<compile_context>
chip_gen: v5e
topology: v5e:2x2
jax: 0.10.0
libtpu: 0.0.40
codegen_flags: <defaults>
</compile_context>

<pallas_src>
import functools

import jax
import jax.numpy as jnp
from jax.experimental import pallas as pl
from jax.experimental.pallas import tpu as pltpu


# ---------------------------------------------------------------------------
# In-kernel helpers (pure functions of loaded values)
# ---------------------------------------------------------------------------
def _gru_step(gi, h_prev, whh, bhh, H):
    """One GRU step with the input projection `gi` already precomputed.

    PyTorch convention, gate order (r, z, n):
      n  = tanh(gi_n + r * (h_prev @ W_hn + b_hn))
      h' = (1 - z) * n + z * h_prev
    gi : [B, 3H] f32, h_prev : [B, H] f32, whh : [H, 3H] bf16, bhh : [1, 3H] f32
    """
    gh = jnp.dot(h_prev.astype(whh.dtype), whh,
                 preferred_element_type=jnp.float32) + bhh
    r = jax.nn.sigmoid(gi[:, 0:H] + gh[:, 0:H])
    z = jax.nn.sigmoid(gi[:, H:2 * H] + gh[:, H:2 * H])
    n = jnp.tanh(gi[:, 2 * H:3 * H] + r * gh[:, 2 * H:3 * H])
    return (1.0 - z) * n + z * h_prev


def _attention_pool_split(hf, hb, attw, attb, ctx, T, B, H):
    """tanh attention pooling over time with fwd/bwd kept as separate planes.

    hf, hb : [T*B, H]   GRU outputs, row order t*B + b
    attw   : [2H, 2H]   rows 0:H act on the fwd half, H:2H on the bwd half
    attb   : [1, 2H],  ctx : [1, 2H]
    Returns pooled (fwd, bwd) halves, each [B, H].
    """
    hf_c = hf.astype(attw.dtype)
    hb_c = hb.astype(attw.dtype)
    u = jnp.tanh(
        jnp.dot(hf_c, attw[0:H, :], preferred_element_type=jnp.float32)
        + jnp.dot(hb_c, attw[H:2 * H, :], preferred_element_type=jnp.float32)
        + attb)                                                    # [T*B, 2H]
    sc = jnp.tanh(jnp.sum(u * ctx, axis=-1, keepdims=True))        # [T*B, 1]
    # Scores are tanh-bounded to [-1, 1]: exp never over/underflows and
    # softmax is shift-invariant, so no max subtraction is needed (exact).
    e = jnp.exp(sc)                                                 # [T*B, 1]
    den = jnp.sum(e.reshape(T, B, 1), axis=0)                       # [B, 1]
    num_f = jnp.sum((e * hf).reshape(T, B, H), axis=0)              # [B, H]
    num_b = jnp.sum((e * hb).reshape(T, B, H), axis=0)              # [B, H]
    inv = pl.reciprocal(den, approx=True)
    return num_f * inv, num_b * inv


# ---------------------------------------------------------------------------
# The fused kernel: one doc-tile (8 documents) per grid step
# ---------------------------------------------------------------------------
def _hier_att_kernel(S, W,
                     x_ref, genre_ref,
                     w_wih, w_bih, w_whh_f, w_bhh_f, w_whh_b, w_bhh_b,
                     w_attw, w_attb, w_ctx,
                     s_wih, s_bih, s_whh_f, s_bhh_f, s_whh_b, s_bhh_b,
                     s_attw, s_attb, s_ctx,
                     lw_ref, lb_ref,
                     out_ref):
    B = out_ref.shape[0]              # docs per tile (padded to 8)
    Hw = w_whh_f.shape[0]
    Hs = s_whh_f.shape[0]
    WB = W * B

    # Load constants once (they are tiny and reused across all sentences).
    wih = w_wih[...]; bih = w_bih[...]
    whh_f = w_whh_f[...]; bhh_f = w_bhh_f[...]
    whh_b = w_whh_b[...]; bhh_b = w_bhh_b[...]
    attw = w_attw[...]; attb = w_attb[...]; ctx = w_ctx[...]
    swih = s_wih[...]; sbih = s_bih[...]
    swhh_f = s_whh_f[...]; sbhh_f = s_bhh_f[...]
    swhh_b = s_whh_b[...]; sbhh_b = s_bhh_b[...]
    sattw = s_attw[...]; sattb = s_attb[...]; sctx = s_ctx[...]
    lw = lw_ref[...]; lb = lb_ref[...]

    # _init_hidden_state(): word hidden state starts at zero for the document
    # and is threaded across the per-sentence loop (matches the PyTorch module).
    h_wf = jnp.zeros((B, Hw), jnp.float32)
    h_wb = jnp.zeros((B, Hw), jnp.float32)
    # Sentence-level forward hidden state, consumed online per sentence.
    h_sf = jnp.zeros((B, Hs), jnp.float32)

    gi_s_per_sent = [None] * S        # hoisted sentence-GRU input projections
    sf_per_sent = [None] * S          # forward sentence-GRU outputs

    for s in range(S):
        x_s = x_ref[0, s * WB:(s + 1) * WB, :]                      # [W*B, E] bf16

        # Hoisted word-GRU input projections: all time steps, both directions.
        gi_all = jnp.dot(x_s, wih,
                         preferred_element_type=jnp.float32) + bih  # [W*B, 6Hw]

        # Interleaved fwd/bwd recurrences; only gh matmuls are serial.
        hf_steps = [None] * W
        hb_steps = [None] * W
        hf, hb = h_wf, h_wb
        for t in range(W):
            tb = W - 1 - t
            hf = _gru_step(gi_all[t * B:(t + 1) * B, 0:3 * Hw],
                           hf, whh_f, bhh_f, Hw)
            hb = _gru_step(gi_all[tb * B:(tb + 1) * B, 3 * Hw:6 * Hw],
                           hb, whh_b, bhh_b, Hw)
            hf_steps[t] = hf
            hb_steps[tb] = hb
        h_wf, h_wb = hf, hb                                          # carry

        hf_all = jnp.concatenate(hf_steps, axis=0)                   # [W*B, Hw]
        hb_all = jnp.concatenate(hb_steps, axis=0)                   # [W*B, Hw]

        # Word-level attention pooling -> sentence vector (fwd/bwd planes).
        pooled_f, pooled_b = _attention_pool_split(
            hf_all, hb_all, attw, attb, ctx, W, B, Hw)               # [B, Hw] x2

        # Hoisted sentence-GRU input projection for this sentence (both dirs);
        # the [fwd | bwd] concat is folded into a row-split of swih.
        gi_s = (jnp.dot(pooled_f.astype(swih.dtype), swih[0:Hw, :],
                        preferred_element_type=jnp.float32)
                + jnp.dot(pooled_b.astype(swih.dtype), swih[Hw:2 * Hw, :],
                          preferred_element_type=jnp.float32)
                + sbih)                                              # [B, 6Hs]
        gi_s_per_sent[s] = gi_s

        # Forward sentence-GRU step consumed online.
        h_sf = _gru_step(gi_s[:, 0:3 * Hs], h_sf, swhh_f, sbhh_f, Hs)
        sf_per_sent[s] = h_sf

    # Backward sentence-GRU pass over the stored projections (epilogue).
    sb_per_sent = [None] * S
    h_sb = jnp.zeros((B, Hs), jnp.float32)
    for s in reversed(range(S)):
        h_sb = _gru_step(gi_s_per_sent[s][:, 3 * Hs:6 * Hs],
                         h_sb, swhh_b, sbhh_b, Hs)
        sb_per_sent[s] = h_sb

    sf_all = jnp.concatenate(sf_per_sent, axis=0)                    # [S*B, Hs]
    sb_all = jnp.concatenate(sb_per_sent, axis=0)                    # [S*B, Hs]

    pooled_sf, pooled_sb = _attention_pool_split(
        sf_all, sb_all, sattw, sattb, sctx, S, B, Hs)                # [B, Hs] x2

    # Final linear: cat([pooled_s, genre], 1) @ label_w + label_b, with the
    # concat folded into a row-split of label_w (no lane concatenates).
    logits = (jnp.dot(pooled_sf.astype(lw.dtype), lw[0:Hs, :],
                      preferred_element_type=jnp.float32)
              + jnp.dot(pooled_sb.astype(lw.dtype), lw[Hs:2 * Hs, :],
                        preferred_element_type=jnp.float32)
              + jnp.dot(genre_ref[...].astype(lw.dtype), lw[2 * Hs:, :],
                        preferred_element_type=jnp.float32)
              + lb)
    out_ref[...] = logits


# ---------------------------------------------------------------------------
# Wrapper
# ---------------------------------------------------------------------------
def _const_index_map(ndim):
    return lambda d: (0,) * ndim


def hier_att_net_forward(doc_ids, genre, params, word_hidden, sent_hidden):
    """Reproduces HierAttNet.forward([input, genre]) with one pallas_call."""
    B0, S, W = doc_ids.shape
    C = params['label_w'].shape[1]
    E = params['embedding'].shape[1]

    # ---- pad documents so each doc-tile fills vreg sublanes (8 docs/tile);
    # the doc-tile axis is the (parallel) grid axis. ----
    BT = 8
    Bp = ((B0 + BT - 1) // BT) * BT
    NT = Bp // BT
    ids = jnp.pad(doc_ids.astype(jnp.int32), ((0, Bp - B0), (0, 0), (0, 0)))
    gen = jnp.pad(genre.astype(jnp.float32), ((0, Bp - B0), (0, 0)))

    # ---- embedding gather in XLA (replaces the in-kernel one-hot matmul);
    # row layout per tile: row = s*(W*BT) + t*BT + doc  (sentence/word major). ----
    x = jnp.take(params['embedding'], ids, axis=0)            # [Bp, S, W, E] bf16
    x = (x.reshape(NT, BT, S, W, E)
          .transpose(0, 2, 3, 1, 4)
          .reshape(NT, S * W * BT, E))

    wp, sp = params['word'], params['sent']
    inputs = [
        x, gen,
        wp['wih'], wp['bih'], wp['whh_f'], wp['bhh_f'], wp['whh_b'], wp['bhh_b'],
        wp['att_w'], wp['att_b'], wp['ctx_w'],
        sp['wih'], sp['bih'], sp['whh_f'], sp['bhh_f'], sp['whh_b'], sp['bhh_b'],
        sp['att_w'], sp['att_b'], sp['ctx_w'],
        params['label_w'], params['label_b'],
    ]

    in_specs = [
        pl.BlockSpec((1, S * W * BT, E), lambda d: (d, 0, 0)),   # embedded tokens
        pl.BlockSpec((BT, gen.shape[1]), lambda d: (d, 0)),      # genre features
    ]
    # Constant weight/bias operands: full block, constant index map.
    in_specs += [pl.BlockSpec(a.shape, _const_index_map(a.ndim))
                 for a in inputs[2:]]

    out = pl.pallas_call(
        functools.partial(_hier_att_kernel, S, W),
        out_shape=jax.ShapeDtypeStruct((Bp, C), jnp.float32),
        grid=(NT,),
        in_specs=in_specs,
        out_specs=pl.BlockSpec((BT, C), lambda d: (d, 0)),
        compiler_params=pltpu.CompilerParams(
            dimension_semantics=("parallel",),       # doc-tiles across TCs (v7x)
            vmem_limit_bytes=32 * 1024 * 1024),      # above v5e's 16 MiB default
    )(*inputs)
    return out[:B0]


# ---------------------------------------------------------------------------
# Parameter init (matmul weights pre-transposed to x @ W layout, stored bf16;
# biases / context vectors stay f32)
# ---------------------------------------------------------------------------
def init_params(key, word_hidden, sent_hidden, vocab_size, embed_size,
                num_classes):
    keys = iter(jax.random.split(key, 40))

    def nrm(shape, scale=0.1, dtype=jnp.float32):
        return (scale * jax.random.normal(next(keys), shape)).astype(dtype)

    def gru(in_size, hidden):
        return dict(
            # fwd | bwd input projections fused along lanes -> one hoisted matmul
            wih=nrm((in_size, 6 * hidden), dtype=jnp.bfloat16),
            bih=nrm((1, 6 * hidden)),
            whh_f=nrm((hidden, 3 * hidden), dtype=jnp.bfloat16),
            bhh_f=nrm((1, 3 * hidden)),
            whh_b=nrm((hidden, 3 * hidden), dtype=jnp.bfloat16),
            bhh_b=nrm((1, 3 * hidden)),
        )

    word = gru(embed_size, word_hidden)
    word.update(att_w=nrm((2 * word_hidden, 2 * word_hidden), dtype=jnp.bfloat16),
                att_b=nrm((1, 2 * word_hidden)),
                ctx_w=nrm((1, 2 * word_hidden)))

    sent = gru(2 * word_hidden, sent_hidden)
    sent.update(att_w=nrm((2 * sent_hidden, 2 * sent_hidden), dtype=jnp.bfloat16),
                att_b=nrm((1, 2 * sent_hidden)),
                ctx_w=nrm((1, 2 * sent_hidden)))

    return dict(
        embedding=nrm((vocab_size, embed_size), 1.0, jnp.bfloat16),  # word2vec
        word=word,
        sent=sent,
        label_w=nrm((2 * sent_hidden + 31, num_classes), dtype=jnp.bfloat16),
        label_b=nrm((1, num_classes)),
    )


# ---------------------------------------------------------------------------
if __name__ == "__main__":
    word_hidden_size = 16
    sent_hidden_size = 16
    vocab_size = 64
    embed_size = 32
    num_classes = 5
    batch = 2
    max_sent_length = 4     # sentences per document
    max_word_length = 6     # words per sentence

    key = jax.random.PRNGKey(0)
    k_param, k_doc, k_genre = jax.random.split(key, 3)

    params = init_params(k_param, word_hidden_size, sent_hidden_size,
                         vocab_size, embed_size, num_classes)

    doc_ids = jax.random.randint(k_doc, (batch, max_sent_length, max_word_length),
                                 0, vocab_size, dtype=jnp.int32)
    genre = jax.random.normal(k_genre, (batch, 31), dtype=jnp.float32)

    out = hier_att_net_forward(doc_ids, genre, params,
                               word_hidden_size, sent_hidden_size)
    out = jax.block_until_ready(out)
    assert out.shape == (batch, num_classes)
    assert bool(jnp.all(jnp.isfinite(out)))
    print("KERNEL_OK")
</pallas_src>

<mosaic_0001>
module attributes {stable_mosaic.version = 11 : i64} {
  func.func @_hier_att_kernel(%arg0: i32, %arg1: memref<1x192x32xbf16, #tpu.memory_space<vmem>>, %arg2: memref<8x31xf32, #tpu.memory_space<vmem>>, %arg3: memref<32x96xbf16, #tpu.memory_space<vmem>>, %arg4: memref<1x96xf32, #tpu.memory_space<vmem>>, %arg5: memref<16x48xbf16, #tpu.memory_space<vmem>>, %arg6: memref<1x48xf32, #tpu.memory_space<vmem>>, %arg7: memref<16x48xbf16, #tpu.memory_space<vmem>>, %arg8: memref<1x48xf32, #tpu.memory_space<vmem>>, %arg9: memref<32x32xbf16, #tpu.memory_space<vmem>>, %arg10: memref<1x32xf32, #tpu.memory_space<vmem>>, %arg11: memref<1x32xf32, #tpu.memory_space<vmem>>, %arg12: memref<32x96xbf16, #tpu.memory_space<vmem>>, %arg13: memref<1x96xf32, #tpu.memory_space<vmem>>, %arg14: memref<16x48xbf16, #tpu.memory_space<vmem>>, %arg15: memref<1x48xf32, #tpu.memory_space<vmem>>, %arg16: memref<16x48xbf16, #tpu.memory_space<vmem>>, %arg17: memref<1x48xf32, #tpu.memory_space<vmem>>, %arg18: memref<32x32xbf16, #tpu.memory_space<vmem>>, %arg19: memref<1x32xf32, #tpu.memory_space<vmem>>, %arg20: memref<1x32xf32, #tpu.memory_space<vmem>>, %arg21: memref<63x5xbf16, #tpu.memory_space<vmem>>, %arg22: memref<1x5xf32, #tpu.memory_space<vmem>>, %arg23: memref<8x5xf32, #tpu.memory_space<vmem>>) attributes {dimension_semantics = [#tpu.dimension_semantics<parallel>], iteration_bounds = array<i64: 1>, scalar_prefetch = 0 : i64, scratch_operands = 0 : i64, tpu.core_type = #tpu.core_type<tc>, window_params = [{transform_indices = @transform_0, window_bounds = array<i64: 1, 192, 32>}, {transform_indices = @transform_1, window_bounds = array<i64: 8, 31>}, {pipeline_mode = #tpu.pipeline_mode<synchronous>, transform_indices = @transform_2, window_bounds = array<i64: 32, 96>}, {pipeline_mode = #tpu.pipeline_mode<synchronous>, transform_indices = @transform_3, window_bounds = array<i64: 1, 96>}, {pipeline_mode = #tpu.pipeline_mode<synchronous>, transform_indices = @transform_4, window_bounds = array<i64: 16, 48>}, {pipeline_mode = #tpu.pipeline_mode<synchronous>, transform_indices = @transform_5, window_bounds = array<i64: 1, 48>}, {pipeline_mode = #tpu.pipeline_mode<synchronous>, transform_indices = @transform_6, window_bounds = array<i64: 16, 48>}, {pipeline_mode = #tpu.pipeline_mode<synchronous>, transform_indices = @transform_7, window_bounds = array<i64: 1, 48>}, {pipeline_mode = #tpu.pipeline_mode<synchronous>, transform_indices = @transform_8, window_bounds = array<i64: 32, 32>}, {pipeline_mode = #tpu.pipeline_mode<synchronous>, transform_indices = @transform_9, window_bounds = array<i64: 1, 32>}, {pipeline_mode = #tpu.pipeline_mode<synchronous>, transform_indices = @transform_10, window_bounds = array<i64: 1, 32>}, {pipeline_mode = #tpu.pipeline_mode<synchronous>, transform_indices = @transform_11, window_bounds = array<i64: 32, 96>}, {pipeline_mode = #tpu.pipeline_mode<synchronous>, transform_indices = @transform_12, window_bounds = array<i64: 1, 96>}, {pipeline_mode = #tpu.pipeline_mode<synchronous>, transform_indices = @transform_13, window_bounds = array<i64: 16, 48>}, {pipeline_mode = #tpu.pipeline_mode<synchronous>, transform_indices = @transform_14, window_bounds = array<i64: 1, 48>}, {pipeline_mode = #tpu.pipeline_mode<synchronous>, transform_indices = @transform_15, window_bounds = array<i64: 16, 48>}, {pipeline_mode = #tpu.pipeline_mode<synchronous>, transform_indices = @transform_16, window_bounds = array<i64: 1, 48>}, {pipeline_mode = #tpu.pipeline_mode<synchronous>, transform_indices = @transform_17, window_bounds = array<i64: 32, 32>}, {pipeline_mode = #tpu.pipeline_mode<synchronous>, transform_indices = @transform_18, window_bounds = array<i64: 1, 32>}, {pipeline_mode = #tpu.pipeline_mode<synchronous>, transform_indices = @transform_19, window_bounds = array<i64: 1, 32>}, {pipeline_mode = #tpu.pipeline_mode<synchronous>, transform_indices = @transform_20, window_bounds = array<i64: 63, 5>}, {pipeline_mode = #tpu.pipeline_mode<synchronous>, transform_indices = @transform_21, window_bounds = array<i64: 1, 5>}, {transform_indices = @transform_22, window_bounds = array<i64: 8, 5>}]} {
    %c0 = arith.constant 0 : index
    %c0_0 = arith.constant 0 : index
    %0 = vector.load %arg3[%c0, %c0_0] : memref<32x96xbf16, #tpu.memory_space<vmem>>, vector<32x96xbf16>
    %c0_1 = arith.constant 0 : index
    %c0_2 = arith.constant 0 : index
    %1 = vector.load %arg4[%c0_1, %c0_2] : memref<1x96xf32, #tpu.memory_space<vmem>>, vector<1x96xf32>
    %c0_3 = arith.constant 0 : index
    %c0_4 = arith.constant 0 : index
    %2 = vector.load %arg5[%c0_3, %c0_4] : memref<16x48xbf16, #tpu.memory_space<vmem>>, vector<16x48xbf16>
    %c0_5 = arith.constant 0 : index
    %c0_6 = arith.constant 0 : index
    %3 = vector.load %arg6[%c0_5, %c0_6] : memref<1x48xf32, #tpu.memory_space<vmem>>, vector<1x48xf32>
    %c0_7 = arith.constant 0 : index
    %c0_8 = arith.constant 0 : index
    %4 = vector.load %arg7[%c0_7, %c0_8] : memref<16x48xbf16, #tpu.memory_space<vmem>>, vector<16x48xbf16>
    %c0_9 = arith.constant 0 : index
    %c0_10 = arith.constant 0 : index
    %5 = vector.load %arg8[%c0_9, %c0_10] : memref<1x48xf32, #tpu.memory_space<vmem>>, vector<1x48xf32>
    %c0_11 = arith.constant 0 : index
    %c0_12 = arith.constant 0 : index
    %6 = vector.load %arg9[%c0_11, %c0_12] : memref<32x32xbf16, #tpu.memory_space<vmem>>, vector<32x32xbf16>
    %c0_13 = arith.constant 0 : index
    %c0_14 = arith.constant 0 : index
    %7 = vector.load %arg10[%c0_13, %c0_14] : memref<1x32xf32, #tpu.memory_space<vmem>>, vector<1x32xf32>
    %c0_15 = arith.constant 0 : index
    %c0_16 = arith.constant 0 : index
    %8 = vector.load %arg11[%c0_15, %c0_16] : memref<1x32xf32, #tpu.memory_space<vmem>>, vector<1x32xf32>
    %c0_17 = arith.constant 0 : index
    %c0_18 = arith.constant 0 : index
    %9 = vector.load %arg12[%c0_17, %c0_18] : memref<32x96xbf16, #tpu.memory_space<vmem>>, vector<32x96xbf16>
    %c0_19 = arith.constant 0 : index
    %c0_20 = arith.constant 0 : index
    %10 = vector.load %arg13[%c0_19, %c0_20] : memref<1x96xf32, #tpu.memory_space<vmem>>, vector<1x96xf32>
    %c0_21 = arith.constant 0 : index
    %c0_22 = arith.constant 0 : index
    %11 = vector.load %arg14[%c0_21, %c0_22] : memref<16x48xbf16, #tpu.memory_space<vmem>>, vector<16x48xbf16>
    %c0_23 = arith.constant 0 : index
    %c0_24 = arith.constant 0 : index
    %12 = vector.load %arg15[%c0_23, %c0_24] : memref<1x48xf32, #tpu.memory_space<vmem>>, vector<1x48xf32>
    %c0_25 = arith.constant 0 : index
    %c0_26 = arith.constant 0 : index
    %13 = vector.load %arg16[%c0_25, %c0_26] : memref<16x48xbf16, #tpu.memory_space<vmem>>, vector<16x48xbf16>
    %c0_27 = arith.constant 0 : index
    %c0_28 = arith.constant 0 : index
    %14 = vector.load %arg17[%c0_27, %c0_28] : memref<1x48xf32, #tpu.memory_space<vmem>>, vector<1x48xf32>
    %c0_29 = arith.constant 0 : index
    %c0_30 = arith.constant 0 : index
    %15 = vector.load %arg18[%c0_29, %c0_30] : memref<32x32xbf16, #tpu.memory_space<vmem>>, vector<32x32xbf16>
    %c0_31 = arith.constant 0 : index
    %c0_32 = arith.constant 0 : index
    %16 = vector.load %arg19[%c0_31, %c0_32] : memref<1x32xf32, #tpu.memory_space<vmem>>, vector<1x32xf32>
    %c0_33 = arith.constant 0 : index
    %c0_34 = arith.constant 0 : index
    %17 = vector.load %arg20[%c0_33, %c0_34] : memref<1x32xf32, #tpu.memory_space<vmem>>, vector<1x32xf32>
    %c0_35 = arith.constant 0 : index
    %c0_36 = arith.constant 0 : index
    %18 = vector.load %arg21[%c0_35, %c0_36] : memref<63x5xbf16, #tpu.memory_space<vmem>>, vector<63x5xbf16>
    %c0_37 = arith.constant 0 : index
    %c0_38 = arith.constant 0 : index
    %19 = vector.load %arg22[%c0_37, %c0_38] : memref<1x5xf32, #tpu.memory_space<vmem>>, vector<1x5xf32>
    %cst = arith.constant 0.000000e+00 : f32
    %20 = vector.broadcast %cst : f32 to vector<8x16xf32>
    %cst_39 = arith.constant 0.000000e+00 : f32
    %21 = vector.broadcast %cst_39 : f32 to vector<8x16xf32>
    %cst_40 = arith.constant 0.000000e+00 : f32
    %22 = vector.broadcast %cst_40 : f32 to vector<8x16xf32>
    %c0_41 = arith.constant 0 : index
    %c0_42 = arith.constant 0 : index
    %c0_43 = arith.constant 0 : index
    %23 = vector.load %arg1[%c0_41, %c0_42, %c0_43] : memref<1x192x32xbf16, #tpu.memory_space<vmem>>, vector<1x48x32xbf16>
    %24 = vector.shape_cast %23 : vector<1x48x32xbf16> to vector<48x32xbf16>
    %cst_44 = arith.constant dense<0.000000e+00> : vector<48x96xf32>
    %25 = tpu.matmul %24, %0, %cst_44 {dimension_numbers = #tpu.dot_dimension_numbers<[1], [0], [0], [1], [0, 0, 1, 1], [], []>} : vector<48x32xbf16>, vector<32x96xbf16>, vector<48x96xf32> -> vector<48x96xf32>
    %26 = vector.broadcast %1 : vector<1x96xf32> to vector<48x96xf32>
    %27 = arith.addf %25, %26 : vector<48x96xf32>
    %28 = vector.extract_strided_slice %27 {offsets = [0, 0], sizes = [8, 48], strides = [1, 1]} : vector<48x96xf32> to vector<8x48xf32>
    %29 = arith.truncf %20 : vector<8x16xf32> to vector<8x16xbf16>
    %cst_45 = arith.constant dense<0.000000e+00> : vector<8x48xf32>
    %30 = tpu.matmul %29, %2, %cst_45 {dimension_numbers = #tpu.dot_dimension_numbers<[1], [0], [0], [1], [0, 0, 1, 1], [], []>} : vector<8x16xbf16>, vector<16x48xbf16>, vector<8x48xf32> -> vector<8x48xf32>
    %31 = vector.broadcast %3 : vector<1x48xf32> to vector<8x48xf32>
    %32 = arith.addf %30, %31 : vector<8x48xf32>
    %33 = vector.extract_strided_slice %28 {offsets = [0, 0], sizes = [8, 16], strides = [1, 1]} : vector<8x48xf32> to vector<8x16xf32>
    %34 = vector.extract_strided_slice %32 {offsets = [0, 0], sizes = [8, 16], strides = [1, 1]} : vector<8x48xf32> to vector<8x16xf32>
    %35 = arith.addf %33, %34 : vector<8x16xf32>
    %36 = arith.negf %35 : vector<8x16xf32>
    %37 = math.exp %36 : vector<8x16xf32>
    %cst_46 = arith.constant 1.000000e+00 : f32
    %38 = vector.broadcast %cst_46 : f32 to vector<8x16xf32>
    %39 = arith.addf %38, %37 : vector<8x16xf32>
    %40 = arith.divf %38, %39 : vector<8x16xf32>
    %41 = vector.extract_strided_slice %28 {offsets = [0, 16], sizes = [8, 16], strides = [1, 1]} : vector<8x48xf32> to vector<8x16xf32>
    %42 = vector.extract_strided_slice %32 {offsets = [0, 16], sizes = [8, 16], strides = [1, 1]} : vector<8x48xf32> to vector<8x16xf32>
    %43 = arith.addf %41, %42 : vector<8x16xf32>
    %44 = arith.negf %43 : vector<8x16xf32>
    %45 = math.exp %44 : vector<8x16xf32>
    %cst_47 = arith.constant 1.000000e+00 : f32
    %46 = vector.broadcast %cst_47 : f32 to vector<8x16xf32>
    %47 = arith.addf %46, %45 : vector<8x16xf32>
    %48 = arith.divf %46, %47 : vector<8x16xf32>
    %49 = vector.extract_strided_slice %28 {offsets = [0, 32], sizes = [8, 16], strides = [1, 1]} : vector<8x48xf32> to vector<8x16xf32>
    %50 = vector.extract_strided_slice %32 {offsets = [0, 32], sizes = [8, 16], strides = [1, 1]} : vector<8x48xf32> to vector<8x16xf32>
    %51 = arith.mulf %40, %50 : vector<8x16xf32>
    %52 = arith.addf %49, %51 : vector<8x16xf32>
    %53 = math.tanh %52 : vector<8x16xf32>
    %cst_48 = arith.constant 1.000000e+00 : f32
    %54 = vector.broadcast %cst_48 : f32 to vector<8x16xf32>
    %55 = arith.subf %54, %48 : vector<8x16xf32>
    %56 = arith.mulf %55, %53 : vector<8x16xf32>
    %57 = arith.mulf %48, %20 : vector<8x16xf32>
    %58 = arith.addf %56, %57 : vector<8x16xf32>
    %59 = vector.extract_strided_slice %27 {offsets = [40, 48], sizes = [8, 48], strides = [1, 1]} : vector<48x96xf32> to vector<8x48xf32>
    %60 = arith.truncf %21 : vector<8x16xf32> to vector<8x16xbf16>
    %cst_49 = arith.constant dense<0.000000e+00> : vector<8x48xf32>
    %61 = tpu.matmul %60, %4, %cst_49 {dimension_numbers = #tpu.dot_dimension_numbers<[1], [0], [0], [1], [0, 0, 1, 1], [], []>} : vector<8x16xbf16>, vector<16x48xbf16>, vector<8x48xf32> -> vector<8x48xf32>
    %62 = vector.broadcast %5 : vector<1x48xf32> to vector<8x48xf32>
    %63 = arith.addf %61, %62 : vector<8x48xf32>
    %64 = vector.extract_strided_slice %59 {offsets = [0, 0], sizes = [8, 16], strides = [1, 1]} : vector<8x48xf32> to vector<8x16xf32>
    %65 = vector.extract_strided_slice %63 {offsets = [0, 0], sizes = [8, 16], strides = [1, 1]} : vector<8x48xf32> to vector<8x16xf32>
    %66 = arith.addf %64, %65 : vector<8x16xf32>
    %67 = arith.negf %66 : vector<8x16xf32>
    %68 = math.exp %67 : vector<8x16xf32>
    %cst_50 = arith.constant 1.000000e+00 : f32
    %69 = vector.broadcast %cst_50 : f32 to vector<8x16xf32>
    %70 = arith.addf %69, %68 : vector<8x16xf32>
    %71 = arith.divf %69, %70 : vector<8x16xf32>
    %72 = vector.extract_strided_slice %59 {offsets = [0, 16], sizes = [8, 16], strides = [1, 1]} : vector<8x48xf32> to vector<8x16xf32>
    %73 = vector.extract_strided_slice %63 {offsets = [0, 16], sizes = [8, 16], strides = [1, 1]} : vector<8x48xf32> to vector<8x16xf32>
    %74 = arith.addf %72, %73 : vector<8x16xf32>
    %75 = arith.negf %74 : vector<8x16xf32>
    %76 = math.exp %75 : vector<8x16xf32>
    %cst_51 = arith.constant 1.000000e+00 : f32
    %77 = vector.broadcast %cst_51 : f32 to vector<8x16xf32>
    %78 = arith.addf %77, %76 : vector<8x16xf32>
    %79 = arith.divf %77, %78 : vector<8x16xf32>
    %80 = vector.extract_strided_slice %59 {offsets = [0, 32], sizes = [8, 16], strides = [1, 1]} : vector<8x48xf32> to vector<8x16xf32>
    %81 = vector.extract_strided_slice %63 {offsets = [0, 32], sizes = [8, 16], strides = [1, 1]} : vector<8x48xf32> to vector<8x16xf32>
    %82 = arith.mulf %71, %81 : vector<8x16xf32>
    %83 = arith.addf %80, %82 : vector<8x16xf32>
    %84 = math.tanh %83 : vector<8x16xf32>
    %cst_52 = arith.constant 1.000000e+00 : f32
    %85 = vector.broadcast %cst_52 : f32 to vector<8x16xf32>
    %86 = arith.subf %85, %79 : vector<8x16xf32>
    %87 = arith.mulf %86, %84 : vector<8x16xf32>
    %88 = arith.mulf %79, %21 : vector<8x16xf32>
    %89 = arith.addf %87, %88 : vector<8x16xf32>
    %90 = vector.extract_strided_slice %27 {offsets = [8, 0], sizes = [8, 48], strides = [1, 1]} : vector<48x96xf32> to vector<8x48xf32>
    %91 = arith.truncf %58 : vector<8x16xf32> to vector<8x16xbf16>
    %cst_53 = arith.constant dense<0.000000e+00> : vector<8x48xf32>
    %92 = tpu.matmul %91, %2, %cst_53 {dimension_numbers = #tpu.dot_dimension_numbers<[1], [0], [0], [1], [0, 0, 1, 1], [], []>} : vector<8x16xbf16>, vector<16x48xbf16>, vector<8x48xf32> -> vector<8x48xf32>
    %93 = vector.broadcast %3 : vector<1x48xf32> to vector<8x48xf32>
    %94 = arith.addf %92, %93 : vector<8x48xf32>
    %95 = vector.extract_strided_slice %90 {offsets = [0, 0], sizes = [8, 16], strides = [1, 1]} : vector<8x48xf32> to vector<8x16xf32>
    %96 = vector.extract_strided_slice %94 {offsets = [0, 0], sizes = [8, 16], strides = [1, 1]} : vector<8x48xf32> to vector<8x16xf32>
    %97 = arith.addf %95, %96 : vector<8x16xf32>
    %98 = arith.negf %97 : vector<8x16xf32>
    %99 = math.exp %98 : vector<8x16xf32>
    %cst_54 = arith.constant 1.000000e+00 : f32
    %100 = vector.broadcast %cst_54 : f32 to vector<8x16xf32>
    %101 = arith.addf %100, %99 : vector<8x16xf32>
    %102 = arith.divf %100, %101 : vector<8x16xf32>
    %103 = vector.extract_strided_slice %90 {offsets = [0, 16], sizes = [8, 16], strides = [1, 1]} : vector<8x48xf32> to vector<8x16xf32>
    %104 = vector.extract_strided_slice %94 {offsets = [0, 16], sizes = [8, 16], strides = [1, 1]} : vector<8x48xf32> to vector<8x16xf32>
    %105 = arith.addf %103, %104 : vector<8x16xf32>
    %106 = arith.negf %105 : vector<8x16xf32>
    %107 = math.exp %106 : vector<8x16xf32>
    %cst_55 = arith.constant 1.000000e+00 : f32
    %108 = vector.broadcast %cst_55 : f32 to vector<8x16xf32>
    %109 = arith.addf %108, %107 : vector<8x16xf32>
    %110 = arith.divf %108, %109 : vector<8x16xf32>
    %111 = vector.extract_strided_slice %90 {offsets = [0, 32], sizes = [8, 16], strides = [1, 1]} : vector<8x48xf32> to vector<8x16xf32>
    %112 = vector.extract_strided_slice %94 {offsets = [0, 32], sizes = [8, 16], strides = [1, 1]} : vector<8x48xf32> to vector<8x16xf32>
    %113 = arith.mulf %102, %112 : vector<8x16xf32>
    %114 = arith.addf %111, %113 : vector<8x16xf32>
    %115 = math.tanh %114 : vector<8x16xf32>
    %cst_56 = arith.constant 1.000000e+00 : f32
    %116 = vector.broadcast %cst_56 : f32 to vector<8x16xf32>
    %117 = arith.subf %116, %110 : vector<8x16xf32>
    %118 = arith.mulf %117, %115 : vector<8x16xf32>
    %119 = arith.mulf %110, %58 : vector<8x16xf32>
    %120 = arith.addf %118, %119 : vector<8x16xf32>
    %121 = vector.extract_strided_slice %27 {offsets = [32, 48], sizes = [8, 48], strides = [1, 1]} : vector<48x96xf32> to vector<8x48xf32>
    %122 = arith.truncf %89 : vector<8x16xf32> to vector<8x16xbf16>
    %cst_57 = arith.constant dense<0.000000e+00> : vector<8x48xf32>
    %123 = tpu.matmul %122, %4, %cst_57 {dimension_numbers = #tpu.dot_dimension_numbers<[1], [0], [0], [1], [0, 0, 1, 1], [], []>} : vector<8x16xbf16>, vector<16x48xbf16>, vector<8x48xf32> -> vector<8x48xf32>
    %124 = vector.broadcast %5 : vector<1x48xf32> to vector<8x48xf32>
    %125 = arith.addf %123, %124 : vector<8x48xf32>
    %126 = vector.extract_strided_slice %121 {offsets = [0, 0], sizes = [8, 16], strides = [1, 1]} : vector<8x48xf32> to vector<8x16xf32>
    %127 = vector.extract_strided_slice %125 {offsets = [0, 0], sizes = [8, 16], strides = [1, 1]} : vector<8x48xf32> to vector<8x16xf32>
    %128 = arith.addf %126, %127 : vector<8x16xf32>
    %129 = arith.negf %128 : vector<8x16xf32>
    %130 = math.exp %129 : vector<8x16xf32>
    %cst_58 = arith.constant 1.000000e+00 : f32
    %131 = vector.broadcast %cst_58 : f32 to vector<8x16xf32>
    %132 = arith.addf %131, %130 : vector<8x16xf32>
    %133 = arith.divf %131, %132 : vector<8x16xf32>
    %134 = vector.extract_strided_slice %121 {offsets = [0, 16], sizes = [8, 16], strides = [1, 1]} : vector<8x48xf32> to vector<8x16xf32>
    %135 = vector.extract_strided_slice %125 {offsets = [0, 16], sizes = [8, 16], strides = [1, 1]} : vector<8x48xf32> to vector<8x16xf32>
    %136 = arith.addf %134, %135 : vector<8x16xf32>
    %137 = arith.negf %136 : vector<8x16xf32>
    %138 = math.exp %137 : vector<8x16xf32>
    %cst_59 = arith.constant 1.000000e+00 : f32
    %139 = vector.broadcast %cst_59 : f32 to vector<8x16xf32>
    %140 = arith.addf %139, %138 : vector<8x16xf32>
    %141 = arith.divf %139, %140 : vector<8x16xf32>
    %142 = vector.extract_strided_slice %121 {offsets = [0, 32], sizes = [8, 16], strides = [1, 1]} : vector<8x48xf32> to vector<8x16xf32>
    %143 = vector.extract_strided_slice %125 {offsets = [0, 32], sizes = [8, 16], strides = [1, 1]} : vector<8x48xf32> to vector<8x16xf32>
    %144 = arith.mulf %133, %143 : vector<8x16xf32>
    %145 = arith.addf %142, %144 : vector<8x16xf32>
    %146 = math.tanh %145 : vector<8x16xf32>
    %cst_60 = arith.constant 1.000000e+00 : f32
    %147 = vector.broadcast %cst_60 : f32 to vector<8x16xf32>
    %148 = arith.subf %147, %141 : vector<8x16xf32>
    %149 = arith.mulf %148, %146 : vector<8x16xf32>
    %150 = arith.mulf %141, %89 : vector<8x16xf32>
    %151 = arith.addf %149, %150 : vector<8x16xf32>
    %152 = vector.extract_strided_slice %27 {offsets = [16, 0], sizes = [8, 48], strides = [1, 1]} : vector<48x96xf32> to vector<8x48xf32>
    %153 = arith.truncf %120 : vector<8x16xf32> to vector<8x16xbf16>
    %cst_61 = arith.constant dense<0.000000e+00> : vector<8x48xf32>
    %154 = tpu.matmul %153, %2, %cst_61 {dimension_numbers = #tpu.dot_dimension_numbers<[1], [0], [0], [1], [0, 0, 1, 1], [], []>} : vector<8x16xbf16>, vector<16x48xbf16>, vector<8x48xf32> -> vector<8x48xf32>
    %155 = vector.broadcast %3 : vector<1x48xf32> to vector<8x48xf32>
    %156 = arith.addf %154, %155 : vector<8x48xf32>
    %157 = vector.extract_strided_slice %152 {offsets = [0, 0], sizes = [8, 16], strides = [1, 1]} : vector<8x48xf32> to vector<8x16xf32>
    %158 = vector.extract_strided_slice %156 {offsets = [0, 0], sizes = [8, 16], strides = [1, 1]} : vector<8x48xf32> to vector<8x16xf32>
    %159 = arith.addf %157, %158 : vector<8x16xf32>
    %160 = arith.negf %159 : vector<8x16xf32>
    %161 = math.exp %160 : vector<8x16xf32>
    %cst_62 = arith.constant 1.000000e+00 : f32
    %162 = vector.broadcast %cst_62 : f32 to vector<8x16xf32>
    %163 = arith.addf %162, %161 : vector<8x16xf32>
    %164 = arith.divf %162, %163 : vector<8x16xf32>
    %165 = vector.extract_strided_slice %152 {offsets = [0, 16], sizes = [8, 16], strides = [1, 1]} : vector<8x48xf32> to vector<8x16xf32>
    %166 = vector.extract_strided_slice %156 {offsets = [0, 16], sizes = [8, 16], strides = [1, 1]} : vector<8x48xf32> to vector<8x16xf32>
    %167 = arith.addf %165, %166 : vector<8x16xf32>
    %168 = arith.negf %167 : vector<8x16xf32>
    %169 = math.exp %168 : vector<8x16xf32>
    %cst_63 = arith.constant 1.000000e+00 : f32
    %170 = vector.broadcast %cst_63 : f32 to vector<8x16xf32>
    %171 = arith.addf %170, %169 : vector<8x16xf32>
    %172 = arith.divf %170, %171 : vector<8x16xf32>
    %173 = vector.extract_strided_slice %152 {offsets = [0, 32], sizes = [8, 16], strides = [1, 1]} : vector<8x48xf32> to vector<8x16xf32>
    %174 = vector.extract_strided_slice %156 {offsets = [0, 32], sizes = [8, 16], strides = [1, 1]} : vector<8x48xf32> to vector<8x16xf32>
    %175 = arith.mulf %164, %174 : vector<8x16xf32>
    %176 = arith.addf %173, %175 : vector<8x16xf32>
    %177 = math.tanh %176 : vector<8x16xf32>
    %cst_64 = arith.constant 1.000000e+00 : f32
    %178 = vector.broadcast %cst_64 : f32 to vector<8x16xf32>
    %179 = arith.subf %178, %172 : vector<8x16xf32>
    %180 = arith.mulf %179, %177 : vector<8x16xf32>
    %181 = arith.mulf %172, %120 : vector<8x16xf32>
    %182 = arith.addf %180, %181 : vector<8x16xf32>
    %183 = vector.extract_strided_slice %27 {offsets = [24, 48], sizes = [8, 48], strides = [1, 1]} : vector<48x96xf32> to vector<8x48xf32>
    %184 = arith.truncf %151 : vector<8x16xf32> to vector<8x16xbf16>
    %cst_65 = arith.constant dense<0.000000e+00> : vector<8x48xf32>
    %185 = tpu.matmul %184, %4, %cst_65 {dimension_numbers = #tpu.dot_dimension_numbers<[1], [0], [0], [1], [0, 0, 1, 1], [], []>} : vector<8x16xbf16>, vector<16x48xbf16>, vector<8x48xf32> -> vector<8x48xf32>
    %186 = vector.broadcast %5 : vector<1x48xf32> to vector<8x48xf32>
    %187 = arith.addf %185, %186 : vector<8x48xf32>
    %188 = vector.extract_strided_slice %183 {offsets = [0, 0], sizes = [8, 16], strides = [1, 1]} : vector<8x48xf32> to vector<8x16xf32>
    %189 = vector.extract_strided_slice %187 {offsets = [0, 0], sizes = [8, 16], strides = [1, 1]} : vector<8x48xf32> to vector<8x16xf32>
    %190 = arith.addf %188, %189 : vector<8x16xf32>
    %191 = arith.negf %190 : vector<8x16xf32>
    %192 = math.exp %191 : vector<8x16xf32>
    %cst_66 = arith.constant 1.000000e+00 : f32
    %193 = vector.broadcast %cst_66 : f32 to vector<8x16xf32>
    %194 = arith.addf %193, %192 : vector<8x16xf32>
    %195 = arith.divf %193, %194 : vector<8x16xf32>
    %196 = vector.extract_strided_slice %183 {offsets = [0, 16], sizes = [8, 16], strides = [1, 1]} : vector<8x48xf32> to vector<8x16xf32>
    %197 = vector.extract_strided_slice %187 {offsets = [0, 16], sizes = [8, 16], strides = [1, 1]} : vector<8x48xf32> to vector<8x16xf32>
    %198 = arith.addf %196, %197 : vector<8x16xf32>
    %199 = arith.negf %198 : vector<8x16xf32>
    %200 = math.exp %199 : vector<8x16xf32>
    %cst_67 = arith.constant 1.000000e+00 : f32
    %201 = vector.broadcast %cst_67 : f32 to vector<8x16xf32>
    %202 = arith.addf %201, %200 : vector<8x16xf32>
    %203 = arith.divf %201, %202 : vector<8x16xf32>
    %204 = vector.extract_strided_slice %183 {offsets = [0, 32], sizes = [8, 16], strides = [1, 1]} : vector<8x48xf32> to vector<8x16xf32>
    %205 = vector.extract_strided_slice %187 {offsets = [0, 32], sizes = [8, 16], strides = [1, 1]} : vector<8x48xf32> to vector<8x16xf32>
    %206 = arith.mulf %195, %205 : vector<8x16xf32>
    %207 = arith.addf %204, %206 : vector<8x16xf32>
    %208 = math.tanh %207 : vector<8x16xf32>
    %cst_68 = arith.constant 1.000000e+00 : f32
    %209 = vector.broadcast %cst_68 : f32 to vector<8x16xf32>
    %210 = arith.subf %209, %203 : vector<8x16xf32>
    %211 = arith.mulf %210, %208 : vector<8x16xf32>
    %212 = arith.mulf %203, %151 : vector<8x16xf32>
    %213 = arith.addf %211, %212 : vector<8x16xf32>
    %214 = vector.extract_strided_slice %27 {offsets = [24, 0], sizes = [8, 48], strides = [1, 1]} : vector<48x96xf32> to vector<8x48xf32>
    %215 = arith.truncf %182 : vector<8x16xf32> to vector<8x16xbf16>
    %cst_69 = arith.constant dense<0.000000e+00> : vector<8x48xf32>
    %216 = tpu.matmul %215, %2, %cst_69 {dimension_numbers = #tpu.dot_dimension_numbers<[1], [0], [0], [1], [0, 0, 1, 1], [], []>} : vector<8x16xbf16>, vector<16x48xbf16>, vector<8x48xf32> -> vector<8x48xf32>
    %217 = vector.broadcast %3 : vector<1x48xf32> to vector<8x48xf32>
    %218 = arith.addf %216, %217 : vector<8x48xf32>
    %219 = vector.extract_strided_slice %214 {offsets = [0, 0], sizes = [8, 16], strides = [1, 1]} : vector<8x48xf32> to vector<8x16xf32>
    %220 = vector.extract_strided_slice %218 {offsets = [0, 0], sizes = [8, 16], strides = [1, 1]} : vector<8x48xf32> to vector<8x16xf32>
    %221 = arith.addf %219, %220 : vector<8x16xf32>
    %222 = arith.negf %221 : vector<8x16xf32>
    %223 = math.exp %222 : vector<8x16xf32>
    %cst_70 = arith.constant 1.000000e+00 : f32
    %224 = vector.broadcast %cst_70 : f32 to vector<8x16xf32>
    %225 = arith.addf %224, %223 : vector<8x16xf32>
    %226 = arith.divf %224, %225 : vector<8x16xf32>
    %227 = vector.extract_strided_slice %214 {offsets = [0, 16], sizes = [8, 16], strides = [1, 1]} : vector<8x48xf32> to vector<8x16xf32>
    %228 = vector.extract_strided_slice %218 {offsets = [0, 16], sizes = [8, 16], strides = [1, 1]} : vector<8x48xf32> to vector<8x16xf32>
    %229 = arith.addf %227, %228 : vector<8x16xf32>
    %230 = arith.negf %229 : vector<8x16xf32>
    %231 = math.exp %230 : vector<8x16xf32>
    %cst_71 = arith.constant 1.000000e+00 : f32
    %232 = vector.broadcast %cst_71 : f32 to vector<8x16xf32>
    %233 = arith.addf %232, %231 : vector<8x16xf32>
    %234 = arith.divf %232, %233 : vector<8x16xf32>
    %235 = vector.extract_strided_slice %214 {offsets = [0, 32], sizes = [8, 16], strides = [1, 1]} : vector<8x48xf32> to vector<8x16xf32>
    %236 = vector.extract_strided_slice %218 {offsets = [0, 32], sizes = [8, 16], strides = [1, 1]} : vector<8x48xf32> to vector<8x16xf32>
    %237 = arith.mulf %226, %236 : vector<8x16xf32>
    %238 = arith.addf %235, %237 : vector<8x16xf32>
    %239 = math.tanh %238 : vector<8x16xf32>
    %cst_72 = arith.constant 1.000000e+00 : f32
    %240 = vector.broadcast %cst_72 : f32 to vector<8x16xf32>
    %241 = arith.subf %240, %234 : vector<8x16xf32>
    %242 = arith.mulf %241, %239 : vector<8x16xf32>
    %243 = arith.mulf %234, %182 : vector<8x16xf32>
    %244 = arith.addf %242, %243 : vector<8x16xf32>
    %245 = vector.extract_strided_slice %27 {offsets = [16, 48], sizes = [8, 48], strides = [1, 1]} : vector<48x96xf32> to vector<8x48xf32>
    %246 = arith.truncf %213 : vector<8x16xf32> to vector<8x16xbf16>
    %cst_73 = arith.constant dense<0.000000e+00> : vector<8x48xf32>
    %247 = tpu.matmul %246, %4, %cst_73 {dimension_numbers = #tpu.dot_dimension_numbers<[1], [0], [0], [1], [0, 0, 1, 1], [], []>} : vector<8x16xbf16>, vector<16x48xbf16>, vector<8x48xf32> -> vector<8x48xf32>
    %248 = vector.broadcast %5 : vector<1x48xf32> to vector<8x48xf32>
    %249 = arith.addf %247, %248 : vector<8x48xf32>
    %250 = vector.extract_strided_slice %245 {offsets = [0, 0], sizes = [8, 16], strides = [1, 1]} : vector<8x48xf32> to vector<8x16xf32>
    %251 = vector.extract_strided_slice %249 {offsets = [0, 0], sizes = [8, 16], strides = [1, 1]} : vector<8x48xf32> to vector<8x16xf32>
    %252 = arith.addf %250, %251 : vector<8x16xf32>
    %253 = arith.negf %252 : vector<8x16xf32>
    %254 = math.exp %253 : vector<8x16xf32>
    %cst_74 = arith.constant 1.000000e+00 : f32
    %255 = vector.broadcast %cst_74 : f32 to vector<8x16xf32>
    %256 = arith.addf %255, %254 : vector<8x16xf32>
    %257 = arith.divf %255, %256 : vector<8x16xf32>
    %258 = vector.extract_strided_slice %245 {offsets = [0, 16], sizes = [8, 16], strides = [1, 1]} : vector<8x48xf32> to vector<8x16xf32>
    %259 = vector.extract_strided_slice %249 {offsets = [0, 16], sizes = [8, 16], strides = [1, 1]} : vector<8x48xf32> to vector<8x16xf32>
    %260 = arith.addf %258, %259 : vector<8x16xf32>
    %261 = arith.negf %260 : vector<8x16xf32>
    %262 = math.exp %261 : vector<8x16xf32>
    %cst_75 = arith.constant 1.000000e+00 : f32
    %263 = vector.broadcast %cst_75 : f32 to vector<8x16xf32>
    %264 = arith.addf %263, %262 : vector<8x16xf32>
    %265 = arith.divf %263, %264 : vector<8x16xf32>
    %266 = vector.extract_strided_slice %245 {offsets = [0, 32], sizes = [8, 16], strides = [1, 1]} : vector<8x48xf32> to vector<8x16xf32>
    %267 = vector.extract_strided_slice %249 {offsets = [0, 32], sizes = [8, 16], strides = [1, 1]} : vector<8x48xf32> to vector<8x16xf32>
    %268 = arith.mulf %257, %267 : vector<8x16xf32>
    %269 = arith.addf %266, %268 : vector<8x16xf32>
    %270 = math.tanh %269 : vector<8x16xf32>
    %cst_76 = arith.constant 1.000000e+00 : f32
    %271 = vector.broadcast %cst_76 : f32 to vector<8x16xf32>
    %272 = arith.subf %271, %265 : vector<8x16xf32>
    %273 = arith.mulf %272, %270 : vector<8x16xf32>
    %274 = arith.mulf %265, %213 : vector<8x16xf32>
    %275 = arith.addf %273, %274 : vector<8x16xf32>
    %276 = vector.extract_strided_slice %27 {offsets = [32, 0], sizes = [8, 48], strides = [1, 1]} : vector<48x96xf32> to vector<8x48xf32>
    %277 = arith.truncf %244 : vector<8x16xf32> to vector<8x16xbf16>
    %cst_77 = arith.constant dense<0.000000e+00> : vector<8x48xf32>
    %278 = tpu.matmul %277, %2, %cst_77 {dimension_numbers = #tpu.dot_dimension_numbers<[1], [0], [0], [1], [0, 0, 1, 1], [], []>} : vector<8x16xbf16>, vector<16x48xbf16>, vector<8x48xf32> -> vector<8x48xf32>
    %279 = vector.broadcast %3 : vector<1x48xf32> to vector<8x48xf32>
    %280 = arith.addf %278, %279 : vector<8x48xf32>
    %281 = vector.extract_strided_slice %276 {offsets = [0, 0], sizes = [8, 16], strides = [1, 1]} : vector<8x48xf32> to vector<8x16xf32>
    %282 = vector.extract_strided_slice %280 {offsets = [0, 0], sizes = [8, 16], strides = [1, 1]} : vector<8x48xf32> to vector<8x16xf32>
    %283 = arith.addf %281, %282 : vector<8x16xf32>
    %284 = arith.negf %283 : vector<8x16xf32>
    %285 = math.exp %284 : vector<8x16xf32>
    %cst_78 = arith.constant 1.000000e+00 : f32
    %286 = vector.broadcast %cst_78 : f32 to vector<8x16xf32>
    %287 = arith.addf %286, %285 : vector<8x16xf32>
    %288 = arith.divf %286, %287 : vector<8x16xf32>
    %289 = vector.extract_strided_slice %276 {offsets = [0, 16], sizes = [8, 16], strides = [1, 1]} : vector<8x48xf32> to vector<8x16xf32>
    %290 = vector.extract_strided_slice %280 {offsets = [0, 16], sizes = [8, 16], strides = [1, 1]} : vector<8x48xf32> to vector<8x16xf32>
    %291 = arith.addf %289, %290 : vector<8x16xf32>
    %292 = arith.negf %291 : vector<8x16xf32>
    %293 = math.exp %292 : vector<8x16xf32>
    %cst_79 = arith.constant 1.000000e+00 : f32
    %294 = vector.broadcast %cst_79 : f32 to vector<8x16xf32>
    %295 = arith.addf %294, %293 : vector<8x16xf32>
    %296 = arith.divf %294, %295 : vector<8x16xf32>
    %297 = vector.extract_strided_slice %276 {offsets = [0, 32], sizes = [8, 16], strides = [1, 1]} : vector<8x48xf32> to vector<8x16xf32>
    %298 = vector.extract_strided_slice %280 {offsets = [0, 32], sizes = [8, 16], strides = [1, 1]} : vector<8x48xf32> to vector<8x16xf32>
    %299 = arith.mulf %288, %298 : vector<8x16xf32>
    %300 = arith.addf %297, %299 : vector<8x16xf32>
    %301 = math.tanh %300 : vector<8x16xf32>
    %cst_80 = arith.constant 1.000000e+00 : f32
    %302 = vector.broadcast %cst_80 : f32 to vector<8x16xf32>
    %303 = arith.subf %302, %296 : vector<8x16xf32>
    %304 = arith.mulf %303, %301 : vector<8x16xf32>
    %305 = arith.mulf %296, %244 : vector<8x16xf32>
    %306 = arith.addf %304, %305 : vector<8x16xf32>
    %307 = vector.extract_strided_slice %27 {offsets = [8, 48], sizes = [8, 48], strides = [1, 1]} : vector<48x96xf32> to vector<8x48xf32>
    %308 = arith.truncf %275 : vector<8x16xf32> to vector<8x16xbf16>
    %cst_81 = arith.constant dense<0.000000e+00> : vector<8x48xf32>
    %309 = tpu.matmul %308, %4, %cst_81 {dimension_numbers = #tpu.dot_dimension_numbers<[1], [0], [0], [1], [0, 0, 1, 1], [], []>} : vector<8x16xbf16>, vector<16x48xbf16>, vector<8x48xf32> -> vector<8x48xf32>
    %310 = vector.broadcast %5 : vector<1x48xf32> to vector<8x48xf32>
    %311 = arith.addf %309, %310 : vector<8x48xf32>
    %312 = vector.extract_strided_slice %307 {offsets = [0, 0], sizes = [8, 16], strides = [1, 1]} : vector<8x48xf32> to vector<8x16xf32>
    %313 = vector.extract_strided_slice %311 {offsets = [0, 0], sizes = [8, 16], strides = [1, 1]} : vector<8x48xf32> to vector<8x16xf32>
    %314 = arith.addf %312, %313 : vector<8x16xf32>
    %315 = arith.negf %314 : vector<8x16xf32>
    %316 = math.exp %315 : vector<8x16xf32>
    %cst_82 = arith.constant 1.000000e+00 : f32
    %317 = vector.broadcast %cst_82 : f32 to vector<8x16xf32>
    %318 = arith.addf %317, %316 : vector<8x16xf32>
    %319 = arith.divf %317, %318 : vector<8x16xf32>
    %320 = vector.extract_strided_slice %307 {offsets = [0, 16], sizes = [8, 16], strides = [1, 1]} : vector<8x48xf32> to vector<8x16xf32>
    %321 = vector.extract_strided_slice %311 {offsets = [0, 16], sizes = [8, 16], strides = [1, 1]} : vector<8x48xf32> to vector<8x16xf32>
    %322 = arith.addf %320, %321 : vector<8x16xf32>
    %323 = arith.negf %322 : vector<8x16xf32>
    %324 = math.exp %323 : vector<8x16xf32>
    %cst_83 = arith.constant 1.000000e+00 : f32
    %325 = vector.broadcast %cst_83 : f32 to vector<8x16xf32>
    %326 = arith.addf %325, %324 : vector<8x16xf32>
    %327 = arith.divf %325, %326 : vector<8x16xf32>
    %328 = vector.extract_strided_slice %307 {offsets = [0, 32], sizes = [8, 16], strides = [1, 1]} : vector<8x48xf32> to vector<8x16xf32>
    %329 = vector.extract_strided_slice %311 {offsets = [0, 32], sizes = [8, 16], strides = [1, 1]} : vector<8x48xf32> to vector<8x16xf32>
    %330 = arith.mulf %319, %329 : vector<8x16xf32>
    %331 = arith.addf %328, %330 : vector<8x16xf32>
    %332 = math.tanh %331 : vector<8x16xf32>
    %cst_84 = arith.constant 1.000000e+00 : f32
    %333 = vector.broadcast %cst_84 : f32 to vector<8x16xf32>
    %334 = arith.subf %333, %327 : vector<8x16xf32>
    %335 = arith.mulf %334, %332 : vector<8x16xf32>
    %336 = arith.mulf %327, %275 : vector<8x16xf32>
    %337 = arith.addf %335, %336 : vector<8x16xf32>
    %338 = vector.extract_strided_slice %27 {offsets = [40, 0], sizes = [8, 48], strides = [1, 1]} : vector<48x96xf32> to vector<8x48xf32>
    %339 = arith.truncf %306 : vector<8x16xf32> to vector<8x16xbf16>
    %cst_85 = arith.constant dense<0.000000e+00> : vector<8x48xf32>
    %340 = tpu.matmul %339, %2, %cst_85 {dimension_numbers = #tpu.dot_dimension_numbers<[1], [0], [0], [1], [0, 0, 1, 1], [], []>} : vector<8x16xbf16>, vector<16x48xbf16>, vector<8x48xf32> -> vector<8x48xf32>
    %341 = vector.broadcast %3 : vector<1x48xf32> to vector<8x48xf32>
    %342 = arith.addf %340, %341 : vector<8x48xf32>
    %343 = vector.extract_strided_slice %338 {offsets = [0, 0], sizes = [8, 16], strides = [1, 1]} : vector<8x48xf32> to vector<8x16xf32>
    %344 = vector.extract_strided_slice %342 {offsets = [0, 0], sizes = [8, 16], strides = [1, 1]} : vector<8x48xf32> to vector<8x16xf32>
    %345 = arith.addf %343, %344 : vector<8x16xf32>
    %346 = arith.negf %345 : vector<8x16xf32>
    %347 = math.exp %346 : vector<8x16xf32>
    %cst_86 = arith.constant 1.000000e+00 : f32
    %348 = vector.broadcast %cst_86 : f32 to vector<8x16xf32>
    %349 = arith.addf %348, %347 : vector<8x16xf32>
    %350 = arith.divf %348, %349 : vector<8x16xf32>
    %351 = vector.extract_strided_slice %338 {offsets = [0, 16], sizes = [8, 16], strides = [1, 1]} : vector<8x48xf32> to vector<8x16xf32>
    %352 = vector.extract_strided_slice %342 {offsets = [0, 16], sizes = [8, 16], strides = [1, 1]} : vector<8x48xf32> to vector<8x16xf32>
    %353 = arith.addf %351, %352 : vector<8x16xf32>
    %354 = arith.negf %353 : vector<8x16xf32>
    %355 = math.exp %354 : vector<8x16xf32>
    %cst_87 = arith.constant 1.000000e+00 : f32
    %356 = vector.broadcast %cst_87 : f32 to vector<8x16xf32>
    %357 = arith.addf %356, %355 : vector<8x16xf32>
    %358 = arith.divf %356, %357 : vector<8x16xf32>
    %359 = vector.extract_strided_slice %338 {offsets = [0, 32], sizes = [8, 16], strides = [1, 1]} : vector<8x48xf32> to vector<8x16xf32>
    %360 = vector.extract_strided_slice %342 {offsets = [0, 32], sizes = [8, 16], strides = [1, 1]} : vector<8x48xf32> to vector<8x16xf32>
    %361 = arith.mulf %350, %360 : vector<8x16xf32>
    %362 = arith.addf %359, %361 : vector<8x16xf32>
    %363 = math.tanh %362 : vector<8x16xf32>
    %cst_88 = arith.constant 1.000000e+00 : f32
    %364 = vector.broadcast %cst_88 : f32 to vector<8x16xf32>
    %365 = arith.subf %364, %358 : vector<8x16xf32>
    %366 = arith.mulf %365, %363 : vector<8x16xf32>
    %367 = arith.mulf %358, %306 : vector<8x16xf32>
    %368 = arith.addf %366, %367 : vector<8x16xf32>
    %369 = vector.extract_strided_slice %27 {offsets = [0, 48], sizes = [8, 48], strides = [1, 1]} : vector<48x96xf32> to vector<8x48xf32>
    %370 = arith.truncf %337 : vector<8x16xf32> to vector<8x16xbf16>
    %cst_89 = arith.constant dense<0.000000e+00> : vector<8x48xf32>
    %371 = tpu.matmul %370, %4, %cst_89 {dimension_numbers = #tpu.dot_dimension_numbers<[1], [0], [0], [1], [0, 0, 1, 1], [], []>} : vector<8x16xbf16>, vector<16x48xbf16>, vector<8x48xf32> -> vector<8x48xf32>
    %372 = vector.broadcast %5 : vector<1x48xf32> to vector<8x48xf32>
    %373 = arith.addf %371, %372 : vector<8x48xf32>
    %374 = vector.extract_strided_slice %369 {offsets = [0, 0], sizes = [8, 16], strides = [1, 1]} : vector<8x48xf32> to vector<8x16xf32>
    %375 = vector.extract_strided_slice %373 {offsets = [0, 0], sizes = [8, 16], strides = [1, 1]} : vector<8x48xf32> to vector<8x16xf32>
    %376 = arith.addf %374, %375 : vector<8x16xf32>
    %377 = arith.negf %376 : vector<8x16xf32>
    %378 = math.exp %377 : vector<8x16xf32>
    %cst_90 = arith.constant 1.000000e+00 : f32
    %379 = vector.broadcast %cst_90 : f32 to vector<8x16xf32>
    %380 = arith.addf %379, %378 : vector<8x16xf32>
    %381 = arith.divf %379, %380 : vector<8x16xf32>
    %382 = vector.extract_strided_slice %369 {offsets = [0, 16], sizes = [8, 16], strides = [1, 1]} : vector<8x48xf32> to vector<8x16xf32>
    %383 = vector.extract_strided_slice %373 {offsets = [0, 16], sizes = [8, 16], strides = [1, 1]} : vector<8x48xf32> to vector<8x16xf32>
    %384 = arith.addf %382, %383 : vector<8x16xf32>
    %385 = arith.negf %384 : vector<8x16xf32>
    %386 = math.exp %385 : vector<8x16xf32>
    %cst_91 = arith.constant 1.000000e+00 : f32
    %387 = vector.broadcast %cst_91 : f32 to vector<8x16xf32>
    %388 = arith.addf %387, %386 : vector<8x16xf32>
    %389 = arith.divf %387, %388 : vector<8x16xf32>
    %390 = vector.extract_strided_slice %369 {offsets = [0, 32], sizes = [8, 16], strides = [1, 1]} : vector<8x48xf32> to vector<8x16xf32>
    %391 = vector.extract_strided_slice %373 {offsets = [0, 32], sizes = [8, 16], strides = [1, 1]} : vector<8x48xf32> to vector<8x16xf32>
    %392 = arith.mulf %381, %391 : vector<8x16xf32>
    %393 = arith.addf %390, %392 : vector<8x16xf32>
    %394 = math.tanh %393 : vector<8x16xf32>
    %cst_92 = arith.constant 1.000000e+00 : f32
    %395 = vector.broadcast %cst_92 : f32 to vector<8x16xf32>
    %396 = arith.subf %395, %389 : vector<8x16xf32>
    %397 = arith.mulf %396, %394 : vector<8x16xf32>
    %398 = arith.mulf %389, %337 : vector<8x16xf32>
    %399 = arith.addf %397, %398 : vector<8x16xf32>
    %400 = tpu.concatenate %58, %120, %182, %244, %306, %368 in 0 : vector<8x16xf32>, vector<8x16xf32>, vector<8x16xf32>, vector<8x16xf32>, vector<8x16xf32>, vector<8x16xf32> -> vector<48x16xf32>
    %401 = tpu.concatenate %399, %337, %275, %213, %151, %89 in 0 : vector<8x16xf32>, vector<8x16xf32>, vector<8x16xf32>, vector<8x16xf32>, vector<8x16xf32>, vector<8x16xf32> -> vector<48x16xf32>
    %402 = arith.truncf %400 : vector<48x16xf32> to vector<48x16xbf16>
    %403 = arith.truncf %401 : vector<48x16xf32> to vector<48x16xbf16>
    %404 = vector.extract_strided_slice %6 {offsets = [0, 0], sizes = [16, 32], strides = [1, 1]} : vector<32x32xbf16> to vector<16x32xbf16>
    %cst_93 = arith.constant dense<0.000000e+00> : vector<48x32xf32>
    %405 = tpu.matmul %402, %404, %cst_93 {dimension_numbers = #tpu.dot_dimension_numbers<[1], [0], [0], [1], [0, 0, 1, 1], [], []>} : vector<48x16xbf16>, vector<16x32xbf16>, vector<48x32xf32> -> vector<48x32xf32>
    %406 = vector.extract_strided_slice %6 {offsets = [16, 0], sizes = [16, 32], strides = [1, 1]} : vector<32x32xbf16> to vector<16x32xbf16>
    %cst_94 = arith.constant dense<0.000000e+00> : vector<48x32xf32>
    %407 = tpu.matmul %403, %406, %cst_94 {dimension_numbers = #tpu.dot_dimension_numbers<[1], [0], [0], [1], [0, 0, 1, 1], [], []>} : vector<48x16xbf16>, vector<16x32xbf16>, vector<48x32xf32> -> vector<48x32xf32>
    %408 = arith.addf %405, %407 : vector<48x32xf32>
    %409 = vector.broadcast %7 : vector<1x32xf32> to vector<48x32xf32>
    %410 = arith.addf %408, %409 : vector<48x32xf32>
    %411 = math.tanh %410 : vector<48x32xf32>
    %412 = vector.broadcast %8 : vector<1x32xf32> to vector<48x32xf32>
    %413 = arith.mulf %411, %412 : vector<48x32xf32>
    %cst_95 = arith.constant dense<0.000000e+00> : vector<48xf32>
    %414 = vector.multi_reduction <add>, %413, %cst_95 [1] : vector<48x32xf32> to vector<48xf32>
    %415 = vector.shape_cast %414 : vector<48xf32> to vector<48x1xf32>
    %416 = math.tanh %415 : vector<48x1xf32>
    %417 = math.exp %416 : vector<48x1xf32>
    %418 = vector.shape_cast %417 : vector<48x1xf32> to vector<6x8x1xf32>
    %cst_96 = arith.constant dense<0.000000e+00> : vector<8x1xf32>
    %419 = vector.multi_reduction <add>, %418, %cst_96 [0] : vector<6x8x1xf32> to vector<8x1xf32>
    %420 = vector.broadcast %417 : vector<48x1xf32> to vector<48x16xf32>
    %421 = arith.mulf %420, %400 : vector<48x16xf32>
    %422 = vector.shape_cast %421 : vector<48x16xf32> to vector<6x8x16xf32>
    %cst_97 = arith.constant dense<0.000000e+00> : vector<8x16xf32>
    %423 = vector.multi_reduction <add>, %422, %cst_97 [0] : vector<6x8x16xf32> to vector<8x16xf32>
    %424 = vector.broadcast %417 : vector<48x1xf32> to vector<48x16xf32>
    %425 = arith.mulf %424, %401 : vector<48x16xf32>
    %426 = vector.shape_cast %425 : vector<48x16xf32> to vector<6x8x16xf32>
    %cst_98 = arith.constant dense<0.000000e+00> : vector<8x16xf32>
    %427 = vector.multi_reduction <add>, %426, %cst_98 [0] : vector<6x8x16xf32> to vector<8x16xf32>
    %428 = tpu.reciprocal %419 {approx = true} : vector<8x1xf32> -> vector<8x1xf32>
    %429 = vector.broadcast %428 : vector<8x1xf32> to vector<8x16xf32>
    %430 = arith.mulf %423, %429 : vector<8x16xf32>
    %431 = vector.broadcast %428 : vector<8x1xf32> to vector<8x16xf32>
    %432 = arith.mulf %427, %431 : vector<8x16xf32>
    %433 = arith.truncf %430 : vector<8x16xf32> to vector<8x16xbf16>
    %434 = vector.extract_strided_slice %9 {offsets = [0, 0], sizes = [16, 96], strides = [1, 1]} : vector<32x96xbf16> to vector<16x96xbf16>
    %cst_99 = arith.constant dense<0.000000e+00> : vector<8x96xf32>
    %435 = tpu.matmul %433, %434, %cst_99 {dimension_numbers = #tpu.dot_dimension_numbers<[1], [0], [0], [1], [0, 0, 1, 1], [], []>} : vector<8x16xbf16>, vector<16x96xbf16>, vector<8x96xf32> -> vector<8x96xf32>
    %436 = arith.truncf %432 : vector<8x16xf32> to vector<8x16xbf16>
    %437 = vector.extract_strided_slice %9 {offsets = [16, 0], sizes = [16, 96], strides = [1, 1]} : vector<32x96xbf16> to vector<16x96xbf16>
    %cst_100 = arith.constant dense<0.000000e+00> : vector<8x96xf32>
    %438 = tpu.matmul %436, %437, %cst_100 {dimension_numbers = #tpu.dot_dimension_numbers<[1], [0], [0], [1], [0, 0, 1, 1], [], []>} : vector<8x16xbf16>, vector<16x96xbf16>, vector<8x96xf32> -> vector<8x96xf32>
    %439 = arith.addf %435, %438 : vector<8x96xf32>
    %440 = vector.broadcast %10 : vector<1x96xf32> to vector<8x96xf32>
    %441 = arith.addf %439, %440 : vector<8x96xf32>
    %442 = vector.extract_strided_slice %441 {offsets = [0, 0], sizes = [8, 48], strides = [1, 1]} : vector<8x96xf32> to vector<8x48xf32>
    %443 = arith.truncf %22 : vector<8x16xf32> to vector<8x16xbf16>
    %cst_101 = arith.constant dense<0.000000e+00> : vector<8x48xf32>
    %444 = tpu.matmul %443, %11, %cst_101 {dimension_numbers = #tpu.dot_dimension_numbers<[1], [0], [0], [1], [0, 0, 1, 1], [], []>} : vector<8x16xbf16>, vector<16x48xbf16>, vector<8x48xf32> -> vector<8x48xf32>
    %445 = vector.broadcast %12 : vector<1x48xf32> to vector<8x48xf32>
    %446 = arith.addf %444, %445 : vector<8x48xf32>
    %447 = vector.extract_strided_slice %442 {offsets = [0, 0], sizes = [8, 16], strides = [1, 1]} : vector<8x48xf32> to vector<8x16xf32>
    %448 = vector.extract_strided_slice %446 {offsets = [0, 0], sizes = [8, 16], strides = [1, 1]} : vector<8x48xf32> to vector<8x16xf32>
    %449 = arith.addf %447, %448 : vector<8x16xf32>
    %450 = arith.negf %449 : vector<8x16xf32>
    %451 = math.exp %450 : vector<8x16xf32>
    %cst_102 = arith.constant 1.000000e+00 : f32
    %452 = vector.broadcast %cst_102 : f32 to vector<8x16xf32>
    %453 = arith.addf %452, %451 : vector<8x16xf32>
    %454 = arith.divf %452, %453 : vector<8x16xf32>
    %455 = vector.extract_strided_slice %442 {offsets = [0, 16], sizes = [8, 16], strides = [1, 1]} : vector<8x48xf32> to vector<8x16xf32>
    %456 = vector.extract_strided_slice %446 {offsets = [0, 16], sizes = [8, 16], strides = [1, 1]} : vector<8x48xf32> to vector<8x16xf32>
    %457 = arith.addf %455, %456 : vector<8x16xf32>
    %458 = arith.negf %457 : vector<8x16xf32>
    %459 = math.exp %458 : vector<8x16xf32>
    %cst_103 = arith.constant 1.000000e+00 : f32
    %460 = vector.broadcast %cst_103 : f32 to vector<8x16xf32>
    %461 = arith.addf %460, %459 : vector<8x16xf32>
    %462 = arith.divf %460, %461 : vector<8x16xf32>
    %463 = vector.extract_strided_slice %442 {offsets = [0, 32], sizes = [8, 16], strides = [1, 1]} : vector<8x48xf32> to vector<8x16xf32>
    %464 = vector.extract_strided_slice %446 {offsets = [0, 32], sizes = [8, 16], strides = [1, 1]} : vector<8x48xf32> to vector<8x16xf32>
    %465 = arith.mulf %454, %464 : vector<8x16xf32>
    %466 = arith.addf %463, %465 : vector<8x16xf32>
    %467 = math.tanh %466 : vector<8x16xf32>
    %cst_104 = arith.constant 1.000000e+00 : f32
    %468 = vector.broadcast %cst_104 : f32 to vector<8x16xf32>
    %469 = arith.subf %468, %462 : vector<8x16xf32>
    %470 = arith.mulf %469, %467 : vector<8x16xf32>
    %471 = arith.mulf %462, %22 : vector<8x16xf32>
    %472 = arith.addf %470, %471 : vector<8x16xf32>
    %c0_105 = arith.constant 0 : index
    %c48 = arith.constant 48 : index
    %c0_106 = arith.constant 0 : index
    %473 = vector.load %arg1[%c0_105, %c48, %c0_106] : memref<1x192x32xbf16, #tpu.memory_space<vmem>>, vector<1x48x32xbf16>
    %474 = vector.shape_cast %473 : vector<1x48x32xbf16> to vector<48x32xbf16>
    %cst_107 = arith.constant dense<0.000000e+00> : vector<48x96xf32>
    %475 = tpu.matmul %474, %0, %cst_107 {dimension_numbers = #tpu.dot_dimension_numbers<[1], [0], [0], [1], [0, 0, 1, 1], [], []>} : vector<48x32xbf16>, vector<32x96xbf16>, vector<48x96xf32> -> vector<48x96xf32>
    %476 = vector.broadcast %1 : vector<1x96xf32> to vector<48x96xf32>
    %477 = arith.addf %475, %476 : vector<48x96xf32>
    %478 = vector.extract_strided_slice %477 {offsets = [0, 0], sizes = [8, 48], strides = [1, 1]} : vector<48x96xf32> to vector<8x48xf32>
    %479 = arith.truncf %368 : vector<8x16xf32> to vector<8x16xbf16>
    %cst_108 = arith.constant dense<0.000000e+00> : vector<8x48xf32>
    %480 = tpu.matmul %479, %2, %cst_108 {dimension_numbers = #tpu.dot_dimension_numbers<[1], [0], [0], [1], [0, 0, 1, 1], [], []>} : vector<8x16xbf16>, vector<16x48xbf16>, vector<8x48xf32> -> vector<8x48xf32>
    %481 = vector.broadcast %3 : vector<1x48xf32> to vector<8x48xf32>
    %482 = arith.addf %480, %481 : vector<8x48xf32>
    %483 = vector.extract_strided_slice %478 {offsets = [0, 0], sizes = [8, 16], strides = [1, 1]} : vector<8x48xf32> to vector<8x16xf32>
    %484 = vector.extract_strided_slice %482 {offsets = [0, 0], sizes = [8, 16], strides = [1, 1]} : vector<8x48xf32> to vector<8x16xf32>
    %485 = arith.addf %483, %484 : vector<8x16xf32>
    %486 = arith.negf %485 : vector<8x16xf32>
    %487 = math.exp %486 : vector<8x16xf32>
    %cst_109 = arith.constant 1.000000e+00 : f32
    %488 = vector.broadcast %cst_109 : f32 to vector<8x16xf32>
    %489 = arith.addf %488, %487 : vector<8x16xf32>
    %490 = arith.divf %488, %489 : vector<8x16xf32>
    %491 = vector.extract_strided_slice %478 {offsets = [0, 16], sizes = [8, 16], strides = [1, 1]} : vector<8x48xf32> to vector<8x16xf32>
    %492 = vector.extract_strided_slice %482 {offsets = [0, 16], sizes = [8, 16], strides = [1, 1]} : vector<8x48xf32> to vector<8x16xf32>
    %493 = arith.addf %491, %492 : vector<8x16xf32>
    %494 = arith.negf %493 : vector<8x16xf32>
    %495 = math.exp %494 : vector<8x16xf32>
    %cst_110 = arith.constant 1.000000e+00 : f32
    %496 = vector.broadcast %cst_110 : f32 to vector<8x16xf32>
    %497 = arith.addf %496, %495 : vector<8x16xf32>
    %498 = arith.divf %496, %497 : vector<8x16xf32>
    %499 = vector.extract_strided_slice %478 {offsets = [0, 32], sizes = [8, 16], strides = [1, 1]} : vector<8x48xf32> to vector<8x16xf32>
    %500 = vector.extract_strided_slice %482 {offsets = [0, 32], sizes = [8, 16], strides = [1, 1]} : vector<8x48xf32> to vector<8x16xf32>
    %501 = arith.mulf %490, %500 : vector<8x16xf32>
    %502 = arith.addf %499, %501 : vector<8x16xf32>
    %503 = math.tanh %502 : vector<8x16xf32>
    %cst_111 = arith.constant 1.000000e+00 : f32
    %504 = vector.broadcast %cst_111 : f32 to vector<8x16xf32>
    %505 = arith.subf %504, %498 : vector<8x16xf32>
    %506 = arith.mulf %505, %503 : vector<8x16xf32>
    %507 = arith.mulf %498, %368 : vector<8x16xf32>
    %508 = arith.addf %506, %507 : vector<8x16xf32>
    %509 = vector.extract_strided_slice %477 {offsets = [40, 48], sizes = [8, 48], strides = [1, 1]} : vector<48x96xf32> to vector<8x48xf32>
    %510 = arith.truncf %399 : vector<8x16xf32> to vector<8x16xbf16>
    %cst_112 = arith.constant dense<0.000000e+00> : vector<8x48xf32>
    %511 = tpu.matmul %510, %4, %cst_112 {dimension_numbers = #tpu.dot_dimension_numbers<[1], [0], [0], [1], [0, 0, 1, 1], [], []>} : vector<8x16xbf16>, vector<16x48xbf16>, vector<8x48xf32> -> vector<8x48xf32>
    %512 = vector.broadcast %5 : vector<1x48xf32> to vector<8x48xf32>
    %513 = arith.addf %511, %512 : vector<8x48xf32>
    %514 = vector.extract_strided_slice %509 {offsets = [0, 0], sizes = [8, 16], strides = [1, 1]} : vector<8x48xf32> to vector<8x16xf32>
    %515 = vector.extract_strided_slice %513 {offsets = [0, 0], sizes = [8, 16], strides = [1, 1]} : vector<8x48xf32> to vector<8x16xf32>
    %516 = arith.addf %514, %515 : vector<8x16xf32>
    %517 = arith.negf %516 : vector<8x16xf32>
    %518 = math.exp %517 : vector<8x16xf32>
    %cst_113 = arith.constant 1.000000e+00 : f32
    %519 = vector.broadcast %cst_113 : f32 to vector<8x16xf32>
    %520 = arith.addf %519, %518 : vector<8x16xf32>
    %521 = arith.divf %519, %520 : vector<8x16xf32>
    %522 = vector.extract_strided_slice %509 {offsets = [0, 16], sizes = [8, 16], strides = [1, 1]} : vector<8x48xf32> to vector<8x16xf32>
    %523 = vector.extract_strided_slice %513 {offsets = [0, 16], sizes = [8, 16], strides = [1, 1]} : vector<8x48xf32> to vector<8x16xf32>
    %524 = arith.addf %522, %523 : vector<8x16xf32>
    %525 = arith.negf %524 : vector<8x16xf32>
    %526 = math.exp %525 : vector<8x16xf32>
    %cst_114 = arith.constant 1.000000e+00 : f32
    %527 = vector.broadcast %cst_114 : f32 to vector<8x16xf32>
    %528 = arith.addf %527, %526 : vector<8x16xf32>
    %529 = arith.divf %527, %528 : vector<8x16xf32>
    %530 = vector.extract_strided_slice %509 {offsets = [0, 32], sizes = [8, 16], strides = [1, 1]} : vector<8x48xf32> to vector<8x16xf32>
    %531 = vector.extract_strided_slice %513 {offsets = [0, 32], sizes = [8, 16], strides = [1, 1]} : vector<8x48xf32> to vector<8x16xf32>
    %532 = arith.mulf %521, %531 : vector<8x16xf32>
    %533 = arith.addf %530, %532 : vector<8x16xf32>
    %534 = math.tanh %533 : vector<8x16xf32>
    %cst_115 = arith.constant 1.000000e+00 : f32
    %535 = vector.broadcast %cst_115 : f32 to vector<8x16xf32>
    %536 = arith.subf %535, %529 : vector<8x16xf32>
    %537 = arith.mulf %536, %534 : vector<8x16xf32>
    %538 = arith.mulf %529, %399 : vector<8x16xf32>
    %539 = arith.addf %537, %538 : vector<8x16xf32>
    %540 = vector.extract_strided_slice %477 {offsets = [8, 0], sizes = [8, 48], strides = [1, 1]} : vector<48x96xf32> to vector<8x48xf32>
    %541 = arith.truncf %508 : vector<8x16xf32> to vector<8x16xbf16>
    %cst_116 = arith.constant dense<0.000000e+00> : vector<8x48xf32>
    %542 = tpu.matmul %541, %2, %cst_116 {dimension_numbers = #tpu.dot_dimension_numbers<[1], [0], [0], [1], [0, 0, 1, 1], [], []>} : vector<8x16xbf16>, vector<16x48xbf16>, vector<8x48xf32> -> vector<8x48xf32>
    %543 = vector.broadcast %3 : vector<1x48xf32> to vector<8x48xf32>
    %544 = arith.addf %542, %543 : vector<8x48xf32>
    %545 = vector.extract_strided_slice %540 {offsets = [0, 0], sizes = [8, 16], strides = [1, 1]} : vector<8x48xf32> to vector<8x16xf32>
    %546 = vector.extract_strided_slice %544 {offsets = [0, 0], sizes = [8, 16], strides = [1, 1]} : vector<8x48xf32> to vector<8x16xf32>
    %547 = arith.addf %545, %546 : vector<8x16xf32>
    %548 = arith.negf %547 : vector<8x16xf32>
    %549 = math.exp %548 : vector<8x16xf32>
    %cst_117 = arith.constant 1.000000e+00 : f32
    %550 = vector.broadcast %cst_117 : f32 to vector<8x16xf32>
    %551 = arith.addf %550, %549 : vector<8x16xf32>
    %552 = arith.divf %550, %551 : vector<8x16xf32>
    %553 = vector.extract_strided_slice %540 {offsets = [0, 16], sizes = [8, 16], strides = [1, 1]} : vector<8x48xf32> to vector<8x16xf32>
    %554 = vector.extract_strided_slice %544 {offsets = [0, 16], sizes = [8, 16], strides = [1, 1]} : vector<8x48xf32> to vector<8x16xf32>
    %555 = arith.addf %553, %554 : vector<8x16xf32>
    %556 = arith.negf %555 : vector<8x16xf32>
    %557 = math.exp %556 : vector<8x16xf32>
    %cst_118 = arith.constant 1.000000e+00 : f32
    %558 = vector.broadcast %cst_118 : f32 to vector<8x16xf32>
    %559 = arith.addf %558, %557 : vector<8x16xf32>
    %560 = arith.divf %558, %559 : vector<8x16xf32>
    %561 = vector.extract_strided_slice %540 {offsets = [0, 32], sizes = [8, 16], strides = [1, 1]} : vector<8x48xf32> to vector<8x16xf32>
    %562 = vector.extract_strided_slice %544 {offsets = [0, 32], sizes = [8, 16], strides = [1, 1]} : vector<8x48xf32> to vector<8x16xf32>
    %563 = arith.mulf %552, %562 : vector<8x16xf32>
    %564 = arith.addf %561, %563 : vector<8x16xf32>
    %565 = math.tanh %564 : vector<8x16xf32>
    %cst_119 = arith.constant 1.000000e+00 : f32
    %566 = vector.broadcast %cst_119 : f32 to vector<8x16xf32>
    %567 = arith.subf %566, %560 : vector<8x16xf32>
    %568 = arith.mulf %567, %565 : vector<8x16xf32>
    %569 = arith.mulf %560, %508 : vector<8x16xf32>
    %570 = arith.addf %568, %569 : vector<8x16xf32>
    %571 = vector.extract_strided_slice %477 {offsets = [32, 48], sizes = [8, 48], strides = [1, 1]} : vector<48x96xf32> to vector<8x48xf32>
    %572 = arith.truncf %539 : vector<8x16xf32> to vector<8x16xbf16>
    %cst_120 = arith.constant dense<0.000000e+00> : vector<8x48xf32>
    %573 = tpu.matmul %572, %4, %cst_120 {dimension_numbers = #tpu.dot_dimension_numbers<[1], [0], [0], [1], [0, 0, 1, 1], [], []>} : vector<8x16xbf16>, vector<16x48xbf16>, vector<8x48xf32> -> vector<8x48xf32>
    %574 = vector.broadcast %5 : vector<1x48xf32> to vector<8x48xf32>
    %575 = arith.addf %573, %574 : vector<8x48xf32>
    %576 = vector.extract_strided_slice %571 {offsets = [0, 0], sizes = [8, 16], strides = [1, 1]} : vector<8x48xf32> to vector<8x16xf32>
    %577 = vector.extract_strided_slice %575 {offsets = [0, 0], sizes = [8, 16], strides = [1, 1]} : vector<8x48xf32> to vector<8x16xf32>
    %578 = arith.addf %576, %577 : vector<8x16xf32>
    %579 = arith.negf %578 : vector<8x16xf32>
    %580 = math.exp %579 : vector<8x16xf32>
    %cst_121 = arith.constant 1.000000e+00 : f32
    %581 = vector.broadcast %cst_121 : f32 to vector<8x16xf32>
    %582 = arith.addf %581, %580 : vector<8x16xf32>
    %583 = arith.divf %581, %582 : vector<8x16xf32>
    %584 = vector.extract_strided_slice %571 {offsets = [0, 16], sizes = [8, 16], strides = [1, 1]} : vector<8x48xf32> to vector<8x16xf32>
    %585 = vector.extract_strided_slice %575 {offsets = [0, 16], sizes = [8, 16], strides = [1, 1]} : vector<8x48xf32> to vector<8x16xf32>
    %586 = arith.addf %584, %585 : vector<8x16xf32>
    %587 = arith.negf %586 : vector<8x16xf32>
    %588 = math.exp %587 : vector<8x16xf32>
    %cst_122 = arith.constant 1.000000e+00 : f32
    %589 = vector.broadcast %cst_122 : f32 to vector<8x16xf32>
    %590 = arith.addf %589, %588 : vector<8x16xf32>
    %591 = arith.divf %589, %590 : vector<8x16xf32>
    %592 = vector.extract_strided_slice %571 {offsets = [0, 32], sizes = [8, 16], strides = [1, 1]} : vector<8x48xf32> to vector<8x16xf32>
    %593 = vector.extract_strided_slice %575 {offsets = [0, 32], sizes = [8, 16], strides = [1, 1]} : vector<8x48xf32> to vector<8x16xf32>
    %594 = arith.mulf %583, %593 : vector<8x16xf32>
    %595 = arith.addf %592, %594 : vector<8x16xf32>
    %596 = math.tanh %595 : vector<8x16xf32>
    %cst_123 = arith.constant 1.000000e+00 : f32
    %597 = vector.broadcast %cst_123 : f32 to vector<8x16xf32>
    %598 = arith.subf %597, %591 : vector<8x16xf32>
    %599 = arith.mulf %598, %596 : vector<8x16xf32>
    %600 = arith.mulf %591, %539 : vector<8x16xf32>
    %601 = arith.addf %599, %600 : vector<8x16xf32>
    %602 = vector.extract_strided_slice %477 {offsets = [16, 0], sizes = [8, 48], strides = [1, 1]} : vector<48x96xf32> to vector<8x48xf32>
    %603 = arith.truncf %570 : vector<8x16xf32> to vector<8x16xbf16>
    %cst_124 = arith.constant dense<0.000000e+00> : vector<8x48xf32>
    %604 = tpu.matmul %603, %2, %cst_124 {dimension_numbers = #tpu.dot_dimension_numbers<[1], [0], [0], [1], [0, 0, 1, 1], [], []>} : vector<8x16xbf16>, vector<16x48xbf16>, vector<8x48xf32> -> vector<8x48xf32>
    %605 = vector.broadcast %3 : vector<1x48xf32> to vector<8x48xf32>
    %606 = arith.addf %604, %605 : vector<8x48xf32>
    %607 = vector.extract_strided_slice %602 {offsets = [0, 0], sizes = [8, 16], strides = [1, 1]} : vector<8x48xf32> to vector<8x16xf32>
    %608 = vector.extract_strided_slice %606 {offsets = [0, 0], sizes = [8, 16], strides = [1, 1]} : vector<8x48xf32> to vector<8x16xf32>
    %609 = arith.addf %607, %608 : vector<8x16xf32>
    %610 = arith.negf %609 : vector<8x16xf32>
    %611 = math.exp %610 : vector<8x16xf32>
    %cst_125 = arith.constant 1.000000e+00 : f32
    %612 = vector.broadcast %cst_125 : f32 to vector<8x16xf32>
    %613 = arith.addf %612, %611 : vector<8x16xf32>
    %614 = arith.divf %612, %613 : vector<8x16xf32>
    %615 = vector.extract_strided_slice %602 {offsets = [0, 16], sizes = [8, 16], strides = [1, 1]} : vector<8x48xf32> to vector<8x16xf32>
    %616 = vector.extract_strided_slice %606 {offsets = [0, 16], sizes = [8, 16], strides = [1, 1]} : vector<8x48xf32> to vector<8x16xf32>
    %617 = arith.addf %615, %616 : vector<8x16xf32>
    %618 = arith.negf %617 : vector<8x16xf32>
    %619 = math.exp %618 : vector<8x16xf32>
    %cst_126 = arith.constant 1.000000e+00 : f32
    %620 = vector.broadcast %cst_126 : f32 to vector<8x16xf32>
    %621 = arith.addf %620, %619 : vector<8x16xf32>
    %622 = arith.divf %620, %621 : vector<8x16xf32>
    %623 = vector.extract_strided_slice %602 {offsets = [0, 32], sizes = [8, 16], strides = [1, 1]} : vector<8x48xf32> to vector<8x16xf32>
    %624 = vector.extract_strided_slice %606 {offsets = [0, 32], sizes = [8, 16], strides = [1, 1]} : vector<8x48xf32> to vector<8x16xf32>
    %625 = arith.mulf %614, %624 : vector<8x16xf32>
    %626 = arith.addf %623, %625 : vector<8x16xf32>
    %627 = math.tanh %626 : vector<8x16xf32>
    %cst_127 = arith.constant 1.000000e+00 : f32
    %628 = vector.broadcast %cst_127 : f32 to vector<8x16xf32>
    %629 = arith.subf %628, %622 : vector<8x16xf32>
    %630 = arith.mulf %629, %627 : vector<8x16xf32>
    %631 = arith.mulf %622, %570 : vector<8x16xf32>
    %632 = arith.addf %630, %631 : vector<8x16xf32>
    %633 = vector.extract_strided_slice %477 {offsets = [24, 48], sizes = [8, 48], strides = [1, 1]} : vector<48x96xf32> to vector<8x48xf32>
    %634 = arith.truncf %601 : vector<8x16xf32> to vector<8x16xbf16>
    %cst_128 = arith.constant dense<0.000000e+00> : vector<8x48xf32>
    %635 = tpu.matmul %634, %4, %cst_128 {dimension_numbers = #tpu.dot_dimension_numbers<[1], [0], [0], [1], [0, 0, 1, 1], [], []>} : vector<8x16xbf16>, vector<16x48xbf16>, vector<8x48xf32> -> vector<8x48xf32>
    %636 = vector.broadcast %5 : vector<1x48xf32> to vector<8x48xf32>
    %637 = arith.addf %635, %636 : vector<8x48xf32>
    %638 = vector.extract_strided_slice %633 {offsets = [0, 0], sizes = [8, 16], strides = [1, 1]} : vector<8x48xf32> to vector<8x16xf32>
    %639 = vector.extract_strided_slice %637 {offsets = [0, 0], sizes = [8, 16], strides = [1, 1]} : vector<8x48xf32> to vector<8x16xf32>
    %640 = arith.addf %638, %639 : vector<8x16xf32>
    %641 = arith.negf %640 : vector<8x16xf32>
    %642 = math.exp %641 : vector<8x16xf32>
    %cst_129 = arith.constant 1.000000e+00 : f32
    %643 = vector.broadcast %cst_129 : f32 to vector<8x16xf32>
    %644 = arith.addf %643, %642 : vector<8x16xf32>
    %645 = arith.divf %643, %644 : vector<8x16xf32>
    %646 = vector.extract_strided_slice %633 {offsets = [0, 16], sizes = [8, 16], strides = [1, 1]} : vector<8x48xf32> to vector<8x16xf32>
    %647 = vector.extract_strided_slice %637 {offsets = [0, 16], sizes = [8, 16], strides = [1, 1]} : vector<8x48xf32> to vector<8x16xf32>
    %648 = arith.addf %646, %647 : vector<8x16xf32>
    %649 = arith.negf %648 : vector<8x16xf32>
    %650 = math.exp %649 : vector<8x16xf32>
    %cst_130 = arith.constant 1.000000e+00 : f32
    %651 = vector.broadcast %cst_130 : f32 to vector<8x16xf32>
    %652 = arith.addf %651, %650 : vector<8x16xf32>
    %653 = arith.divf %651, %652 : vector<8x16xf32>
    %654 = vector.extract_strided_slice %633 {offsets = [0, 32], sizes = [8, 16], strides = [1, 1]} : vector<8x48xf32> to vector<8x16xf32>
    %655 = vector.extract_strided_slice %637 {offsets = [0, 32], sizes = [8, 16], strides = [1, 1]} : vector<8x48xf32> to vector<8x16xf32>
    %656 = arith.mulf %645, %655 : vector<8x16xf32>
    %657 = arith.addf %654, %656 : vector<8x16xf32>
    %658 = math.tanh %657 : vector<8x16xf32>
    %cst_131 = arith.constant 1.000000e+00 : f32
    %659 = vector.broadcast %cst_131 : f32 to vector<8x16xf32>
    %660 = arith.subf %659, %653 : vector<8x16xf32>
    %661 = arith.mulf %660, %658 : vector<8x16xf32>
    %662 = arith.mulf %653, %601 : vector<8x16xf32>
    %663 = arith.addf %661, %662 : vector<8x16xf32>
    %664 = vector.extract_strided_slice %477 {offsets = [24, 0], sizes = [8, 48], strides = [1, 1]} : vector<48x96xf32> to vector<8x48xf32>
    %665 = arith.truncf %632 : vector<8x16xf32> to vector<8x16xbf16>
    %cst_132 = arith.constant dense<0.000000e+00> : vector<8x48xf32>
    %666 = tpu.matmul %665, %2, %cst_132 {dimension_numbers = #tpu.dot_dimension_numbers<[1], [0], [0], [1], [0, 0, 1, 1], [], []>} : vector<8x16xbf16>, vector<16x48xbf16>, vector<8x48xf32> -> vector<8x48xf32>
    %667 = vector.broadcast %3 : vector<1x48xf32> to vector<8x48xf32>
    %668 = arith.addf %666, %667 : vector<8x48xf32>
    %669 = vector.extract_strided_slice %664 {offsets = [0, 0], sizes = [8, 16], strides = [1, 1]} : vector<8x48xf32> to vector<8x16xf32>
    %670 = vector.extract_strided_slice %668 {offsets = [0, 0], sizes = [8, 16], strides = [1, 1]} : vector<8x48xf32> to vector<8x16xf32>
    %671 = arith.addf %669, %670 : vector<8x16xf32>
    %672 = arith.negf %671 : vector<8x16xf32>
    %673 = math.exp %672 : vector<8x16xf32>
    %cst_133 = arith.constant 1.000000e+00 : f32
    %674 = vector.broadcast %cst_133 : f32 to vector<8x16xf32>
    %675 = arith.addf %674, %673 : vector<8x16xf32>
    %676 = arith.divf %674, %675 : vector<8x16xf32>
    %677 = vector.extract_strided_slice %664 {offsets = [0, 16], sizes = [8, 16], strides = [1, 1]} : vector<8x48xf32> to vector<8x16xf32>
    %678 = vector.extract_strided_slice %668 {offsets = [0, 16], sizes = [8, 16], strides = [1, 1]} : vector<8x48xf32> to vector<8x16xf32>
    %679 = arith.addf %677, %678 : vector<8x16xf32>
    %680 = arith.negf %679 : vector<8x16xf32>
    %681 = math.exp %680 : vector<8x16xf32>
    %cst_134 = arith.constant 1.000000e+00 : f32
    %682 = vector.broadcast %cst_134 : f32 to vector<8x16xf32>
    %683 = arith.addf %682, %681 : vector<8x16xf32>
    %684 = arith.divf %682, %683 : vector<8x16xf32>
    %685 = vector.extract_strided_slice %664 {offsets = [0, 32], sizes = [8, 16], strides = [1, 1]} : vector<8x48xf32> to vector<8x16xf32>
    %686 = vector.extract_strided_slice %668 {offsets = [0, 32], sizes = [8, 16], strides = [1, 1]} : vector<8x48xf32> to vector<8x16xf32>
    %687 = arith.mulf %676, %686 : vector<8x16xf32>
    %688 = arith.addf %685, %687 : vector<8x16xf32>
    %689 = math.tanh %688 : vector<8x16xf32>
    %cst_135 = arith.constant 1.000000e+00 : f32
    %690 = vector.broadcast %cst_135 : f32 to vector<8x16xf32>
    %691 = arith.subf %690, %684 : vector<8x16xf32>
    %692 = arith.mulf %691, %689 : vector<8x16xf32>
    %693 = arith.mulf %684, %632 : vector<8x16xf32>
    %694 = arith.addf %692, %693 : vector<8x16xf32>
    %695 = vector.extract_strided_slice %477 {offsets = [16, 48], sizes = [8, 48], strides = [1, 1]} : vector<48x96xf32> to vector<8x48xf32>
    %696 = arith.truncf %663 : vector<8x16xf32> to vector<8x16xbf16>
    %cst_136 = arith.constant dense<0.000000e+00> : vector<8x48xf32>
    %697 = tpu.matmul %696, %4, %cst_136 {dimension_numbers = #tpu.dot_dimension_numbers<[1], [0], [0], [1], [0, 0, 1, 1], [], []>} : vector<8x16xbf16>, vector<16x48xbf16>, vector<8x48xf32> -> vector<8x48xf32>
    %698 = vector.broadcast %5 : vector<1x48xf32> to vector<8x48xf32>
    %699 = arith.addf %697, %698 : vector<8x48xf32>
    %700 = vector.extract_strided_slice %695 {offsets = [0, 0], sizes = [8, 16], strides = [1, 1]} : vector<8x48xf32> to vector<8x16xf32>
    %701 = vector.extract_strided_slice %699 {offsets = [0, 0], sizes = [8, 16], strides = [1, 1]} : vector<8x48xf32> to vector<8x16xf32>
    %702 = arith.addf %700, %701 : vector<8x16xf32>
    %703 = arith.negf %702 : vector<8x16xf32>
    %704 = math.exp %703 : vector<8x16xf32>
    %cst_137 = arith.constant 1.000000e+00 : f32
    %705 = vector.broadcast %cst_137 : f32 to vector<8x16xf32>
    %706 = arith.addf %705, %704 : vector<8x16xf32>
    %707 = arith.divf %705, %706 : vector<8x16xf32>
    %708 = vector.extract_strided_slice %695 {offsets = [0, 16], sizes = [8, 16], strides = [1, 1]} : vector<8x48xf32> to vector<8x16xf32>
    %709 = vector.extract_strided_slice %699 {offsets = [0, 16], sizes = [8, 16], strides = [1, 1]} : vector<8x48xf32> to vector<8x16xf32>
    %710 = arith.addf %708, %709 : vector<8x16xf32>
    %711 = arith.negf %710 : vector<8x16xf32>
    %712 = math.exp %711 : vector<8x16xf32>
    %cst_138 = arith.constant 1.000000e+00 : f32
    %713 = vector.broadcast %cst_138 : f32 to vector<8x16xf32>
    %714 = arith.addf %713, %712 : vector<8x16xf32>
    %715 = arith.divf %713, %714 : vector<8x16xf32>
    %716 = vector.extract_strided_slice %695 {offsets = [0, 32], sizes = [8, 16], strides = [1, 1]} : vector<8x48xf32> to vector<8x16xf32>
    %717 = vector.extract_strided_slice %699 {offsets = [0, 32], sizes = [8, 16], strides = [1, 1]} : vector<8x48xf32> to vector<8x16xf32>
    %718 = arith.mulf %707, %717 : vector<8x16xf32>
    %719 = arith.addf %716, %718 : vector<8x16xf32>
    %720 = math.tanh %719 : vector<8x16xf32>
    %cst_139 = arith.constant 1.000000e+00 : f32
    %721 = vector.broadcast %cst_139 : f32 to vector<8x16xf32>
    %722 = arith.subf %721, %715 : vector<8x16xf32>
    %723 = arith.mulf %722, %720 : vector<8x16xf32>
    %724 = arith.mulf %715, %663 : vector<8x16xf32>
    %725 = arith.addf %723, %724 : vector<8x16xf32>
    %726 = vector.extract_strided_slice %477 {offsets = [32, 0], sizes = [8, 48], strides = [1, 1]} : vector<48x96xf32> to vector<8x48xf32>
    %727 = arith.truncf %694 : vector<8x16xf32> to vector<8x16xbf16>
    %cst_140 = arith.constant dense<0.000000e+00> : vector<8x48xf32>
    %728 = tpu.matmul %727, %2, %cst_140 {dimension_numbers = #tpu.dot_dimension_numbers<[1], [0], [0], [1], [0, 0, 1, 1], [], []>} : vector<8x16xbf16>, vector<16x48xbf16>, vector<8x48xf32> -> vector<8x48xf32>
    %729 = vector.broadcast %3 : vector<1x48xf32> to vector<8x48xf32>
    %730 = arith.addf %728, %729 : vector<8x48xf32>
    %731 = vector.extract_strided_slice %726 {offsets = [0, 0], sizes = [8, 16], strides = [1, 1]} : vector<8x48xf32> to vector<8x16xf32>
    %732 = vector.extract_strided_slice %730 {offsets = [0, 0], sizes = [8, 16], strides = [1, 1]} : vector<8x48xf32> to vector<8x16xf32>
    %733 = arith.addf %731, %732 : vector<8x16xf32>
    %734 = arith.negf %733 : vector<8x16xf32>
    %735 = math.exp %734 : vector<8x16xf32>
    %cst_141 = arith.constant 1.000000e+00 : f32
    %736 = vector.broadcast %cst_141 : f32 to vector<8x16xf32>
    %737 = arith.addf %736, %735 : vector<8x16xf32>
    %738 = arith.divf %736, %737 : vector<8x16xf32>
    %739 = vector.extract_strided_slice %726 {offsets = [0, 16], sizes = [8, 16], strides = [1, 1]} : vector<8x48xf32> to vector<8x16xf32>
    %740 = vector.extract_strided_slice %730 {offsets = [0, 16], sizes = [8, 16], strides = [1, 1]} : vector<8x48xf32> to vector<8x16xf32>
    %741 = arith.addf %739, %740 : vector<8x16xf32>
    %742 = arith.negf %741 : vector<8x16xf32>
    %743 = math.exp %742 : vector<8x16xf32>
    %cst_142 = arith.constant 1.000000e+00 : f32
    %744 = vector.broadcast %cst_142 : f32 to vector<8x16xf32>
    %745 = arith.addf %744, %743 : vector<8x16xf32>
    %746 = arith.divf %744, %745 : vector<8x16xf32>
    %747 = vector.extract_strided_slice %726 {offsets = [0, 32], sizes = [8, 16], strides = [1, 1]} : vector<8x48xf32> to vector<8x16xf32>
    %748 = vector.extract_strided_slice %730 {offsets = [0, 32], sizes = [8, 16], strides = [1, 1]} : vector<8x48xf32> to vector<8x16xf32>
    %749 = arith.mulf %738, %748 : vector<8x16xf32>
    %750 = arith.addf %747, %749 : vector<8x16xf32>
    %751 = math.tanh %750 : vector<8x16xf32>
    %cst_143 = arith.constant 1.000000e+00 : f32
    %752 = vector.broadcast %cst_143 : f32 to vector<8x16xf32>
    %753 = arith.subf %752, %746 : vector<8x16xf32>
    %754 = arith.mulf %753, %751 : vector<8x16xf32>
    %755 = arith.mulf %746, %694 : vector<8x16xf32>
    %756 = arith.addf %754, %755 : vector<8x16xf32>
    %757 = vector.extract_strided_slice %477 {offsets = [8, 48], sizes = [8, 48], strides = [1, 1]} : vector<48x96xf32> to vector<8x48xf32>
    %758 = arith.truncf %725 : vector<8x16xf32> to vector<8x16xbf16>
    %cst_144 = arith.constant dense<0.000000e+00> : vector<8x48xf32>
    %759 = tpu.matmul %758, %4, %cst_144 {dimension_numbers = #tpu.dot_dimension_numbers<[1], [0], [0], [1], [0, 0, 1, 1], [], []>} : vector<8x16xbf16>, vector<16x48xbf16>, vector<8x48xf32> -> vector<8x48xf32>
    %760 = vector.broadcast %5 : vector<1x48xf32> to vector<8x48xf32>
    %761 = arith.addf %759, %760 : vector<8x48xf32>
    %762 = vector.extract_strided_slice %757 {offsets = [0, 0], sizes = [8, 16], strides = [1, 1]} : vector<8x48xf32> to vector<8x16xf32>
    %763 = vector.extract_strided_slice %761 {offsets = [0, 0], sizes = [8, 16], strides = [1, 1]} : vector<8x48xf32> to vector<8x16xf32>
    %764 = arith.addf %762, %763 : vector<8x16xf32>
    %765 = arith.negf %764 : vector<8x16xf32>
    %766 = math.exp %765 : vector<8x16xf32>
    %cst_145 = arith.constant 1.000000e+00 : f32
    %767 = vector.broadcast %cst_145 : f32 to vector<8x16xf32>
    %768 = arith.addf %767, %766 : vector<8x16xf32>
    %769 = arith.divf %767, %768 : vector<8x16xf32>
    %770 = vector.extract_strided_slice %757 {offsets = [0, 16], sizes = [8, 16], strides = [1, 1]} : vector<8x48xf32> to vector<8x16xf32>
    %771 = vector.extract_strided_slice %761 {offsets = [0, 16], sizes = [8, 16], strides = [1, 1]} : vector<8x48xf32> to vector<8x16xf32>
    %772 = arith.addf %770, %771 : vector<8x16xf32>
    %773 = arith.negf %772 : vector<8x16xf32>
    %774 = math.exp %773 : vector<8x16xf32>
    %cst_146 = arith.constant 1.000000e+00 : f32
    %775 = vector.broadcast %cst_146 : f32 to vector<8x16xf32>
    %776 = arith.addf %775, %774 : vector<8x16xf32>
    %777 = arith.divf %775, %776 : vector<8x16xf32>
    %778 = vector.extract_strided_slice %757 {offsets = [0, 32], sizes = [8, 16], strides = [1, 1]} : vector<8x48xf32> to vector<8x16xf32>
    %779 = vector.extract_strided_slice %761 {offsets = [0, 32], sizes = [8, 16], strides = [1, 1]} : vector<8x48xf32> to vector<8x16xf32>
    %780 = arith.mulf %769, %779 : vector<8x16xf32>
    %781 = arith.addf %778, %780 : vector<8x16xf32>
    %782 = math.tanh %781 : vector<8x16xf32>
    %cst_147 = arith.constant 1.000000e+00 : f32
    %783 = vector.broadcast %cst_147 : f32 to vector<8x16xf32>
    %784 = arith.subf %783, %777 : vector<8x16xf32>
    %785 = arith.mulf %784, %782 : vector<8x16xf32>
    %786 = arith.mulf %777, %725 : vector<8x16xf32>
    %787 = arith.addf %785, %786 : vector<8x16xf32>
    %788 = vector.extract_strided_slice %477 {offsets = [40, 0], sizes = [8, 48], strides = [1, 1]} : vector<48x96xf32> to vector<8x48xf32>
    %789 = arith.truncf %756 : vector<8x16xf32> to vector<8x16xbf16>
    %cst_148 = arith.constant dense<0.000000e+00> : vector<8x48xf32>
    %790 = tpu.matmul %789, %2, %cst_148 {dimension_numbers = #tpu.dot_dimension_numbers<[1], [0], [0], [1], [0, 0, 1, 1], [], []>} : vector<8x16xbf16>, vector<16x48xbf16>, vector<8x48xf32> -> vector<8x48xf32>
    %791 = vector.broadcast %3 : vector<1x48xf32> to vector<8x48xf32>
    %792 = arith.addf %790, %791 : vector<8x48xf32>
    %793 = vector.extract_strided_slice %788 {offsets = [0, 0], sizes = [8, 16], strides = [1, 1]} : vector<8x48xf32> to vector<8x16xf32>
    %794 = vector.extract_strided_slice %792 {offsets = [0, 0], sizes = [8, 16], strides = [1, 1]} : vector<8x48xf32> to vector<8x16xf32>
    %795 = arith.addf %793, %794 : vector<8x16xf32>
    %796 = arith.negf %795 : vector<8x16xf32>
    %797 = math.exp %796 : vector<8x16xf32>
    %cst_149 = arith.constant 1.000000e+00 : f32
    %798 = vector.broadcast %cst_149 : f32 to vector<8x16xf32>
    %799 = arith.addf %798, %797 : vector<8x16xf32>
    %800 = arith.divf %798, %799 : vector<8x16xf32>
    %801 = vector.extract_strided_slice %788 {offsets = [0, 16], sizes = [8, 16], strides = [1, 1]} : vector<8x48xf32> to vector<8x16xf32>
    %802 = vector.extract_strided_slice %792 {offsets = [0, 16], sizes = [8, 16], strides = [1, 1]} : vector<8x48xf32> to vector<8x16xf32>
    %803 = arith.addf %801, %802 : vector<8x16xf32>
    %804 = arith.negf %803 : vector<8x16xf32>
    %805 = math.exp %804 : vector<8x16xf32>
    %cst_150 = arith.constant 1.000000e+00 : f32
    %806 = vector.broadcast %cst_150 : f32 to vector<8x16xf32>
    %807 = arith.addf %806, %805 : vector<8x16xf32>
    %808 = arith.divf %806, %807 : vector<8x16xf32>
    %809 = vector.extract_strided_slice %788 {offsets = [0, 32], sizes = [8, 16], strides = [1, 1]} : vector<8x48xf32> to vector<8x16xf32>
    %810 = vector.extract_strided_slice %792 {offsets = [0, 32], sizes = [8, 16], strides = [1, 1]} : vector<8x48xf32> to vector<8x16xf32>
    %811 = arith.mulf %800, %810 : vector<8x16xf32>
    %812 = arith.addf %809, %811 : vector<8x16xf32>
    %813 = math.tanh %812 : vector<8x16xf32>
    %cst_151 = arith.constant 1.000000e+00 : f32
    %814 = vector.broadcast %cst_151 : f32 to vector<8x16xf32>
    %815 = arith.subf %814, %808 : vector<8x16xf32>
    %816 = arith.mulf %815, %813 : vector<8x16xf32>
    %817 = arith.mulf %808, %756 : vector<8x16xf32>
    %818 = arith.addf %816, %817 : vector<8x16xf32>
    %819 = vector.extract_strided_slice %477 {offsets = [0, 48], sizes = [8, 48], strides = [1, 1]} : vector<48x96xf32> to vector<8x48xf32>
    %820 = arith.truncf %787 : vector<8x16xf32> to vector<8x16xbf16>
    %cst_152 = arith.constant dense<0.000000e+00> : vector<8x48xf32>
    %821 = tpu.matmul %820, %4, %cst_152 {dimension_numbers = #tpu.dot_dimension_numbers<[1], [0], [0], [1], [0, 0, 1, 1], [], []>} : vector<8x16xbf16>, vector<16x48xbf16>, vector<8x48xf32> -> vector<8x48xf32>
    %822 = vector.broadcast %5 : vector<1x48xf32> to vector<8x48xf32>
    %823 = arith.addf %821, %822 : vector<8x48xf32>
    %824 = vector.extract_strided_slice %819 {offsets = [0, 0], sizes = [8, 16], strides = [1, 1]} : vector<8x48xf32> to vector<8x16xf32>
    %825 = vector.extract_strided_slice %823 {offsets = [0, 0], sizes = [8, 16], strides = [1, 1]} : vector<8x48xf32> to vector<8x16xf32>
    %826 = arith.addf %824, %825 : vector<8x16xf32>
    %827 = arith.negf %826 : vector<8x16xf32>
    %828 = math.exp %827 : vector<8x16xf32>
    %cst_153 = arith.constant 1.000000e+00 : f32
    %829 = vector.broadcast %cst_153 : f32 to vector<8x16xf32>
    %830 = arith.addf %829, %828 : vector<8x16xf32>
    %831 = arith.divf %829, %830 : vector<8x16xf32>
    %832 = vector.extract_strided_slice %819 {offsets = [0, 16], sizes = [8, 16], strides = [1, 1]} : vector<8x48xf32> to vector<8x16xf32>
    %833 = vector.extract_strided_slice %823 {offsets = [0, 16], sizes = [8, 16], strides = [1, 1]} : vector<8x48xf32> to vector<8x16xf32>
    %834 = arith.addf %832, %833 : vector<8x16xf32>
    %835 = arith.negf %834 : vector<8x16xf32>
    %836 = math.exp %835 : vector<8x16xf32>
    %cst_154 = arith.constant 1.000000e+00 : f32
    %837 = vector.broadcast %cst_154 : f32 to vector<8x16xf32>
    %838 = arith.addf %837, %836 : vector<8x16xf32>
    %839 = arith.divf %837, %838 : vector<8x16xf32>
    %840 = vector.extract_strided_slice %819 {offsets = [0, 32], sizes = [8, 16], strides = [1, 1]} : vector<8x48xf32> to vector<8x16xf32>
    %841 = vector.extract_strided_slice %823 {offsets = [0, 32], sizes = [8, 16], strides = [1, 1]} : vector<8x48xf32> to vector<8x16xf32>
    %842 = arith.mulf %831, %841 : vector<8x16xf32>
    %843 = arith.addf %840, %842 : vector<8x16xf32>
    %844 = math.tanh %843 : vector<8x16xf32>
    %cst_155 = arith.constant 1.000000e+00 : f32
    %845 = vector.broadcast %cst_155 : f32 to vector<8x16xf32>
    %846 = arith.subf %845, %839 : vector<8x16xf32>
    %847 = arith.mulf %846, %844 : vector<8x16xf32>
    %848 = arith.mulf %839, %787 : vector<8x16xf32>
    %849 = arith.addf %847, %848 : vector<8x16xf32>
    %850 = tpu.concatenate %508, %570, %632, %694, %756, %818 in 0 : vector<8x16xf32>, vector<8x16xf32>, vector<8x16xf32>, vector<8x16xf32>, vector<8x16xf32>, vector<8x16xf32> -> vector<48x16xf32>
    %851 = tpu.concatenate %849, %787, %725, %663, %601, %539 in 0 : vector<8x16xf32>, vector<8x16xf32>, vector<8x16xf32>, vector<8x16xf32>, vector<8x16xf32>, vector<8x16xf32> -> vector<48x16xf32>
    %852 = arith.truncf %850 : vector<48x16xf32> to vector<48x16xbf16>
    %853 = arith.truncf %851 : vector<48x16xf32> to vector<48x16xbf16>
    %854 = vector.extract_strided_slice %6 {offsets = [0, 0], sizes = [16, 32], strides = [1, 1]} : vector<32x32xbf16> to vector<16x32xbf16>
    %cst_156 = arith.constant dense<0.000000e+00> : vector<48x32xf32>
    %855 = tpu.matmul %852, %854, %cst_156 {dimension_numbers = #tpu.dot_dimension_numbers<[1], [0], [0], [1], [0, 0, 1, 1], [], []>} : vector<48x16xbf16>, vector<16x32xbf16>, vector<48x32xf32> -> vector<48x32xf32>
    %856 = vector.extract_strided_slice %6 {offsets = [16, 0], sizes = [16, 32], strides = [1, 1]} : vector<32x32xbf16> to vector<16x32xbf16>
    %cst_157 = arith.constant dense<0.000000e+00> : vector<48x32xf32>
    %857 = tpu.matmul %853, %856, %cst_157 {dimension_numbers = #tpu.dot_dimension_numbers<[1], [0], [0], [1], [0, 0, 1, 1], [], []>} : vector<48x16xbf16>, vector<16x32xbf16>, vector<48x32xf32> -> vector<48x32xf32>
    %858 = arith.addf %855, %857 : vector<48x32xf32>
    %859 = vector.broadcast %7 : vector<1x32xf32> to vector<48x32xf32>
    %860 = arith.addf %858, %859 : vector<48x32xf32>
    %861 = math.tanh %860 : vector<48x32xf32>
    %862 = vector.broadcast %8 : vector<1x32xf32> to vector<48x32xf32>
    %863 = arith.mulf %861, %862 : vector<48x32xf32>
    %cst_158 = arith.constant dense<0.000000e+00> : vector<48xf32>
    %864 = vector.multi_reduction <add>, %863, %cst_158 [1] : vector<48x32xf32> to vector<48xf32>
    %865 = vector.shape_cast %864 : vector<48xf32> to vector<48x1xf32>
    %866 = math.tanh %865 : vector<48x1xf32>
    %867 = math.exp %866 : vector<48x1xf32>
    %868 = vector.shape_cast %867 : vector<48x1xf32> to vector<6x8x1xf32>
    %cst_159 = arith.constant dense<0.000000e+00> : vector<8x1xf32>
    %869 = vector.multi_reduction <add>, %868, %cst_159 [0] : vector<6x8x1xf32> to vector<8x1xf32>
    %870 = vector.broadcast %867 : vector<48x1xf32> to vector<48x16xf32>
    %871 = arith.mulf %870, %850 : vector<48x16xf32>
    %872 = vector.shape_cast %871 : vector<48x16xf32> to vector<6x8x16xf32>
    %cst_160 = arith.constant dense<0.000000e+00> : vector<8x16xf32>
    %873 = vector.multi_reduction <add>, %872, %cst_160 [0] : vector<6x8x16xf32> to vector<8x16xf32>
    %874 = vector.broadcast %867 : vector<48x1xf32> to vector<48x16xf32>
    %875 = arith.mulf %874, %851 : vector<48x16xf32>
    %876 = vector.shape_cast %875 : vector<48x16xf32> to vector<6x8x16xf32>
    %cst_161 = arith.constant dense<0.000000e+00> : vector<8x16xf32>
    %877 = vector.multi_reduction <add>, %876, %cst_161 [0] : vector<6x8x16xf32> to vector<8x16xf32>
    %878 = tpu.reciprocal %869 {approx = true} : vector<8x1xf32> -> vector<8x1xf32>
    %879 = vector.broadcast %878 : vector<8x1xf32> to vector<8x16xf32>
    %880 = arith.mulf %873, %879 : vector<8x16xf32>
    %881 = vector.broadcast %878 : vector<8x1xf32> to vector<8x16xf32>
    %882 = arith.mulf %877, %881 : vector<8x16xf32>
    %883 = arith.truncf %880 : vector<8x16xf32> to vector<8x16xbf16>
    %884 = vector.extract_strided_slice %9 {offsets = [0, 0], sizes = [16, 96], strides = [1, 1]} : vector<32x96xbf16> to vector<16x96xbf16>
    %cst_162 = arith.constant dense<0.000000e+00> : vector<8x96xf32>
    %885 = tpu.matmul %883, %884, %cst_162 {dimension_numbers = #tpu.dot_dimension_numbers<[1], [0], [0], [1], [0, 0, 1, 1], [], []>} : vector<8x16xbf16>, vector<16x96xbf16>, vector<8x96xf32> -> vector<8x96xf32>
    %886 = arith.truncf %882 : vector<8x16xf32> to vector<8x16xbf16>
    %887 = vector.extract_strided_slice %9 {offsets = [16, 0], sizes = [16, 96], strides = [1, 1]} : vector<32x96xbf16> to vector<16x96xbf16>
    %cst_163 = arith.constant dense<0.000000e+00> : vector<8x96xf32>
    %888 = tpu.matmul %886, %887, %cst_163 {dimension_numbers = #tpu.dot_dimension_numbers<[1], [0], [0], [1], [0, 0, 1, 1], [], []>} : vector<8x16xbf16>, vector<16x96xbf16>, vector<8x96xf32> -> vector<8x96xf32>
    %889 = arith.addf %885, %888 : vector<8x96xf32>
    %890 = vector.broadcast %10 : vector<1x96xf32> to vector<8x96xf32>
    %891 = arith.addf %889, %890 : vector<8x96xf32>
    %892 = vector.extract_strided_slice %891 {offsets = [0, 0], sizes = [8, 48], strides = [1, 1]} : vector<8x96xf32> to vector<8x48xf32>
    %893 = arith.truncf %472 : vector<8x16xf32> to vector<8x16xbf16>
    %cst_164 = arith.constant dense<0.000000e+00> : vector<8x48xf32>
    %894 = tpu.matmul %893, %11, %cst_164 {dimension_numbers = #tpu.dot_dimension_numbers<[1], [0], [0], [1], [0, 0, 1, 1], [], []>} : vector<8x16xbf16>, vector<16x48xbf16>, vector<8x48xf32> -> vector<8x48xf32>
    %895 = vector.broadcast %12 : vector<1x48xf32> to vector<8x48xf32>
    %896 = arith.addf %894, %895 : vector<8x48xf32>
    %897 = vector.extract_strided_slice %892 {offsets = [0, 0], sizes = [8, 16], strides = [1, 1]} : vector<8x48xf32> to vector<8x16xf32>
    %898 = vector.extract_strided_slice %896 {offsets = [0, 0], sizes = [8, 16], strides = [1, 1]} : vector<8x48xf32> to vector<8x16xf32>
    %899 = arith.addf %897, %898 : vector<8x16xf32>
    %900 = arith.negf %899 : vector<8x16xf32>
    %901 = math.exp %900 : vector<8x16xf32>
    %cst_165 = arith.constant 1.000000e+00 : f32
    %902 = vector.broadcast %cst_165 : f32 to vector<8x16xf32>
    %903 = arith.addf %902, %901 : vector<8x16xf32>
    %904 = arith.divf %902, %903 : vector<8x16xf32>
    %905 = vector.extract_strided_slice %892 {offsets = [0, 16], sizes = [8, 16], strides = [1, 1]} : vector<8x48xf32> to vector<8x16xf32>
    %906 = vector.extract_strided_slice %896 {offsets = [0, 16], sizes = [8, 16], strides = [1, 1]} : vector<8x48xf32> to vector<8x16xf32>
    %907 = arith.addf %905, %906 : vector<8x16xf32>
    %908 = arith.negf %907 : vector<8x16xf32>
    %909 = math.exp %908 : vector<8x16xf32>
    %cst_166 = arith.constant 1.000000e+00 : f32
    %910 = vector.broadcast %cst_166 : f32 to vector<8x16xf32>
    %911 = arith.addf %910, %909 : vector<8x16xf32>
    %912 = arith.divf %910, %911 : vector<8x16xf32>
    %913 = vector.extract_strided_slice %892 {offsets = [0, 32], sizes = [8, 16], strides = [1, 1]} : vector<8x48xf32> to vector<8x16xf32>
    %914 = vector.extract_strided_slice %896 {offsets = [0, 32], sizes = [8, 16], strides = [1, 1]} : vector<8x48xf32> to vector<8x16xf32>
    %915 = arith.mulf %904, %914 : vector<8x16xf32>
    %916 = arith.addf %913, %915 : vector<8x16xf32>
    %917 = math.tanh %916 : vector<8x16xf32>
    %cst_167 = arith.constant 1.000000e+00 : f32
    %918 = vector.broadcast %cst_167 : f32 to vector<8x16xf32>
    %919 = arith.subf %918, %912 : vector<8x16xf32>
    %920 = arith.mulf %919, %917 : vector<8x16xf32>
    %921 = arith.mulf %912, %472 : vector<8x16xf32>
    %922 = arith.addf %920, %921 : vector<8x16xf32>
    %c0_168 = arith.constant 0 : index
    %c96 = arith.constant 96 : index
    %c0_169 = arith.constant 0 : index
    %923 = vector.load %arg1[%c0_168, %c96, %c0_169] : memref<1x192x32xbf16, #tpu.memory_space<vmem>>, vector<1x48x32xbf16>
    %924 = vector.shape_cast %923 : vector<1x48x32xbf16> to vector<48x32xbf16>
    %cst_170 = arith.constant dense<0.000000e+00> : vector<48x96xf32>
    %925 = tpu.matmul %924, %0, %cst_170 {dimension_numbers = #tpu.dot_dimension_numbers<[1], [0], [0], [1], [0, 0, 1, 1], [], []>} : vector<48x32xbf16>, vector<32x96xbf16>, vector<48x96xf32> -> vector<48x96xf32>
    %926 = vector.broadcast %1 : vector<1x96xf32> to vector<48x96xf32>
    %927 = arith.addf %925, %926 : vector<48x96xf32>
    %928 = vector.extract_strided_slice %927 {offsets = [0, 0], sizes = [8, 48], strides = [1, 1]} : vector<48x96xf32> to vector<8x48xf32>
    %929 = arith.truncf %818 : vector<8x16xf32> to vector<8x16xbf16>
    %cst_171 = arith.constant dense<0.000000e+00> : vector<8x48xf32>
    %930 = tpu.matmul %929, %2, %cst_171 {dimension_numbers = #tpu.dot_dimension_numbers<[1], [0], [0], [1], [0, 0, 1, 1], [], []>} : vector<8x16xbf16>, vector<16x48xbf16>, vector<8x48xf32> -> vector<8x48xf32>
    %931 = vector.broadcast %3 : vector<1x48xf32> to vector<8x48xf32>
    %932 = arith.addf %930, %931 : vector<8x48xf32>
    %933 = vector.extract_strided_slice %928 {offsets = [0, 0], sizes = [8, 16], strides = [1, 1]} : vector<8x48xf32> to vector<8x16xf32>
    %934 = vector.extract_strided_slice %932 {offsets = [0, 0], sizes = [8, 16], strides = [1, 1]} : vector<8x48xf32> to vector<8x16xf32>
    %935 = arith.addf %933, %934 : vector<8x16xf32>
    %936 = arith.negf %935 : vector<8x16xf32>
    %937 = math.exp %936 : vector<8x16xf32>
    %cst_172 = arith.constant 1.000000e+00 : f32
    %938 = vector.broadcast %cst_172 : f32 to vector<8x16xf32>
    %939 = arith.addf %938, %937 : vector<8x16xf32>
    %940 = arith.divf %938, %939 : vector<8x16xf32>
    %941 = vector.extract_strided_slice %928 {offsets = [0, 16], sizes = [8, 16], strides = [1, 1]} : vector<8x48xf32> to vector<8x16xf32>
    %942 = vector.extract_strided_slice %932 {offsets = [0, 16], sizes = [8, 16], strides = [1, 1]} : vector<8x48xf32> to vector<8x16xf32>
    %943 = arith.addf %941, %942 : vector<8x16xf32>
    %944 = arith.negf %943 : vector<8x16xf32>
    %945 = math.exp %944 : vector<8x16xf32>
    %cst_173 = arith.constant 1.000000e+00 : f32
    %946 = vector.broadcast %cst_173 : f32 to vector<8x16xf32>
    %947 = arith.addf %946, %945 : vector<8x16xf32>
    %948 = arith.divf %946, %947 : vector<8x16xf32>
    %949 = vector.extract_strided_slice %928 {offsets = [0, 32], sizes = [8, 16], strides = [1, 1]} : vector<8x48xf32> to vector<8x16xf32>
    %950 = vector.extract_strided_slice %932 {offsets = [0, 32], sizes = [8, 16], strides = [1, 1]} : vector<8x48xf32> to vector<8x16xf32>
    %951 = arith.mulf %940, %950 : vector<8x16xf32>
    %952 = arith.addf %949, %951 : vector<8x16xf32>
    %953 = math.tanh %952 : vector<8x16xf32>
    %cst_174 = arith.constant 1.000000e+00 : f32
    %954 = vector.broadcast %cst_174 : f32 to vector<8x16xf32>
    %955 = arith.subf %954, %948 : vector<8x16xf32>
    %956 = arith.mulf %955, %953 : vector<8x16xf32>
    %957 = arith.mulf %948, %818 : vector<8x16xf32>
    %958 = arith.addf %956, %957 : vector<8x16xf32>
    %959 = vector.extract_strided_slice %927 {offsets = [40, 48], sizes = [8, 48], strides = [1, 1]} : vector<48x96xf32> to vector<8x48xf32>
    %960 = arith.truncf %849 : vector<8x16xf32> to vector<8x16xbf16>
    %cst_175 = arith.constant dense<0.000000e+00> : vector<8x48xf32>
    %961 = tpu.matmul %960, %4, %cst_175 {dimension_numbers = #tpu.dot_dimension_numbers<[1], [0], [0], [1], [0, 0, 1, 1], [], []>} : vector<8x16xbf16>, vector<16x48xbf16>, vector<8x48xf32> -> vector<8x48xf32>
    %962 = vector.broadcast %5 : vector<1x48xf32> to vector<8x48xf32>
    %963 = arith.addf %961, %962 : vector<8x48xf32>
    %964 = vector.extract_strided_slice %959 {offsets = [0, 0], sizes = [8, 16], strides = [1, 1]} : vector<8x48xf32> to vector<8x16xf32>
    %965 = vector.extract_strided_slice %963 {offsets = [0, 0], sizes = [8, 16], strides = [1, 1]} : vector<8x48xf32> to vector<8x16xf32>
    %966 = arith.addf %964, %965 : vector<8x16xf32>
    %967 = arith.negf %966 : vector<8x16xf32>
    %968 = math.exp %967 : vector<8x16xf32>
    %cst_176 = arith.constant 1.000000e+00 : f32
    %969 = vector.broadcast %cst_176 : f32 to vector<8x16xf32>
    %970 = arith.addf %969, %968 : vector<8x16xf32>
    %971 = arith.divf %969, %970 : vector<8x16xf32>
    %972 = vector.extract_strided_slice %959 {offsets = [0, 16], sizes = [8, 16], strides = [1, 1]} : vector<8x48xf32> to vector<8x16xf32>
    %973 = vector.extract_strided_slice %963 {offsets = [0, 16], sizes = [8, 16], strides = [1, 1]} : vector<8x48xf32> to vector<8x16xf32>
    %974 = arith.addf %972, %973 : vector<8x16xf32>
    %975 = arith.negf %974 : vector<8x16xf32>
    %976 = math.exp %975 : vector<8x16xf32>
    %cst_177 = arith.constant 1.000000e+00 : f32
    %977 = vector.broadcast %cst_177 : f32 to vector<8x16xf32>
    %978 = arith.addf %977, %976 : vector<8x16xf32>
    %979 = arith.divf %977, %978 : vector<8x16xf32>
    %980 = vector.extract_strided_slice %959 {offsets = [0, 32], sizes = [8, 16], strides = [1, 1]} : vector<8x48xf32> to vector<8x16xf32>
    %981 = vector.extract_strided_slice %963 {offsets = [0, 32], sizes = [8, 16], strides = [1, 1]} : vector<8x48xf32> to vector<8x16xf32>
    %982 = arith.mulf %971, %981 : vector<8x16xf32>
    %983 = arith.addf %980, %982 : vector<8x16xf32>
    %984 = math.tanh %983 : vector<8x16xf32>
    %cst_178 = arith.constant 1.000000e+00 : f32
    %985 = vector.broadcast %cst_178 : f32 to vector<8x16xf32>
    %986 = arith.subf %985, %979 : vector<8x16xf32>
    %987 = arith.mulf %986, %984 : vector<8x16xf32>
    %988 = arith.mulf %979, %849 : vector<8x16xf32>
    %989 = arith.addf %987, %988 : vector<8x16xf32>
    %990 = vector.extract_strided_slice %927 {offsets = [8, 0], sizes = [8, 48], strides = [1, 1]} : vector<48x96xf32> to vector<8x48xf32>
    %991 = arith.truncf %958 : vector<8x16xf32> to vector<8x16xbf16>
    %cst_179 = arith.constant dense<0.000000e+00> : vector<8x48xf32>
    %992 = tpu.matmul %991, %2, %cst_179 {dimension_numbers = #tpu.dot_dimension_numbers<[1], [0], [0], [1], [0, 0, 1, 1], [], []>} : vector<8x16xbf16>, vector<16x48xbf16>, vector<8x48xf32> -> vector<8x48xf32>
    %993 = vector.broadcast %3 : vector<1x48xf32> to vector<8x48xf32>
    %994 = arith.addf %992, %993 : vector<8x48xf32>
    %995 = vector.extract_strided_slice %990 {offsets = [0, 0], sizes = [8, 16], strides = [1, 1]} : vector<8x48xf32> to vector<8x16xf32>
    %996 = vector.extract_strided_slice %994 {offsets = [0, 0], sizes = [8, 16], strides = [1, 1]} : vector<8x48xf32> to vector<8x16xf32>
    %997 = arith.addf %995, %996 : vector<8x16xf32>
    %998 = arith.negf %997 : vector<8x16xf32>
    %999 = math.exp %998 : vector<8x16xf32>
    %cst_180 = arith.constant 1.000000e+00 : f32
    %1000 = vector.broadcast %cst_180 : f32 to vector<8x16xf32>
    %1001 = arith.addf %1000, %999 : vector<8x16xf32>
    %1002 = arith.divf %1000, %1001 : vector<8x16xf32>
    %1003 = vector.extract_strided_slice %990 {offsets = [0, 16], sizes = [8, 16], strides = [1, 1]} : vector<8x48xf32> to vector<8x16xf32>
    %1004 = vector.extract_strided_slice %994 {offsets = [0, 16], sizes = [8, 16], strides = [1, 1]} : vector<8x48xf32> to vector<8x16xf32>
    %1005 = arith.addf %1003, %1004 : vector<8x16xf32>
    %1006 = arith.negf %1005 : vector<8x16xf32>
    %1007 = math.exp %1006 : vector<8x16xf32>
    %cst_181 = arith.constant 1.000000e+00 : f32
    %1008 = vector.broadcast %cst_181 : f32 to vector<8x16xf32>
    %1009 = arith.addf %1008, %1007 : vector<8x16xf32>
    %1010 = arith.divf %1008, %1009 : vector<8x16xf32>
    %1011 = vector.extract_strided_slice %990 {offsets = [0, 32], sizes = [8, 16], strides = [1, 1]} : vector<8x48xf32> to vector<8x16xf32>
    %1012 = vector.extract_strided_slice %994 {offsets = [0, 32], sizes = [8, 16], strides = [1, 1]} : vector<8x48xf32> to vector<8x16xf32>
    %1013 = arith.mulf %1002, %1012 : vector<8x16xf32>
    %1014 = arith.addf %1011, %1013 : vector<8x16xf32>
    %1015 = math.tanh %1014 : vector<8x16xf32>
    %cst_182 = arith.constant 1.000000e+00 : f32
    %1016 = vector.broadcast %cst_182 : f32 to vector<8x16xf32>
    %1017 = arith.subf %1016, %1010 : vector<8x16xf32>
    %1018 = arith.mulf %1017, %1015 : vector<8x16xf32>
    %1019 = arith.mulf %1010, %958 : vector<8x16xf32>
    %1020 = arith.addf %1018, %1019 : vector<8x16xf32>
    %1021 = vector.extract_strided_slice %927 {offsets = [32, 48], sizes = [8, 48], strides = [1, 1]} : vector<48x96xf32> to vector<8x48xf32>
    %1022 = arith.truncf %989 : vector<8x16xf32> to vector<8x16xbf16>
    %cst_183 = arith.constant dense<0.000000e+00> : vector<8x48xf32>
    %1023 = tpu.matmul %1022, %4, %cst_183 {dimension_numbers = #tpu.dot_dimension_numbers<[1], [0], [0], [1], [0, 0, 1, 1], [], []>} : vector<8x16xbf16>, vector<16x48xbf16>, vector<8x48xf32> -> vector<8x48xf32>
    %1024 = vector.broadcast %5 : vector<1x48xf32> to vector<8x48xf32>
    %1025 = arith.addf %1023, %1024 : vector<8x48xf32>
    %1026 = vector.extract_strided_slice %1021 {offsets = [0, 0], sizes = [8, 16], strides = [1, 1]} : vector<8x48xf32> to vector<8x16xf32>
    %1027 = vector.extract_strided_slice %1025 {offsets = [0, 0], sizes = [8, 16], strides = [1, 1]} : vector<8x48xf32> to vector<8x16xf32>
    %1028 = arith.addf %1026, %1027 : vector<8x16xf32>
    %1029 = arith.negf %1028 : vector<8x16xf32>
    %1030 = math.exp %1029 : vector<8x16xf32>
    %cst_184 = arith.constant 1.000000e+00 : f32
    %1031 = vector.broadcast %cst_184 : f32 to vector<8x16xf32>
    %1032 = arith.addf %1031, %1030 : vector<8x16xf32>
    %1033 = arith.divf %1031, %1032 : vector<8x16xf32>
    %1034 = vector.extract_strided_slice %1021 {offsets = [0, 16], sizes = [8, 16], strides = [1, 1]} : vector<8x48xf32> to vector<8x16xf32>
    %1035 = vector.extract_strided_slice %1025 {offsets = [0, 16], sizes = [8, 16], strides = [1, 1]} : vector<8x48xf32> to vector<8x16xf32>
    %1036 = arith.addf %1034, %1035 : vector<8x16xf32>
    %1037 = arith.negf %1036 : vector<8x16xf32>
    %1038 = math.exp %1037 : vector<8x16xf32>
    %cst_185 = arith.constant 1.000000e+00 : f32
    %1039 = vector.broadcast %cst_185 : f32 to vector<8x16xf32>
    %1040 = arith.addf %1039, %1038 : vector<8x16xf32>
    %1041 = arith.divf %1039, %1040 : vector<8x16xf32>
    %1042 = vector.extract_strided_slice %1021 {offsets = [0, 32], sizes = [8, 16], strides = [1, 1]} : vector<8x48xf32> to vector<8x16xf32>
    %1043 = vector.extract_strided_slice %1025 {offsets = [0, 32], sizes = [8, 16], strides = [1, 1]} : vector<8x48xf32> to vector<8x16xf32>
    %1044 = arith.mulf %1033, %1043 : vector<8x16xf32>
    %1045 = arith.addf %1042, %1044 : vector<8x16xf32>
    %1046 = math.tanh %1045 : vector<8x16xf32>
    %cst_186 = arith.constant 1.000000e+00 : f32
    %1047 = vector.broadcast %cst_186 : f32 to vector<8x16xf32>
    %1048 = arith.subf %1047, %1041 : vector<8x16xf32>
    %1049 = arith.mulf %1048, %1046 : vector<8x16xf32>
    %1050 = arith.mulf %1041, %989 : vector<8x16xf32>
    %1051 = arith.addf %1049, %1050 : vector<8x16xf32>
    %1052 = vector.extract_strided_slice %927 {offsets = [16, 0], sizes = [8, 48], strides = [1, 1]} : vector<48x96xf32> to vector<8x48xf32>
    %1053 = arith.truncf %1020 : vector<8x16xf32> to vector<8x16xbf16>
    %cst_187 = arith.constant dense<0.000000e+00> : vector<8x48xf32>
    %1054 = tpu.matmul %1053, %2, %cst_187 {dimension_numbers = #tpu.dot_dimension_numbers<[1], [0], [0], [1], [0, 0, 1, 1], [], []>} : vector<8x16xbf16>, vector<16x48xbf16>, vector<8x48xf32> -> vector<8x48xf32>
    %1055 = vector.broadcast %3 : vector<1x48xf32> to vector<8x48xf32>
    %1056 = arith.addf %1054, %1055 : vector<8x48xf32>
    %1057 = vector.extract_strided_slice %1052 {offsets = [0, 0], sizes = [8, 16], strides = [1, 1]} : vector<8x48xf32> to vector<8x16xf32>
    %1058 = vector.extract_strided_slice %1056 {offsets = [0, 0], sizes = [8, 16], strides = [1, 1]} : vector<8x48xf32> to vector<8x16xf32>
    %1059 = arith.addf %1057, %1058 : vector<8x16xf32>
    %1060 = arith.negf %1059 : vector<8x16xf32>
    %1061 = math.exp %1060 : vector<8x16xf32>
    %cst_188 = arith.constant 1.000000e+00 : f32
    %1062 = vector.broadcast %cst_188 : f32 to vector<8x16xf32>
    %1063 = arith.addf %1062, %1061 : vector<8x16xf32>
    %1064 = arith.divf %1062, %1063 : vector<8x16xf32>
    %1065 = vector.extract_strided_slice %1052 {offsets = [0, 16], sizes = [8, 16], strides = [1, 1]} : vector<8x48xf32> to vector<8x16xf32>
    %1066 = vector.extract_strided_slice %1056 {offsets = [0, 16], sizes = [8, 16], strides = [1, 1]} : vector<8x48xf32> to vector<8x16xf32>
    %1067 = arith.addf %1065, %1066 : vector<8x16xf32>
    %1068 = arith.negf %1067 : vector<8x16xf32>
    %1069 = math.exp %1068 : vector<8x16xf32>
    %cst_189 = arith.constant 1.000000e+00 : f32
    %1070 = vector.broadcast %cst_189 : f32 to vector<8x16xf32>
    %1071 = arith.addf %1070, %1069 : vector<8x16xf32>
    %1072 = arith.divf %1070, %1071 : vector<8x16xf32>
    %1073 = vector.extract_strided_slice %1052 {offsets = [0, 32], sizes = [8, 16], strides = [1, 1]} : vector<8x48xf32> to vector<8x16xf32>
    %1074 = vector.extract_strided_slice %1056 {offsets = [0, 32], sizes = [8, 16], strides = [1, 1]} : vector<8x48xf32> to vector<8x16xf32>
    %1075 = arith.mulf %1064, %1074 : vector<8x16xf32>
    %1076 = arith.addf %1073, %1075 : vector<8x16xf32>
    %1077 = math.tanh %1076 : vector<8x16xf32>
    %cst_190 = arith.constant 1.000000e+00 : f32
    %1078 = vector.broadcast %cst_190 : f32 to vector<8x16xf32>
    %1079 = arith.subf %1078, %1072 : vector<8x16xf32>
    %1080 = arith.mulf %1079, %1077 : vector<8x16xf32>
    %1081 = arith.mulf %1072, %1020 : vector<8x16xf32>
    %1082 = arith.addf %1080, %1081 : vector<8x16xf32>
    %1083 = vector.extract_strided_slice %927 {offsets = [24, 48], sizes = [8, 48], strides = [1, 1]} : vector<48x96xf32> to vector<8x48xf32>
    %1084 = arith.truncf %1051 : vector<8x16xf32> to vector<8x16xbf16>
    %cst_191 = arith.constant dense<0.000000e+00> : vector<8x48xf32>
    %1085 = tpu.matmul %1084, %4, %cst_191 {dimension_numbers = #tpu.dot_dimension_numbers<[1], [0], [0], [1], [0, 0, 1, 1], [], []>} : vector<8x16xbf16>, vector<16x48xbf16>, vector<8x48xf32> -> vector<8x48xf32>
    %1086 = vector.broadcast %5 : vector<1x48xf32> to vector<8x48xf32>
    %1087 = arith.addf %1085, %1086 : vector<8x48xf32>
    %1088 = vector.extract_strided_slice %1083 {offsets = [0, 0], sizes = [8, 16], strides = [1, 1]} : vector<8x48xf32> to vector<8x16xf32>
    %1089 = vector.extract_strided_slice %1087 {offsets = [0, 0], sizes = [8, 16], strides = [1, 1]} : vector<8x48xf32> to vector<8x16xf32>
    %1090 = arith.addf %1088, %1089 : vector<8x16xf32>
    %1091 = arith.negf %1090 : vector<8x16xf32>
    %1092 = math.exp %1091 : vector<8x16xf32>
    %cst_192 = arith.constant 1.000000e+00 : f32
    %1093 = vector.broadcast %cst_192 : f32 to vector<8x16xf32>
    %1094 = arith.addf %1093, %1092 : vector<8x16xf32>
    %1095 = arith.divf %1093, %1094 : vector<8x16xf32>
    %1096 = vector.extract_strided_slice %1083 {offsets = [0, 16], sizes = [8, 16], strides = [1, 1]} : vector<8x48xf32> to vector<8x16xf32>
    %1097 = vector.extract_strided_slice %1087 {offsets = [0, 16], sizes = [8, 16], strides = [1, 1]} : vector<8x48xf32> to vector<8x16xf32>
    %1098 = arith.addf %1096, %1097 : vector<8x16xf32>
    %1099 = arith.negf %1098 : vector<8x16xf32>
    %1100 = math.exp %1099 : vector<8x16xf32>
    %cst_193 = arith.constant 1.000000e+00 : f32
    %1101 = vector.broadcast %cst_193 : f32 to vector<8x16xf32>
    %1102 = arith.addf %1101, %1100 : vector<8x16xf32>
    %1103 = arith.divf %1101, %1102 : vector<8x16xf32>
    %1104 = vector.extract_strided_slice %1083 {offsets = [0, 32], sizes = [8, 16], strides = [1, 1]} : vector<8x48xf32> to vector<8x16xf32>
    %1105 = vector.extract_strided_slice %1087 {offsets = [0, 32], sizes = [8, 16], strides = [1, 1]} : vector<8x48xf32> to vector<8x16xf32>
    %1106 = arith.mulf %1095, %1105 : vector<8x16xf32>
    %1107 = arith.addf %1104, %1106 : vector<8x16xf32>
    %1108 = math.tanh %1107 : vector<8x16xf32>
    %cst_194 = arith.constant 1.000000e+00 : f32
    %1109 = vector.broadcast %cst_194 : f32 to vector<8x16xf32>
    %1110 = arith.subf %1109, %1103 : vector<8x16xf32>
    %1111 = arith.mulf %1110, %1108 : vector<8x16xf32>
    %1112 = arith.mulf %1103, %1051 : vector<8x16xf32>
    %1113 = arith.addf %1111, %1112 : vector<8x16xf32>
    %1114 = vector.extract_strided_slice %927 {offsets = [24, 0], sizes = [8, 48], strides = [1, 1]} : vector<48x96xf32> to vector<8x48xf32>
    %1115 = arith.truncf %1082 : vector<8x16xf32> to vector<8x16xbf16>
    %cst_195 = arith.constant dense<0.000000e+00> : vector<8x48xf32>
    %1116 = tpu.matmul %1115, %2, %cst_195 {dimension_numbers = #tpu.dot_dimension_numbers<[1], [0], [0], [1], [0, 0, 1, 1], [], []>} : vector<8x16xbf16>, vector<16x48xbf16>, vector<8x48xf32> -> vector<8x48xf32>
    %1117 = vector.broadcast %3 : vector<1x48xf32> to vector<8x48xf32>
    %1118 = arith.addf %1116, %1117 : vector<8x48xf32>
    %1119 = vector.extract_strided_slice %1114 {offsets = [0, 0], sizes = [8, 16], strides = [1, 1]} : vector<8x48xf32> to vector<8x16xf32>
    %1120 = vector.extract_strided_slice %1118 {offsets = [0, 0], sizes = [8, 16], strides = [1, 1]} : vector<8x48xf32> to vector<8x16xf32>
    %1121 = arith.addf %1119, %1120 : vector<8x16xf32>
    %1122 = arith.negf %1121 : vector<8x16xf32>
    %1123 = math.exp %1122 : vector<8x16xf32>
    %cst_196 = arith.constant 1.000000e+00 : f32
    %1124 = vector.broadcast %cst_196 : f32 to vector<8x16xf32>
    %1125 = arith.addf %1124, %1123 : vector<8x16xf32>
    %1126 = arith.divf %1124, %1125 : vector<8x16xf32>
    %1127 = vector.extract_strided_slice %1114 {offsets = [0, 16], sizes = [8, 16], strides = [1, 1]} : vector<8x48xf32> to vector<8x16xf32>
    %1128 = vector.extract_strided_slice %1118 {offsets = [0, 16], sizes = [8, 16], strides = [1, 1]} : vector<8x48xf32> to vector<8x16xf32>
    %1129 = arith.addf %1127, %1128 : vector<8x16xf32>
    %1130 = arith.negf %1129 : vector<8x16xf32>
    %1131 = math.exp %1130 : vector<8x16xf32>
    %cst_197 = arith.constant 1.000000e+00 : f32
    %1132 = vector.broadcast %cst_197 : f32 to vector<8x16xf32>
    %1133 = arith.addf %1132, %1131 : vector<8x16xf32>
    %1134 = arith.divf %1132, %1133 : vector<8x16xf32>
    %1135 = vector.extract_strided_slice %1114 {offsets = [0, 32], sizes = [8, 16], strides = [1, 1]} : vector<8x48xf32> to vector<8x16xf32>
    %1136 = vector.extract_strided_slice %1118 {offsets = [0, 32], sizes = [8, 16], strides = [1, 1]} : vector<8x48xf32> to vector<8x16xf32>
    %1137 = arith.mulf %1126, %1136 : vector<8x16xf32>
    %1138 = arith.addf %1135, %1137 : vector<8x16xf32>
    %1139 = math.tanh %1138 : vector<8x16xf32>
    %cst_198 = arith.constant 1.000000e+00 : f32
    %1140 = vector.broadcast %cst_198 : f32 to vector<8x16xf32>
    %1141 = arith.subf %1140, %1134 : vector<8x16xf32>
    %1142 = arith.mulf %1141, %1139 : vector<8x16xf32>
    %1143 = arith.mulf %1134, %1082 : vector<8x16xf32>
    %1144 = arith.addf %1142, %1143 : vector<8x16xf32>
    %1145 = vector.extract_strided_slice %927 {offsets = [16, 48], sizes = [8, 48], strides = [1, 1]} : vector<48x96xf32> to vector<8x48xf32>
    %1146 = arith.truncf %1113 : vector<8x16xf32> to vector<8x16xbf16>
    %cst_199 = arith.constant dense<0.000000e+00> : vector<8x48xf32>
    %1147 = tpu.matmul %1146, %4, %cst_199 {dimension_numbers = #tpu.dot_dimension_numbers<[1], [0], [0], [1], [0, 0, 1, 1], [], []>} : vector<8x16xbf16>, vector<16x48xbf16>, vector<8x48xf32> -> vector<8x48xf32>
    %1148 = vector.broadcast %5 : vector<1x48xf32> to vector<8x48xf32>
    %1149 = arith.addf %1147, %1148 : vector<8x48xf32>
    %1150 = vector.extract_strided_slice %1145 {offsets = [0, 0], sizes = [8, 16], strides = [1, 1]} : vector<8x48xf32> to vector<8x16xf32>
    %1151 = vector.extract_strided_slice %1149 {offsets = [0, 0], sizes = [8, 16], strides = [1, 1]} : vector<8x48xf32> to vector<8x16xf32>
    %1152 = arith.addf %1150, %1151 : vector<8x16xf32>
    %1153 = arith.negf %1152 : vector<8x16xf32>
    %1154 = math.exp %1153 : vector<8x16xf32>
    %cst_200 = arith.constant 1.000000e+00 : f32
    %1155 = vector.broadcast %cst_200 : f32 to vector<8x16xf32>
    %1156 = arith.addf %1155, %1154 : vector<8x16xf32>
    %1157 = arith.divf %1155, %1156 : vector<8x16xf32>
    %1158 = vector.extract_strided_slice %1145 {offsets = [0, 16], sizes = [8, 16], strides = [1, 1]} : vector<8x48xf32> to vector<8x16xf32>
    %1159 = vector.extract_strided_slice %1149 {offsets = [0, 16], sizes = [8, 16], strides = [1, 1]} : vector<8x48xf32> to vector<8x16xf32>
    %1160 = arith.addf %1158, %1159 : vector<8x16xf32>
    %1161 = arith.negf %1160 : vector<8x16xf32>
    %1162 = math.exp %1161 : vector<8x16xf32>
    %cst_201 = arith.constant 1.000000e+00 : f32
    %1163 = vector.broadcast %cst_201 : f32 to vector<8x16xf32>
    %1164 = arith.addf %1163, %1162 : vector<8x16xf32>
    %1165 = arith.divf %1163, %1164 : vector<8x16xf32>
    %1166 = vector.extract_strided_slice %1145 {offsets = [0, 32], sizes = [8, 16], strides = [1, 1]} : vector<8x48xf32> to vector<8x16xf32>
    %1167 = vector.extract_strided_slice %1149 {offsets = [0, 32], sizes = [8, 16], strides = [1, 1]} : vector<8x48xf32> to vector<8x16xf32>
    %1168 = arith.mulf %1157, %1167 : vector<8x16xf32>
    %1169 = arith.addf %1166, %1168 : vector<8x16xf32>
    %1170 = math.tanh %1169 : vector<8x16xf32>
    %cst_202 = arith.constant 1.000000e+00 : f32
    %1171 = vector.broadcast %cst_202 : f32 to vector<8x16xf32>
    %1172 = arith.subf %1171, %1165 : vector<8x16xf32>
    %1173 = arith.mulf %1172, %1170 : vector<8x16xf32>
    %1174 = arith.mulf %1165, %1113 : vector<8x16xf32>
    %1175 = arith.addf %1173, %1174 : vector<8x16xf32>
    %1176 = vector.extract_strided_slice %927 {offsets = [32, 0], sizes = [8, 48], strides = [1, 1]} : vector<48x96xf32> to vector<8x48xf32>
    %1177 = arith.truncf %1144 : vector<8x16xf32> to vector<8x16xbf16>
    %cst_203 = arith.constant dense<0.000000e+00> : vector<8x48xf32>
    %1178 = tpu.matmul %1177, %2, %cst_203 {dimension_numbers = #tpu.dot_dimension_numbers<[1], [0], [0], [1], [0, 0, 1, 1], [], []>} : vector<8x16xbf16>, vector<16x48xbf16>, vector<8x48xf32> -> vector<8x48xf32>
    %1179 = vector.broadcast %3 : vector<1x48xf32> to vector<8x48xf32>
    %1180 = arith.addf %1178, %1179 : vector<8x48xf32>
    %1181 = vector.extract_strided_slice %1176 {offsets = [0, 0], sizes = [8, 16], strides = [1, 1]} : vector<8x48xf32> to vector<8x16xf32>
    %1182 = vector.extract_strided_slice %1180 {offsets = [0, 0], sizes = [8, 16], strides = [1, 1]} : vector<8x48xf32> to vector<8x16xf32>
    %1183 = arith.addf %1181, %1182 : vector<8x16xf32>
    %1184 = arith.negf %1183 : vector<8x16xf32>
    %1185 = math.exp %1184 : vector<8x16xf32>
    %cst_204 = arith.constant 1.000000e+00 : f32
    %1186 = vector.broadcast %cst_204 : f32 to vector<8x16xf32>
    %1187 = arith.addf %1186, %1185 : vector<8x16xf32>
    %1188 = arith.divf %1186, %1187 : vector<8x16xf32>
    %1189 = vector.extract_strided_slice %1176 {offsets = [0, 16], sizes = [8, 16], strides = [1, 1]} : vector<8x48xf32> to vector<8x16xf32>
    %1190 = vector.extract_strided_slice %1180 {offsets = [0, 16], sizes = [8, 16], strides = [1, 1]} : vector<8x48xf32> to vector<8x16xf32>
    %1191 = arith.addf %1189, %1190 : vector<8x16xf32>
    %1192 = arith.negf %1191 : vector<8x16xf32>
    %1193 = math.exp %1192 : vector<8x16xf32>
    %cst_205 = arith.constant 1.000000e+00 : f32
    %1194 = vector.broadcast %cst_205 : f32 to vector<8x16xf32>
    %1195 = arith.addf %1194, %1193 : vector<8x16xf32>
    %1196 = arith.divf %1194, %1195 : vector<8x16xf32>
    %1197 = vector.extract_strided_slice %1176 {offsets = [0, 32], sizes = [8, 16], strides = [1, 1]} : vector<8x48xf32> to vector<8x16xf32>
    %1198 = vector.extract_strided_slice %1180 {offsets = [0, 32], sizes = [8, 16], strides = [1, 1]} : vector<8x48xf32> to vector<8x16xf32>
    %1199 = arith.mulf %1188, %1198 : vector<8x16xf32>
    %1200 = arith.addf %1197, %1199 : vector<8x16xf32>
    %1201 = math.tanh %1200 : vector<8x16xf32>
    %cst_206 = arith.constant 1.000000e+00 : f32
    %1202 = vector.broadcast %cst_206 : f32 to vector<8x16xf32>
    %1203 = arith.subf %1202, %1196 : vector<8x16xf32>
    %1204 = arith.mulf %1203, %1201 : vector<8x16xf32>
    %1205 = arith.mulf %1196, %1144 : vector<8x16xf32>
    %1206 = arith.addf %1204, %1205 : vector<8x16xf32>
    %1207 = vector.extract_strided_slice %927 {offsets = [8, 48], sizes = [8, 48], strides = [1, 1]} : vector<48x96xf32> to vector<8x48xf32>
    %1208 = arith.truncf %1175 : vector<8x16xf32> to vector<8x16xbf16>
    %cst_207 = arith.constant dense<0.000000e+00> : vector<8x48xf32>
    %1209 = tpu.matmul %1208, %4, %cst_207 {dimension_numbers = #tpu.dot_dimension_numbers<[1], [0], [0], [1], [0, 0, 1, 1], [], []>} : vector<8x16xbf16>, vector<16x48xbf16>, vector<8x48xf32> -> vector<8x48xf32>
    %1210 = vector.broadcast %5 : vector<1x48xf32> to vector<8x48xf32>
    %1211 = arith.addf %1209, %1210 : vector<8x48xf32>
    %1212 = vector.extract_strided_slice %1207 {offsets = [0, 0], sizes = [8, 16], strides = [1, 1]} : vector<8x48xf32> to vector<8x16xf32>
    %1213 = vector.extract_strided_slice %1211 {offsets = [0, 0], sizes = [8, 16], strides = [1, 1]} : vector<8x48xf32> to vector<8x16xf32>
    %1214 = arith.addf %1212, %1213 : vector<8x16xf32>
    %1215 = arith.negf %1214 : vector<8x16xf32>
    %1216 = math.exp %1215 : vector<8x16xf32>
    %cst_208 = arith.constant 1.000000e+00 : f32
    %1217 = vector.broadcast %cst_208 : f32 to vector<8x16xf32>
    %1218 = arith.addf %1217, %1216 : vector<8x16xf32>
    %1219 = arith.divf %1217, %1218 : vector<8x16xf32>
    %1220 = vector.extract_strided_slice %1207 {offsets = [0, 16], sizes = [8, 16], strides = [1, 1]} : vector<8x48xf32> to vector<8x16xf32>
    %1221 = vector.extract_strided_slice %1211 {offsets = [0, 16], sizes = [8, 16], strides = [1, 1]} : vector<8x48xf32> to vector<8x16xf32>
    %1222 = arith.addf %1220, %1221 : vector<8x16xf32>
    %1223 = arith.negf %1222 : vector<8x16xf32>
    %1224 = math.exp %1223 : vector<8x16xf32>
    %cst_209 = arith.constant 1.000000e+00 : f32
    %1225 = vector.broadcast %cst_209 : f32 to vector<8x16xf32>
    %1226 = arith.addf %1225, %1224 : vector<8x16xf32>
    %1227 = arith.divf %1225, %1226 : vector<8x16xf32>
    %1228 = vector.extract_strided_slice %1207 {offsets = [0, 32], sizes = [8, 16], strides = [1, 1]} : vector<8x48xf32> to vector<8x16xf32>
    %1229 = vector.extract_strided_slice %1211 {offsets = [0, 32], sizes = [8, 16], strides = [1, 1]} : vector<8x48xf32> to vector<8x16xf32>
    %1230 = arith.mulf %1219, %1229 : vector<8x16xf32>
    %1231 = arith.addf %1228, %1230 : vector<8x16xf32>
    %1232 = math.tanh %1231 : vector<8x16xf32>
    %cst_210 = arith.constant 1.000000e+00 : f32
    %1233 = vector.broadcast %cst_210 : f32 to vector<8x16xf32>
    %1234 = arith.subf %1233, %1227 : vector<8x16xf32>
    %1235 = arith.mulf %1234, %1232 : vector<8x16xf32>
    %1236 = arith.mulf %1227, %1175 : vector<8x16xf32>
    %1237 = arith.addf %1235, %1236 : vector<8x16xf32>
    %1238 = vector.extract_strided_slice %927 {offsets = [40, 0], sizes = [8, 48], strides = [1, 1]} : vector<48x96xf32> to vector<8x48xf32>
    %1239 = arith.truncf %1206 : vector<8x16xf32> to vector<8x16xbf16>
    %cst_211 = arith.constant dense<0.000000e+00> : vector<8x48xf32>
    %1240 = tpu.matmul %1239, %2, %cst_211 {dimension_numbers = #tpu.dot_dimension_numbers<[1], [0], [0], [1], [0, 0, 1, 1], [], []>} : vector<8x16xbf16>, vector<16x48xbf16>, vector<8x48xf32> -> vector<8x48xf32>
    %1241 = vector.broadcast %3 : vector<1x48xf32> to vector<8x48xf32>
    %1242 = arith.addf %1240, %1241 : vector<8x48xf32>
    %1243 = vector.extract_strided_slice %1238 {offsets = [0, 0], sizes = [8, 16], strides = [1, 1]} : vector<8x48xf32> to vector<8x16xf32>
    %1244 = vector.extract_strided_slice %1242 {offsets = [0, 0], sizes = [8, 16], strides = [1, 1]} : vector<8x48xf32> to vector<8x16xf32>
    %1245 = arith.addf %1243, %1244 : vector<8x16xf32>
    %1246 = arith.negf %1245 : vector<8x16xf32>
    %1247 = math.exp %1246 : vector<8x16xf32>
    %cst_212 = arith.constant 1.000000e+00 : f32
    %1248 = vector.broadcast %cst_212 : f32 to vector<8x16xf32>
    %1249 = arith.addf %1248, %1247 : vector<8x16xf32>
    %1250 = arith.divf %1248, %1249 : vector<8x16xf32>
    %1251 = vector.extract_strided_slice %1238 {offsets = [0, 16], sizes = [8, 16], strides = [1, 1]} : vector<8x48xf32> to vector<8x16xf32>
    %1252 = vector.extract_strided_slice %1242 {offsets = [0, 16], sizes = [8, 16], strides = [1, 1]} : vector<8x48xf32> to vector<8x16xf32>
    %1253 = arith.addf %1251, %1252 : vector<8x16xf32>
    %1254 = arith.negf %1253 : vector<8x16xf32>
    %1255 = math.exp %1254 : vector<8x16xf32>
    %cst_213 = arith.constant 1.000000e+00 : f32
    %1256 = vector.broadcast %cst_213 : f32 to vector<8x16xf32>
    %1257 = arith.addf %1256, %1255 : vector<8x16xf32>
    %1258 = arith.divf %1256, %1257 : vector<8x16xf32>
    %1259 = vector.extract_strided_slice %1238 {offsets = [0, 32], sizes = [8, 16], strides = [1, 1]} : vector<8x48xf32> to vector<8x16xf32>
    %1260 = vector.extract_strided_slice %1242 {offsets = [0, 32], sizes = [8, 16], strides = [1, 1]} : vector<8x48xf32> to vector<8x16xf32>
    %1261 = arith.mulf %1250, %1260 : vector<8x16xf32>
    %1262 = arith.addf %1259, %1261 : vector<8x16xf32>
    %1263 = math.tanh %1262 : vector<8x16xf32>
    %cst_214 = arith.constant 1.000000e+00 : f32
    %1264 = vector.broadcast %cst_214 : f32 to vector<8x16xf32>
    %1265 = arith.subf %1264, %1258 : vector<8x16xf32>
    %1266 = arith.mulf %1265, %1263 : vector<8x16xf32>
    %1267 = arith.mulf %1258, %1206 : vector<8x16xf32>
    %1268 = arith.addf %1266, %1267 : vector<8x16xf32>
    %1269 = vector.extract_strided_slice %927 {offsets = [0, 48], sizes = [8, 48], strides = [1, 1]} : vector<48x96xf32> to vector<8x48xf32>
    %1270 = arith.truncf %1237 : vector<8x16xf32> to vector<8x16xbf16>
    %cst_215 = arith.constant dense<0.000000e+00> : vector<8x48xf32>
    %1271 = tpu.matmul %1270, %4, %cst_215 {dimension_numbers = #tpu.dot_dimension_numbers<[1], [0], [0], [1], [0, 0, 1, 1], [], []>} : vector<8x16xbf16>, vector<16x48xbf16>, vector<8x48xf32> -> vector<8x48xf32>
    %1272 = vector.broadcast %5 : vector<1x48xf32> to vector<8x48xf32>
    %1273 = arith.addf %1271, %1272 : vector<8x48xf32>
    %1274 = vector.extract_strided_slice %1269 {offsets = [0, 0], sizes = [8, 16], strides = [1, 1]} : vector<8x48xf32> to vector<8x16xf32>
    %1275 = vector.extract_strided_slice %1273 {offsets = [0, 0], sizes = [8, 16], strides = [1, 1]} : vector<8x48xf32> to vector<8x16xf32>
    %1276 = arith.addf %1274, %1275 : vector<8x16xf32>
    %1277 = arith.negf %1276 : vector<8x16xf32>
    %1278 = math.exp %1277 : vector<8x16xf32>
    %cst_216 = arith.constant 1.000000e+00 : f32
    %1279 = vector.broadcast %cst_216 : f32 to vector<8x16xf32>
    %1280 = arith.addf %1279, %1278 : vector<8x16xf32>
    %1281 = arith.divf %1279, %1280 : vector<8x16xf32>
    %1282 = vector.extract_strided_slice %1269 {offsets = [0, 16], sizes = [8, 16], strides = [1, 1]} : vector<8x48xf32> to vector<8x16xf32>
    %1283 = vector.extract_strided_slice %1273 {offsets = [0, 16], sizes = [8, 16], strides = [1, 1]} : vector<8x48xf32> to vector<8x16xf32>
    %1284 = arith.addf %1282, %1283 : vector<8x16xf32>
    %1285 = arith.negf %1284 : vector<8x16xf32>
    %1286 = math.exp %1285 : vector<8x16xf32>
    %cst_217 = arith.constant 1.000000e+00 : f32
    %1287 = vector.broadcast %cst_217 : f32 to vector<8x16xf32>
    %1288 = arith.addf %1287, %1286 : vector<8x16xf32>
    %1289 = arith.divf %1287, %1288 : vector<8x16xf32>
    %1290 = vector.extract_strided_slice %1269 {offsets = [0, 32], sizes = [8, 16], strides = [1, 1]} : vector<8x48xf32> to vector<8x16xf32>
    %1291 = vector.extract_strided_slice %1273 {offsets = [0, 32], sizes = [8, 16], strides = [1, 1]} : vector<8x48xf32> to vector<8x16xf32>
    %1292 = arith.mulf %1281, %1291 : vector<8x16xf32>
    %1293 = arith.addf %1290, %1292 : vector<8x16xf32>
    %1294 = math.tanh %1293 : vector<8x16xf32>
    %cst_218 = arith.constant 1.000000e+00 : f32
    %1295 = vector.broadcast %cst_218 : f32 to vector<8x16xf32>
    %1296 = arith.subf %1295, %1289 : vector<8x16xf32>
    %1297 = arith.mulf %1296, %1294 : vector<8x16xf32>
    %1298 = arith.mulf %1289, %1237 : vector<8x16xf32>
    %1299 = arith.addf %1297, %1298 : vector<8x16xf32>
    %1300 = tpu.concatenate %958, %1020, %1082, %1144, %1206, %1268 in 0 : vector<8x16xf32>, vector<8x16xf32>, vector<8x16xf32>, vector<8x16xf32>, vector<8x16xf32>, vector<8x16xf32> -> vector<48x16xf32>
    %1301 = tpu.concatenate %1299, %1237, %1175, %1113, %1051, %989 in 0 : vector<8x16xf32>, vector<8x16xf32>, vector<8x16xf32>, vector<8x16xf32>, vector<8x16xf32>, vector<8x16xf32> -> vector<48x16xf32>
    %1302 = arith.truncf %1300 : vector<48x16xf32> to vector<48x16xbf16>
    %1303 = arith.truncf %1301 : vector<48x16xf32> to vector<48x16xbf16>
    %1304 = vector.extract_strided_slice %6 {offsets = [0, 0], sizes = [16, 32], strides = [1, 1]} : vector<32x32xbf16> to vector<16x32xbf16>
    %cst_219 = arith.constant dense<0.000000e+00> : vector<48x32xf32>
    %1305 = tpu.matmul %1302, %1304, %cst_219 {dimension_numbers = #tpu.dot_dimension_numbers<[1], [0], [0], [1], [0, 0, 1, 1], [], []>} : vector<48x16xbf16>, vector<16x32xbf16>, vector<48x32xf32> -> vector<48x32xf32>
    %1306 = vector.extract_strided_slice %6 {offsets = [16, 0], sizes = [16, 32], strides = [1, 1]} : vector<32x32xbf16> to vector<16x32xbf16>
    %cst_220 = arith.constant dense<0.000000e+00> : vector<48x32xf32>
    %1307 = tpu.matmul %1303, %1306, %cst_220 {dimension_numbers = #tpu.dot_dimension_numbers<[1], [0], [0], [1], [0, 0, 1, 1], [], []>} : vector<48x16xbf16>, vector<16x32xbf16>, vector<48x32xf32> -> vector<48x32xf32>
    %1308 = arith.addf %1305, %1307 : vector<48x32xf32>
    %1309 = vector.broadcast %7 : vector<1x32xf32> to vector<48x32xf32>
    %1310 = arith.addf %1308, %1309 : vector<48x32xf32>
    %1311 = math.tanh %1310 : vector<48x32xf32>
    %1312 = vector.broadcast %8 : vector<1x32xf32> to vector<48x32xf32>
    %1313 = arith.mulf %1311, %1312 : vector<48x32xf32>
    %cst_221 = arith.constant dense<0.000000e+00> : vector<48xf32>
    %1314 = vector.multi_reduction <add>, %1313, %cst_221 [1] : vector<48x32xf32> to vector<48xf32>
    %1315 = vector.shape_cast %1314 : vector<48xf32> to vector<48x1xf32>
    %1316 = math.tanh %1315 : vector<48x1xf32>
    %1317 = math.exp %1316 : vector<48x1xf32>
    %1318 = vector.shape_cast %1317 : vector<48x1xf32> to vector<6x8x1xf32>
    %cst_222 = arith.constant dense<0.000000e+00> : vector<8x1xf32>
    %1319 = vector.multi_reduction <add>, %1318, %cst_222 [0] : vector<6x8x1xf32> to vector<8x1xf32>
    %1320 = vector.broadcast %1317 : vector<48x1xf32> to vector<48x16xf32>
    %1321 = arith.mulf %1320, %1300 : vector<48x16xf32>
    %1322 = vector.shape_cast %1321 : vector<48x16xf32> to vector<6x8x16xf32>
    %cst_223 = arith.constant dense<0.000000e+00> : vector<8x16xf32>
    %1323 = vector.multi_reduction <add>, %1322, %cst_223 [0] : vector<6x8x16xf32> to vector<8x16xf32>
    %1324 = vector.broadcast %1317 : vector<48x1xf32> to vector<48x16xf32>
    %1325 = arith.mulf %1324, %1301 : vector<48x16xf32>
    %1326 = vector.shape_cast %1325 : vector<48x16xf32> to vector<6x8x16xf32>
    %cst_224 = arith.constant dense<0.000000e+00> : vector<8x16xf32>
    %1327 = vector.multi_reduction <add>, %1326, %cst_224 [0] : vector<6x8x16xf32> to vector<8x16xf32>
    %1328 = tpu.reciprocal %1319 {approx = true} : vector<8x1xf32> -> vector<8x1xf32>
    %1329 = vector.broadcast %1328 : vector<8x1xf32> to vector<8x16xf32>
    %1330 = arith.mulf %1323, %1329 : vector<8x16xf32>
    %1331 = vector.broadcast %1328 : vector<8x1xf32> to vector<8x16xf32>
    %1332 = arith.mulf %1327, %1331 : vector<8x16xf32>
    %1333 = arith.truncf %1330 : vector<8x16xf32> to vector<8x16xbf16>
    %1334 = vector.extract_strided_slice %9 {offsets = [0, 0], sizes = [16, 96], strides = [1, 1]} : vector<32x96xbf16> to vector<16x96xbf16>
    %cst_225 = arith.constant dense<0.000000e+00> : vector<8x96xf32>
    %1335 = tpu.matmul %1333, %1334, %cst_225 {dimension_numbers = #tpu.dot_dimension_numbers<[1], [0], [0], [1], [0, 0, 1, 1], [], []>} : vector<8x16xbf16>, vector<16x96xbf16>, vector<8x96xf32> -> vector<8x96xf32>
    %1336 = arith.truncf %1332 : vector<8x16xf32> to vector<8x16xbf16>
    %1337 = vector.extract_strided_slice %9 {offsets = [16, 0], sizes = [16, 96], strides = [1, 1]} : vector<32x96xbf16> to vector<16x96xbf16>
    %cst_226 = arith.constant dense<0.000000e+00> : vector<8x96xf32>
    %1338 = tpu.matmul %1336, %1337, %cst_226 {dimension_numbers = #tpu.dot_dimension_numbers<[1], [0], [0], [1], [0, 0, 1, 1], [], []>} : vector<8x16xbf16>, vector<16x96xbf16>, vector<8x96xf32> -> vector<8x96xf32>
    %1339 = arith.addf %1335, %1338 : vector<8x96xf32>
    %1340 = vector.broadcast %10 : vector<1x96xf32> to vector<8x96xf32>
    %1341 = arith.addf %1339, %1340 : vector<8x96xf32>
    %1342 = vector.extract_strided_slice %1341 {offsets = [0, 0], sizes = [8, 48], strides = [1, 1]} : vector<8x96xf32> to vector<8x48xf32>
    %1343 = arith.truncf %922 : vector<8x16xf32> to vector<8x16xbf16>
    %cst_227 = arith.constant dense<0.000000e+00> : vector<8x48xf32>
    %1344 = tpu.matmul %1343, %11, %cst_227 {dimension_numbers = #tpu.dot_dimension_numbers<[1], [0], [0], [1], [0, 0, 1, 1], [], []>} : vector<8x16xbf16>, vector<16x48xbf16>, vector<8x48xf32> -> vector<8x48xf32>
    %1345 = vector.broadcast %12 : vector<1x48xf32> to vector<8x48xf32>
    %1346 = arith.addf %1344, %1345 : vector<8x48xf32>
    %1347 = vector.extract_strided_slice %1342 {offsets = [0, 0], sizes = [8, 16], strides = [1, 1]} : vector<8x48xf32> to vector<8x16xf32>
    %1348 = vector.extract_strided_slice %1346 {offsets = [0, 0], sizes = [8, 16], strides = [1, 1]} : vector<8x48xf32> to vector<8x16xf32>
    %1349 = arith.addf %1347, %1348 : vector<8x16xf32>
    %1350 = arith.negf %1349 : vector<8x16xf32>
    %1351 = math.exp %1350 : vector<8x16xf32>
    %cst_228 = arith.constant 1.000000e+00 : f32
    %1352 = vector.broadcast %cst_228 : f32 to vector<8x16xf32>
    %1353 = arith.addf %1352, %1351 : vector<8x16xf32>
    %1354 = arith.divf %1352, %1353 : vector<8x16xf32>
    %1355 = vector.extract_strided_slice %1342 {offsets = [0, 16], sizes = [8, 16], strides = [1, 1]} : vector<8x48xf32> to vector<8x16xf32>
    %1356 = vector.extract_strided_slice %1346 {offsets = [0, 16], sizes = [8, 16], strides = [1, 1]} : vector<8x48xf32> to vector<8x16xf32>
    %1357 = arith.addf %1355, %1356 : vector<8x16xf32>
    %1358 = arith.negf %1357 : vector<8x16xf32>
    %1359 = math.exp %1358 : vector<8x16xf32>
    %cst_229 = arith.constant 1.000000e+00 : f32
    %1360 = vector.broadcast %cst_229 : f32 to vector<8x16xf32>
    %1361 = arith.addf %1360, %1359 : vector<8x16xf32>
    %1362 = arith.divf %1360, %1361 : vector<8x16xf32>
    %1363 = vector.extract_strided_slice %1342 {offsets = [0, 32], sizes = [8, 16], strides = [1, 1]} : vector<8x48xf32> to vector<8x16xf32>
    %1364 = vector.extract_strided_slice %1346 {offsets = [0, 32], sizes = [8, 16], strides = [1, 1]} : vector<8x48xf32> to vector<8x16xf32>
    %1365 = arith.mulf %1354, %1364 : vector<8x16xf32>
    %1366 = arith.addf %1363, %1365 : vector<8x16xf32>
    %1367 = math.tanh %1366 : vector<8x16xf32>
    %cst_230 = arith.constant 1.000000e+00 : f32
    %1368 = vector.broadcast %cst_230 : f32 to vector<8x16xf32>
    %1369 = arith.subf %1368, %1362 : vector<8x16xf32>
    %1370 = arith.mulf %1369, %1367 : vector<8x16xf32>
    %1371 = arith.mulf %1362, %922 : vector<8x16xf32>
    %1372 = arith.addf %1370, %1371 : vector<8x16xf32>
    %c0_231 = arith.constant 0 : index
    %c144 = arith.constant 144 : index
    %c0_232 = arith.constant 0 : index
    %1373 = vector.load %arg1[%c0_231, %c144, %c0_232] : memref<1x192x32xbf16, #tpu.memory_space<vmem>>, vector<1x48x32xbf16>
    %1374 = vector.shape_cast %1373 : vector<1x48x32xbf16> to vector<48x32xbf16>
    %cst_233 = arith.constant dense<0.000000e+00> : vector<48x96xf32>
    %1375 = tpu.matmul %1374, %0, %cst_233 {dimension_numbers = #tpu.dot_dimension_numbers<[1], [0], [0], [1], [0, 0, 1, 1], [], []>} : vector<48x32xbf16>, vector<32x96xbf16>, vector<48x96xf32> -> vector<48x96xf32>
    %1376 = vector.broadcast %1 : vector<1x96xf32> to vector<48x96xf32>
    %1377 = arith.addf %1375, %1376 : vector<48x96xf32>
    %1378 = vector.extract_strided_slice %1377 {offsets = [0, 0], sizes = [8, 48], strides = [1, 1]} : vector<48x96xf32> to vector<8x48xf32>
    %1379 = arith.truncf %1268 : vector<8x16xf32> to vector<8x16xbf16>
    %cst_234 = arith.constant dense<0.000000e+00> : vector<8x48xf32>
    %1380 = tpu.matmul %1379, %2, %cst_234 {dimension_numbers = #tpu.dot_dimension_numbers<[1], [0], [0], [1], [0, 0, 1, 1], [], []>} : vector<8x16xbf16>, vector<16x48xbf16>, vector<8x48xf32> -> vector<8x48xf32>
    %1381 = vector.broadcast %3 : vector<1x48xf32> to vector<8x48xf32>
    %1382 = arith.addf %1380, %1381 : vector<8x48xf32>
    %1383 = vector.extract_strided_slice %1378 {offsets = [0, 0], sizes = [8, 16], strides = [1, 1]} : vector<8x48xf32> to vector<8x16xf32>
    %1384 = vector.extract_strided_slice %1382 {offsets = [0, 0], sizes = [8, 16], strides = [1, 1]} : vector<8x48xf32> to vector<8x16xf32>
    %1385 = arith.addf %1383, %1384 : vector<8x16xf32>
    %1386 = arith.negf %1385 : vector<8x16xf32>
    %1387 = math.exp %1386 : vector<8x16xf32>
    %cst_235 = arith.constant 1.000000e+00 : f32
    %1388 = vector.broadcast %cst_235 : f32 to vector<8x16xf32>
    %1389 = arith.addf %1388, %1387 : vector<8x16xf32>
    %1390 = arith.divf %1388, %1389 : vector<8x16xf32>
    %1391 = vector.extract_strided_slice %1378 {offsets = [0, 16], sizes = [8, 16], strides = [1, 1]} : vector<8x48xf32> to vector<8x16xf32>
    %1392 = vector.extract_strided_slice %1382 {offsets = [0, 16], sizes = [8, 16], strides = [1, 1]} : vector<8x48xf32> to vector<8x16xf32>
    %1393 = arith.addf %1391, %1392 : vector<8x16xf32>
    %1394 = arith.negf %1393 : vector<8x16xf32>
    %1395 = math.exp %1394 : vector<8x16xf32>
    %cst_236 = arith.constant 1.000000e+00 : f32
    %1396 = vector.broadcast %cst_236 : f32 to vector<8x16xf32>
    %1397 = arith.addf %1396, %1395 : vector<8x16xf32>
    %1398 = arith.divf %1396, %1397 : vector<8x16xf32>
    %1399 = vector.extract_strided_slice %1378 {offsets = [0, 32], sizes = [8, 16], strides = [1, 1]} : vector<8x48xf32> to vector<8x16xf32>
    %1400 = vector.extract_strided_slice %1382 {offsets = [0, 32], sizes = [8, 16], strides = [1, 1]} : vector<8x48xf32> to vector<8x16xf32>
    %1401 = arith.mulf %1390, %1400 : vector<8x16xf32>
    %1402 = arith.addf %1399, %1401 : vector<8x16xf32>
    %1403 = math.tanh %1402 : vector<8x16xf32>
    %cst_237 = arith.constant 1.000000e+00 : f32
    %1404 = vector.broadcast %cst_237 : f32 to vector<8x16xf32>
    %1405 = arith.subf %1404, %1398 : vector<8x16xf32>
    %1406 = arith.mulf %1405, %1403 : vector<8x16xf32>
    %1407 = arith.mulf %1398, %1268 : vector<8x16xf32>
    %1408 = arith.addf %1406, %1407 : vector<8x16xf32>
    %1409 = vector.extract_strided_slice %1377 {offsets = [40, 48], sizes = [8, 48], strides = [1, 1]} : vector<48x96xf32> to vector<8x48xf32>
    %1410 = arith.truncf %1299 : vector<8x16xf32> to vector<8x16xbf16>
    %cst_238 = arith.constant dense<0.000000e+00> : vector<8x48xf32>
    %1411 = tpu.matmul %1410, %4, %cst_238 {dimension_numbers = #tpu.dot_dimension_numbers<[1], [0], [0], [1], [0, 0, 1, 1], [], []>} : vector<8x16xbf16>, vector<16x48xbf16>, vector<8x48xf32> -> vector<8x48xf32>
    %1412 = vector.broadcast %5 : vector<1x48xf32> to vector<8x48xf32>
    %1413 = arith.addf %1411, %1412 : vector<8x48xf32>
    %1414 = vector.extract_strided_slice %1409 {offsets = [0, 0], sizes = [8, 16], strides = [1, 1]} : vector<8x48xf32> to vector<8x16xf32>
    %1415 = vector.extract_strided_slice %1413 {offsets = [0, 0], sizes = [8, 16], strides = [1, 1]} : vector<8x48xf32> to vector<8x16xf32>
    %1416 = arith.addf %1414, %1415 : vector<8x16xf32>
    %1417 = arith.negf %1416 : vector<8x16xf32>
    %1418 = math.exp %1417 : vector<8x16xf32>
    %cst_239 = arith.constant 1.000000e+00 : f32
    %1419 = vector.broadcast %cst_239 : f32 to vector<8x16xf32>
    %1420 = arith.addf %1419, %1418 : vector<8x16xf32>
    %1421 = arith.divf %1419, %1420 : vector<8x16xf32>
    %1422 = vector.extract_strided_slice %1409 {offsets = [0, 16], sizes = [8, 16], strides = [1, 1]} : vector<8x48xf32> to vector<8x16xf32>
    %1423 = vector.extract_strided_slice %1413 {offsets = [0, 16], sizes = [8, 16], strides = [1, 1]} : vector<8x48xf32> to vector<8x16xf32>
    %1424 = arith.addf %1422, %1423 : vector<8x16xf32>
    %1425 = arith.negf %1424 : vector<8x16xf32>
    %1426 = math.exp %1425 : vector<8x16xf32>
    %cst_240 = arith.constant 1.000000e+00 : f32
    %1427 = vector.broadcast %cst_240 : f32 to vector<8x16xf32>
    %1428 = arith.addf %1427, %1426 : vector<8x16xf32>
    %1429 = arith.divf %1427, %1428 : vector<8x16xf32>
    %1430 = vector.extract_strided_slice %1409 {offsets = [0, 32], sizes = [8, 16], strides = [1, 1]} : vector<8x48xf32> to vector<8x16xf32>
    %1431 = vector.extract_strided_slice %1413 {offsets = [0, 32], sizes = [8, 16], strides = [1, 1]} : vector<8x48xf32> to vector<8x16xf32>
    %1432 = arith.mulf %1421, %1431 : vector<8x16xf32>
    %1433 = arith.addf %1430, %1432 : vector<8x16xf32>
    %1434 = math.tanh %1433 : vector<8x16xf32>
    %cst_241 = arith.constant 1.000000e+00 : f32
    %1435 = vector.broadcast %cst_241 : f32 to vector<8x16xf32>
    %1436 = arith.subf %1435, %1429 : vector<8x16xf32>
    %1437 = arith.mulf %1436, %1434 : vector<8x16xf32>
    %1438 = arith.mulf %1429, %1299 : vector<8x16xf32>
    %1439 = arith.addf %1437, %1438 : vector<8x16xf32>
    %1440 = vector.extract_strided_slice %1377 {offsets = [8, 0], sizes = [8, 48], strides = [1, 1]} : vector<48x96xf32> to vector<8x48xf32>
    %1441 = arith.truncf %1408 : vector<8x16xf32> to vector<8x16xbf16>
    %cst_242 = arith.constant dense<0.000000e+00> : vector<8x48xf32>
    %1442 = tpu.matmul %1441, %2, %cst_242 {dimension_numbers = #tpu.dot_dimension_numbers<[1], [0], [0], [1], [0, 0, 1, 1], [], []>} : vector<8x16xbf16>, vector<16x48xbf16>, vector<8x48xf32> -> vector<8x48xf32>
    %1443 = vector.broadcast %3 : vector<1x48xf32> to vector<8x48xf32>
    %1444 = arith.addf %1442, %1443 : vector<8x48xf32>
    %1445 = vector.extract_strided_slice %1440 {offsets = [0, 0], sizes = [8, 16], strides = [1, 1]} : vector<8x48xf32> to vector<8x16xf32>
    %1446 = vector.extract_strided_slice %1444 {offsets = [0, 0], sizes = [8, 16], strides = [1, 1]} : vector<8x48xf32> to vector<8x16xf32>
    %1447 = arith.addf %1445, %1446 : vector<8x16xf32>
    %1448 = arith.negf %1447 : vector<8x16xf32>
    %1449 = math.exp %1448 : vector<8x16xf32>
    %cst_243 = arith.constant 1.000000e+00 : f32
    %1450 = vector.broadcast %cst_243 : f32 to vector<8x16xf32>
    %1451 = arith.addf %1450, %1449 : vector<8x16xf32>
    %1452 = arith.divf %1450, %1451 : vector<8x16xf32>
    %1453 = vector.extract_strided_slice %1440 {offsets = [0, 16], sizes = [8, 16], strides = [1, 1]} : vector<8x48xf32> to vector<8x16xf32>
    %1454 = vector.extract_strided_slice %1444 {offsets = [0, 16], sizes = [8, 16], strides = [1, 1]} : vector<8x48xf32> to vector<8x16xf32>
    %1455 = arith.addf %1453, %1454 : vector<8x16xf32>
    %1456 = arith.negf %1455 : vector<8x16xf32>
    %1457 = math.exp %1456 : vector<8x16xf32>
    %cst_244 = arith.constant 1.000000e+00 : f32
    %1458 = vector.broadcast %cst_244 : f32 to vector<8x16xf32>
    %1459 = arith.addf %1458, %1457 : vector<8x16xf32>
    %1460 = arith.divf %1458, %1459 : vector<8x16xf32>
    %1461 = vector.extract_strided_slice %1440 {offsets = [0, 32], sizes = [8, 16], strides = [1, 1]} : vector<8x48xf32> to vector<8x16xf32>
    %1462 = vector.extract_strided_slice %1444 {offsets = [0, 32], sizes = [8, 16], strides = [1, 1]} : vector<8x48xf32> to vector<8x16xf32>
    %1463 = arith.mulf %1452, %1462 : vector<8x16xf32>
    %1464 = arith.addf %1461, %1463 : vector<8x16xf32>
    %1465 = math.tanh %1464 : vector<8x16xf32>
    %cst_245 = arith.constant 1.000000e+00 : f32
    %1466 = vector.broadcast %cst_245 : f32 to vector<8x16xf32>
    %1467 = arith.subf %1466, %1460 : vector<8x16xf32>
    %1468 = arith.mulf %1467, %1465 : vector<8x16xf32>
    %1469 = arith.mulf %1460, %1408 : vector<8x16xf32>
    %1470 = arith.addf %1468, %1469 : vector<8x16xf32>
    %1471 = vector.extract_strided_slice %1377 {offsets = [32, 48], sizes = [8, 48], strides = [1, 1]} : vector<48x96xf32> to vector<8x48xf32>
    %1472 = arith.truncf %1439 : vector<8x16xf32> to vector<8x16xbf16>
    %cst_246 = arith.constant dense<0.000000e+00> : vector<8x48xf32>
    %1473 = tpu.matmul %1472, %4, %cst_246 {dimension_numbers = #tpu.dot_dimension_numbers<[1], [0], [0], [1], [0, 0, 1, 1], [], []>} : vector<8x16xbf16>, vector<16x48xbf16>, vector<8x48xf32> -> vector<8x48xf32>
    %1474 = vector.broadcast %5 : vector<1x48xf32> to vector<8x48xf32>
    %1475 = arith.addf %1473, %1474 : vector<8x48xf32>
    %1476 = vector.extract_strided_slice %1471 {offsets = [0, 0], sizes = [8, 16], strides = [1, 1]} : vector<8x48xf32> to vector<8x16xf32>
    %1477 = vector.extract_strided_slice %1475 {offsets = [0, 0], sizes = [8, 16], strides = [1, 1]} : vector<8x48xf32> to vector<8x16xf32>
    %1478 = arith.addf %1476, %1477 : vector<8x16xf32>
    %1479 = arith.negf %1478 : vector<8x16xf32>
    %1480 = math.exp %1479 : vector<8x16xf32>
    %cst_247 = arith.constant 1.000000e+00 : f32
    %1481 = vector.broadcast %cst_247 : f32 to vector<8x16xf32>
    %1482 = arith.addf %1481, %1480 : vector<8x16xf32>
    %1483 = arith.divf %1481, %1482 : vector<8x16xf32>
    %1484 = vector.extract_strided_slice %1471 {offsets = [0, 16], sizes = [8, 16], strides = [1, 1]} : vector<8x48xf32> to vector<8x16xf32>
    %1485 = vector.extract_strided_slice %1475 {offsets = [0, 16], sizes = [8, 16], strides = [1, 1]} : vector<8x48xf32> to vector<8x16xf32>
    %1486 = arith.addf %1484, %1485 : vector<8x16xf32>
    %1487 = arith.negf %1486 : vector<8x16xf32>
    %1488 = math.exp %1487 : vector<8x16xf32>
    %cst_248 = arith.constant 1.000000e+00 : f32
    %1489 = vector.broadcast %cst_248 : f32 to vector<8x16xf32>
    %1490 = arith.addf %1489, %1488 : vector<8x16xf32>
    %1491 = arith.divf %1489, %1490 : vector<8x16xf32>
    %1492 = vector.extract_strided_slice %1471 {offsets = [0, 32], sizes = [8, 16], strides = [1, 1]} : vector<8x48xf32> to vector<8x16xf32>
    %1493 = vector.extract_strided_slice %1475 {offsets = [0, 32], sizes = [8, 16], strides = [1, 1]} : vector<8x48xf32> to vector<8x16xf32>
    %1494 = arith.mulf %1483, %1493 : vector<8x16xf32>
    %1495 = arith.addf %1492, %1494 : vector<8x16xf32>
    %1496 = math.tanh %1495 : vector<8x16xf32>
    %cst_249 = arith.constant 1.000000e+00 : f32
    %1497 = vector.broadcast %cst_249 : f32 to vector<8x16xf32>
    %1498 = arith.subf %1497, %1491 : vector<8x16xf32>
    %1499 = arith.mulf %1498, %1496 : vector<8x16xf32>
    %1500 = arith.mulf %1491, %1439 : vector<8x16xf32>
    %1501 = arith.addf %1499, %1500 : vector<8x16xf32>
    %1502 = vector.extract_strided_slice %1377 {offsets = [16, 0], sizes = [8, 48], strides = [1, 1]} : vector<48x96xf32> to vector<8x48xf32>
    %1503 = arith.truncf %1470 : vector<8x16xf32> to vector<8x16xbf16>
    %cst_250 = arith.constant dense<0.000000e+00> : vector<8x48xf32>
    %1504 = tpu.matmul %1503, %2, %cst_250 {dimension_numbers = #tpu.dot_dimension_numbers<[1], [0], [0], [1], [0, 0, 1, 1], [], []>} : vector<8x16xbf16>, vector<16x48xbf16>, vector<8x48xf32> -> vector<8x48xf32>
    %1505 = vector.broadcast %3 : vector<1x48xf32> to vector<8x48xf32>
    %1506 = arith.addf %1504, %1505 : vector<8x48xf32>
    %1507 = vector.extract_strided_slice %1502 {offsets = [0, 0], sizes = [8, 16], strides = [1, 1]} : vector<8x48xf32> to vector<8x16xf32>
    %1508 = vector.extract_strided_slice %1506 {offsets = [0, 0], sizes = [8, 16], strides = [1, 1]} : vector<8x48xf32> to vector<8x16xf32>
    %1509 = arith.addf %1507, %1508 : vector<8x16xf32>
    %1510 = arith.negf %1509 : vector<8x16xf32>
    %1511 = math.exp %1510 : vector<8x16xf32>
    %cst_251 = arith.constant 1.000000e+00 : f32
    %1512 = vector.broadcast %cst_251 : f32 to vector<8x16xf32>
    %1513 = arith.addf %1512, %1511 : vector<8x16xf32>
    %1514 = arith.divf %1512, %1513 : vector<8x16xf32>
    %1515 = vector.extract_strided_slice %1502 {offsets = [0, 16], sizes = [8, 16], strides = [1, 1]} : vector<8x48xf32> to vector<8x16xf32>
    %1516 = vector.extract_strided_slice %1506 {offsets = [0, 16], sizes = [8, 16], strides = [1, 1]} : vector<8x48xf32> to vector<8x16xf32>
    %1517 = arith.addf %1515, %1516 : vector<8x16xf32>
    %1518 = arith.negf %1517 : vector<8x16xf32>
    %1519 = math.exp %1518 : vector<8x16xf32>
    %cst_252 = arith.constant 1.000000e+00 : f32
    %1520 = vector.broadcast %cst_252 : f32 to vector<8x16xf32>
    %1521 = arith.addf %1520, %1519 : vector<8x16xf32>
    %1522 = arith.divf %1520, %1521 : vector<8x16xf32>
    %1523 = vector.extract_strided_slice %1502 {offsets = [0, 32], sizes = [8, 16], strides = [1, 1]} : vector<8x48xf32> to vector<8x16xf32>
    %1524 = vector.extract_strided_slice %1506 {offsets = [0, 32], sizes = [8, 16], strides = [1, 1]} : vector<8x48xf32> to vector<8x16xf32>
    %1525 = arith.mulf %1514, %1524 : vector<8x16xf32>
    %1526 = arith.addf %1523, %1525 : vector<8x16xf32>
    %1527 = math.tanh %1526 : vector<8x16xf32>
    %cst_253 = arith.constant 1.000000e+00 : f32
    %1528 = vector.broadcast %cst_253 : f32 to vector<8x16xf32>
    %1529 = arith.subf %1528, %1522 : vector<8x16xf32>
    %1530 = arith.mulf %1529, %1527 : vector<8x16xf32>
    %1531 = arith.mulf %1522, %1470 : vector<8x16xf32>
    %1532 = arith.addf %1530, %1531 : vector<8x16xf32>
    %1533 = vector.extract_strided_slice %1377 {offsets = [24, 48], sizes = [8, 48], strides = [1, 1]} : vector<48x96xf32> to vector<8x48xf32>
    %1534 = arith.truncf %1501 : vector<8x16xf32> to vector<8x16xbf16>
    %cst_254 = arith.constant dense<0.000000e+00> : vector<8x48xf32>
    %1535 = tpu.matmul %1534, %4, %cst_254 {dimension_numbers = #tpu.dot_dimension_numbers<[1], [0], [0], [1], [0, 0, 1, 1], [], []>} : vector<8x16xbf16>, vector<16x48xbf16>, vector<8x48xf32> -> vector<8x48xf32>
    %1536 = vector.broadcast %5 : vector<1x48xf32> to vector<8x48xf32>
    %1537 = arith.addf %1535, %1536 : vector<8x48xf32>
    %1538 = vector.extract_strided_slice %1533 {offsets = [0, 0], sizes = [8, 16], strides = [1, 1]} : vector<8x48xf32> to vector<8x16xf32>
    %1539 = vector.extract_strided_slice %1537 {offsets = [0, 0], sizes = [8, 16], strides = [1, 1]} : vector<8x48xf32> to vector<8x16xf32>
    %1540 = arith.addf %1538, %1539 : vector<8x16xf32>
    %1541 = arith.negf %1540 : vector<8x16xf32>
    %1542 = math.exp %1541 : vector<8x16xf32>
    %cst_255 = arith.constant 1.000000e+00 : f32
    %1543 = vector.broadcast %cst_255 : f32 to vector<8x16xf32>
    %1544 = arith.addf %1543, %1542 : vector<8x16xf32>
    %1545 = arith.divf %1543, %1544 : vector<8x16xf32>
    %1546 = vector.extract_strided_slice %1533 {offsets = [0, 16], sizes = [8, 16], strides = [1, 1]} : vector<8x48xf32> to vector<8x16xf32>
    %1547 = vector.extract_strided_slice %1537 {offsets = [0, 16], sizes = [8, 16], strides = [1, 1]} : vector<8x48xf32> to vector<8x16xf32>
    %1548 = arith.addf %1546, %1547 : vector<8x16xf32>
    %1549 = arith.negf %1548 : vector<8x16xf32>
    %1550 = math.exp %1549 : vector<8x16xf32>
    %cst_256 = arith.constant 1.000000e+00 : f32
    %1551 = vector.broadcast %cst_256 : f32 to vector<8x16xf32>
    %1552 = arith.addf %1551, %1550 : vector<8x16xf32>
    %1553 = arith.divf %1551, %1552 : vector<8x16xf32>
    %1554 = vector.extract_strided_slice %1533 {offsets = [0, 32], sizes = [8, 16], strides = [1, 1]} : vector<8x48xf32> to vector<8x16xf32>
    %1555 = vector.extract_strided_slice %1537 {offsets = [0, 32], sizes = [8, 16], strides = [1, 1]} : vector<8x48xf32> to vector<8x16xf32>
    %1556 = arith.mulf %1545, %1555 : vector<8x16xf32>
    %1557 = arith.addf %1554, %1556 : vector<8x16xf32>
    %1558 = math.tanh %1557 : vector<8x16xf32>
    %cst_257 = arith.constant 1.000000e+00 : f32
    %1559 = vector.broadcast %cst_257 : f32 to vector<8x16xf32>
    %1560 = arith.subf %1559, %1553 : vector<8x16xf32>
    %1561 = arith.mulf %1560, %1558 : vector<8x16xf32>
    %1562 = arith.mulf %1553, %1501 : vector<8x16xf32>
    %1563 = arith.addf %1561, %1562 : vector<8x16xf32>
    %1564 = vector.extract_strided_slice %1377 {offsets = [24, 0], sizes = [8, 48], strides = [1, 1]} : vector<48x96xf32> to vector<8x48xf32>
    %1565 = arith.truncf %1532 : vector<8x16xf32> to vector<8x16xbf16>
    %cst_258 = arith.constant dense<0.000000e+00> : vector<8x48xf32>
    %1566 = tpu.matmul %1565, %2, %cst_258 {dimension_numbers = #tpu.dot_dimension_numbers<[1], [0], [0], [1], [0, 0, 1, 1], [], []>} : vector<8x16xbf16>, vector<16x48xbf16>, vector<8x48xf32> -> vector<8x48xf32>
    %1567 = vector.broadcast %3 : vector<1x48xf32> to vector<8x48xf32>
    %1568 = arith.addf %1566, %1567 : vector<8x48xf32>
    %1569 = vector.extract_strided_slice %1564 {offsets = [0, 0], sizes = [8, 16], strides = [1, 1]} : vector<8x48xf32> to vector<8x16xf32>
    %1570 = vector.extract_strided_slice %1568 {offsets = [0, 0], sizes = [8, 16], strides = [1, 1]} : vector<8x48xf32> to vector<8x16xf32>
    %1571 = arith.addf %1569, %1570 : vector<8x16xf32>
    %1572 = arith.negf %1571 : vector<8x16xf32>
    %1573 = math.exp %1572 : vector<8x16xf32>
    %cst_259 = arith.constant 1.000000e+00 : f32
    %1574 = vector.broadcast %cst_259 : f32 to vector<8x16xf32>
    %1575 = arith.addf %1574, %1573 : vector<8x16xf32>
    %1576 = arith.divf %1574, %1575 : vector<8x16xf32>
    %1577 = vector.extract_strided_slice %1564 {offsets = [0, 16], sizes = [8, 16], strides = [1, 1]} : vector<8x48xf32> to vector<8x16xf32>
    %1578 = vector.extract_strided_slice %1568 {offsets = [0, 16], sizes = [8, 16], strides = [1, 1]} : vector<8x48xf32> to vector<8x16xf32>
    %1579 = arith.addf %1577, %1578 : vector<8x16xf32>
    %1580 = arith.negf %1579 : vector<8x16xf32>
    %1581 = math.exp %1580 : vector<8x16xf32>
    %cst_260 = arith.constant 1.000000e+00 : f32
    %1582 = vector.broadcast %cst_260 : f32 to vector<8x16xf32>
    %1583 = arith.addf %1582, %1581 : vector<8x16xf32>
    %1584 = arith.divf %1582, %1583 : vector<8x16xf32>
    %1585 = vector.extract_strided_slice %1564 {offsets = [0, 32], sizes = [8, 16], strides = [1, 1]} : vector<8x48xf32> to vector<8x16xf32>
    %1586 = vector.extract_strided_slice %1568 {offsets = [0, 32], sizes = [8, 16], strides = [1, 1]} : vector<8x48xf32> to vector<8x16xf32>
    %1587 = arith.mulf %1576, %1586 : vector<8x16xf32>
    %1588 = arith.addf %1585, %1587 : vector<8x16xf32>
    %1589 = math.tanh %1588 : vector<8x16xf32>
    %cst_261 = arith.constant 1.000000e+00 : f32
    %1590 = vector.broadcast %cst_261 : f32 to vector<8x16xf32>
    %1591 = arith.subf %1590, %1584 : vector<8x16xf32>
    %1592 = arith.mulf %1591, %1589 : vector<8x16xf32>
    %1593 = arith.mulf %1584, %1532 : vector<8x16xf32>
    %1594 = arith.addf %1592, %1593 : vector<8x16xf32>
    %1595 = vector.extract_strided_slice %1377 {offsets = [16, 48], sizes = [8, 48], strides = [1, 1]} : vector<48x96xf32> to vector<8x48xf32>
    %1596 = arith.truncf %1563 : vector<8x16xf32> to vector<8x16xbf16>
    %cst_262 = arith.constant dense<0.000000e+00> : vector<8x48xf32>
    %1597 = tpu.matmul %1596, %4, %cst_262 {dimension_numbers = #tpu.dot_dimension_numbers<[1], [0], [0], [1], [0, 0, 1, 1], [], []>} : vector<8x16xbf16>, vector<16x48xbf16>, vector<8x48xf32> -> vector<8x48xf32>
    %1598 = vector.broadcast %5 : vector<1x48xf32> to vector<8x48xf32>
    %1599 = arith.addf %1597, %1598 : vector<8x48xf32>
    %1600 = vector.extract_strided_slice %1595 {offsets = [0, 0], sizes = [8, 16], strides = [1, 1]} : vector<8x48xf32> to vector<8x16xf32>
    %1601 = vector.extract_strided_slice %1599 {offsets = [0, 0], sizes = [8, 16], strides = [1, 1]} : vector<8x48xf32> to vector<8x16xf32>
    %1602 = arith.addf %1600, %1601 : vector<8x16xf32>
    %1603 = arith.negf %1602 : vector<8x16xf32>
    %1604 = math.exp %1603 : vector<8x16xf32>
    %cst_263 = arith.constant 1.000000e+00 : f32
    %1605 = vector.broadcast %cst_263 : f32 to vector<8x16xf32>
    %1606 = arith.addf %1605, %1604 : vector<8x16xf32>
    %1607 = arith.divf %1605, %1606 : vector<8x16xf32>
    %1608 = vector.extract_strided_slice %1595 {offsets = [0, 16], sizes = [8, 16], strides = [1, 1]} : vector<8x48xf32> to vector<8x16xf32>
    %1609 = vector.extract_strided_slice %1599 {offsets = [0, 16], sizes = [8, 16], strides = [1, 1]} : vector<8x48xf32> to vector<8x16xf32>
    %1610 = arith.addf %1608, %1609 : vector<8x16xf32>
    %1611 = arith.negf %1610 : vector<8x16xf32>
    %1612 = math.exp %1611 : vector<8x16xf32>
    %cst_264 = arith.constant 1.000000e+00 : f32
    %1613 = vector.broadcast %cst_264 : f32 to vector<8x16xf32>
    %1614 = arith.addf %1613, %1612 : vector<8x16xf32>
    %1615 = arith.divf %1613, %1614 : vector<8x16xf32>
    %1616 = vector.extract_strided_slice %1595 {offsets = [0, 32], sizes = [8, 16], strides = [1, 1]} : vector<8x48xf32> to vector<8x16xf32>
    %1617 = vector.extract_strided_slice %1599 {offsets = [0, 32], sizes = [8, 16], strides = [1, 1]} : vector<8x48xf32> to vector<8x16xf32>
    %1618 = arith.mulf %1607, %1617 : vector<8x16xf32>
    %1619 = arith.addf %1616, %1618 : vector<8x16xf32>
    %1620 = math.tanh %1619 : vector<8x16xf32>
    %cst_265 = arith.constant 1.000000e+00 : f32
    %1621 = vector.broadcast %cst_265 : f32 to vector<8x16xf32>
    %1622 = arith.subf %1621, %1615 : vector<8x16xf32>
    %1623 = arith.mulf %1622, %1620 : vector<8x16xf32>
    %1624 = arith.mulf %1615, %1563 : vector<8x16xf32>
    %1625 = arith.addf %1623, %1624 : vector<8x16xf32>
    %1626 = vector.extract_strided_slice %1377 {offsets = [32, 0], sizes = [8, 48], strides = [1, 1]} : vector<48x96xf32> to vector<8x48xf32>
    %1627 = arith.truncf %1594 : vector<8x16xf32> to vector<8x16xbf16>
    %cst_266 = arith.constant dense<0.000000e+00> : vector<8x48xf32>
    %1628 = tpu.matmul %1627, %2, %cst_266 {dimension_numbers = #tpu.dot_dimension_numbers<[1], [0], [0], [1], [0, 0, 1, 1], [], []>} : vector<8x16xbf16>, vector<16x48xbf16>, vector<8x48xf32> -> vector<8x48xf32>
    %1629 = vector.broadcast %3 : vector<1x48xf32> to vector<8x48xf32>
    %1630 = arith.addf %1628, %1629 : vector<8x48xf32>
    %1631 = vector.extract_strided_slice %1626 {offsets = [0, 0], sizes = [8, 16], strides = [1, 1]} : vector<8x48xf32> to vector<8x16xf32>
    %1632 = vector.extract_strided_slice %1630 {offsets = [0, 0], sizes = [8, 16], strides = [1, 1]} : vector<8x48xf32> to vector<8x16xf32>
    %1633 = arith.addf %1631, %1632 : vector<8x16xf32>
    %1634 = arith.negf %1633 : vector<8x16xf32>
    %1635 = math.exp %1634 : vector<8x16xf32>
    %cst_267 = arith.constant 1.000000e+00 : f32
    %1636 = vector.broadcast %cst_267 : f32 to vector<8x16xf32>
    %1637 = arith.addf %1636, %1635 : vector<8x16xf32>
    %1638 = arith.divf %1636, %1637 : vector<8x16xf32>
    %1639 = vector.extract_strided_slice %1626 {offsets = [0, 16], sizes = [8, 16], strides = [1, 1]} : vector<8x48xf32> to vector<8x16xf32>
    %1640 = vector.extract_strided_slice %1630 {offsets = [0, 16], sizes = [8, 16], strides = [1, 1]} : vector<8x48xf32> to vector<8x16xf32>
    %1641 = arith.addf %1639, %1640 : vector<8x16xf32>
    %1642 = arith.negf %1641 : vector<8x16xf32>
    %1643 = math.exp %1642 : vector<8x16xf32>
    %cst_268 = arith.constant 1.000000e+00 : f32
    %1644 = vector.broadcast %cst_268 : f32 to vector<8x16xf32>
    %1645 = arith.addf %1644, %1643 : vector<8x16xf32>
    %1646 = arith.divf %1644, %1645 : vector<8x16xf32>
    %1647 = vector.extract_strided_slice %1626 {offsets = [0, 32], sizes = [8, 16], strides = [1, 1]} : vector<8x48xf32> to vector<8x16xf32>
    %1648 = vector.extract_strided_slice %1630 {offsets = [0, 32], sizes = [8, 16], strides = [1, 1]} : vector<8x48xf32> to vector<8x16xf32>
    %1649 = arith.mulf %1638, %1648 : vector<8x16xf32>
    %1650 = arith.addf %1647, %1649 : vector<8x16xf32>
    %1651 = math.tanh %1650 : vector<8x16xf32>
    %cst_269 = arith.constant 1.000000e+00 : f32
    %1652 = vector.broadcast %cst_269 : f32 to vector<8x16xf32>
    %1653 = arith.subf %1652, %1646 : vector<8x16xf32>
    %1654 = arith.mulf %1653, %1651 : vector<8x16xf32>
    %1655 = arith.mulf %1646, %1594 : vector<8x16xf32>
    %1656 = arith.addf %1654, %1655 : vector<8x16xf32>
    %1657 = vector.extract_strided_slice %1377 {offsets = [8, 48], sizes = [8, 48], strides = [1, 1]} : vector<48x96xf32> to vector<8x48xf32>
    %1658 = arith.truncf %1625 : vector<8x16xf32> to vector<8x16xbf16>
    %cst_270 = arith.constant dense<0.000000e+00> : vector<8x48xf32>
    %1659 = tpu.matmul %1658, %4, %cst_270 {dimension_numbers = #tpu.dot_dimension_numbers<[1], [0], [0], [1], [0, 0, 1, 1], [], []>} : vector<8x16xbf16>, vector<16x48xbf16>, vector<8x48xf32> -> vector<8x48xf32>
    %1660 = vector.broadcast %5 : vector<1x48xf32> to vector<8x48xf32>
    %1661 = arith.addf %1659, %1660 : vector<8x48xf32>
    %1662 = vector.extract_strided_slice %1657 {offsets = [0, 0], sizes = [8, 16], strides = [1, 1]} : vector<8x48xf32> to vector<8x16xf32>
    %1663 = vector.extract_strided_slice %1661 {offsets = [0, 0], sizes = [8, 16], strides = [1, 1]} : vector<8x48xf32> to vector<8x16xf32>
    %1664 = arith.addf %1662, %1663 : vector<8x16xf32>
    %1665 = arith.negf %1664 : vector<8x16xf32>
    %1666 = math.exp %1665 : vector<8x16xf32>
    %cst_271 = arith.constant 1.000000e+00 : f32
    %1667 = vector.broadcast %cst_271 : f32 to vector<8x16xf32>
    %1668 = arith.addf %1667, %1666 : vector<8x16xf32>
    %1669 = arith.divf %1667, %1668 : vector<8x16xf32>
    %1670 = vector.extract_strided_slice %1657 {offsets = [0, 16], sizes = [8, 16], strides = [1, 1]} : vector<8x48xf32> to vector<8x16xf32>
    %1671 = vector.extract_strided_slice %1661 {offsets = [0, 16], sizes = [8, 16], strides = [1, 1]} : vector<8x48xf32> to vector<8x16xf32>
    %1672 = arith.addf %1670, %1671 : vector<8x16xf32>
    %1673 = arith.negf %1672 : vector<8x16xf32>
    %1674 = math.exp %1673 : vector<8x16xf32>
    %cst_272 = arith.constant 1.000000e+00 : f32
    %1675 = vector.broadcast %cst_272 : f32 to vector<8x16xf32>
    %1676 = arith.addf %1675, %1674 : vector<8x16xf32>
    %1677 = arith.divf %1675, %1676 : vector<8x16xf32>
    %1678 = vector.extract_strided_slice %1657 {offsets = [0, 32], sizes = [8, 16], strides = [1, 1]} : vector<8x48xf32> to vector<8x16xf32>
    %1679 = vector.extract_strided_slice %1661 {offsets = [0, 32], sizes = [8, 16], strides = [1, 1]} : vector<8x48xf32> to vector<8x16xf32>
    %1680 = arith.mulf %1669, %1679 : vector<8x16xf32>
    %1681 = arith.addf %1678, %1680 : vector<8x16xf32>
    %1682 = math.tanh %1681 : vector<8x16xf32>
    %cst_273 = arith.constant 1.000000e+00 : f32
    %1683 = vector.broadcast %cst_273 : f32 to vector<8x16xf32>
    %1684 = arith.subf %1683, %1677 : vector<8x16xf32>
    %1685 = arith.mulf %1684, %1682 : vector<8x16xf32>
    %1686 = arith.mulf %1677, %1625 : vector<8x16xf32>
    %1687 = arith.addf %1685, %1686 : vector<8x16xf32>
    %1688 = vector.extract_strided_slice %1377 {offsets = [40, 0], sizes = [8, 48], strides = [1, 1]} : vector<48x96xf32> to vector<8x48xf32>
    %1689 = arith.truncf %1656 : vector<8x16xf32> to vector<8x16xbf16>
    %cst_274 = arith.constant dense<0.000000e+00> : vector<8x48xf32>
    %1690 = tpu.matmul %1689, %2, %cst_274 {dimension_numbers = #tpu.dot_dimension_numbers<[1], [0], [0], [1], [0, 0, 1, 1], [], []>} : vector<8x16xbf16>, vector<16x48xbf16>, vector<8x48xf32> -> vector<8x48xf32>
    %1691 = vector.broadcast %3 : vector<1x48xf32> to vector<8x48xf32>
    %1692 = arith.addf %1690, %1691 : vector<8x48xf32>
    %1693 = vector.extract_strided_slice %1688 {offsets = [0, 0], sizes = [8, 16], strides = [1, 1]} : vector<8x48xf32> to vector<8x16xf32>
    %1694 = vector.extract_strided_slice %1692 {offsets = [0, 0], sizes = [8, 16], strides = [1, 1]} : vector<8x48xf32> to vector<8x16xf32>
    %1695 = arith.addf %1693, %1694 : vector<8x16xf32>
    %1696 = arith.negf %1695 : vector<8x16xf32>
    %1697 = math.exp %1696 : vector<8x16xf32>
    %cst_275 = arith.constant 1.000000e+00 : f32
    %1698 = vector.broadcast %cst_275 : f32 to vector<8x16xf32>
    %1699 = arith.addf %1698, %1697 : vector<8x16xf32>
    %1700 = arith.divf %1698, %1699 : vector<8x16xf32>
    %1701 = vector.extract_strided_slice %1688 {offsets = [0, 16], sizes = [8, 16], strides = [1, 1]} : vector<8x48xf32> to vector<8x16xf32>
    %1702 = vector.extract_strided_slice %1692 {offsets = [0, 16], sizes = [8, 16], strides = [1, 1]} : vector<8x48xf32> to vector<8x16xf32>
    %1703 = arith.addf %1701, %1702 : vector<8x16xf32>
    %1704 = arith.negf %1703 : vector<8x16xf32>
    %1705 = math.exp %1704 : vector<8x16xf32>
    %cst_276 = arith.constant 1.000000e+00 : f32
    %1706 = vector.broadcast %cst_276 : f32 to vector<8x16xf32>
    %1707 = arith.addf %1706, %1705 : vector<8x16xf32>
    %1708 = arith.divf %1706, %1707 : vector<8x16xf32>
    %1709 = vector.extract_strided_slice %1688 {offsets = [0, 32], sizes = [8, 16], strides = [1, 1]} : vector<8x48xf32> to vector<8x16xf32>
    %1710 = vector.extract_strided_slice %1692 {offsets = [0, 32], sizes = [8, 16], strides = [1, 1]} : vector<8x48xf32> to vector<8x16xf32>
    %1711 = arith.mulf %1700, %1710 : vector<8x16xf32>
    %1712 = arith.addf %1709, %1711 : vector<8x16xf32>
    %1713 = math.tanh %1712 : vector<8x16xf32>
    %cst_277 = arith.constant 1.000000e+00 : f32
    %1714 = vector.broadcast %cst_277 : f32 to vector<8x16xf32>
    %1715 = arith.subf %1714, %1708 : vector<8x16xf32>
    %1716 = arith.mulf %1715, %1713 : vector<8x16xf32>
    %1717 = arith.mulf %1708, %1656 : vector<8x16xf32>
    %1718 = arith.addf %1716, %1717 : vector<8x16xf32>
    %1719 = vector.extract_strided_slice %1377 {offsets = [0, 48], sizes = [8, 48], strides = [1, 1]} : vector<48x96xf32> to vector<8x48xf32>
    %1720 = arith.truncf %1687 : vector<8x16xf32> to vector<8x16xbf16>
    %cst_278 = arith.constant dense<0.000000e+00> : vector<8x48xf32>
    %1721 = tpu.matmul %1720, %4, %cst_278 {dimension_numbers = #tpu.dot_dimension_numbers<[1], [0], [0], [1], [0, 0, 1, 1], [], []>} : vector<8x16xbf16>, vector<16x48xbf16>, vector<8x48xf32> -> vector<8x48xf32>
    %1722 = vector.broadcast %5 : vector<1x48xf32> to vector<8x48xf32>
    %1723 = arith.addf %1721, %1722 : vector<8x48xf32>
    %1724 = vector.extract_strided_slice %1719 {offsets = [0, 0], sizes = [8, 16], strides = [1, 1]} : vector<8x48xf32> to vector<8x16xf32>
    %1725 = vector.extract_strided_slice %1723 {offsets = [0, 0], sizes = [8, 16], strides = [1, 1]} : vector<8x48xf32> to vector<8x16xf32>
    %1726 = arith.addf %1724, %1725 : vector<8x16xf32>
    %1727 = arith.negf %1726 : vector<8x16xf32>
    %1728 = math.exp %1727 : vector<8x16xf32>
    %cst_279 = arith.constant 1.000000e+00 : f32
    %1729 = vector.broadcast %cst_279 : f32 to vector<8x16xf32>
    %1730 = arith.addf %1729, %1728 : vector<8x16xf32>
    %1731 = arith.divf %1729, %1730 : vector<8x16xf32>
    %1732 = vector.extract_strided_slice %1719 {offsets = [0, 16], sizes = [8, 16], strides = [1, 1]} : vector<8x48xf32> to vector<8x16xf32>
    %1733 = vector.extract_strided_slice %1723 {offsets = [0, 16], sizes = [8, 16], strides = [1, 1]} : vector<8x48xf32> to vector<8x16xf32>
    %1734 = arith.addf %1732, %1733 : vector<8x16xf32>
    %1735 = arith.negf %1734 : vector<8x16xf32>
    %1736 = math.exp %1735 : vector<8x16xf32>
    %cst_280 = arith.constant 1.000000e+00 : f32
    %1737 = vector.broadcast %cst_280 : f32 to vector<8x16xf32>
    %1738 = arith.addf %1737, %1736 : vector<8x16xf32>
    %1739 = arith.divf %1737, %1738 : vector<8x16xf32>
    %1740 = vector.extract_strided_slice %1719 {offsets = [0, 32], sizes = [8, 16], strides = [1, 1]} : vector<8x48xf32> to vector<8x16xf32>
    %1741 = vector.extract_strided_slice %1723 {offsets = [0, 32], sizes = [8, 16], strides = [1, 1]} : vector<8x48xf32> to vector<8x16xf32>
    %1742 = arith.mulf %1731, %1741 : vector<8x16xf32>
    %1743 = arith.addf %1740, %1742 : vector<8x16xf32>
    %1744 = math.tanh %1743 : vector<8x16xf32>
    %cst_281 = arith.constant 1.000000e+00 : f32
    %1745 = vector.broadcast %cst_281 : f32 to vector<8x16xf32>
    %1746 = arith.subf %1745, %1739 : vector<8x16xf32>
    %1747 = arith.mulf %1746, %1744 : vector<8x16xf32>
    %1748 = arith.mulf %1739, %1687 : vector<8x16xf32>
    %1749 = arith.addf %1747, %1748 : vector<8x16xf32>
    %1750 = tpu.concatenate %1408, %1470, %1532, %1594, %1656, %1718 in 0 : vector<8x16xf32>, vector<8x16xf32>, vector<8x16xf32>, vector<8x16xf32>, vector<8x16xf32>, vector<8x16xf32> -> vector<48x16xf32>
    %1751 = tpu.concatenate %1749, %1687, %1625, %1563, %1501, %1439 in 0 : vector<8x16xf32>, vector<8x16xf32>, vector<8x16xf32>, vector<8x16xf32>, vector<8x16xf32>, vector<8x16xf32> -> vector<48x16xf32>
    %1752 = arith.truncf %1750 : vector<48x16xf32> to vector<48x16xbf16>
    %1753 = arith.truncf %1751 : vector<48x16xf32> to vector<48x16xbf16>
    %1754 = vector.extract_strided_slice %6 {offsets = [0, 0], sizes = [16, 32], strides = [1, 1]} : vector<32x32xbf16> to vector<16x32xbf16>
    %cst_282 = arith.constant dense<0.000000e+00> : vector<48x32xf32>
    %1755 = tpu.matmul %1752, %1754, %cst_282 {dimension_numbers = #tpu.dot_dimension_numbers<[1], [0], [0], [1], [0, 0, 1, 1], [], []>} : vector<48x16xbf16>, vector<16x32xbf16>, vector<48x32xf32> -> vector<48x32xf32>
    %1756 = vector.extract_strided_slice %6 {offsets = [16, 0], sizes = [16, 32], strides = [1, 1]} : vector<32x32xbf16> to vector<16x32xbf16>
    %cst_283 = arith.constant dense<0.000000e+00> : vector<48x32xf32>
    %1757 = tpu.matmul %1753, %1756, %cst_283 {dimension_numbers = #tpu.dot_dimension_numbers<[1], [0], [0], [1], [0, 0, 1, 1], [], []>} : vector<48x16xbf16>, vector<16x32xbf16>, vector<48x32xf32> -> vector<48x32xf32>
    %1758 = arith.addf %1755, %1757 : vector<48x32xf32>
    %1759 = vector.broadcast %7 : vector<1x32xf32> to vector<48x32xf32>
    %1760 = arith.addf %1758, %1759 : vector<48x32xf32>
    %1761 = math.tanh %1760 : vector<48x32xf32>
    %1762 = vector.broadcast %8 : vector<1x32xf32> to vector<48x32xf32>
    %1763 = arith.mulf %1761, %1762 : vector<48x32xf32>
    %cst_284 = arith.constant dense<0.000000e+00> : vector<48xf32>
    %1764 = vector.multi_reduction <add>, %1763, %cst_284 [1] : vector<48x32xf32> to vector<48xf32>
    %1765 = vector.shape_cast %1764 : vector<48xf32> to vector<48x1xf32>
    %1766 = math.tanh %1765 : vector<48x1xf32>
    %1767 = math.exp %1766 : vector<48x1xf32>
    %1768 = vector.shape_cast %1767 : vector<48x1xf32> to vector<6x8x1xf32>
    %cst_285 = arith.constant dense<0.000000e+00> : vector<8x1xf32>
    %1769 = vector.multi_reduction <add>, %1768, %cst_285 [0] : vector<6x8x1xf32> to vector<8x1xf32>
    %1770 = vector.broadcast %1767 : vector<48x1xf32> to vector<48x16xf32>
    %1771 = arith.mulf %1770, %1750 : vector<48x16xf32>
    %1772 = vector.shape_cast %1771 : vector<48x16xf32> to vector<6x8x16xf32>
    %cst_286 = arith.constant dense<0.000000e+00> : vector<8x16xf32>
    %1773 = vector.multi_reduction <add>, %1772, %cst_286 [0] : vector<6x8x16xf32> to vector<8x16xf32>
    %1774 = vector.broadcast %1767 : vector<48x1xf32> to vector<48x16xf32>
    %1775 = arith.mulf %1774, %1751 : vector<48x16xf32>
    %1776 = vector.shape_cast %1775 : vector<48x16xf32> to vector<6x8x16xf32>
    %cst_287 = arith.constant dense<0.000000e+00> : vector<8x16xf32>
    %1777 = vector.multi_reduction <add>, %1776, %cst_287 [0] : vector<6x8x16xf32> to vector<8x16xf32>
    %1778 = tpu.reciprocal %1769 {approx = true} : vector<8x1xf32> -> vector<8x1xf32>
    %1779 = vector.broadcast %1778 : vector<8x1xf32> to vector<8x16xf32>
    %1780 = arith.mulf %1773, %1779 : vector<8x16xf32>
    %1781 = vector.broadcast %1778 : vector<8x1xf32> to vector<8x16xf32>
    %1782 = arith.mulf %1777, %1781 : vector<8x16xf32>
    %1783 = arith.truncf %1780 : vector<8x16xf32> to vector<8x16xbf16>
    %1784 = vector.extract_strided_slice %9 {offsets = [0, 0], sizes = [16, 96], strides = [1, 1]} : vector<32x96xbf16> to vector<16x96xbf16>
    %cst_288 = arith.constant dense<0.000000e+00> : vector<8x96xf32>
    %1785 = tpu.matmul %1783, %1784, %cst_288 {dimension_numbers = #tpu.dot_dimension_numbers<[1], [0], [0], [1], [0, 0, 1, 1], [], []>} : vector<8x16xbf16>, vector<16x96xbf16>, vector<8x96xf32> -> vector<8x96xf32>
    %1786 = arith.truncf %1782 : vector<8x16xf32> to vector<8x16xbf16>
    %1787 = vector.extract_strided_slice %9 {offsets = [16, 0], sizes = [16, 96], strides = [1, 1]} : vector<32x96xbf16> to vector<16x96xbf16>
    %cst_289 = arith.constant dense<0.000000e+00> : vector<8x96xf32>
    %1788 = tpu.matmul %1786, %1787, %cst_289 {dimension_numbers = #tpu.dot_dimension_numbers<[1], [0], [0], [1], [0, 0, 1, 1], [], []>} : vector<8x16xbf16>, vector<16x96xbf16>, vector<8x96xf32> -> vector<8x96xf32>
    %1789 = arith.addf %1785, %1788 : vector<8x96xf32>
    %1790 = vector.broadcast %10 : vector<1x96xf32> to vector<8x96xf32>
    %1791 = arith.addf %1789, %1790 : vector<8x96xf32>
    %1792 = vector.extract_strided_slice %1791 {offsets = [0, 0], sizes = [8, 48], strides = [1, 1]} : vector<8x96xf32> to vector<8x48xf32>
    %1793 = arith.truncf %1372 : vector<8x16xf32> to vector<8x16xbf16>
    %cst_290 = arith.constant dense<0.000000e+00> : vector<8x48xf32>
    %1794 = tpu.matmul %1793, %11, %cst_290 {dimension_numbers = #tpu.dot_dimension_numbers<[1], [0], [0], [1], [0, 0, 1, 1], [], []>} : vector<8x16xbf16>, vector<16x48xbf16>, vector<8x48xf32> -> vector<8x48xf32>
    %1795 = vector.broadcast %12 : vector<1x48xf32> to vector<8x48xf32>
    %1796 = arith.addf %1794, %1795 : vector<8x48xf32>
    %1797 = vector.extract_strided_slice %1792 {offsets = [0, 0], sizes = [8, 16], strides = [1, 1]} : vector<8x48xf32> to vector<8x16xf32>
    %1798 = vector.extract_strided_slice %1796 {offsets = [0, 0], sizes = [8, 16], strides = [1, 1]} : vector<8x48xf32> to vector<8x16xf32>
    %1799 = arith.addf %1797, %1798 : vector<8x16xf32>
    %1800 = arith.negf %1799 : vector<8x16xf32>
    %1801 = math.exp %1800 : vector<8x16xf32>
    %cst_291 = arith.constant 1.000000e+00 : f32
    %1802 = vector.broadcast %cst_291 : f32 to vector<8x16xf32>
    %1803 = arith.addf %1802, %1801 : vector<8x16xf32>
    %1804 = arith.divf %1802, %1803 : vector<8x16xf32>
    %1805 = vector.extract_strided_slice %1792 {offsets = [0, 16], sizes = [8, 16], strides = [1, 1]} : vector<8x48xf32> to vector<8x16xf32>
    %1806 = vector.extract_strided_slice %1796 {offsets = [0, 16], sizes = [8, 16], strides = [1, 1]} : vector<8x48xf32> to vector<8x16xf32>
    %1807 = arith.addf %1805, %1806 : vector<8x16xf32>
    %1808 = arith.negf %1807 : vector<8x16xf32>
    %1809 = math.exp %1808 : vector<8x16xf32>
    %cst_292 = arith.constant 1.000000e+00 : f32
    %1810 = vector.broadcast %cst_292 : f32 to vector<8x16xf32>
    %1811 = arith.addf %1810, %1809 : vector<8x16xf32>
    %1812 = arith.divf %1810, %1811 : vector<8x16xf32>
    %1813 = vector.extract_strided_slice %1792 {offsets = [0, 32], sizes = [8, 16], strides = [1, 1]} : vector<8x48xf32> to vector<8x16xf32>
    %1814 = vector.extract_strided_slice %1796 {offsets = [0, 32], sizes = [8, 16], strides = [1, 1]} : vector<8x48xf32> to vector<8x16xf32>
    %1815 = arith.mulf %1804, %1814 : vector<8x16xf32>
    %1816 = arith.addf %1813, %1815 : vector<8x16xf32>
    %1817 = math.tanh %1816 : vector<8x16xf32>
    %cst_293 = arith.constant 1.000000e+00 : f32
    %1818 = vector.broadcast %cst_293 : f32 to vector<8x16xf32>
    %1819 = arith.subf %1818, %1812 : vector<8x16xf32>
    %1820 = arith.mulf %1819, %1817 : vector<8x16xf32>
    %1821 = arith.mulf %1812, %1372 : vector<8x16xf32>
    %1822 = arith.addf %1820, %1821 : vector<8x16xf32>
    %cst_294 = arith.constant 0.000000e+00 : f32
    %1823 = vector.broadcast %cst_294 : f32 to vector<8x16xf32>
    %1824 = vector.extract_strided_slice %1791 {offsets = [0, 48], sizes = [8, 48], strides = [1, 1]} : vector<8x96xf32> to vector<8x48xf32>
    %1825 = arith.truncf %1823 : vector<8x16xf32> to vector<8x16xbf16>
    %cst_295 = arith.constant dense<0.000000e+00> : vector<8x48xf32>
    %1826 = tpu.matmul %1825, %13, %cst_295 {dimension_numbers = #tpu.dot_dimension_numbers<[1], [0], [0], [1], [0, 0, 1, 1], [], []>} : vector<8x16xbf16>, vector<16x48xbf16>, vector<8x48xf32> -> vector<8x48xf32>
    %1827 = vector.broadcast %14 : vector<1x48xf32> to vector<8x48xf32>
    %1828 = arith.addf %1826, %1827 : vector<8x48xf32>
    %1829 = vector.extract_strided_slice %1824 {offsets = [0, 0], sizes = [8, 16], strides = [1, 1]} : vector<8x48xf32> to vector<8x16xf32>
    %1830 = vector.extract_strided_slice %1828 {offsets = [0, 0], sizes = [8, 16], strides = [1, 1]} : vector<8x48xf32> to vector<8x16xf32>
    %1831 = arith.addf %1829, %1830 : vector<8x16xf32>
    %1832 = arith.negf %1831 : vector<8x16xf32>
    %1833 = math.exp %1832 : vector<8x16xf32>
    %cst_296 = arith.constant 1.000000e+00 : f32
    %1834 = vector.broadcast %cst_296 : f32 to vector<8x16xf32>
    %1835 = arith.addf %1834, %1833 : vector<8x16xf32>
    %1836 = arith.divf %1834, %1835 : vector<8x16xf32>
    %1837 = vector.extract_strided_slice %1824 {offsets = [0, 16], sizes = [8, 16], strides = [1, 1]} : vector<8x48xf32> to vector<8x16xf32>
    %1838 = vector.extract_strided_slice %1828 {offsets = [0, 16], sizes = [8, 16], strides = [1, 1]} : vector<8x48xf32> to vector<8x16xf32>
    %1839 = arith.addf %1837, %1838 : vector<8x16xf32>
    %1840 = arith.negf %1839 : vector<8x16xf32>
    %1841 = math.exp %1840 : vector<8x16xf32>
    %cst_297 = arith.constant 1.000000e+00 : f32
    %1842 = vector.broadcast %cst_297 : f32 to vector<8x16xf32>
    %1843 = arith.addf %1842, %1841 : vector<8x16xf32>
    %1844 = arith.divf %1842, %1843 : vector<8x16xf32>
    %1845 = vector.extract_strided_slice %1824 {offsets = [0, 32], sizes = [8, 16], strides = [1, 1]} : vector<8x48xf32> to vector<8x16xf32>
    %1846 = vector.extract_strided_slice %1828 {offsets = [0, 32], sizes = [8, 16], strides = [1, 1]} : vector<8x48xf32> to vector<8x16xf32>
    %1847 = arith.mulf %1836, %1846 : vector<8x16xf32>
    %1848 = arith.addf %1845, %1847 : vector<8x16xf32>
    %1849 = math.tanh %1848 : vector<8x16xf32>
    %cst_298 = arith.constant 1.000000e+00 : f32
    %1850 = vector.broadcast %cst_298 : f32 to vector<8x16xf32>
    %1851 = arith.subf %1850, %1844 : vector<8x16xf32>
    %1852 = arith.mulf %1851, %1849 : vector<8x16xf32>
    %1853 = arith.mulf %1844, %1823 : vector<8x16xf32>
    %1854 = arith.addf %1852, %1853 : vector<8x16xf32>
    %1855 = vector.extract_strided_slice %1341 {offsets = [0, 48], sizes = [8, 48], strides = [1, 1]} : vector<8x96xf32> to vector<8x48xf32>
    %1856 = arith.truncf %1854 : vector<8x16xf32> to vector<8x16xbf16>
    %cst_299 = arith.constant dense<0.000000e+00> : vector<8x48xf32>
    %1857 = tpu.matmul %1856, %13, %cst_299 {dimension_numbers = #tpu.dot_dimension_numbers<[1], [0], [0], [1], [0, 0, 1, 1], [], []>} : vector<8x16xbf16>, vector<16x48xbf16>, vector<8x48xf32> -> vector<8x48xf32>
    %1858 = vector.broadcast %14 : vector<1x48xf32> to vector<8x48xf32>
    %1859 = arith.addf %1857, %1858 : vector<8x48xf32>
    %1860 = vector.extract_strided_slice %1855 {offsets = [0, 0], sizes = [8, 16], strides = [1, 1]} : vector<8x48xf32> to vector<8x16xf32>
    %1861 = vector.extract_strided_slice %1859 {offsets = [0, 0], sizes = [8, 16], strides = [1, 1]} : vector<8x48xf32> to vector<8x16xf32>
    %1862 = arith.addf %1860, %1861 : vector<8x16xf32>
    %1863 = arith.negf %1862 : vector<8x16xf32>
    %1864 = math.exp %1863 : vector<8x16xf32>
    %cst_300 = arith.constant 1.000000e+00 : f32
    %1865 = vector.broadcast %cst_300 : f32 to vector<8x16xf32>
    %1866 = arith.addf %1865, %1864 : vector<8x16xf32>
    %1867 = arith.divf %1865, %1866 : vector<8x16xf32>
    %1868 = vector.extract_strided_slice %1855 {offsets = [0, 16], sizes = [8, 16], strides = [1, 1]} : vector<8x48xf32> to vector<8x16xf32>
    %1869 = vector.extract_strided_slice %1859 {offsets = [0, 16], sizes = [8, 16], strides = [1, 1]} : vector<8x48xf32> to vector<8x16xf32>
    %1870 = arith.addf %1868, %1869 : vector<8x16xf32>
    %1871 = arith.negf %1870 : vector<8x16xf32>
    %1872 = math.exp %1871 : vector<8x16xf32>
    %cst_301 = arith.constant 1.000000e+00 : f32
    %1873 = vector.broadcast %cst_301 : f32 to vector<8x16xf32>
    %1874 = arith.addf %1873, %1872 : vector<8x16xf32>
    %1875 = arith.divf %1873, %1874 : vector<8x16xf32>
    %1876 = vector.extract_strided_slice %1855 {offsets = [0, 32], sizes = [8, 16], strides = [1, 1]} : vector<8x48xf32> to vector<8x16xf32>
    %1877 = vector.extract_strided_slice %1859 {offsets = [0, 32], sizes = [8, 16], strides = [1, 1]} : vector<8x48xf32> to vector<8x16xf32>
    %1878 = arith.mulf %1867, %1877 : vector<8x16xf32>
    %1879 = arith.addf %1876, %1878 : vector<8x16xf32>
    %1880 = math.tanh %1879 : vector<8x16xf32>
    %cst_302 = arith.constant 1.000000e+00 : f32
    %1881 = vector.broadcast %cst_302 : f32 to vector<8x16xf32>
    %1882 = arith.subf %1881, %1875 : vector<8x16xf32>
    %1883 = arith.mulf %1882, %1880 : vector<8x16xf32>
    %1884 = arith.mulf %1875, %1854 : vector<8x16xf32>
    %1885 = arith.addf %1883, %1884 : vector<8x16xf32>
    %1886 = vector.extract_strided_slice %891 {offsets = [0, 48], sizes = [8, 48], strides = [1, 1]} : vector<8x96xf32> to vector<8x48xf32>
    %1887 = arith.truncf %1885 : vector<8x16xf32> to vector<8x16xbf16>
    %cst_303 = arith.constant dense<0.000000e+00> : vector<8x48xf32>
    %1888 = tpu.matmul %1887, %13, %cst_303 {dimension_numbers = #tpu.dot_dimension_numbers<[1], [0], [0], [1], [0, 0, 1, 1], [], []>} : vector<8x16xbf16>, vector<16x48xbf16>, vector<8x48xf32> -> vector<8x48xf32>
    %1889 = vector.broadcast %14 : vector<1x48xf32> to vector<8x48xf32>
    %1890 = arith.addf %1888, %1889 : vector<8x48xf32>
    %1891 = vector.extract_strided_slice %1886 {offsets = [0, 0], sizes = [8, 16], strides = [1, 1]} : vector<8x48xf32> to vector<8x16xf32>
    %1892 = vector.extract_strided_slice %1890 {offsets = [0, 0], sizes = [8, 16], strides = [1, 1]} : vector<8x48xf32> to vector<8x16xf32>
    %1893 = arith.addf %1891, %1892 : vector<8x16xf32>
    %1894 = arith.negf %1893 : vector<8x16xf32>
    %1895 = math.exp %1894 : vector<8x16xf32>
    %cst_304 = arith.constant 1.000000e+00 : f32
    %1896 = vector.broadcast %cst_304 : f32 to vector<8x16xf32>
    %1897 = arith.addf %1896, %1895 : vector<8x16xf32>
    %1898 = arith.divf %1896, %1897 : vector<8x16xf32>
    %1899 = vector.extract_strided_slice %1886 {offsets = [0, 16], sizes = [8, 16], strides = [1, 1]} : vector<8x48xf32> to vector<8x16xf32>
    %1900 = vector.extract_strided_slice %1890 {offsets = [0, 16], sizes = [8, 16], strides = [1, 1]} : vector<8x48xf32> to vector<8x16xf32>
    %1901 = arith.addf %1899, %1900 : vector<8x16xf32>
    %1902 = arith.negf %1901 : vector<8x16xf32>
    %1903 = math.exp %1902 : vector<8x16xf32>
    %cst_305 = arith.constant 1.000000e+00 : f32
    %1904 = vector.broadcast %cst_305 : f32 to vector<8x16xf32>
    %1905 = arith.addf %1904, %1903 : vector<8x16xf32>
    %1906 = arith.divf %1904, %1905 : vector<8x16xf32>
    %1907 = vector.extract_strided_slice %1886 {offsets = [0, 32], sizes = [8, 16], strides = [1, 1]} : vector<8x48xf32> to vector<8x16xf32>
    %1908 = vector.extract_strided_slice %1890 {offsets = [0, 32], sizes = [8, 16], strides = [1, 1]} : vector<8x48xf32> to vector<8x16xf32>
    %1909 = arith.mulf %1898, %1908 : vector<8x16xf32>
    %1910 = arith.addf %1907, %1909 : vector<8x16xf32>
    %1911 = math.tanh %1910 : vector<8x16xf32>
    %cst_306 = arith.constant 1.000000e+00 : f32
    %1912 = vector.broadcast %cst_306 : f32 to vector<8x16xf32>
    %1913 = arith.subf %1912, %1906 : vector<8x16xf32>
    %1914 = arith.mulf %1913, %1911 : vector<8x16xf32>
    %1915 = arith.mulf %1906, %1885 : vector<8x16xf32>
    %1916 = arith.addf %1914, %1915 : vector<8x16xf32>
    %1917 = vector.extract_strided_slice %441 {offsets = [0, 48], sizes = [8, 48], strides = [1, 1]} : vector<8x96xf32> to vector<8x48xf32>
    %1918 = arith.truncf %1916 : vector<8x16xf32> to vector<8x16xbf16>
    %cst_307 = arith.constant dense<0.000000e+00> : vector<8x48xf32>
    %1919 = tpu.matmul %1918, %13, %cst_307 {dimension_numbers = #tpu.dot_dimension_numbers<[1], [0], [0], [1], [0, 0, 1, 1], [], []>} : vector<8x16xbf16>, vector<16x48xbf16>, vector<8x48xf32> -> vector<8x48xf32>
    %1920 = vector.broadcast %14 : vector<1x48xf32> to vector<8x48xf32>
    %1921 = arith.addf %1919, %1920 : vector<8x48xf32>
    %1922 = vector.extract_strided_slice %1917 {offsets = [0, 0], sizes = [8, 16], strides = [1, 1]} : vector<8x48xf32> to vector<8x16xf32>
    %1923 = vector.extract_strided_slice %1921 {offsets = [0, 0], sizes = [8, 16], strides = [1, 1]} : vector<8x48xf32> to vector<8x16xf32>
    %1924 = arith.addf %1922, %1923 : vector<8x16xf32>
    %1925 = arith.negf %1924 : vector<8x16xf32>
    %1926 = math.exp %1925 : vector<8x16xf32>
    %cst_308 = arith.constant 1.000000e+00 : f32
    %1927 = vector.broadcast %cst_308 : f32 to vector<8x16xf32>
    %1928 = arith.addf %1927, %1926 : vector<8x16xf32>
    %1929 = arith.divf %1927, %1928 : vector<8x16xf32>
    %1930 = vector.extract_strided_slice %1917 {offsets = [0, 16], sizes = [8, 16], strides = [1, 1]} : vector<8x48xf32> to vector<8x16xf32>
    %1931 = vector.extract_strided_slice %1921 {offsets = [0, 16], sizes = [8, 16], strides = [1, 1]} : vector<8x48xf32> to vector<8x16xf32>
    %1932 = arith.addf %1930, %1931 : vector<8x16xf32>
    %1933 = arith.negf %1932 : vector<8x16xf32>
    %1934 = math.exp %1933 : vector<8x16xf32>
    %cst_309 = arith.constant 1.000000e+00 : f32
    %1935 = vector.broadcast %cst_309 : f32 to vector<8x16xf32>
    %1936 = arith.addf %1935, %1934 : vector<8x16xf32>
    %1937 = arith.divf %1935, %1936 : vector<8x16xf32>
    %1938 = vector.extract_strided_slice %1917 {offsets = [0, 32], sizes = [8, 16], strides = [1, 1]} : vector<8x48xf32> to vector<8x16xf32>
    %1939 = vector.extract_strided_slice %1921 {offsets = [0, 32], sizes = [8, 16], strides = [1, 1]} : vector<8x48xf32> to vector<8x16xf32>
    %1940 = arith.mulf %1929, %1939 : vector<8x16xf32>
    %1941 = arith.addf %1938, %1940 : vector<8x16xf32>
    %1942 = math.tanh %1941 : vector<8x16xf32>
    %cst_310 = arith.constant 1.000000e+00 : f32
    %1943 = vector.broadcast %cst_310 : f32 to vector<8x16xf32>
    %1944 = arith.subf %1943, %1937 : vector<8x16xf32>
    %1945 = arith.mulf %1944, %1942 : vector<8x16xf32>
    %1946 = arith.mulf %1937, %1916 : vector<8x16xf32>
    %1947 = arith.addf %1945, %1946 : vector<8x16xf32>
    %1948 = tpu.concatenate %472, %922, %1372, %1822 in 0 : vector<8x16xf32>, vector<8x16xf32>, vector<8x16xf32>, vector<8x16xf32> -> vector<32x16xf32>
    %1949 = tpu.concatenate %1947, %1916, %1885, %1854 in 0 : vector<8x16xf32>, vector<8x16xf32>, vector<8x16xf32>, vector<8x16xf32> -> vector<32x16xf32>
    %1950 = arith.truncf %1948 : vector<32x16xf32> to vector<32x16xbf16>
    %1951 = arith.truncf %1949 : vector<32x16xf32> to vector<32x16xbf16>
    %1952 = vector.extract_strided_slice %15 {offsets = [0, 0], sizes = [16, 32], strides = [1, 1]} : vector<32x32xbf16> to vector<16x32xbf16>
    %cst_311 = arith.constant dense<0.000000e+00> : vector<32x32xf32>
    %1953 = tpu.matmul %1950, %1952, %cst_311 {dimension_numbers = #tpu.dot_dimension_numbers<[1], [0], [0], [1], [0, 0, 1, 1], [], []>} : vector<32x16xbf16>, vector<16x32xbf16>, vector<32x32xf32> -> vector<32x32xf32>
    %1954 = vector.extract_strided_slice %15 {offsets = [16, 0], sizes = [16, 32], strides = [1, 1]} : vector<32x32xbf16> to vector<16x32xbf16>
    %cst_312 = arith.constant dense<0.000000e+00> : vector<32x32xf32>
    %1955 = tpu.matmul %1951, %1954, %cst_312 {dimension_numbers = #tpu.dot_dimension_numbers<[1], [0], [0], [1], [0, 0, 1, 1], [], []>} : vector<32x16xbf16>, vector<16x32xbf16>, vector<32x32xf32> -> vector<32x32xf32>
    %1956 = arith.addf %1953, %1955 : vector<32x32xf32>
    %1957 = vector.broadcast %16 : vector<1x32xf32> to vector<32x32xf32>
    %1958 = arith.addf %1956, %1957 : vector<32x32xf32>
    %1959 = math.tanh %1958 : vector<32x32xf32>
    %1960 = vector.broadcast %17 : vector<1x32xf32> to vector<32x32xf32>
    %1961 = arith.mulf %1959, %1960 : vector<32x32xf32>
    %cst_313 = arith.constant dense<0.000000e+00> : vector<32xf32>
    %1962 = vector.multi_reduction <add>, %1961, %cst_313 [1] : vector<32x32xf32> to vector<32xf32>
    %1963 = vector.shape_cast %1962 : vector<32xf32> to vector<32x1xf32>
    %1964 = math.tanh %1963 : vector<32x1xf32>
    %1965 = math.exp %1964 : vector<32x1xf32>
    %1966 = vector.shape_cast %1965 : vector<32x1xf32> to vector<4x8x1xf32>
    %cst_314 = arith.constant dense<0.000000e+00> : vector<8x1xf32>
    %1967 = vector.multi_reduction <add>, %1966, %cst_314 [0] : vector<4x8x1xf32> to vector<8x1xf32>
    %1968 = vector.broadcast %1965 : vector<32x1xf32> to vector<32x16xf32>
    %1969 = arith.mulf %1968, %1948 : vector<32x16xf32>
    %1970 = vector.shape_cast %1969 : vector<32x16xf32> to vector<4x8x16xf32>
    %cst_315 = arith.constant dense<0.000000e+00> : vector<8x16xf32>
    %1971 = vector.multi_reduction <add>, %1970, %cst_315 [0] : vector<4x8x16xf32> to vector<8x16xf32>
    %1972 = vector.broadcast %1965 : vector<32x1xf32> to vector<32x16xf32>
    %1973 = arith.mulf %1972, %1949 : vector<32x16xf32>
    %1974 = vector.shape_cast %1973 : vector<32x16xf32> to vector<4x8x16xf32>
    %cst_316 = arith.constant dense<0.000000e+00> : vector<8x16xf32>
    %1975 = vector.multi_reduction <add>, %1974, %cst_316 [0] : vector<4x8x16xf32> to vector<8x16xf32>
    %1976 = tpu.reciprocal %1967 {approx = true} : vector<8x1xf32> -> vector<8x1xf32>
    %1977 = vector.broadcast %1976 : vector<8x1xf32> to vector<8x16xf32>
    %1978 = arith.mulf %1971, %1977 : vector<8x16xf32>
    %1979 = vector.broadcast %1976 : vector<8x1xf32> to vector<8x16xf32>
    %1980 = arith.mulf %1975, %1979 : vector<8x16xf32>
    %1981 = arith.truncf %1978 : vector<8x16xf32> to vector<8x16xbf16>
    %1982 = vector.extract_strided_slice %18 {offsets = [0, 0], sizes = [16, 5], strides = [1, 1]} : vector<63x5xbf16> to vector<16x5xbf16>
    %cst_317 = arith.constant dense<0.000000e+00> : vector<8x5xf32>
    %1983 = tpu.matmul %1981, %1982, %cst_317 {dimension_numbers = #tpu.dot_dimension_numbers<[1], [0], [0], [1], [0, 0, 1, 1], [], []>} : vector<8x16xbf16>, vector<16x5xbf16>, vector<8x5xf32> -> vector<8x5xf32>
    %1984 = arith.truncf %1980 : vector<8x16xf32> to vector<8x16xbf16>
    %1985 = vector.extract_strided_slice %18 {offsets = [16, 0], sizes = [16, 5], strides = [1, 1]} : vector<63x5xbf16> to vector<16x5xbf16>
    %cst_318 = arith.constant dense<0.000000e+00> : vector<8x5xf32>
    %1986 = tpu.matmul %1984, %1985, %cst_318 {dimension_numbers = #tpu.dot_dimension_numbers<[1], [0], [0], [1], [0, 0, 1, 1], [], []>} : vector<8x16xbf16>, vector<16x5xbf16>, vector<8x5xf32> -> vector<8x5xf32>
    %1987 = arith.addf %1983, %1986 : vector<8x5xf32>
    %c0_319 = arith.constant 0 : index
    %c0_320 = arith.constant 0 : index
    %1988 = vector.load %arg2[%c0_319, %c0_320] : memref<8x31xf32, #tpu.memory_space<vmem>>, vector<8x31xf32>
    %1989 = arith.truncf %1988 : vector<8x31xf32> to vector<8x31xbf16>
    %1990 = vector.extract_strided_slice %18 {offsets = [32, 0], sizes = [31, 5], strides = [1, 1]} : vector<63x5xbf16> to vector<31x5xbf16>
    %cst_321 = arith.constant dense<0.000000e+00> : vector<8x5xf32>
    %1991 = tpu.matmul %1989, %1990, %cst_321 {dimension_numbers = #tpu.dot_dimension_numbers<[1], [0], [0], [1], [0, 0, 1, 1], [], []>} : vector<8x31xbf16>, vector<31x5xbf16>, vector<8x5xf32> -> vector<8x5xf32>
    %1992 = arith.addf %1987, %1991 : vector<8x5xf32>
    %1993 = vector.broadcast %19 : vector<1x5xf32> to vector<8x5xf32>
    %1994 = arith.addf %1992, %1993 : vector<8x5xf32>
    %c0_322 = arith.constant 0 : index
    %c0_323 = arith.constant 0 : index
    %1995 = vector.load %arg23[%c0_322, %c0_323] : memref<8x5xf32, #tpu.memory_space<vmem>>, vector<8x5xf32>
    tpu.vector_store %arg23[%c0_322, %c0_323], %1994 {strides = array<i32>} : memref<8x5xf32, #tpu.memory_space<vmem>>, vector<8x5xf32>,
    return
  }
  func.func @transform_0(%arg0: i32) -> (i32, i32, i32) {
    %c0_i32 = arith.constant 0 : i32
    %c0_i32_0 = arith.constant 0 : i32
    %c0_i32_1 = arith.constant 0 : i32
    return %arg0, %c0_i32, %c0_i32_0 : i32, i32, i32
  }
  func.func @transform_1(%arg0: i32) -> (i32, i32) {
    %c0_i32 = arith.constant 0 : i32
    %c0_i32_0 = arith.constant 0 : i32
    return %arg0, %c0_i32 : i32, i32
  }
  func.func @transform_2(%arg0: i32) -> (i32, i32) {
    %c0_i32 = arith.constant 0 : i32
    %c0_i32_0 = arith.constant 0 : i32
    %c0_i32_1 = arith.constant 0 : i32
    return %c0_i32, %c0_i32_0 : i32, i32
  }
  func.func @transform_3(%arg0: i32) -> (i32, i32) {
    %c0_i32 = arith.constant 0 : i32
    %c0_i32_0 = arith.constant 0 : i32
    %c0_i32_1 = arith.constant 0 : i32
    return %c0_i32, %c0_i32_0 : i32, i32
  }
  func.func @transform_4(%arg0: i32) -> (i32, i32) {
    %c0_i32 = arith.constant 0 : i32
    %c0_i32_0 = arith.constant 0 : i32
    %c0_i32_1 = arith.constant 0 : i32
    return %c0_i32, %c0_i32_0 : i32, i32
  }
  func.func @transform_5(%arg0: i32) -> (i32, i32) {
    %c0_i32 = arith.constant 0 : i32
    %c0_i32_0 = arith.constant 0 : i32
    %c0_i32_1 = arith.constant 0 : i32
    return %c0_i32, %c0_i32_0 : i32, i32
  }
  func.func @transform_6(%arg0: i32) -> (i32, i32) {
    %c0_i32 = arith.constant 0 : i32
    %c0_i32_0 = arith.constant 0 : i32
    %c0_i32_1 = arith.constant 0 : i32
    return %c0_i32, %c0_i32_0 : i32, i32
  }
  func.func @transform_7(%arg0: i32) -> (i32, i32) {
    %c0_i32 = arith.constant 0 : i32
    %c0_i32_0 = arith.constant 0 : i32
    %c0_i32_1 = arith.constant 0 : i32
    return %c0_i32, %c0_i32_0 : i32, i32
  }
  func.func @transform_8(%arg0: i32) -> (i32, i32) {
    %c0_i32 = arith.constant 0 : i32
    %c0_i32_0 = arith.constant 0 : i32
    %c0_i32_1 = arith.constant 0 : i32
    return %c0_i32, %c0_i32_0 : i32, i32
  }
  func.func @transform_9(%arg0: i32) -> (i32, i32) {
    %c0_i32 = arith.constant 0 : i32
    %c0_i32_0 = arith.constant 0 : i32
    %c0_i32_1 = arith.constant 0 : i32
    return %c0_i32, %c0_i32_0 : i32, i32
  }
  func.func @transform_10(%arg0: i32) -> (i32, i32) {
    %c0_i32 = arith.constant 0 : i32
    %c0_i32_0 = arith.constant 0 : i32
    %c0_i32_1 = arith.constant 0 : i32
    return %c0_i32, %c0_i32_0 : i32, i32
  }
  func.func @transform_11(%arg0: i32) -> (i32, i32) {
    %c0_i32 = arith.constant 0 : i32
    %c0_i32_0 = arith.constant 0 : i32
    %c0_i32_1 = arith.constant 0 : i32
    return %c0_i32, %c0_i32_0 : i32, i32
  }
  func.func @transform_12(%arg0: i32) -> (i32, i32) {
    %c0_i32 = arith.constant 0 : i32
    %c0_i32_0 = arith.constant 0 : i32
    %c0_i32_1 = arith.constant 0 : i32
    return %c0_i32, %c0_i32_0 : i32, i32
  }
  func.func @transform_13(%arg0: i32) -> (i32, i32) {
    %c0_i32 = arith.constant 0 : i32
    %c0_i32_0 = arith.constant 0 : i32
    %c0_i32_1 = arith.constant 0 : i32
    return %c0_i32, %c0_i32_0 : i32, i32
  }
  func.func @transform_14(%arg0: i32) -> (i32, i32) {
    %c0_i32 = arith.constant 0 : i32
    %c0_i32_0 = arith.constant 0 : i32
    %c0_i32_1 = arith.constant 0 : i32
    return %c0_i32, %c0_i32_0 : i32, i32
  }
  func.func @transform_15(%arg0: i32) -> (i32, i32) {
    %c0_i32 = arith.constant 0 : i32
    %c0_i32_0 = arith.constant 0 : i32
    %c0_i32_1 = arith.constant 0 : i32
    return %c0_i32, %c0_i32_0 : i32, i32
  }
  func.func @transform_16(%arg0: i32) -> (i32, i32) {
    %c0_i32 = arith.constant 0 : i32
    %c0_i32_0 = arith.constant 0 : i32
    %c0_i32_1 = arith.constant 0 : i32
    return %c0_i32, %c0_i32_0 : i32, i32
  }
  func.func @transform_17(%arg0: i32) -> (i32, i32) {
    %c0_i32 = arith.constant 0 : i32
    %c0_i32_0 = arith.constant 0 : i32
    %c0_i32_1 = arith.constant 0 : i32
    return %c0_i32, %c0_i32_0 : i32, i32
  }
  func.func @transform_18(%arg0: i32) -> (i32, i32) {
    %c0_i32 = arith.constant 0 : i32
    %c0_i32_0 = arith.constant 0 : i32
    %c0_i32_1 = arith.constant 0 : i32
    return %c0_i32, %c0_i32_0 : i32, i32
  }
  func.func @transform_19(%arg0: i32) -> (i32, i32) {
    %c0_i32 = arith.constant 0 : i32
    %c0_i32_0 = arith.constant 0 : i32
    %c0_i32_1 = arith.constant 0 : i32
    return %c0_i32, %c0_i32_0 : i32, i32
  }
  func.func @transform_20(%arg0: i32) -> (i32, i32) {
    %c0_i32 = arith.constant 0 : i32
    %c0_i32_0 = arith.constant 0 : i32
    %c0_i32_1 = arith.constant 0 : i32
    return %c0_i32, %c0_i32_0 : i32, i32
  }
  func.func @transform_21(%arg0: i32) -> (i32, i32) {
    %c0_i32 = arith.constant 0 : i32
    %c0_i32_0 = arith.constant 0 : i32
    %c0_i32_1 = arith.constant 0 : i32
    return %c0_i32, %c0_i32_0 : i32, i32
  }
  func.func @transform_22(%arg0: i32) -> (i32, i32) {
    %c0_i32 = arith.constant 0 : i32
    %c0_i32_0 = arith.constant 0 : i32
    return %arg0, %c0_i32 : i32, i32
  }
}

</mosaic_0001>

<llo_original>
// kernel: tpu_custom_call.1
$region0: #{tpu_custom_call.1}
  #allocation0 [shape = 'u32[]', space=smem, size = 0x4, offset = 0x4, fixed_abs, tag = 'smem constant byte address 0x4 - core index']
  #allocation1 [shape = 'u32[72,128]{1,0:T(1,128)}', space=vmem, size = 0x9000, scoped, tag = 'internal scratch']
  %s0 = inlined_call_operand.vmem [shape: bf16[1,192,32], index: 0, kind: input, shape index: {}]
  %s1 = inlined_call_operand.vmem [shape: f32[8,31], index: 1, kind: input, shape index: {}]
  %s2 = inlined_call_operand.vmem [shape: bf16[32,96], index: 2, kind: input, shape index: {}]
  %s3 = inlined_call_operand.vmem [shape: f32[1,96], index: 3, kind: input, shape index: {}]
  %s4 = inlined_call_operand.vmem [shape: bf16[16,48], index: 4, kind: input, shape index: {}]
  %s5 = inlined_call_operand.vmem [shape: f32[1,48], index: 5, kind: input, shape index: {}]
  %s6 = inlined_call_operand.vmem [shape: bf16[16,48], index: 6, kind: input, shape index: {}]
  %s7 = inlined_call_operand.vmem [shape: f32[1,48], index: 7, kind: input, shape index: {}]
  %s8 = inlined_call_operand.vmem [shape: bf16[32,32], index: 8, kind: input, shape index: {}]
  %s9 = inlined_call_operand.vmem [shape: f32[1,32], index: 9, kind: input, shape index: {}]
  %s10 = inlined_call_operand.vmem [shape: f32[1,32], index: 10, kind: input, shape index: {}]
  %s11 = inlined_call_operand.vmem [shape: bf16[32,96], index: 11, kind: input, shape index: {}]
  %s12 = inlined_call_operand.vmem [shape: f32[1,96], index: 12, kind: input, shape index: {}]
  %s13 = inlined_call_operand.vmem [shape: bf16[16,48], index: 13, kind: input, shape index: {}]
  %s14 = inlined_call_operand.vmem [shape: f32[1,48], index: 14, kind: input, shape index: {}]
  %s15 = inlined_call_operand.vmem [shape: bf16[16,48], index: 15, kind: input, shape index: {}]
  %s16 = inlined_call_operand.vmem [shape: f32[1,48], index: 16, kind: input, shape index: {}]
  %s17 = inlined_call_operand.vmem [shape: bf16[32,32], index: 17, kind: input, shape index: {}]
  %s18 = inlined_call_operand.vmem [shape: f32[1,32], index: 18, kind: input, shape index: {}]
  %s19 = inlined_call_operand.vmem [shape: f32[1,32], index: 19, kind: input, shape index: {}]
  %s20 = inlined_call_operand.vmem [shape: bf16[63,5], index: 20, kind: input, shape index: {}]
  %s21 = inlined_call_operand.vmem [shape: f32[1,5], index: 21, kind: input, shape index: {}]
  %s22 = inlined_call_operand.hbm [shape: f32[8,5], index: 22, kind: output, shape index: {}]
  %s23 = sld [smem:[#allocation0]]
  $region98: #{tpu_custom_call.1} parent=0
    _
  %s25 = ssub.s32 1, %s23
  %s26 = scalar_select 0, %s25, %s23
  $region1: #{tpu_custom_call.1} parent=0
    #allocation2 [shape = 'u8[4096]{0}', space=vmem, size = 0x1000, scoped, tag = 'output window, operand 0, single buffered']
    #allocation3 [shape = 's32[1]{0}', space=sflag, size = 0x4, scoped, tag = 'scoped memory for tpu_custom_call.1']
    %27 = vsyncpa [#allocation3], 0
    // Predicated region
    $region2: #{tpu_custom_call.1} parent=1 // pred_check
      _
    $region3: #{tpu_custom_call.1} parent=1 // pred_check_branch
      %29 = sbr.rel (0) target = $region5
    $region4: #{tpu_custom_call.1} parent=1 // pred_region
      _
    $region5: #{tpu_custom_call.1} parent=1 // pred_fallthru
      _
    // Predicated region
    $region6: #{tpu_custom_call.1} parent=1 // pred_check
      _
    $region7: #{tpu_custom_call.1} parent=1 // pred_check_branch
      %31 = sbr.rel (0) target = $region9
    $region8: #{tpu_custom_call.1} parent=1 // pred_region
      _
    $region9: #{tpu_custom_call.1} parent=1 // pred_fallthru
      _
    // Predicated region
    $region10: #{tpu_custom_call.1} parent=1 // pred_check
      _
    $region11: #{tpu_custom_call.1} parent=1 // pred_check_branch
      %33 = sbr.rel (0) target = $region13
    $region12: #{tpu_custom_call.1} parent=1 // pred_region
      _
    $region13: #{tpu_custom_call.1} parent=1 // pred_fallthru
      _
    // Predicated region
    $region14: #{tpu_custom_call.1} parent=1 // pred_check
      _
    $region15: #{tpu_custom_call.1} parent=1 // pred_check_branch
      %35 = sbr.rel (0) target = $region17
    $region16: #{tpu_custom_call.1} parent=1 // pred_region
      _
    $region17: #{tpu_custom_call.1} parent=1 // pred_fallthru
      _
    // Predicated region
    $region18: #{tpu_custom_call.1} parent=1 // pred_check
      _
    $region19: #{tpu_custom_call.1} parent=1 // pred_check_branch
      %37 = sbr.rel (0) target = $region21
    $region20: #{tpu_custom_call.1} parent=1 // pred_region
      _
    $region21: #{tpu_custom_call.1} parent=1 // pred_fallthru
      _
    // Predicated region
    $region22: #{tpu_custom_call.1} parent=1 // pred_check
      _
    $region23: #{tpu_custom_call.1} parent=1 // pred_check_branch
      %39 = sbr.rel (0) target = $region25
    $region24: #{tpu_custom_call.1} parent=1 // pred_region
      _
    $region25: #{tpu_custom_call.1} parent=1 // pred_fallthru
      _
    // Predicated region
    $region26: #{tpu_custom_call.1} parent=1 // pred_check
      _
    $region27: #{tpu_custom_call.1} parent=1 // pred_check_branch
      %41 = sbr.rel (0) target = $region29
    $region28: #{tpu_custom_call.1} parent=1 // pred_region
      _
    $region29: #{tpu_custom_call.1} parent=1 // pred_fallthru
      _
    // Predicated region
    $region30: #{tpu_custom_call.1} parent=1 // pred_check
      _
    $region31: #{tpu_custom_call.1} parent=1 // pred_check_branch
      %43 = sbr.rel (0) target = $region33
    $region32: #{tpu_custom_call.1} parent=1 // pred_region
      _
    $region33: #{tpu_custom_call.1} parent=1 // pred_fallthru
      _
    // Predicated region
    $region34: #{tpu_custom_call.1} parent=1 // pred_check
      _
    $region35: #{tpu_custom_call.1} parent=1 // pred_check_branch
      %45 = sbr.rel (0) target = $region37
    $region36: #{tpu_custom_call.1} parent=1 // pred_region
      _
    $region37: #{tpu_custom_call.1} parent=1 // pred_fallthru
      _
    // Predicated region
    $region38: #{tpu_custom_call.1} parent=1 // pred_check
      _
    $region39: #{tpu_custom_call.1} parent=1 // pred_check_branch
      %47 = sbr.rel (0) target = $region41
    $region40: #{tpu_custom_call.1} parent=1 // pred_region
      _
    $region41: #{tpu_custom_call.1} parent=1 // pred_fallthru
      _
    // Predicated region
    $region42: #{tpu_custom_call.1} parent=1 // pred_check
      _
    $region43: #{tpu_custom_call.1} parent=1 // pred_check_branch
      %49 = sbr.rel (0) target = $region45
    $region44: #{tpu_custom_call.1} parent=1 // pred_region
      _
    $region45: #{tpu_custom_call.1} parent=1 // pred_fallthru
      _
    // Predicated region
    $region46: #{tpu_custom_call.1} parent=1 // pred_check
      _
    $region47: #{tpu_custom_call.1} parent=1 // pred_check_branch
      %51 = sbr.rel (0) target = $region49
    $region48: #{tpu_custom_call.1} parent=1 // pred_region
      _
    $region49: #{tpu_custom_call.1} parent=1 // pred_fallthru
      _
    // Predicated region
    $region50: #{tpu_custom_call.1} parent=1 // pred_check
      _
    $region51: #{tpu_custom_call.1} parent=1 // pred_check_branch
      %53 = sbr.rel (0) target = $region53
    $region52: #{tpu_custom_call.1} parent=1 // pred_region
      _
    $region53: #{tpu_custom_call.1} parent=1 // pred_fallthru
      _
    // Predicated region
    $region54: #{tpu_custom_call.1} parent=1 // pred_check
      _
    $region55: #{tpu_custom_call.1} parent=1 // pred_check_branch
      %55 = sbr.rel (0) target = $region57
    $region56: #{tpu_custom_call.1} parent=1 // pred_region
      _
    $region57: #{tpu_custom_call.1} parent=1 // pred_fallthru
      _
    // Predicated region
    $region58: #{tpu_custom_call.1} parent=1 // pred_check
      _
    $region59: #{tpu_custom_call.1} parent=1 // pred_check_branch
      %57 = sbr.rel (0) target = $region61
    $region60: #{tpu_custom_call.1} parent=1 // pred_region
      _
    $region61: #{tpu_custom_call.1} parent=1 // pred_fallthru
      _
    // Predicated region
    $region62: #{tpu_custom_call.1} parent=1 // pred_check
      _
    $region63: #{tpu_custom_call.1} parent=1 // pred_check_branch
      %59 = sbr.rel (0) target = $region65
    $region64: #{tpu_custom_call.1} parent=1 // pred_region
      _
    $region65: #{tpu_custom_call.1} parent=1 // pred_fallthru
      _
    // Predicated region
    $region66: #{tpu_custom_call.1} parent=1 // pred_check
      _
    $region67: #{tpu_custom_call.1} parent=1 // pred_check_branch
      %61 = sbr.rel (0) target = $region69
    $region68: #{tpu_custom_call.1} parent=1 // pred_region
      _
    $region69: #{tpu_custom_call.1} parent=1 // pred_fallthru
      _
    // Predicated region
    $region70: #{tpu_custom_call.1} parent=1 // pred_check
      _
    $region71: #{tpu_custom_call.1} parent=1 // pred_check_branch
      %63 = sbr.rel (0) target = $region73
    $region72: #{tpu_custom_call.1} parent=1 // pred_region
      _
    $region73: #{tpu_custom_call.1} parent=1 // pred_fallthru
      _
    // Predicated region
    $region74: #{tpu_custom_call.1} parent=1 // pred_check
      _
    $region75: #{tpu_custom_call.1} parent=1 // pred_check_branch
      %65 = sbr.rel (0) target = $region77
    $region76: #{tpu_custom_call.1} parent=1 // pred_region
      _
    $region77: #{tpu_custom_call.1} parent=1 // pred_fallthru
      _
    // Predicated region
    $region78: #{tpu_custom_call.1} parent=1 // pred_check
      _
    $region79: #{tpu_custom_call.1} parent=1 // pred_check_branch
      %67 = sbr.rel (0) target = $region81
    $region80: #{tpu_custom_call.1} parent=1 // pred_region
      _
    $region81: #{tpu_custom_call.1} parent=1 // pred_fallthru
      _
    // Predicated region
    $region82: #{tpu_custom_call.1} parent=1 // pred_check
      _
    $region83: #{tpu_custom_call.1} parent=1 // pred_check_branch
      %69 = sbr.rel (0) target = $region85
    $region84: #{tpu_custom_call.1} parent=1 // pred_region
      _
    $region85: #{tpu_custom_call.1} parent=1 // pred_fallthru
      _
    // Predicated region
    $region86: #{tpu_custom_call.1} parent=1 // pred_check
      _
    $region87: #{tpu_custom_call.1} parent=1 // pred_check_branch
      %71 = sbr.rel (0) target = $region89
    $region88: #{tpu_custom_call.1} parent=1 // pred_region
      _
    $region89: #{tpu_custom_call.1} parent=1 // pred_fallthru
      _
    %v73 = vld [vmem:[%s2] sm:$0xf]
    %v74 = vld [vmem:[%s2 + $0x4] sm:$0xf]
    %v75 = vld [vmem:[%s2 + $0x8] sm:$0xf]
    %v76 = vld [vmem:[%s2 + $0xc] sm:$0xf]
    %v77 = vld [vmem:[%s3] sm:$0x1]
    %v78 = vld [vmem:[%s4] sm:$0xf]
    %v79 = vld [vmem:[%s4 + $0x4] sm:$0xf]
    %v80 = vld [vmem:[%s5] sm:$0x1]
    %v81 = vld [vmem:[%s6] sm:$0xf]
    %v82 = vld [vmem:[%s6 + $0x4] sm:$0xf]
    %v83 = vld [vmem:[%s7] sm:$0x1]
    %v84 = vld [vmem:[%s8] sm:$0xf]
    %v85 = vld [vmem:[%s8 + $0x4] sm:$0xf]
    %v86 = vld [vmem:[%s8 + $0x8] sm:$0xf]
    %v87 = vld [vmem:[%s8 + $0xc] sm:$0xf]
    %v88 = vld [vmem:[%s9] sm:$0x1]
    %v89 = vld [vmem:[%s10] sm:$0x1]
    %v90 = vld [vmem:[%s11] sm:$0xf]
    %v91 = vld [vmem:[%s11 + $0x4] sm:$0xf]
    %v92 = vld [vmem:[%s11 + $0x8] sm:$0xf]
    %v93 = vld [vmem:[%s11 + $0xc] sm:$0xf]
    %v94 = vld [vmem:[%s12] sm:$0x1]
    %v95 = vld [vmem:[%s13] sm:$0xf]
    %v96 = vld [vmem:[%s13 + $0x4] sm:$0xf]
    %v97 = vld [vmem:[%s14] sm:$0x1]
    %v98 = vld [vmem:[%s15] sm:$0xf]
    %v99 = vld [vmem:[%s15 + $0x4] sm:$0xf]
    %v100 = vld [vmem:[%s16] sm:$0x1]
    %v101 = vld [vmem:[%s17] sm:$0xf]
    %v102 = vld [vmem:[%s17 + $0x4] sm:$0xf]
    %v103 = vld [vmem:[%s17 + $0x8] sm:$0xf]
    %v104 = vld [vmem:[%s17 + $0xc] sm:$0xf]
    %v105 = vld [vmem:[%s18] sm:$0x1]
    %v106 = vld [vmem:[%s19] sm:$0x1]
    %v107 = vld [vmem:[%s20] sm:$0xf]
    %v108 = vld [vmem:[%s20 + $0x4] sm:$0xf]
    %v109 = vld [vmem:[%s20 + $0x8] sm:$0xf]
    %v110 = vld [vmem:[%s20 + $0xc] sm:$0xf]
    %v111 = vld [vmem:[%s20 + $0x10] sm:$0xf]
    %v112 = vld [vmem:[%s20 + $0x14] sm:$0xf]
    %v113 = vld [vmem:[%s20 + $0x18] sm:$0xf]
    %v114 = vld [vmem:[%s20 + $0x1c] sm:$0xf]
    %v115 = vld [vmem:[%s21] sm:$0x1]
    %v116 = vld [vmem:[%s0] sm:$0xf]
    %v117 = vld [vmem:[%s0 + $0x4] sm:$0xf]
    %v118 = vld [vmem:[%s0 + $0x8] sm:$0xf]
    %v119 = vld [vmem:[%s0 + $0xc] sm:$0xf]
    %v120 = vld [vmem:[%s0 + $0x10] sm:$0xf]
    %v121 = vld [vmem:[%s0 + $0x14] sm:$0xf]
    %v123 = vperm.slane %v77, 0
    %v131 = vunpack.c.l.b16 %v116
    %v132 = vunpack.c.l.b16 %v117
    %v133 = vunpack.c.l.b16 %v118
    %v134 = vunpack.c.l.b16 %v119
    %v135 = vunpack.c.l.b16 %v120
    %v136 = vunpack.c.l.b16 %v121
    %v137 = vpack.c.b16 %v132, %v131
    %v138 = vpack.c.b16 %v134, %v133
    %v139 = vpack.c.b16 %v136, %v135
    %v144 = vunpack.c.l.b16 %v73
    %v145 = vunpack.c.l.b16 %v74
    %v146 = vunpack.c.l.b16 %v75
    %v147 = vunpack.c.l.b16 %v76
    %v148 = vpack.c.b16 %v145, %v144
    %v149 = vpack.c.b16 %v147, %v146
    %vm152 = vcmask 261120
    %v154 = vsel %vm152, %v137, 0
    %v157 = vsel %vm152, %v138, 0
    %v160 = vsel %vm152, %v139, 0
    %162 = vmatpush.bf16.msra.mxu0 0
    %163 = vmatpush.bf16.msra.mxu0 0
    %164 = vmatpush.bf16.msra.mxu0 0
    %165 = vmatpush.bf16.msra.mxu0 0
    %166 = vmatpush.bf16.msra.mxu0 0
    %167 = vmatpush.bf16.msra.mxu0 0
    %168 = vmatpush.bf16.msra.mxu0 %v149
    %169 = vmatpush.bf16.msra.mxu0 %v148
    %170 = vmatmul.bf16.gmra.mxu0 %v154
    %v171 = vpop.f32.mrf.mxu0
    %v172 = vadd.f32 %v123, %v171
    %v173 = vpop.f32.mrf.mxu0
    %v174 = vadd.f32 %v123, %v173
    %175 = vmatmul.bf16.gmra.mxu0 %v157
    %v176 = vpop.f32.mrf.mxu0
    %v177 = vadd.f32 %v123, %v176
    %v178 = vpop.f32.mrf.mxu0
    %v179 = vadd.f32 %v123, %v178
    %180 = vmatmul.bf16.gmra.mxu0 %v160
    %v181 = vpop.f32.mrf.mxu0
    %v182 = vadd.f32 %v123, %v181
    %v183 = vpop.f32.mrf.mxu0
    %v184 = vadd.f32 %v123, %v183
    %185 = vdwg.mxu0
    %v187 = vperm.slane %v80, 0
    %v191 = vunpack.c.l.b16 %v78
    %v192 = vunpack.c.l.b16 %v79
    %v193 = vpack.c.b16 %v192, %v191
    %vm195 = vcmask 130048
    %v197 = vsel %vm195, 0, 0
    %199 = vmatpush.bf16.msra.mxu0 0
    %200 = vmatpush.bf16.msra.mxu0 0
    %201 = vmatpush.bf16.msra.mxu0 0
    %202 = vmatpush.bf16.msra.mxu0 0
    %203 = vmatpush.bf16.msra.mxu0 0
    %204 = vmatpush.bf16.msra.mxu0 0
    %205 = vmatpush.bf16.msra.mxu0 0
    %206 = vmatpush.bf16.msra.mxu0 %v193
    %207 = vmatmul.bf16.gmra.mxu0 %v197
    %v208 = vpop.f32.mrf.mxu0
    %v209 = vadd.f32 %v187, %v208
    %v210 = vpop.f32.mrf.mxu0
    %211 = vdwg.mxu0
    %v212 = vadd.f32 %v172, %v209
    %v213 = vxor.u32 %v212, 2147483648
    %v214 = vmul.f32 %v213, 1.442695
    %v215 = vpow.pop %v214
    %v216 = vadd.f32 %v215, 1.0
    %v217 = vrcp.pop %v216
    %v218 = vmul.f32 %v216, %v217
    %v219 = vsub.f32 1.0, %v218
    %v220 = vmul.f32 %v217, %v219
    %v221 = vadd.f32 %v217, %v220
    %vm222 = vweird.f32 %v216
    %vm223 = vweird.f32 %v217
    %vm224 = vmor %vm222, %vm223
    %v225 = vsel %vm224, %v217, %v221
    %v226 = vand.u32 2147483647, %v216
    %vm227 = vcmp.eq.f32.partialorder %v226, 8.507059e+37
    %v228 = vand.u32 %v216, 2147483648
    %v229 = vor.u32 1.1754944e-38, %v228
    %v230 = vsel %vm227, %v229, %v225
    %v231 = vmul.f32 1.0, %v230
    %233 = vrot.lane.b32.xlu0 %v209, 96
    %v234 = vpop.permute.xlu0 %233
    %v236 = vmul.f32 %v231, %v234
    %238 = vrot.lane.b32.xlu0 %v236, 32
    %v239 = vpop.permute.xlu0 %238
    %v241 = vadd.f32 %v172, %v239
    %v242 = vtanh.pop %v241
    %v243 = vsub.f32 1.0, %v231
    %245 = vrot.lane.b32.xlu0 %v242, 112
    %v246 = vpop.permute.xlu0 %245
    %v248 = vmul.f32 %v243, %v246
    %v249 = vmul.f32 %v231, 0.0
    %v250 = vadd.f32 %v248, %v249
    %v252 = vperm.slane %v83, 0
    %v256 = vunpack.c.l.b16 %v81
    %v257 = vunpack.c.l.b16 %v82
    %v258 = vpack.c.b16 %v257, %v256
    %260 = vmatpush.bf16.msra.mxu0 0
    %261 = vmatpush.bf16.msra.mxu0 0
    %262 = vmatpush.bf16.msra.mxu0 0
    %263 = vmatpush.bf16.msra.mxu0 0
    %264 = vmatpush.bf16.msra.mxu0 0
    %265 = vmatpush.bf16.msra.mxu0 0
    %266 = vmatpush.bf16.msra.mxu0 0
    %267 = vmatpush.bf16.msra.mxu0 %v258
    %268 = vmatmul.bf16.gmra.mxu0 %v197
    %v269 = vpop.f32.mrf.mxu0
    %v270 = vadd.f32 %v252, %v269
    %v271 = vpop.f32.mrf.mxu0
    %272 = vdwg.mxu0
    %274 = vrot.lane.b32.xlu0 %v270, 48
    %v275 = vpop.permute.xlu0 %274
    %v277 = vadd.f32 %v184, %v275
    %v278 = vxor.u32 %v277, 2147483648
    %v279 = vmul.f32 %v278, 1.442695
    %v280 = vpow.pop %v279
    %v281 = vadd.f32 %v280, 1.0
    %v282 = vrcp.pop %v281
    %v283 = vmul.f32 %v281, %v282
    %v284 = vsub.f32 1.0, %v283
    %v285 = vmul.f32 %v282, %v284
    %v286 = vadd.f32 %v282, %v285
    %vm287 = vweird.f32 %v281
    %vm288 = vweird.f32 %v282
    %vm289 = vmor %vm287, %vm288
    %v290 = vsel %vm289, %v282, %v286
    %v291 = vand.u32 2147483647, %v281
    %vm292 = vcmp.eq.f32.partialorder %v291, 8.507059e+37
    %v293 = vand.u32 %v281, 2147483648
    %v294 = vor.u32 1.1754944e-38, %v293
    %v295 = vsel %vm292, %v294, %v290
    %v296 = vmul.f32 1.0, %v295
    %297 = vrot.lane.b32.xlu0 %v270, 16
    %v298 = vpop.permute.xlu0 %297
    %v300 = vmul.f32 %v296, %v298
    %302 = vrot.lane.b32.xlu0 %v300, 32
    %v303 = vpop.permute.xlu0 %302
    %v305 = vadd.f32 %v184, %v303
    %v306 = vtanh.pop %v305
    %v307 = vsub.f32 1.0, %v296
    %309 = vrot.lane.b32.xlu0 %v306, 112
    %v310 = vpop.permute.xlu0 %309
    %v312 = vmul.f32 %v307, %v310
    %v313 = vmul.f32 %v296, 0.0
    %v314 = vadd.f32 %v312, %v313
    %v315 = vpack.c.bf16 %v250, %v250
    %317 = vrot.lane.b32.xlu0 %v315, 112
    %v318 = vpop.permute.xlu0 %317
    %v320 = vsel %vm195, %v318, 0
    %322 = vmatpush.bf16.msra.mxu0 0
    %323 = vmatpush.bf16.msra.mxu0 0
    %324 = vmatpush.bf16.msra.mxu0 0
    %325 = vmatpush.bf16.msra.mxu0 0
    %326 = vmatpush.bf16.msra.mxu0 0
    %327 = vmatpush.bf16.msra.mxu0 0
    %328 = vmatpush.bf16.msra.mxu0 0
    %329 = vmatpush.bf16.msra.mxu0 %v193
    %330 = vmatmul.bf16.gmra.mxu0 %v320
    %v331 = vpop.f32.mrf.mxu0
    %v332 = vadd.f32 %v187, %v331
    %v333 = vpop.f32.mrf.mxu0
    %334 = vdwg.mxu0
    %v335 = vadd.f32 %v174, %v332
    %v336 = vxor.u32 %v335, 2147483648
    %v337 = vmul.f32 %v336, 1.442695
    %v338 = vpow.pop %v337
    %v339 = vadd.f32 %v338, 1.0
    %v340 = vrcp.pop %v339
    %v341 = vmul.f32 %v339, %v340
    %v342 = vsub.f32 1.0, %v341
    %v343 = vmul.f32 %v340, %v342
    %v344 = vadd.f32 %v340, %v343
    %vm345 = vweird.f32 %v339
    %vm346 = vweird.f32 %v340
    %vm347 = vmor %vm345, %vm346
    %v348 = vsel %vm347, %v340, %v344
    %v349 = vand.u32 2147483647, %v339
    %vm350 = vcmp.eq.f32.partialorder %v349, 8.507059e+37
    %v351 = vand.u32 %v339, 2147483648
    %v352 = vor.u32 1.1754944e-38, %v351
    %v353 = vsel %vm350, %v352, %v348
    %v354 = vmul.f32 1.0, %v353
    %356 = vrot.lane.b32.xlu0 %v332, 96
    %v357 = vpop.permute.xlu0 %356
    %v359 = vmul.f32 %v354, %v357
    %361 = vrot.lane.b32.xlu0 %v359, 32
    %v362 = vpop.permute.xlu0 %361
    %v364 = vadd.f32 %v174, %v362
    %v365 = vtanh.pop %v364
    %v366 = vsub.f32 1.0, %v354
    %368 = vrot.lane.b32.xlu0 %v365, 112
    %v369 = vpop.permute.xlu0 %368
    %v371 = vmul.f32 %v366, %v369
    %v372 = vmul.f32 %v354, %v250
    %v373 = vadd.f32 %v371, %v372
    %v374 = vpack.c.bf16 %v314, %v314
    %376 = vrot.lane.b32.xlu0 %v374, 64
    %v377 = vpop.permute.xlu0 %376
    %v379 = vsel %vm195, %v377, 0
    %381 = vmatpush.bf16.msra.mxu0 0
    %382 = vmatpush.bf16.msra.mxu0 0
    %383 = vmatpush.bf16.msra.mxu0 0
    %384 = vmatpush.bf16.msra.mxu0 0
    %385 = vmatpush.bf16.msra.mxu0 0
    %386 = vmatpush.bf16.msra.mxu0 0
    %387 = vmatpush.bf16.msra.mxu0 0
    %388 = vmatpush.bf16.msra.mxu0 %v258
    %389 = vmatmul.bf16.gmra.mxu0 %v379
    %v390 = vpop.f32.mrf.mxu0
    %v391 = vadd.f32 %v252, %v390
    %v392 = vpop.f32.mrf.mxu0
    %393 = vdwg.mxu0
    %395 = vrot.lane.b32.xlu0 %v391, 48
    %v396 = vpop.permute.xlu0 %395
    %v398 = vadd.f32 %v182, %v396
    %v399 = vxor.u32 %v398, 2147483648
    %v400 = vmul.f32 %v399, 1.442695
    %v401 = vpow.pop %v400
    %v402 = vadd.f32 %v401, 1.0
    %v403 = vrcp.pop %v402
    %v404 = vmul.f32 %v402, %v403
    %v405 = vsub.f32 1.0, %v404
    %v406 = vmul.f32 %v403, %v405
    %v407 = vadd.f32 %v403, %v406
    %vm408 = vweird.f32 %v402
    %vm409 = vweird.f32 %v403
    %vm410 = vmor %vm408, %vm409
    %v411 = vsel %vm410, %v403, %v407
    %v412 = vand.u32 2147483647, %v402
    %vm413 = vcmp.eq.f32.partialorder %v412, 8.507059e+37
    %v414 = vand.u32 %v402, 2147483648
    %v415 = vor.u32 1.1754944e-38, %v414
    %v416 = vsel %vm413, %v415, %v411
    %v417 = vmul.f32 1.0, %v416
    %418 = vrot.lane.b32.xlu0 %v391, 16
    %v419 = vpop.permute.xlu0 %418
    %v421 = vmul.f32 %v417, %v419
    %423 = vrot.lane.b32.xlu0 %v421, 32
    %v424 = vpop.permute.xlu0 %423
    %v426 = vadd.f32 %v182, %v424
    %v427 = vtanh.pop %v426
    %v428 = vsub.f32 1.0, %v417
    %430 = vrot.lane.b32.xlu0 %v427, 112
    %v431 = vpop.permute.xlu0 %430
    %v433 = vmul.f32 %v428, %v431
    %v434 = vmul.f32 %v417, %v314
    %v435 = vadd.f32 %v433, %v434
    %v436 = vpack.c.bf16 %v373, %v373
    %438 = vrot.lane.b32.xlu0 %v436, 112
    %v439 = vpop.permute.xlu0 %438
    %v441 = vsel %vm195, %v439, 0
    %443 = vmatpush.bf16.msra.mxu0 0
    %444 = vmatpush.bf16.msra.mxu0 0
    %445 = vmatpush.bf16.msra.mxu0 0
    %446 = vmatpush.bf16.msra.mxu0 0
    %447 = vmatpush.bf16.msra.mxu0 0
    %448 = vmatpush.bf16.msra.mxu0 0
    %449 = vmatpush.bf16.msra.mxu0 0
    %450 = vmatpush.bf16.msra.mxu0 %v193
    %451 = vmatmul.bf16.gmra.mxu0 %v441
    %v452 = vpop.f32.mrf.mxu0
    %v453 = vadd.f32 %v187, %v452
    %v454 = vpop.f32.mrf.mxu0
    %455 = vdwg.mxu0
    %v456 = vadd.f32 %v177, %v453
    %v457 = vxor.u32 %v456, 2147483648
    %v458 = vmul.f32 %v457, 1.442695
    %v459 = vpow.pop %v458
    %v460 = vadd.f32 %v459, 1.0
    %v461 = vrcp.pop %v460
    %v462 = vmul.f32 %v460, %v461
    %v463 = vsub.f32 1.0, %v462
    %v464 = vmul.f32 %v461, %v463
    %v465 = vadd.f32 %v461, %v464
    %vm466 = vweird.f32 %v460
    %vm467 = vweird.f32 %v461
    %vm468 = vmor %vm466, %vm467
    %v469 = vsel %vm468, %v461, %v465
    %v470 = vand.u32 2147483647, %v460
    %vm471 = vcmp.eq.f32.partialorder %v470, 8.507059e+37
    %v472 = vand.u32 %v460, 2147483648
    %v473 = vor.u32 1.1754944e-38, %v472
    %v474 = vsel %vm471, %v473, %v469
    %v475 = vmul.f32 1.0, %v474
    %477 = vrot.lane.b32.xlu0 %v453, 96
    %v478 = vpop.permute.xlu0 %477
    %v480 = vmul.f32 %v475, %v478
    %482 = vrot.lane.b32.xlu0 %v480, 32
    %v483 = vpop.permute.xlu0 %482
    %v485 = vadd.f32 %v177, %v483
    %v486 = vtanh.pop %v485
    %v487 = vsub.f32 1.0, %v475
    %489 = vrot.lane.b32.xlu0 %v486, 112
    %v490 = vpop.permute.xlu0 %489
    %v492 = vmul.f32 %v487, %v490
    %v493 = vmul.f32 %v475, %v373
    %v494 = vadd.f32 %v492, %v493
    %v495 = vpack.c.bf16 %v435, %v435
    %497 = vrot.lane.b32.xlu0 %v495, 64
    %v498 = vpop.permute.xlu0 %497
    %v500 = vsel %vm195, %v498, 0
    %502 = vmatpush.bf16.msra.mxu0 0
    %503 = vmatpush.bf16.msra.mxu0 0
    %504 = vmatpush.bf16.msra.mxu0 0
    %505 = vmatpush.bf16.msra.mxu0 0
    %506 = vmatpush.bf16.msra.mxu0 0
    %507 = vmatpush.bf16.msra.mxu0 0
    %508 = vmatpush.bf16.msra.mxu0 0
    %509 = vmatpush.bf16.msra.mxu0 %v258
    %510 = vmatmul.bf16.gmra.mxu0 %v500
    %v511 = vpop.f32.mrf.mxu0
    %v512 = vadd.f32 %v252, %v511
    %v513 = vpop.f32.mrf.mxu0
    %514 = vdwg.mxu0
    %516 = vrot.lane.b32.xlu0 %v512, 48
    %v517 = vpop.permute.xlu0 %516
    %v519 = vadd.f32 %v179, %v517
    %v520 = vxor.u32 %v519, 2147483648
    %v521 = vmul.f32 %v520, 1.442695
    %v522 = vpow.pop %v521
    %v523 = vadd.f32 %v522, 1.0
    %v524 = vrcp.pop %v523
    %v525 = vmul.f32 %v523, %v524
    %v526 = vsub.f32 1.0, %v525
    %v527 = vmul.f32 %v524, %v526
    %v528 = vadd.f32 %v524, %v527
    %vm529 = vweird.f32 %v523
    %vm530 = vweird.f32 %v524
    %vm531 = vmor %vm529, %vm530
    %v532 = vsel %vm531, %v524, %v528
    %v533 = vand.u32 2147483647, %v523
    %vm534 = vcmp.eq.f32.partialorder %v533, 8.507059e+37
    %v535 = vand.u32 %v523, 2147483648
    %v536 = vor.u32 1.1754944e-38, %v535
    %v537 = vsel %vm534, %v536, %v532
    %v538 = vmul.f32 1.0, %v537
    %539 = vrot.lane.b32.xlu0 %v512, 16
    %v540 = vpop.permute.xlu0 %539
    %v542 = vmul.f32 %v538, %v540
    %544 = vrot.lane.b32.xlu0 %v542, 32
    %v545 = vpop.permute.xlu0 %544
    %v547 = vadd.f32 %v179, %v545
    %v548 = vtanh.pop %v547
    %v549 = vsub.f32 1.0, %v538
    %551 = vrot.lane.b32.xlu0 %v548, 112
    %v552 = vpop.permute.xlu0 %551
    %v554 = vmul.f32 %v549, %v552
    %v555 = vmul.f32 %v538, %v435
    %v556 = vadd.f32 %v554, %v555
    %v557 = vpack.c.bf16 %v494, %v494
    %559 = vrot.lane.b32.xlu0 %v557, 112
    %v560 = vpop.permute.xlu0 %559
    %v562 = vsel %vm195, %v560, 0
    %564 = vmatpush.bf16.msra.mxu0 0
    %565 = vmatpush.bf16.msra.mxu0 0
    %566 = vmatpush.bf16.msra.mxu0 0
    %567 = vmatpush.bf16.msra.mxu0 0
    %568 = vmatpush.bf16.msra.mxu0 0
    %569 = vmatpush.bf16.msra.mxu0 0
    %570 = vmatpush.bf16.msra.mxu0 0
    %571 = vmatpush.bf16.msra.mxu0 %v193
    %572 = vmatmul.bf16.gmra.mxu0 %v562
    %v573 = vpop.f32.mrf.mxu0
    %v574 = vadd.f32 %v187, %v573
    %v575 = vpop.f32.mrf.mxu0
    %576 = vdwg.mxu0
    %v577 = vadd.f32 %v179, %v574
    %v578 = vxor.u32 %v577, 2147483648
    %v579 = vmul.f32 %v578, 1.442695
    %v580 = vpow.pop %v579
    %v581 = vadd.f32 %v580, 1.0
    %v582 = vrcp.pop %v581
    %v583 = vmul.f32 %v581, %v582
    %v584 = vsub.f32 1.0, %v583
    %v585 = vmul.f32 %v582, %v584
    %v586 = vadd.f32 %v582, %v585
    %vm587 = vweird.f32 %v581
    %vm588 = vweird.f32 %v582
    %vm589 = vmor %vm587, %vm588
    %v590 = vsel %vm589, %v582, %v586
    %v591 = vand.u32 2147483647, %v581
    %vm592 = vcmp.eq.f32.partialorder %v591, 8.507059e+37
    %v593 = vand.u32 %v581, 2147483648
    %v594 = vor.u32 1.1754944e-38, %v593
    %v595 = vsel %vm592, %v594, %v590
    %v596 = vmul.f32 1.0, %v595
    %598 = vrot.lane.b32.xlu0 %v574, 96
    %v599 = vpop.permute.xlu0 %598
    %v601 = vmul.f32 %v596, %v599
    %603 = vrot.lane.b32.xlu0 %v601, 32
    %v604 = vpop.permute.xlu0 %603
    %v606 = vadd.f32 %v179, %v604
    %v607 = vtanh.pop %v606
    %v608 = vsub.f32 1.0, %v596
    %610 = vrot.lane.b32.xlu0 %v607, 112
    %v611 = vpop.permute.xlu0 %610
    %v613 = vmul.f32 %v608, %v611
    %v614 = vmul.f32 %v596, %v494
    %v615 = vadd.f32 %v613, %v614
    %v616 = vpack.c.bf16 %v556, %v556
    %618 = vrot.lane.b32.xlu0 %v616, 64
    %v619 = vpop.permute.xlu0 %618
    %v621 = vsel %vm195, %v619, 0
    %623 = vmatpush.bf16.msra.mxu0 0
    %624 = vmatpush.bf16.msra.mxu0 0
    %625 = vmatpush.bf16.msra.mxu0 0
    %626 = vmatpush.bf16.msra.mxu0 0
    %627 = vmatpush.bf16.msra.mxu0 0
    %628 = vmatpush.bf16.msra.mxu0 0
    %629 = vmatpush.bf16.msra.mxu0 0
    %630 = vmatpush.bf16.msra.mxu0 %v258
    %631 = vmatmul.bf16.gmra.mxu0 %v621
    %v632 = vpop.f32.mrf.mxu0
    %v633 = vadd.f32 %v252, %v632
    %v634 = vpop.f32.mrf.mxu0
    %635 = vdwg.mxu0
    %637 = vrot.lane.b32.xlu0 %v633, 48
    %v638 = vpop.permute.xlu0 %637
    %v640 = vadd.f32 %v177, %v638
    %v641 = vxor.u32 %v640, 2147483648
    %v642 = vmul.f32 %v641, 1.442695
    %v643 = vpow.pop %v642
    %v644 = vadd.f32 %v643, 1.0
    %v645 = vrcp.pop %v644
    %v646 = vmul.f32 %v644, %v645
    %v647 = vsub.f32 1.0, %v646
    %v648 = vmul.f32 %v645, %v647
    %v649 = vadd.f32 %v645, %v648
    %vm650 = vweird.f32 %v644
    %vm651 = vweird.f32 %v645
    %vm652 = vmor %vm650, %vm651
    %v653 = vsel %vm652, %v645, %v649
    %v654 = vand.u32 2147483647, %v644
    %vm655 = vcmp.eq.f32.partialorder %v654, 8.507059e+37
    %v656 = vand.u32 %v644, 2147483648
    %v657 = vor.u32 1.1754944e-38, %v656
    %v658 = vsel %vm655, %v657, %v653
    %v659 = vmul.f32 1.0, %v658
    %660 = vrot.lane.b32.xlu0 %v633, 16
    %v661 = vpop.permute.xlu0 %660
    %v663 = vmul.f32 %v659, %v661
    %665 = vrot.lane.b32.xlu0 %v663, 32
    %v666 = vpop.permute.xlu0 %665
    %v668 = vadd.f32 %v177, %v666
    %v669 = vtanh.pop %v668
    %v670 = vsub.f32 1.0, %v659
    %672 = vrot.lane.b32.xlu0 %v669, 112
    %v673 = vpop.permute.xlu0 %672
    %v675 = vmul.f32 %v670, %v673
    %v676 = vmul.f32 %v659, %v556
    %v677 = vadd.f32 %v675, %v676
    %v678 = vpack.c.bf16 %v615, %v615
    %680 = vrot.lane.b32.xlu0 %v678, 112
    %v681 = vpop.permute.xlu0 %680
    %v683 = vsel %vm195, %v681, 0
    %685 = vmatpush.bf16.msra.mxu0 0
    %686 = vmatpush.bf16.msra.mxu0 0
    %687 = vmatpush.bf16.msra.mxu0 0
    %688 = vmatpush.bf16.msra.mxu0 0
    %689 = vmatpush.bf16.msra.mxu0 0
    %690 = vmatpush.bf16.msra.mxu0 0
    %691 = vmatpush.bf16.msra.mxu0 0
    %692 = vmatpush.bf16.msra.mxu0 %v193
    %693 = vmatmul.bf16.gmra.mxu0 %v683
    %v694 = vpop.f32.mrf.mxu0
    %v695 = vadd.f32 %v187, %v694
    %v696 = vpop.f32.mrf.mxu0
    %697 = vdwg.mxu0
    %v698 = vadd.f32 %v182, %v695
    %v699 = vxor.u32 %v698, 2147483648
    %v700 = vmul.f32 %v699, 1.442695
    %v701 = vpow.pop %v700
    %v702 = vadd.f32 %v701, 1.0
    %v703 = vrcp.pop %v702
    %v704 = vmul.f32 %v702, %v703
    %v705 = vsub.f32 1.0, %v704
    %v706 = vmul.f32 %v703, %v705
    %v707 = vadd.f32 %v703, %v706
    %vm708 = vweird.f32 %v702
    %vm709 = vweird.f32 %v703
    %vm710 = vmor %vm708, %vm709
    %v711 = vsel %vm710, %v703, %v707
    %v712 = vand.u32 2147483647, %v702
    %vm713 = vcmp.eq.f32.partialorder %v712, 8.507059e+37
    %v714 = vand.u32 %v702, 2147483648
    %v715 = vor.u32 1.1754944e-38, %v714
    %v716 = vsel %vm713, %v715, %v711
    %v717 = vmul.f32 1.0, %v716
    %719 = vrot.lane.b32.xlu0 %v695, 96
    %v720 = vpop.permute.xlu0 %719
    %v722 = vmul.f32 %v717, %v720
    %724 = vrot.lane.b32.xlu0 %v722, 32
    %v725 = vpop.permute.xlu0 %724
    %v727 = vadd.f32 %v182, %v725
    %v728 = vtanh.pop %v727
    %v729 = vsub.f32 1.0, %v717
    %731 = vrot.lane.b32.xlu0 %v728, 112
    %v732 = vpop.permute.xlu0 %731
    %v734 = vmul.f32 %v729, %v732
    %v735 = vmul.f32 %v717, %v615
    %v736 = vadd.f32 %v734, %v735
    %v737 = vpack.c.bf16 %v677, %v677
    %739 = vrot.lane.b32.xlu0 %v737, 64
    %v740 = vpop.permute.xlu0 %739
    %v742 = vsel %vm195, %v740, 0
    %744 = vmatpush.bf16.msra.mxu0 0
    %745 = vmatpush.bf16.msra.mxu0 0
    %746 = vmatpush.bf16.msra.mxu0 0
    %747 = vmatpush.bf16.msra.mxu0 0
    %748 = vmatpush.bf16.msra.mxu0 0
    %749 = vmatpush.bf16.msra.mxu0 0
    %750 = vmatpush.bf16.msra.mxu0 0
    %751 = vmatpush.bf16.msra.mxu0 %v258
    %752 = vmatmul.bf16.gmra.mxu0 %v742
    %v753 = vpop.f32.mrf.mxu0
    %v754 = vadd.f32 %v252, %v753
    %v755 = vpop.f32.mrf.mxu0
    %756 = vdwg.mxu0
    %758 = vrot.lane.b32.xlu0 %v754, 48
    %v759 = vpop.permute.xlu0 %758
    %v761 = vadd.f32 %v174, %v759
    %v762 = vxor.u32 %v761, 2147483648
    %v763 = vmul.f32 %v762, 1.442695
    %v764 = vpow.pop %v763
    %v765 = vadd.f32 %v764, 1.0
    %v766 = vrcp.pop %v765
    %v767 = vmul.f32 %v765, %v766
    %v768 = vsub.f32 1.0, %v767
    %v769 = vmul.f32 %v766, %v768
    %v770 = vadd.f32 %v766, %v769
    %vm771 = vweird.f32 %v765
    %vm772 = vweird.f32 %v766
    %vm773 = vmor %vm771, %vm772
    %v774 = vsel %vm773, %v766, %v770
    %v775 = vand.u32 2147483647, %v765
    %vm776 = vcmp.eq.f32.partialorder %v775, 8.507059e+37
    %v777 = vand.u32 %v765, 2147483648
    %v778 = vor.u32 1.1754944e-38, %v777
    %v779 = vsel %vm776, %v778, %v774
    %v780 = vmul.f32 1.0, %v779
    %781 = vrot.lane.b32.xlu0 %v754, 16
    %v782 = vpop.permute.xlu0 %781
    %v784 = vmul.f32 %v780, %v782
    %786 = vrot.lane.b32.xlu0 %v784, 32
    %v787 = vpop.permute.xlu0 %786
    %v789 = vadd.f32 %v174, %v787
    %v790 = vtanh.pop %v789
    %v791 = vsub.f32 1.0, %v780
    %793 = vrot.lane.b32.xlu0 %v790, 112
    %v794 = vpop.permute.xlu0 %793
    %v796 = vmul.f32 %v791, %v794
    %v797 = vmul.f32 %v780, %v677
    %v798 = vadd.f32 %v796, %v797
    %v799 = vpack.c.bf16 %v736, %v736
    %801 = vrot.lane.b32.xlu0 %v799, 112
    %v802 = vpop.permute.xlu0 %801
    %v804 = vsel %vm195, %v802, 0
    %806 = vmatpush.bf16.msra.mxu0 0
    %807 = vmatpush.bf16.msra.mxu0 0
    %808 = vmatpush.bf16.msra.mxu0 0
    %809 = vmatpush.bf16.msra.mxu0 0
    %810 = vmatpush.bf16.msra.mxu0 0
    %811 = vmatpush.bf16.msra.mxu0 0
    %812 = vmatpush.bf16.msra.mxu0 0
    %813 = vmatpush.bf16.msra.mxu0 %v193
    %814 = vmatmul.bf16.gmra.mxu0 %v804
    %v815 = vpop.f32.mrf.mxu0
    %v816 = vadd.f32 %v187, %v815
    %v817 = vpop.f32.mrf.mxu0
    %818 = vdwg.mxu0
    %v819 = vadd.f32 %v184, %v816
    %v820 = vxor.u32 %v819, 2147483648
    %v821 = vmul.f32 %v820, 1.442695
    %v822 = vpow.pop %v821
    %v823 = vadd.f32 %v822, 1.0
    %v824 = vrcp.pop %v823
    %v825 = vmul.f32 %v823, %v824
    %v826 = vsub.f32 1.0, %v825
    %v827 = vmul.f32 %v824, %v826
    %v828 = vadd.f32 %v824, %v827
    %vm829 = vweird.f32 %v823
    %vm830 = vweird.f32 %v824
    %vm831 = vmor %vm829, %vm830
    %v832 = vsel %vm831, %v824, %v828
    %v833 = vand.u32 2147483647, %v823
    %vm834 = vcmp.eq.f32.partialorder %v833, 8.507059e+37
    %v835 = vand.u32 %v823, 2147483648
    %v836 = vor.u32 1.1754944e-38, %v835
    %v837 = vsel %vm834, %v836, %v832
    %v838 = vmul.f32 1.0, %v837
    %840 = vrot.lane.b32.xlu0 %v816, 96
    %v841 = vpop.permute.xlu0 %840
    %v843 = vmul.f32 %v838, %v841
    %845 = vrot.lane.b32.xlu0 %v843, 32
    %v846 = vpop.permute.xlu0 %845
    %v848 = vadd.f32 %v184, %v846
    %v849 = vtanh.pop %v848
    %v850 = vsub.f32 1.0, %v838
    %852 = vrot.lane.b32.xlu0 %v849, 112
    %v853 = vpop.permute.xlu0 %852
    %v855 = vmul.f32 %v850, %v853
    %v856 = vmul.f32 %v838, %v736
    %v857 = vadd.f32 %v855, %v856
    %v858 = vpack.c.bf16 %v798, %v798
    %860 = vrot.lane.b32.xlu0 %v858, 64
    %v861 = vpop.permute.xlu0 %860
    %v863 = vsel %vm195, %v861, 0
    %865 = vmatpush.bf16.msra.mxu0 0
    %866 = vmatpush.bf16.msra.mxu0 0
    %867 = vmatpush.bf16.msra.mxu0 0
    %868 = vmatpush.bf16.msra.mxu0 0
    %869 = vmatpush.bf16.msra.mxu0 0
    %870 = vmatpush.bf16.msra.mxu0 0
    %871 = vmatpush.bf16.msra.mxu0 0
    %872 = vmatpush.bf16.msra.mxu0 %v258
    %873 = vmatmul.bf16.gmra.mxu0 %v863
    %v874 = vpop.f32.mrf.mxu0
    %v875 = vadd.f32 %v252, %v874
    %v876 = vpop.f32.mrf.mxu0
    %877 = vdwg.mxu0
    %879 = vrot.lane.b32.xlu0 %v875, 48
    %v880 = vpop.permute.xlu0 %879
    %v882 = vadd.f32 %v172, %v880
    %v883 = vxor.u32 %v882, 2147483648
    %v884 = vmul.f32 %v883, 1.442695
    %v885 = vpow.pop %v884
    %v886 = vadd.f32 %v885, 1.0
    %v887 = vrcp.pop %v886
    %v888 = vmul.f32 %v886, %v887
    %v889 = vsub.f32 1.0, %v888
    %v890 = vmul.f32 %v887, %v889
    %v891 = vadd.f32 %v887, %v890
    %vm892 = vweird.f32 %v886
    %vm893 = vweird.f32 %v887
    %vm894 = vmor %vm892, %vm893
    %v895 = vsel %vm894, %v887, %v891
    %v896 = vand.u32 2147483647, %v886
    %vm897 = vcmp.eq.f32.partialorder %v896, 8.507059e+37
    %v898 = vand.u32 %v886, 2147483648
    %v899 = vor.u32 1.1754944e-38, %v898
    %v900 = vsel %vm897, %v899, %v895
    %v901 = vmul.f32 1.0, %v900
    %902 = vrot.lane.b32.xlu0 %v875, 16
    %v903 = vpop.permute.xlu0 %902
    %v905 = vmul.f32 %v901, %v903
    %907 = vrot.lane.b32.xlu0 %v905, 32
    %v908 = vpop.permute.xlu0 %907
    %v910 = vadd.f32 %v172, %v908
    %v911 = vtanh.pop %v910
    %v912 = vsub.f32 1.0, %v901
    %914 = vrot.lane.b32.xlu0 %v911, 112
    %v915 = vpop.permute.xlu0 %914
    %v917 = vmul.f32 %v912, %v915
    %v918 = vmul.f32 %v901, %v798
    %v919 = vadd.f32 %v917, %v918
    %v920 = vpack.c.bf16 %v373, %v250
    %v921 = vpack.c.bf16 %v615, %v494
    %v922 = vpack.c.bf16 %v857, %v736
    %v923 = vpack.c.bf16 %v798, %v919
    %v924 = vpack.c.bf16 %v556, %v677
    %v925 = vpack.c.bf16 %v314, %v435
    %929 = vrot.lane.b32.xlu0 %v923, 64
    %v930 = vpop.permute.xlu0 %929
    %931 = vrot.lane.b32.xlu0 %v924, 64
    %v932 = vpop.permute.xlu0 %931
    %933 = vrot.lane.b32.xlu0 %v925, 64
    %v934 = vpop.permute.xlu0 %933
    %v937 = vunpack.c.l.b16 %v86
    %v938 = vunpack.c.l.b16 %v87
    %v939 = vpack.c.b16 %v938, %v937
    %v942 = vsel %vm195, %v930, 0
    %v945 = vsel %vm195, %v932, 0
    %v948 = vsel %vm195, %v934, 0
    %950 = vmatpush.bf16.msra.mxu0 0
    %951 = vmatpush.bf16.msra.mxu0 0
    %952 = vmatpush.bf16.msra.mxu0 0
    %953 = vmatpush.bf16.msra.mxu0 0
    %954 = vmatpush.bf16.msra.mxu0 0
    %955 = vmatpush.bf16.msra.mxu0 0
    %956 = vmatpush.bf16.msra.mxu0 0
    %957 = vmatpush.bf16.msra.mxu0 %v939
    %958 = vmatmul.bf16.gmra.mxu0 %v942
    %v959 = vpop.f32.mrf.mxu0
    %v960 = vadd.f32 0.0, %v959
    %v961 = vpop.f32.mrf.mxu0
    %v962 = vadd.f32 0.0, %v961
    %963 = vmatmul.bf16.gmra.mxu0 %v945
    %v964 = vpop.f32.mrf.mxu0
    %v965 = vadd.f32 0.0, %v964
    %v966 = vpop.f32.mrf.mxu0
    %v967 = vadd.f32 0.0, %v966
    %968 = vmatmul.bf16.gmra.mxu0 %v948
    %v969 = vpop.f32.mrf.mxu0
    %v970 = vadd.f32 0.0, %v969
    %v971 = vpop.f32.mrf.mxu0
    %v972 = vadd.f32 0.0, %v971
    %973 = vdwg.mxu0
    %977 = vrot.lane.b32.xlu0 %v920, 112
    %v978 = vpop.permute.xlu0 %977
    %979 = vrot.lane.b32.xlu0 %v921, 112
    %v980 = vpop.permute.xlu0 %979
    %981 = vrot.lane.b32.xlu0 %v922, 112
    %v982 = vpop.permute.xlu0 %981
    %v985 = vunpack.c.l.b16 %v84
    %v986 = vunpack.c.l.b16 %v85
    %v987 = vpack.c.b16 %v986, %v985
    %v990 = vsel %vm195, %v978, 0
    %v993 = vsel %vm195, %v980, 0
    %v996 = vsel %vm195, %v982, 0
    %998 = vmatpush.bf16.msra.mxu0 0
    %999 = vmatpush.bf16.msra.mxu0 0
    %1000 = vmatpush.bf16.msra.mxu0 0
    %1001 = vmatpush.bf16.msra.mxu0 0
    %1002 = vmatpush.bf16.msra.mxu0 0
    %1003 = vmatpush.bf16.msra.mxu0 0
    %1004 = vmatpush.bf16.msra.mxu0 0
    %1005 = vmatpush.bf16.msra.mxu0 %v987
    %1006 = vmatmul.bf16.gmra.mxu0 %v990
    %v1007 = vpop.f32.mrf.mxu0
    %v1008 = vadd.f32 %v960, %v1007
    %v1009 = vpop.f32.mrf.mxu0
    %v1010 = vadd.f32 %v962, %v1009
    %1011 = vmatmul.bf16.gmra.mxu0 %v993
    %v1012 = vpop.f32.mrf.mxu0
    %v1013 = vadd.f32 %v965, %v1012
    %v1014 = vpop.f32.mrf.mxu0
    %v1015 = vadd.f32 %v967, %v1014
    %1016 = vmatmul.bf16.gmra.mxu0 %v996
    %v1017 = vpop.f32.mrf.mxu0
    %v1018 = vadd.f32 %v970, %v1017
    %v1019 = vpop.f32.mrf.mxu0
    %v1020 = vadd.f32 %v972, %v1019
    %1021 = vdwg.mxu0
    %v1023 = vperm.slane %v88, 0
    %v1025 = vadd.f32 %v1008, %v1023
    %v1026 = vadd.f32 %v1010, %v1023
    %v1027 = vadd.f32 %v1013, %v1023
    %v1028 = vadd.f32 %v1015, %v1023
    %v1029 = vadd.f32 %v1018, %v1023
    %v1030 = vadd.f32 %v1020, %v1023
    %v1031 = vtanh.pop %v1025
    %v1032 = vtanh.pop %v1026
    %v1033 = vtanh.pop %v1027
    %v1034 = vtanh.pop %v1028
    %v1035 = vtanh.pop %v1029
    %v1036 = vtanh.pop %v1030
    %v1038 = vperm.slane %v89, 0
    %v1040 = vmul.f32 %v1031, %v1038
    %v1041 = vmul.f32 %v1032, %v1038
    %v1042 = vmul.f32 %v1033, %v1038
    %v1043 = vmul.f32 %v1034, %v1038
    %v1044 = vmul.f32 %v1035, %v1038
    %v1045 = vmul.f32 %v1036, %v1038
    %v1046 = vsel %vm152, %v1040, 0.0
    %1047 = vadd.xlane.f32.xlu0 %v1046
    %v1048 = vpop.xlane.xlu0 %1047
    %v1049 = vsel %vm152, %v1041, 0.0
    %1050 = vadd.xlane.f32.xlu0 %v1049
    %v1051 = vpop.xlane.xlu0 %1050
    %v1052 = vsel %vm152, %v1042, 0.0
    %1053 = vadd.xlane.f32.xlu0 %v1052
    %v1054 = vpop.xlane.xlu0 %1053
    %v1055 = vsel %vm152, %v1043, 0.0
    %1056 = vadd.xlane.f32.xlu0 %v1055
    %v1057 = vpop.xlane.xlu0 %1056
    %v1058 = vsel %vm152, %v1044, 0.0
    %1059 = vadd.xlane.f32.xlu0 %v1058
    %v1060 = vpop.xlane.xlu0 %1059
    %v1061 = vsel %vm152, %v1045, 0.0
    %1062 = vadd.xlane.f32.xlu0 %v1061
    %v1063 = vpop.xlane.xlu0 %1062
    %v1064 = vtanh.pop %v1048
    %v1065 = vtanh.pop %v1051
    %v1066 = vtanh.pop %v1054
    %v1067 = vtanh.pop %v1057
    %v1068 = vtanh.pop %v1060
    %v1069 = vtanh.pop %v1063
    %v1070 = vmul.f32 %v1064, 1.442695
    %v1071 = vpow.pop %v1070
    %v1072 = vmul.f32 %v1065, 1.442695
    %v1073 = vpow.pop %v1072
    %v1074 = vmul.f32 %v1066, 1.442695
    %v1075 = vpow.pop %v1074
    %v1076 = vmul.f32 %v1067, 1.442695
    %v1077 = vpow.pop %v1076
    %v1078 = vmul.f32 %v1068, 1.442695
    %v1079 = vpow.pop %v1078
    %v1080 = vmul.f32 %v1069, 1.442695
    %v1081 = vpow.pop %v1080
    %v1082 = vadd.f32 %v1071, %v1073
    %v1083 = vadd.f32 %v1082, %v1075
    %v1084 = vadd.f32 %v1083, %v1077
    %v1085 = vadd.f32 %v1084, %v1079
    %v1086 = vadd.f32 %v1085, %v1081
    %v1087 = vmul.f32 %v1071, %v250
    %v1088 = vmul.f32 %v1073, %v373
    %v1089 = vmul.f32 %v1075, %v494
    %v1090 = vmul.f32 %v1077, %v615
    %v1091 = vmul.f32 %v1079, %v736
    %v1092 = vmul.f32 %v1081, %v857
    %vm1093 = vcmask 261248
    %v1094 = vsel %vm1093, %v1087, 0.0
    %v1095 = vsel %vm1093, %v1088, 0.0
    %v1096 = vadd.f32 %v1094, %v1095
    %v1097 = vsel %vm1093, %v1089, 0.0
    %v1098 = vadd.f32 %v1096, %v1097
    %v1099 = vsel %vm1093, %v1090, 0.0
    %v1100 = vadd.f32 %v1098, %v1099
    %v1101 = vsel %vm1093, %v1091, 0.0
    %v1102 = vadd.f32 %v1100, %v1101
    %v1103 = vsel %vm1093, %v1092, 0.0
    %v1104 = vadd.f32 %v1102, %v1103
    %v1105 = vmul.f32 %v1071, %v919
    %v1106 = vmul.f32 %v1073, %v798
    %v1107 = vmul.f32 %v1075, %v677
    %v1108 = vmul.f32 %v1077, %v556
    %v1109 = vmul.f32 %v1079, %v435
    %v1110 = vmul.f32 %v1081, %v314
    %vm1111 = vcmask 654848
    %v1112 = vsel %vm1111, %v1105, 0.0
    %v1113 = vsel %vm1111, %v1106, 0.0
    %v1114 = vadd.f32 %v1112, %v1113
    %v1115 = vsel %vm1111, %v1107, 0.0
    %v1116 = vadd.f32 %v1114, %v1115
    %v1117 = vsel %vm1111, %v1108, 0.0
    %v1118 = vadd.f32 %v1116, %v1117
    %v1119 = vsel %vm1111, %v1109, 0.0
    %v1120 = vadd.f32 %v1118, %v1119
    %v1121 = vsel %vm1111, %v1110, 0.0
    %v1122 = vadd.f32 %v1120, %v1121
    %v1123 = vrcp.pop %v1086
    %v1124 = vmul.f32 %v1104, %v1123
    %v1125 = vmul.f32 %v1122, %v1123
    %v1126 = vpack.c.bf16 %v1124, %v1124
    %v1127 = vpack.c.bf16 %v1125, %v1125
    %1129 = vrot.lane.b32.xlu0 %v1127, 64
    %v1130 = vpop.permute.xlu0 %1129
    %v1133 = vunpack.c.l.b16 %v92
    %v1134 = vunpack.c.l.b16 %v93
    %v1135 = vpack.c.b16 %v1134, %v1133
    %v1138 = vsel %vm195, %v1130, 0
    %1140 = vmatpush.bf16.msra.mxu0 0
    %1141 = vmatpush.bf16.msra.mxu0 0
    %1142 = vmatpush.bf16.msra.mxu0 0
    %1143 = vmatpush.bf16.msra.mxu0 0
    %1144 = vmatpush.bf16.msra.mxu0 0
    %1145 = vmatpush.bf16.msra.mxu0 0
    %1146 = vmatpush.bf16.msra.mxu0 0
    %1147 = vmatpush.bf16.msra.mxu0 %v1135
    %1148 = vmatmul.bf16.gmra.mxu0 %v1138
    %v1149 = vpop.f32.mrf.mxu0
    %v1150 = vadd.f32 0.0, %v1149
    %v1151 = vpop.f32.mrf.mxu0
    %1152 = vdwg.mxu0
    %1154 = vrot.lane.b32.xlu0 %v1126, 112
    %v1155 = vpop.permute.xlu0 %1154
    %v1158 = vunpack.c.l.b16 %v90
    %v1159 = vunpack.c.l.b16 %v91
    %v1160 = vpack.c.b16 %v1159, %v1158
    %v1163 = vsel %vm195, %v1155, 0
    %1165 = vmatpush.bf16.msra.mxu0 0
    %1166 = vmatpush.bf16.msra.mxu0 0
    %1167 = vmatpush.bf16.msra.mxu0 0
    %1168 = vmatpush.bf16.msra.mxu0 0
    %1169 = vmatpush.bf16.msra.mxu0 0
    %1170 = vmatpush.bf16.msra.mxu0 0
    %1171 = vmatpush.bf16.msra.mxu0 0
    %1172 = vmatpush.bf16.msra.mxu0 %v1160
    %1173 = vmatmul.bf16.gmra.mxu0 %v1163
    %v1174 = vpop.f32.mrf.mxu0
    %v1175 = vadd.f32 %v1150, %v1174
    %v1176 = vpop.f32.mrf.mxu0
    %1177 = vdwg.mxu0
    %v1179 = vperm.slane %v94, 0
    %v1181 = vadd.f32 %v1175, %v1179
    %v1183 = vperm.slane %v97, 0
    %v1187 = vunpack.c.l.b16 %v95
    %v1188 = vunpack.c.l.b16 %v96
    %v1189 = vpack.c.b16 %v1188, %v1187
    %1191 = vmatpush.bf16.msra.mxu0 0
    %1192 = vmatpush.bf16.msra.mxu0 0
    %1193 = vmatpush.bf16.msra.mxu0 0
    %1194 = vmatpush.bf16.msra.mxu0 0
    %1195 = vmatpush.bf16.msra.mxu0 0
    %1196 = vmatpush.bf16.msra.mxu0 0
    %1197 = vmatpush.bf16.msra.mxu0 0
    %1198 = vmatpush.bf16.msra.mxu0 %v1189
    %1199 = vmatmul.bf16.gmra.mxu0 %v197
    %v1200 = vpop.f32.mrf.mxu0
    %v1201 = vadd.f32 %v1183, %v1200
    %v1202 = vpop.f32.mrf.mxu0
    %1203 = vdwg.mxu0
    %v1204 = vadd.f32 %v1181, %v1201
    %v1205 = vxor.u32 %v1204, 2147483648
    %v1206 = vmul.f32 %v1205, 1.442695
    %v1207 = vpow.pop %v1206
    %v1208 = vadd.f32 %v1207, 1.0
    %v1209 = vrcp.pop %v1208
    %v1210 = vmul.f32 %v1208, %v1209
    %v1211 = vsub.f32 1.0, %v1210
    %v1212 = vmul.f32 %v1209, %v1211
    %v1213 = vadd.f32 %v1209, %v1212
    %vm1214 = vweird.f32 %v1208
    %vm1215 = vweird.f32 %v1209
    %vm1216 = vmor %vm1214, %vm1215
    %v1217 = vsel %vm1216, %v1209, %v1213
    %v1218 = vand.u32 2147483647, %v1208
    %vm1219 = vcmp.eq.f32.partialorder %v1218, 8.507059e+37
    %v1220 = vand.u32 %v1208, 2147483648
    %v1221 = vor.u32 1.1754944e-38, %v1220
    %v1222 = vsel %vm1219, %v1221, %v1217
    %v1223 = vmul.f32 1.0, %v1222
    %1225 = vrot.lane.b32.xlu0 %v1201, 96
    %v1226 = vpop.permute.xlu0 %1225
    %v1228 = vmul.f32 %v1223, %v1226
    %1230 = vrot.lane.b32.xlu0 %v1228, 32
    %v1231 = vpop.permute.xlu0 %1230
    %v1233 = vadd.f32 %v1181, %v1231
    %v1234 = vtanh.pop %v1233
    %v1235 = vsub.f32 1.0, %v1223
    %1237 = vrot.lane.b32.xlu0 %v1234, 112
    %v1238 = vpop.permute.xlu0 %1237
    %v1240 = vmul.f32 %v1235, %v1238
    %v1241 = vmul.f32 %v1223, 0.0
    %v1242 = vadd.f32 %v1240, %v1241
    %v1243 = vld [vmem:[%s0 + $0x18] sm:$0xf]
    %v1244 = vld [vmem:[%s0 + $0x1c] sm:$0xf]
    %v1245 = vld [vmem:[%s0 + $0x20] sm:$0xf]
    %v1246 = vld [vmem:[%s0 + $0x24] sm:$0xf]
    %v1247 = vld [vmem:[%s0 + $0x28] sm:$0xf]
    %v1248 = vld [vmem:[%s0 + $0x2c] sm:$0xf]
    %v1255 = vunpack.c.l.b16 %v1243
    %v1256 = vunpack.c.l.b16 %v1244
    %v1257 = vunpack.c.l.b16 %v1245
    %v1258 = vunpack.c.l.b16 %v1246
    %v1259 = vunpack.c.l.b16 %v1247
    %v1260 = vunpack.c.l.b16 %v1248
    %v1261 = vpack.c.b16 %v1256, %v1255
    %v1262 = vpack.c.b16 %v1258, %v1257
    %v1263 = vpack.c.b16 %v1260, %v1259
    %v1265 = vsel %vm152, %v1261, 0
    %v1268 = vsel %vm152, %v1262, 0
    %v1271 = vsel %vm152, %v1263, 0
    %1273 = vmatpush.bf16.msra.mxu0 0
    %1274 = vmatpush.bf16.msra.mxu0 0
    %1275 = vmatpush.bf16.msra.mxu0 0
    %1276 = vmatpush.bf16.msra.mxu0 0
    %1277 = vmatpush.bf16.msra.mxu0 0
    %1278 = vmatpush.bf16.msra.mxu0 0
    %1279 = vmatpush.bf16.msra.mxu0 %v149
    %1280 = vmatpush.bf16.msra.mxu0 %v148
    %1281 = vmatmul.bf16.gmra.mxu0 %v1265
    %v1282 = vpop.f32.mrf.mxu0
    %v1283 = vadd.f32 %v123, %v1282
    %v1284 = vpop.f32.mrf.mxu0
    %v1285 = vadd.f32 %v123, %v1284
    %1286 = vmatmul.bf16.gmra.mxu0 %v1268
    %v1287 = vpop.f32.mrf.mxu0
    %v1288 = vadd.f32 %v123, %v1287
    %v1289 = vpop.f32.mrf.mxu0
    %v1290 = vadd.f32 %v123, %v1289
    %1291 = vmatmul.bf16.gmra.mxu0 %v1271
    %v1292 = vpop.f32.mrf.mxu0
    %v1293 = vadd.f32 %v123, %v1292
    %v1294 = vpop.f32.mrf.mxu0
    %v1295 = vadd.f32 %v123, %v1294
    %1296 = vdwg.mxu0
    %v1297 = vpack.c.bf16 %v857, %v857
    %1299 = vrot.lane.b32.xlu0 %v1297, 112
    %v1300 = vpop.permute.xlu0 %1299
    %v1302 = vsel %vm195, %v1300, 0
    %1304 = vmatpush.bf16.msra.mxu0 0
    %1305 = vmatpush.bf16.msra.mxu0 0
    %1306 = vmatpush.bf16.msra.mxu0 0
    %1307 = vmatpush.bf16.msra.mxu0 0
    %1308 = vmatpush.bf16.msra.mxu0 0
    %1309 = vmatpush.bf16.msra.mxu0 0
    %1310 = vmatpush.bf16.msra.mxu0 0
    %1311 = vmatpush.bf16.msra.mxu0 %v193
    %1312 = vmatmul.bf16.gmra.mxu0 %v1302
    %v1313 = vpop.f32.mrf.mxu0
    %v1314 = vadd.f32 %v187, %v1313
    %v1315 = vpop.f32.mrf.mxu0
    %1316 = vdwg.mxu0
    %v1317 = vadd.f32 %v1283, %v1314
    %v1318 = vxor.u32 %v1317, 2147483648
    %v1319 = vmul.f32 %v1318, 1.442695
    %v1320 = vpow.pop %v1319
    %v1321 = vadd.f32 %v1320, 1.0
    %v1322 = vrcp.pop %v1321
    %v1323 = vmul.f32 %v1321, %v1322
    %v1324 = vsub.f32 1.0, %v1323
    %v1325 = vmul.f32 %v1322, %v1324
    %v1326 = vadd.f32 %v1322, %v1325
    %vm1327 = vweird.f32 %v1321
    %vm1328 = vweird.f32 %v1322
    %vm1329 = vmor %vm1327, %vm1328
    %v1330 = vsel %vm1329, %v1322, %v1326
    %v1331 = vand.u32 2147483647, %v1321
    %vm1332 = vcmp.eq.f32.partialorder %v1331, 8.507059e+37
    %v1333 = vand.u32 %v1321, 2147483648
    %v1334 = vor.u32 1.1754944e-38, %v1333
    %v1335 = vsel %vm1332, %v1334, %v1330
    %v1336 = vmul.f32 1.0, %v1335
    %1338 = vrot.lane.b32.xlu0 %v1314, 96
    %v1339 = vpop.permute.xlu0 %1338
    %v1341 = vmul.f32 %v1336, %v1339
    %1343 = vrot.lane.b32.xlu0 %v1341, 32
    %v1344 = vpop.permute.xlu0 %1343
    %v1346 = vadd.f32 %v1283, %v1344
    %v1347 = vtanh.pop %v1346
    %v1348 = vsub.f32 1.0, %v1336
    %1350 = vrot.lane.b32.xlu0 %v1347, 112
    %v1351 = vpop.permute.xlu0 %1350
    %v1353 = vmul.f32 %v1348, %v1351
    %v1354 = vmul.f32 %v1336, %v857
    %v1355 = vadd.f32 %v1353, %v1354
    %v1356 = vpack.c.bf16 %v919, %v919
    %1358 = vrot.lane.b32.xlu0 %v1356, 64
    %v1359 = vpop.permute.xlu0 %1358
    %v1361 = vsel %vm195, %v1359, 0
    %1363 = vmatpush.bf16.msra.mxu0 0
    %1364 = vmatpush.bf16.msra.mxu0 0
    %1365 = vmatpush.bf16.msra.mxu0 0
    %1366 = vmatpush.bf16.msra.mxu0 0
    %1367 = vmatpush.bf16.msra.mxu0 0
    %1368 = vmatpush.bf16.msra.mxu0 0
    %1369 = vmatpush.bf16.msra.mxu0 0
    %1370 = vmatpush.bf16.msra.mxu0 %v258
    %1371 = vmatmul.bf16.gmra.mxu0 %v1361
    %v1372 = vpop.f32.mrf.mxu0
    %v1373 = vadd.f32 %v252, %v1372
    %v1374 = vpop.f32.mrf.mxu0
    %1375 = vdwg.mxu0
    %1377 = vrot.lane.b32.xlu0 %v1373, 48
    %v1378 = vpop.permute.xlu0 %1377
    %v1380 = vadd.f32 %v1295, %v1378
    %v1381 = vxor.u32 %v1380, 2147483648
    %v1382 = vmul.f32 %v1381, 1.442695
    %v1383 = vpow.pop %v1382
    %v1384 = vadd.f32 %v1383, 1.0
    %v1385 = vrcp.pop %v1384
    %v1386 = vmul.f32 %v1384, %v1385
    %v1387 = vsub.f32 1.0, %v1386
    %v1388 = vmul.f32 %v1385, %v1387
    %v1389 = vadd.f32 %v1385, %v1388
    %vm1390 = vweird.f32 %v1384
    %vm1391 = vweird.f32 %v1385
    %vm1392 = vmor %vm1390, %vm1391
    %v1393 = vsel %vm1392, %v1385, %v1389
    %v1394 = vand.u32 2147483647, %v1384
    %vm1395 = vcmp.eq.f32.partialorder %v1394, 8.507059e+37
    %v1396 = vand.u32 %v1384, 2147483648
    %v1397 = vor.u32 1.1754944e-38, %v1396
    %v1398 = vsel %vm1395, %v1397, %v1393
    %v1399 = vmul.f32 1.0, %v1398
    %1400 = vrot.lane.b32.xlu0 %v1373, 16
    %v1401 = vpop.permute.xlu0 %1400
    %v1403 = vmul.f32 %v1399, %v1401
    %1405 = vrot.lane.b32.xlu0 %v1403, 32
    %v1406 = vpop.permute.xlu0 %1405
    %v1408 = vadd.f32 %v1295, %v1406
    %v1409 = vtanh.pop %v1408
    %v1410 = vsub.f32 1.0, %v1399
    %1412 = vrot.lane.b32.xlu0 %v1409, 112
    %v1413 = vpop.permute.xlu0 %1412
    %v1415 = vmul.f32 %v1410, %v1413
    %v1416 = vmul.f32 %v1399, %v919
    %v1417 = vadd.f32 %v1415, %v1416
    %v1418 = vpack.c.bf16 %v1355, %v1355
    %1420 = vrot.lane.b32.xlu0 %v1418, 112
    %v1421 = vpop.permute.xlu0 %1420
    %v1423 = vsel %vm195, %v1421, 0
    %1425 = vmatpush.bf16.msra.mxu0 0
    %1426 = vmatpush.bf16.msra.mxu0 0
    %1427 = vmatpush.bf16.msra.mxu0 0
    %1428 = vmatpush.bf16.msra.mxu0 0
    %1429 = vmatpush.bf16.msra.mxu0 0
    %1430 = vmatpush.bf16.msra.mxu0 0
    %1431 = vmatpush.bf16.msra.mxu0 0
    %1432 = vmatpush.bf16.msra.mxu0 %v193
    %1433 = vmatmul.bf16.gmra.mxu0 %v1423
    %v1434 = vpop.f32.mrf.mxu0
    %v1435 = vadd.f32 %v187, %v1434
    %v1436 = vpop.f32.mrf.mxu0
    %1437 = vdwg.mxu0
    %v1438 = vadd.f32 %v1285, %v1435
    %v1439 = vxor.u32 %v1438, 2147483648
    %v1440 = vmul.f32 %v1439, 1.442695
    %v1441 = vpow.pop %v1440
    %v1442 = vadd.f32 %v1441, 1.0
    %v1443 = vrcp.pop %v1442
    %v1444 = vmul.f32 %v1442, %v1443
    %v1445 = vsub.f32 1.0, %v1444
    %v1446 = vmul.f32 %v1443, %v1445
    %v1447 = vadd.f32 %v1443, %v1446
    %vm1448 = vweird.f32 %v1442
    %vm1449 = vweird.f32 %v1443
    %vm1450 = vmor %vm1448, %vm1449
    %v1451 = vsel %vm1450, %v1443, %v1447
    %v1452 = vand.u32 2147483647, %v1442
    %vm1453 = vcmp.eq.f32.partialorder %v1452, 8.507059e+37
    %v1454 = vand.u32 %v1442, 2147483648
    %v1455 = vor.u32 1.1754944e-38, %v1454
    %v1456 = vsel %vm1453, %v1455, %v1451
    %v1457 = vmul.f32 1.0, %v1456
    %1459 = vrot.lane.b32.xlu0 %v1435, 96
    %v1460 = vpop.permute.xlu0 %1459
    %v1462 = vmul.f32 %v1457, %v1460
    %1464 = vrot.lane.b32.xlu0 %v1462, 32
    %v1465 = vpop.permute.xlu0 %1464
    %v1467 = vadd.f32 %v1285, %v1465
    %v1468 = vtanh.pop %v1467
    %v1469 = vsub.f32 1.0, %v1457
    %1471 = vrot.lane.b32.xlu0 %v1468, 112
    %v1472 = vpop.permute.xlu0 %1471
    %v1474 = vmul.f32 %v1469, %v1472
    %v1475 = vmul.f32 %v1457, %v1355
    %v1476 = vadd.f32 %v1474, %v1475
    %v1477 = vpack.c.bf16 %v1417, %v1417
    %1479 = vrot.lane.b32.xlu0 %v1477, 64
    %v1480 = vpop.permute.xlu0 %1479
    %v1482 = vsel %vm195, %v1480, 0
    %1484 = vmatpush.bf16.msra.mxu0 0
    %1485 = vmatpush.bf16.msra.mxu0 0
    %1486 = vmatpush.bf16.msra.mxu0 0
    %1487 = vmatpush.bf16.msra.mxu0 0
    %1488 = vmatpush.bf16.msra.mxu0 0
    %1489 = vmatpush.bf16.msra.mxu0 0
    %1490 = vmatpush.bf16.msra.mxu0 0
    %1491 = vmatpush.bf16.msra.mxu0 %v258
    %1492 = vmatmul.bf16.gmra.mxu0 %v1482
    %v1493 = vpop.f32.mrf.mxu0
    %v1494 = vadd.f32 %v252, %v1493
    %v1495 = vpop.f32.mrf.mxu0
    %1496 = vdwg.mxu0
    %1498 = vrot.lane.b32.xlu0 %v1494, 48
    %v1499 = vpop.permute.xlu0 %1498
    %v1501 = vadd.f32 %v1293, %v1499
    %v1502 = vxor.u32 %v1501, 2147483648
    %v1503 = vmul.f32 %v1502, 1.442695
    %v1504 = vpow.pop %v1503
    %v1505 = vadd.f32 %v1504, 1.0
    %v1506 = vrcp.pop %v1505
    %v1507 = vmul.f32 %v1505, %v1506
    %v1508 = vsub.f32 1.0, %v1507
    %v1509 = vmul.f32 %v1506, %v1508
    %v1510 = vadd.f32 %v1506, %v1509
    %vm1511 = vweird.f32 %v1505
    %vm1512 = vweird.f32 %v1506
    %vm1513 = vmor %vm1511, %vm1512
    %v1514 = vsel %vm1513, %v1506, %v1510
    %v1515 = vand.u32 2147483647, %v1505
    %vm1516 = vcmp.eq.f32.partialorder %v1515, 8.507059e+37
    %v1517 = vand.u32 %v1505, 2147483648
    %v1518 = vor.u32 1.1754944e-38, %v1517
    %v1519 = vsel %vm1516, %v1518, %v1514
    %v1520 = vmul.f32 1.0, %v1519
    %1521 = vrot.lane.b32.xlu0 %v1494, 16
    %v1522 = vpop.permute.xlu0 %1521
    %v1524 = vmul.f32 %v1520, %v1522
    %1526 = vrot.lane.b32.xlu0 %v1524, 32
    %v1527 = vpop.permute.xlu0 %1526
    %v1529 = vadd.f32 %v1293, %v1527
    %v1530 = vtanh.pop %v1529
    %v1531 = vsub.f32 1.0, %v1520
    %1533 = vrot.lane.b32.xlu0 %v1530, 112
    %v1534 = vpop.permute.xlu0 %1533
    %v1536 = vmul.f32 %v1531, %v1534
    %v1537 = vmul.f32 %v1520, %v1417
    %v1538 = vadd.f32 %v1536, %v1537
    %v1539 = vpack.c.bf16 %v1476, %v1476
    %1541 = vrot.lane.b32.xlu0 %v1539, 112
    %v1542 = vpop.permute.xlu0 %1541
    %v1544 = vsel %vm195, %v1542, 0
    %1546 = vmatpush.bf16.msra.mxu0 0
    %1547 = vmatpush.bf16.msra.mxu0 0
    %1548 = vmatpush.bf16.msra.mxu0 0
    %1549 = vmatpush.bf16.msra.mxu0 0
    %1550 = vmatpush.bf16.msra.mxu0 0
    %1551 = vmatpush.bf16.msra.mxu0 0
    %1552 = vmatpush.bf16.msra.mxu0 0
    %1553 = vmatpush.bf16.msra.mxu0 %v193
    %1554 = vmatmul.bf16.gmra.mxu0 %v1544
    %v1555 = vpop.f32.mrf.mxu0
    %v1556 = vadd.f32 %v187, %v1555
    %v1557 = vpop.f32.mrf.mxu0
    %1558 = vdwg.mxu0
    %v1559 = vadd.f32 %v1288, %v1556
    %v1560 = vxor.u32 %v1559, 2147483648
    %v1561 = vmul.f32 %v1560, 1.442695
    %v1562 = vpow.pop %v1561
    %v1563 = vadd.f32 %v1562, 1.0
    %v1564 = vrcp.pop %v1563
    %v1565 = vmul.f32 %v1563, %v1564
    %v1566 = vsub.f32 1.0, %v1565
    %v1567 = vmul.f32 %v1564, %v1566
    %v1568 = vadd.f32 %v1564, %v1567
    %vm1569 = vweird.f32 %v1563
    %vm1570 = vweird.f32 %v1564
    %vm1571 = vmor %vm1569, %vm1570
    %v1572 = vsel %vm1571, %v1564, %v1568
    %v1573 = vand.u32 2147483647, %v1563
    %vm1574 = vcmp.eq.f32.partialorder %v1573, 8.507059e+37
    %v1575 = vand.u32 %v1563, 2147483648
    %v1576 = vor.u32 1.1754944e-38, %v1575
    %v1577 = vsel %vm1574, %v1576, %v1572
    %v1578 = vmul.f32 1.0, %v1577
    %1580 = vrot.lane.b32.xlu0 %v1556, 96
    %v1581 = vpop.permute.xlu0 %1580
    %v1583 = vmul.f32 %v1578, %v1581
    %1585 = vrot.lane.b32.xlu0 %v1583, 32
    %v1586 = vpop.permute.xlu0 %1585
    %v1588 = vadd.f32 %v1288, %v1586
    %v1589 = vtanh.pop %v1588
    %v1590 = vsub.f32 1.0, %v1578
    %1592 = vrot.lane.b32.xlu0 %v1589, 112
    %v1593 = vpop.permute.xlu0 %1592
    %v1595 = vmul.f32 %v1590, %v1593
    %v1596 = vmul.f32 %v1578, %v1476
    %v1597 = vadd.f32 %v1595, %v1596
    %v1598 = vpack.c.bf16 %v1538, %v1538
    %1600 = vrot.lane.b32.xlu0 %v1598, 64
    %v1601 = vpop.permute.xlu0 %1600
    %v1603 = vsel %vm195, %v1601, 0
    %1605 = vmatpush.bf16.msra.mxu0 0
    %1606 = vmatpush.bf16.msra.mxu0 0
    %1607 = vmatpush.bf16.msra.mxu0 0
    %1608 = vmatpush.bf16.msra.mxu0 0
    %1609 = vmatpush.bf16.msra.mxu0 0
    %1610 = vmatpush.bf16.msra.mxu0 0
    %1611 = vmatpush.bf16.msra.mxu0 0
    %1612 = vmatpush.bf16.msra.mxu0 %v258
    %1613 = vmatmul.bf16.gmra.mxu0 %v1603
    %v1614 = vpop.f32.mrf.mxu0
    %v1615 = vadd.f32 %v252, %v1614
    %v1616 = vpop.f32.mrf.mxu0
    %1617 = vdwg.mxu0
    %1619 = vrot.lane.b32.xlu0 %v1615, 48
    %v1620 = vpop.permute.xlu0 %1619
    %v1622 = vadd.f32 %v1290, %v1620
    %v1623 = vxor.u32 %v1622, 2147483648
    %v1624 = vmul.f32 %v1623, 1.442695
    %v1625 = vpow.pop %v1624
    %v1626 = vadd.f32 %v1625, 1.0
    %v1627 = vrcp.pop %v1626
    %v1628 = vmul.f32 %v1626, %v1627
    %v1629 = vsub.f32 1.0, %v1628
    %v1630 = vmul.f32 %v1627, %v1629
    %v1631 = vadd.f32 %v1627, %v1630
    %vm1632 = vweird.f32 %v1626
    %vm1633 = vweird.f32 %v1627
    %vm1634 = vmor %vm1632, %vm1633
    %v1635 = vsel %vm1634, %v1627, %v1631
    %v1636 = vand.u32 2147483647, %v1626
    %vm1637 = vcmp.eq.f32.partialorder %v1636, 8.507059e+37
    %v1638 = vand.u32 %v1626, 2147483648
    %v1639 = vor.u32 1.1754944e-38, %v1638
    %v1640 = vsel %vm1637, %v1639, %v1635
    %v1641 = vmul.f32 1.0, %v1640
    %1642 = vrot.lane.b32.xlu0 %v1615, 16
    %v1643 = vpop.permute.xlu0 %1642
    %v1645 = vmul.f32 %v1641, %v1643
    %1647 = vrot.lane.b32.xlu0 %v1645, 32
    %v1648 = vpop.permute.xlu0 %1647
    %v1650 = vadd.f32 %v1290, %v1648
    %v1651 = vtanh.pop %v1650
    %v1652 = vsub.f32 1.0, %v1641
    %1654 = vrot.lane.b32.xlu0 %v1651, 112
    %v1655 = vpop.permute.xlu0 %1654
    %v1657 = vmul.f32 %v1652, %v1655
    %v1658 = vmul.f32 %v1641, %v1538
    %v1659 = vadd.f32 %v1657, %v1658
    %v1660 = vpack.c.bf16 %v1597, %v1597
    %1662 = vrot.lane.b32.xlu0 %v1660, 112
    %v1663 = vpop.permute.xlu0 %1662
    %v1665 = vsel %vm195, %v1663, 0
    %1667 = vmatpush.bf16.msra.mxu0 0
    %1668 = vmatpush.bf16.msra.mxu0 0
    %1669 = vmatpush.bf16.msra.mxu0 0
    %1670 = vmatpush.bf16.msra.mxu0 0
    %1671 = vmatpush.bf16.msra.mxu0 0
    %1672 = vmatpush.bf16.msra.mxu0 0
    %1673 = vmatpush.bf16.msra.mxu0 0
    %1674 = vmatpush.bf16.msra.mxu0 %v193
    %1675 = vmatmul.bf16.gmra.mxu0 %v1665
    %v1676 = vpop.f32.mrf.mxu0
    %v1677 = vadd.f32 %v187, %v1676
    %v1678 = vpop.f32.mrf.mxu0
    %1679 = vdwg.mxu0
    %v1680 = vadd.f32 %v1290, %v1677
    %v1681 = vxor.u32 %v1680, 2147483648
    %v1682 = vmul.f32 %v1681, 1.442695
    %v1683 = vpow.pop %v1682
    %v1684 = vadd.f32 %v1683, 1.0
    %v1685 = vrcp.pop %v1684
    %v1686 = vmul.f32 %v1684, %v1685
    %v1687 = vsub.f32 1.0, %v1686
    %v1688 = vmul.f32 %v1685, %v1687
    %v1689 = vadd.f32 %v1685, %v1688
    %vm1690 = vweird.f32 %v1684
    %vm1691 = vweird.f32 %v1685
    %vm1692 = vmor %vm1690, %vm1691
    %v1693 = vsel %vm1692, %v1685, %v1689
    %v1694 = vand.u32 2147483647, %v1684
    %vm1695 = vcmp.eq.f32.partialorder %v1694, 8.507059e+37
    %v1696 = vand.u32 %v1684, 2147483648
    %v1697 = vor.u32 1.1754944e-38, %v1696
    %v1698 = vsel %vm1695, %v1697, %v1693
    %v1699 = vmul.f32 1.0, %v1698
    %1701 = vrot.lane.b32.xlu0 %v1677, 96
    %v1702 = vpop.permute.xlu0 %1701
    %v1704 = vmul.f32 %v1699, %v1702
    %1706 = vrot.lane.b32.xlu0 %v1704, 32
    %v1707 = vpop.permute.xlu0 %1706
    %v1709 = vadd.f32 %v1290, %v1707
    %v1710 = vtanh.pop %v1709
    %v1711 = vsub.f32 1.0, %v1699
    %1713 = vrot.lane.b32.xlu0 %v1710, 112
    %v1714 = vpop.permute.xlu0 %1713
    %v1716 = vmul.f32 %v1711, %v1714
    %v1717 = vmul.f32 %v1699, %v1597
    %v1718 = vadd.f32 %v1716, %v1717
    %v1719 = vpack.c.bf16 %v1659, %v1659
    %1721 = vrot.lane.b32.xlu0 %v1719, 64
    %v1722 = vpop.permute.xlu0 %1721
    %v1724 = vsel %vm195, %v1722, 0
    %1726 = vmatpush.bf16.msra.mxu0 0
    %1727 = vmatpush.bf16.msra.mxu0 0
    %1728 = vmatpush.bf16.msra.mxu0 0
    %1729 = vmatpush.bf16.msra.mxu0 0
    %1730 = vmatpush.bf16.msra.mxu0 0
    %1731 = vmatpush.bf16.msra.mxu0 0
    %1732 = vmatpush.bf16.msra.mxu0 0
    %1733 = vmatpush.bf16.msra.mxu0 %v258
    %1734 = vmatmul.bf16.gmra.mxu0 %v1724
    %v1735 = vpop.f32.mrf.mxu0
    %v1736 = vadd.f32 %v252, %v1735
    %v1737 = vpop.f32.mrf.mxu0
    %1738 = vdwg.mxu0
    %1740 = vrot.lane.b32.xlu0 %v1736, 48
    %v1741 = vpop.permute.xlu0 %1740
    %v1743 = vadd.f32 %v1288, %v1741
    %v1744 = vxor.u32 %v1743, 2147483648
    %v1745 = vmul.f32 %v1744, 1.442695
    %v1746 = vpow.pop %v1745
    %v1747 = vadd.f32 %v1746, 1.0
    %v1748 = vrcp.pop %v1747
    %v1749 = vmul.f32 %v1747, %v1748
    %v1750 = vsub.f32 1.0, %v1749
    %v1751 = vmul.f32 %v1748, %v1750
    %v1752 = vadd.f32 %v1748, %v1751
    %vm1753 = vweird.f32 %v1747
    %vm1754 = vweird.f32 %v1748
    %vm1755 = vmor %vm1753, %vm1754
    %v1756 = vsel %vm1755, %v1748, %v1752
    %v1757 = vand.u32 2147483647, %v1747
    %vm1758 = vcmp.eq.f32.partialorder %v1757, 8.507059e+37
    %v1759 = vand.u32 %v1747, 2147483648
    %v1760 = vor.u32 1.1754944e-38, %v1759
    %v1761 = vsel %vm1758, %v1760, %v1756
    %v1762 = vmul.f32 1.0, %v1761
    %1763 = vrot.lane.b32.xlu0 %v1736, 16
    %v1764 = vpop.permute.xlu0 %1763
    %v1766 = vmul.f32 %v1762, %v1764
    %1768 = vrot.lane.b32.xlu0 %v1766, 32
    %v1769 = vpop.permute.xlu0 %1768
    %v1771 = vadd.f32 %v1288, %v1769
    %v1772 = vtanh.pop %v1771
    %v1773 = vsub.f32 1.0, %v1762
    %1775 = vrot.lane.b32.xlu0 %v1772, 112
    %v1776 = vpop.permute.xlu0 %1775
    %v1778 = vmul.f32 %v1773, %v1776
    %v1779 = vmul.f32 %v1762, %v1659
    %v1780 = vadd.f32 %v1778, %v1779
    %v1781 = vpack.c.bf16 %v1718, %v1718
    %1783 = vrot.lane.b32.xlu0 %v1781, 112
    %v1784 = vpop.permute.xlu0 %1783
    %v1786 = vsel %vm195, %v1784, 0
    %1788 = vmatpush.bf16.msra.mxu0 0
    %1789 = vmatpush.bf16.msra.mxu0 0
    %1790 = vmatpush.bf16.msra.mxu0 0
    %1791 = vmatpush.bf16.msra.mxu0 0
    %1792 = vmatpush.bf16.msra.mxu0 0
    %1793 = vmatpush.bf16.msra.mxu0 0
    %1794 = vmatpush.bf16.msra.mxu0 0
    %1795 = vmatpush.bf16.msra.mxu0 %v193
    %1796 = vmatmul.bf16.gmra.mxu0 %v1786
    %v1797 = vpop.f32.mrf.mxu0
    %v1798 = vadd.f32 %v187, %v1797
    %v1799 = vpop.f32.mrf.mxu0
    %1800 = vdwg.mxu0
    %v1801 = vadd.f32 %v1293, %v1798
    %v1802 = vxor.u32 %v1801, 2147483648
    %v1803 = vmul.f32 %v1802, 1.442695
    %v1804 = vpow.pop %v1803
    %v1805 = vadd.f32 %v1804, 1.0
    %v1806 = vrcp.pop %v1805
    %v1807 = vmul.f32 %v1805, %v1806
    %v1808 = vsub.f32 1.0, %v1807
    %v1809 = vmul.f32 %v1806, %v1808
    %v1810 = vadd.f32 %v1806, %v1809
    %vm1811 = vweird.f32 %v1805
    %vm1812 = vweird.f32 %v1806
    %vm1813 = vmor %vm1811, %vm1812
    %v1814 = vsel %vm1813, %v1806, %v1810
    %v1815 = vand.u32 2147483647, %v1805
    %vm1816 = vcmp.eq.f32.partialorder %v1815, 8.507059e+37
    %v1817 = vand.u32 %v1805, 2147483648
    %v1818 = vor.u32 1.1754944e-38, %v1817
    %v1819 = vsel %vm1816, %v1818, %v1814
    %v1820 = vmul.f32 1.0, %v1819
    %1822 = vrot.lane.b32.xlu0 %v1798, 96
    %v1823 = vpop.permute.xlu0 %1822
    %v1825 = vmul.f32 %v1820, %v1823
    %1827 = vrot.lane.b32.xlu0 %v1825, 32
    %v1828 = vpop.permute.xlu0 %1827
    %v1830 = vadd.f32 %v1293, %v1828
    %v1831 = vtanh.pop %v1830
    %v1832 = vsub.f32 1.0, %v1820
    %1834 = vrot.lane.b32.xlu0 %v1831, 112
    %v1835 = vpop.permute.xlu0 %1834
    %v1837 = vmul.f32 %v1832, %v1835
    %v1838 = vmul.f32 %v1820, %v1718
    %v1839 = vadd.f32 %v1837, %v1838
    %v1840 = vpack.c.bf16 %v1780, %v1780
    %1842 = vrot.lane.b32.xlu0 %v1840, 64
    %v1843 = vpop.permute.xlu0 %1842
    %v1845 = vsel %vm195, %v1843, 0
    %1847 = vmatpush.bf16.msra.mxu0 0
    %1848 = vmatpush.bf16.msra.mxu0 0
    %1849 = vmatpush.bf16.msra.mxu0 0
    %1850 = vmatpush.bf16.msra.mxu0 0
    %1851 = vmatpush.bf16.msra.mxu0 0
    %1852 = vmatpush.bf16.msra.mxu0 0
    %1853 = vmatpush.bf16.msra.mxu0 0
    %1854 = vmatpush.bf16.msra.mxu0 %v258
    %1855 = vmatmul.bf16.gmra.mxu0 %v1845
    %v1856 = vpop.f32.mrf.mxu0
    %v1857 = vadd.f32 %v252, %v1856
    %v1858 = vpop.f32.mrf.mxu0
    %1859 = vdwg.mxu0
    %1861 = vrot.lane.b32.xlu0 %v1857, 48
    %v1862 = vpop.permute.xlu0 %1861
    %v1864 = vadd.f32 %v1285, %v1862
    %v1865 = vxor.u32 %v1864, 2147483648
    %v1866 = vmul.f32 %v1865, 1.442695
    %v1867 = vpow.pop %v1866
    %v1868 = vadd.f32 %v1867, 1.0
    %v1869 = vrcp.pop %v1868
    %v1870 = vmul.f32 %v1868, %v1869
    %v1871 = vsub.f32 1.0, %v1870
    %v1872 = vmul.f32 %v1869, %v1871
    %v1873 = vadd.f32 %v1869, %v1872
    %vm1874 = vweird.f32 %v1868
    %vm1875 = vweird.f32 %v1869
    %vm1876 = vmor %vm1874, %vm1875
    %v1877 = vsel %vm1876, %v1869, %v1873
    %v1878 = vand.u32 2147483647, %v1868
    %vm1879 = vcmp.eq.f32.partialorder %v1878, 8.507059e+37
    %v1880 = vand.u32 %v1868, 2147483648
    %v1881 = vor.u32 1.1754944e-38, %v1880
    %v1882 = vsel %vm1879, %v1881, %v1877
    %v1883 = vmul.f32 1.0, %v1882
    %1884 = vrot.lane.b32.xlu0 %v1857, 16
    %v1885 = vpop.permute.xlu0 %1884
    %v1887 = vmul.f32 %v1883, %v1885
    %1889 = vrot.lane.b32.xlu0 %v1887, 32
    %v1890 = vpop.permute.xlu0 %1889
    %v1892 = vadd.f32 %v1285, %v1890
    %v1893 = vtanh.pop %v1892
    %v1894 = vsub.f32 1.0, %v1883
    %1896 = vrot.lane.b32.xlu0 %v1893, 112
    %v1897 = vpop.permute.xlu0 %1896
    %v1899 = vmul.f32 %v1894, %v1897
    %v1900 = vmul.f32 %v1883, %v1780
    %v1901 = vadd.f32 %v1899, %v1900
    %v1902 = vpack.c.bf16 %v1839, %v1839
    %1904 = vrot.lane.b32.xlu0 %v1902, 112
    %v1905 = vpop.permute.xlu0 %1904
    %v1907 = vsel %vm195, %v1905, 0
    %1909 = vmatpush.bf16.msra.mxu0 0
    %1910 = vmatpush.bf16.msra.mxu0 0
    %1911 = vmatpush.bf16.msra.mxu0 0
    %1912 = vmatpush.bf16.msra.mxu0 0
    %1913 = vmatpush.bf16.msra.mxu0 0
    %1914 = vmatpush.bf16.msra.mxu0 0
    %1915 = vmatpush.bf16.msra.mxu0 0
    %1916 = vmatpush.bf16.msra.mxu0 %v193
    %1917 = vmatmul.bf16.gmra.mxu0 %v1907
    %v1918 = vpop.f32.mrf.mxu0
    %v1919 = vadd.f32 %v187, %v1918
    %v1920 = vpop.f32.mrf.mxu0
    %1921 = vdwg.mxu0
    %v1922 = vadd.f32 %v1295, %v1919
    %v1923 = vxor.u32 %v1922, 2147483648
    %v1924 = vmul.f32 %v1923, 1.442695
    %v1925 = vpow.pop %v1924
    %v1926 = vadd.f32 %v1925, 1.0
    %v1927 = vrcp.pop %v1926
    %v1928 = vmul.f32 %v1926, %v1927
    %v1929 = vsub.f32 1.0, %v1928
    %v1930 = vmul.f32 %v1927, %v1929
    %v1931 = vadd.f32 %v1927, %v1930
    %vm1932 = vweird.f32 %v1926
    %vm1933 = vweird.f32 %v1927
    %vm1934 = vmor %vm1932, %vm1933
    %v1935 = vsel %vm1934, %v1927, %v1931
    %v1936 = vand.u32 2147483647, %v1926
    %vm1937 = vcmp.eq.f32.partialorder %v1936, 8.507059e+37
    %v1938 = vand.u32 %v1926, 2147483648
    %v1939 = vor.u32 1.1754944e-38, %v1938
    %v1940 = vsel %vm1937, %v1939, %v1935
    %v1941 = vmul.f32 1.0, %v1940
    %1943 = vrot.lane.b32.xlu0 %v1919, 96
    %v1944 = vpop.permute.xlu0 %1943
    %v1946 = vmul.f32 %v1941, %v1944
    %1948 = vrot.lane.b32.xlu0 %v1946, 32
    %v1949 = vpop.permute.xlu0 %1948
    %v1951 = vadd.f32 %v1295, %v1949
    %v1952 = vtanh.pop %v1951
    %v1953 = vsub.f32 1.0, %v1941
    %1955 = vrot.lane.b32.xlu0 %v1952, 112
    %v1956 = vpop.permute.xlu0 %1955
    %v1958 = vmul.f32 %v1953, %v1956
    %v1959 = vmul.f32 %v1941, %v1839
    %v1960 = vadd.f32 %v1958, %v1959
    %v1961 = vpack.c.bf16 %v1901, %v1901
    %1963 = vrot.lane.b32.xlu0 %v1961, 64
    %v1964 = vpop.permute.xlu0 %1963
    %v1966 = vsel %vm195, %v1964, 0
    %1968 = vmatpush.bf16.msra.mxu0 0
    %1969 = vmatpush.bf16.msra.mxu0 0
    %1970 = vmatpush.bf16.msra.mxu0 0
    %1971 = vmatpush.bf16.msra.mxu0 0
    %1972 = vmatpush.bf16.msra.mxu0 0
    %1973 = vmatpush.bf16.msra.mxu0 0
    %1974 = vmatpush.bf16.msra.mxu0 0
    %1975 = vmatpush.bf16.msra.mxu0 %v258
    %1976 = vmatmul.bf16.gmra.mxu0 %v1966
    %v1977 = vpop.f32.mrf.mxu0
    %v1978 = vadd.f32 %v252, %v1977
    %v1979 = vpop.f32.mrf.mxu0
    %1980 = vdwg.mxu0
    %1982 = vrot.lane.b32.xlu0 %v1978, 48
    %v1983 = vpop.permute.xlu0 %1982
    %v1985 = vadd.f32 %v1283, %v1983
    %v1986 = vxor.u32 %v1985, 2147483648
    %v1987 = vmul.f32 %v1986, 1.442695
    %v1988 = vpow.pop %v1987
    %v1989 = vadd.f32 %v1988, 1.0
    %v1990 = vrcp.pop %v1989
    %v1991 = vmul.f32 %v1989, %v1990
    %v1992 = vsub.f32 1.0, %v1991
    %v1993 = vmul.f32 %v1990, %v1992
    %v1994 = vadd.f32 %v1990, %v1993
    %vm1995 = vweird.f32 %v1989
    %vm1996 = vweird.f32 %v1990
    %vm1997 = vmor %vm1995, %vm1996
    %v1998 = vsel %vm1997, %v1990, %v1994
    %v1999 = vand.u32 2147483647, %v1989
    %vm2000 = vcmp.eq.f32.partialorder %v1999, 8.507059e+37
    %v2001 = vand.u32 %v1989, 2147483648
    %v2002 = vor.u32 1.1754944e-38, %v2001
    %v2003 = vsel %vm2000, %v2002, %v1998
    %v2004 = vmul.f32 1.0, %v2003
    %2005 = vrot.lane.b32.xlu0 %v1978, 16
    %v2006 = vpop.permute.xlu0 %2005
    %v2008 = vmul.f32 %v2004, %v2006
    %2010 = vrot.lane.b32.xlu0 %v2008, 32
    %v2011 = vpop.permute.xlu0 %2010
    %v2013 = vadd.f32 %v1283, %v2011
    %v2014 = vtanh.pop %v2013
    %v2015 = vsub.f32 1.0, %v2004
    %2017 = vrot.lane.b32.xlu0 %v2014, 112
    %v2018 = vpop.permute.xlu0 %2017
    %v2020 = vmul.f32 %v2015, %v2018
    %v2021 = vmul.f32 %v2004, %v1901
    %v2022 = vadd.f32 %v2020, %v2021
    %v2023 = vpack.c.bf16 %v1476, %v1355
    %v2024 = vpack.c.bf16 %v1718, %v1597
    %v2025 = vpack.c.bf16 %v1960, %v1839
    %v2026 = vpack.c.bf16 %v1901, %v2022
    %v2027 = vpack.c.bf16 %v1659, %v1780
    %v2028 = vpack.c.bf16 %v1417, %v1538
    %2032 = vrot.lane.b32.xlu0 %v2026, 64
    %v2033 = vpop.permute.xlu0 %2032
    %2034 = vrot.lane.b32.xlu0 %v2027, 64
    %v2035 = vpop.permute.xlu0 %2034
    %2036 = vrot.lane.b32.xlu0 %v2028, 64
    %v2037 = vpop.permute.xlu0 %2036
    %v2039 = vsel %vm195, %v2033, 0
    %v2042 = vsel %vm195, %v2035, 0
    %v2045 = vsel %vm195, %v2037, 0
    %2047 = vmatpush.bf16.msra.mxu0 0
    %2048 = vmatpush.bf16.msra.mxu0 0
    %2049 = vmatpush.bf16.msra.mxu0 0
    %2050 = vmatpush.bf16.msra.mxu0 0
    %2051 = vmatpush.bf16.msra.mxu0 0
    %2052 = vmatpush.bf16.msra.mxu0 0
    %2053 = vmatpush.bf16.msra.mxu0 0
    %2054 = vmatpush.bf16.msra.mxu0 %v939
    %2055 = vmatmul.bf16.gmra.mxu0 %v2039
    %v2056 = vpop.f32.mrf.mxu0
    %v2057 = vadd.f32 0.0, %v2056
    %v2058 = vpop.f32.mrf.mxu0
    %v2059 = vadd.f32 0.0, %v2058
    %2060 = vmatmul.bf16.gmra.mxu0 %v2042
    %v2061 = vpop.f32.mrf.mxu0
    %v2062 = vadd.f32 0.0, %v2061
    %v2063 = vpop.f32.mrf.mxu0
    %v2064 = vadd.f32 0.0, %v2063
    %2065 = vmatmul.bf16.gmra.mxu0 %v2045
    %v2066 = vpop.f32.mrf.mxu0
    %v2067 = vadd.f32 0.0, %v2066
    %v2068 = vpop.f32.mrf.mxu0
    %v2069 = vadd.f32 0.0, %v2068
    %2070 = vdwg.mxu0
    %2074 = vrot.lane.b32.xlu0 %v2023, 112
    %v2075 = vpop.permute.xlu0 %2074
    %2076 = vrot.lane.b32.xlu0 %v2024, 112
    %v2077 = vpop.permute.xlu0 %2076
    %2078 = vrot.lane.b32.xlu0 %v2025, 112
    %v2079 = vpop.permute.xlu0 %2078
    %v2081 = vsel %vm195, %v2075, 0
    %v2084 = vsel %vm195, %v2077, 0
    %v2087 = vsel %vm195, %v2079, 0
    %2089 = vmatpush.bf16.msra.mxu0 0
    %2090 = vmatpush.bf16.msra.mxu0 0
    %2091 = vmatpush.bf16.msra.mxu0 0
    %2092 = vmatpush.bf16.msra.mxu0 0
    %2093 = vmatpush.bf16.msra.mxu0 0
    %2094 = vmatpush.bf16.msra.mxu0 0
    %2095 = vmatpush.bf16.msra.mxu0 0
    %2096 = vmatpush.bf16.msra.mxu0 %v987
    %2097 = vmatmul.bf16.gmra.mxu0 %v2081
    %v2098 = vpop.f32.mrf.mxu0
    %v2099 = vadd.f32 %v2057, %v2098
    %v2100 = vpop.f32.mrf.mxu0
    %v2101 = vadd.f32 %v2059, %v2100
    %2102 = vmatmul.bf16.gmra.mxu0 %v2084
    %v2103 = vpop.f32.mrf.mxu0
    %v2104 = vadd.f32 %v2062, %v2103
    %v2105 = vpop.f32.mrf.mxu0
    %v2106 = vadd.f32 %v2064, %v2105
    %2107 = vmatmul.bf16.gmra.mxu0 %v2087
    %v2108 = vpop.f32.mrf.mxu0
    %v2109 = vadd.f32 %v2067, %v2108
    %v2110 = vpop.f32.mrf.mxu0
    %v2111 = vadd.f32 %v2069, %v2110
    %2112 = vdwg.mxu0
    %v2113 = vadd.f32 %v2099, %v1023
    %v2114 = vadd.f32 %v2101, %v1023
    %v2115 = vadd.f32 %v2104, %v1023
    %v2116 = vadd.f32 %v2106, %v1023
    %v2117 = vadd.f32 %v2109, %v1023
    %v2118 = vadd.f32 %v2111, %v1023
    %v2119 = vtanh.pop %v2113
    %v2120 = vtanh.pop %v2114
    %v2121 = vtanh.pop %v2115
    %v2122 = vtanh.pop %v2116
    %v2123 = vtanh.pop %v2117
    %v2124 = vtanh.pop %v2118
    %v2125 = vmul.f32 %v2119, %v1038
    %v2126 = vmul.f32 %v2120, %v1038
    %v2127 = vmul.f32 %v2121, %v1038
    %v2128 = vmul.f32 %v2122, %v1038
    %v2129 = vmul.f32 %v2123, %v1038
    %v2130 = vmul.f32 %v2124, %v1038
    %v2131 = vsel %vm152, %v2125, 0.0
    %2132 = vadd.xlane.f32.xlu0 %v2131
    %v2133 = vpop.xlane.xlu0 %2132
    %v2134 = vsel %vm152, %v2126, 0.0
    %2135 = vadd.xlane.f32.xlu0 %v2134
    %v2136 = vpop.xlane.xlu0 %2135
    %v2137 = vsel %vm152, %v2127, 0.0
    %2138 = vadd.xlane.f32.xlu0 %v2137
    %v2139 = vpop.xlane.xlu0 %2138
    %v2140 = vsel %vm152, %v2128, 0.0
    %2141 = vadd.xlane.f32.xlu0 %v2140
    %v2142 = vpop.xlane.xlu0 %2141
    %v2143 = vsel %vm152, %v2129, 0.0
    %2144 = vadd.xlane.f32.xlu0 %v2143
    %v2145 = vpop.xlane.xlu0 %2144
    %v2146 = vsel %vm152, %v2130, 0.0
    %2147 = vadd.xlane.f32.xlu0 %v2146
    %v2148 = vpop.xlane.xlu0 %2147
    %v2149 = vtanh.pop %v2133
    %v2150 = vtanh.pop %v2136
    %v2151 = vtanh.pop %v2139
    %v2152 = vtanh.pop %v2142
    %v2153 = vtanh.pop %v2145
    %v2154 = vtanh.pop %v2148
    %v2155 = vmul.f32 %v2149, 1.442695
    %v2156 = vpow.pop %v2155
    %v2157 = vmul.f32 %v2150, 1.442695
    %v2158 = vpow.pop %v2157
    %v2159 = vmul.f32 %v2151, 1.442695
    %v2160 = vpow.pop %v2159
    %v2161 = vmul.f32 %v2152, 1.442695
    %v2162 = vpow.pop %v2161
    %v2163 = vmul.f32 %v2153, 1.442695
    %v2164 = vpow.pop %v2163
    %v2165 = vmul.f32 %v2154, 1.442695
    %v2166 = vpow.pop %v2165
    %v2167 = vadd.f32 %v2156, %v2158
    %v2168 = vadd.f32 %v2167, %v2160
    %v2169 = vadd.f32 %v2168, %v2162
    %v2170 = vadd.f32 %v2169, %v2164
    %v2171 = vadd.f32 %v2170, %v2166
    %v2172 = vmul.f32 %v2156, %v1355
    %v2173 = vmul.f32 %v2158, %v1476
    %v2174 = vmul.f32 %v2160, %v1597
    %v2175 = vmul.f32 %v2162, %v1718
    %v2176 = vmul.f32 %v2164, %v1839
    %v2177 = vmul.f32 %v2166, %v1960
    %v2178 = vsel %vm1093, %v2172, 0.0
    %v2179 = vsel %vm1093, %v2173, 0.0
    %v2180 = vadd.f32 %v2178, %v2179
    %v2181 = vsel %vm1093, %v2174, 0.0
    %v2182 = vadd.f32 %v2180, %v2181
    %v2183 = vsel %vm1093, %v2175, 0.0
    %v2184 = vadd.f32 %v2182, %v2183
    %v2185 = vsel %vm1093, %v2176, 0.0
    %v2186 = vadd.f32 %v2184, %v2185
    %v2187 = vsel %vm1093, %v2177, 0.0
    %v2188 = vadd.f32 %v2186, %v2187
    %v2189 = vmul.f32 %v2156, %v2022
    %v2190 = vmul.f32 %v2158, %v1901
    %v2191 = vmul.f32 %v2160, %v1780
    %v2192 = vmul.f32 %v2162, %v1659
    %v2193 = vmul.f32 %v2164, %v1538
    %v2194 = vmul.f32 %v2166, %v1417
    %v2195 = vsel %vm1111, %v2189, 0.0
    %v2196 = vsel %vm1111, %v2190, 0.0
    %v2197 = vadd.f32 %v2195, %v2196
    %v2198 = vsel %vm1111, %v2191, 0.0
    %v2199 = vadd.f32 %v2197, %v2198
    %v2200 = vsel %vm1111, %v2192, 0.0
    %v2201 = vadd.f32 %v2199, %v2200
    %v2202 = vsel %vm1111, %v2193, 0.0
    %v2203 = vadd.f32 %v2201, %v2202
    %v2204 = vsel %vm1111, %v2194, 0.0
    %v2205 = vadd.f32 %v2203, %v2204
    %v2206 = vrcp.pop %v2171
    %v2207 = vmul.f32 %v2188, %v2206
    %v2208 = vmul.f32 %v2205, %v2206
    %v2209 = vpack.c.bf16 %v2207, %v2207
    %v2210 = vpack.c.bf16 %v2208, %v2208
    %2212 = vrot.lane.b32.xlu0 %v2210, 64
    %v2213 = vpop.permute.xlu0 %2212
    %v2215 = vsel %vm195, %v2213, 0
    %2217 = vmatpush.bf16.msra.mxu0 0
    %2218 = vmatpush.bf16.msra.mxu0 0
    %2219 = vmatpush.bf16.msra.mxu0 0
    %2220 = vmatpush.bf16.msra.mxu0 0
    %2221 = vmatpush.bf16.msra.mxu0 0
    %2222 = vmatpush.bf16.msra.mxu0 0
    %2223 = vmatpush.bf16.msra.mxu0 0
    %2224 = vmatpush.bf16.msra.mxu0 %v1135
    %2225 = vmatmul.bf16.gmra.mxu0 %v2215
    %v2226 = vpop.f32.mrf.mxu0
    %v2227 = vadd.f32 0.0, %v2226
    %v2228 = vpop.f32.mrf.mxu0
    %2229 = vdwg.mxu0
    %2231 = vrot.lane.b32.xlu0 %v2209, 112
    %v2232 = vpop.permute.xlu0 %2231
    %v2234 = vsel %vm195, %v2232, 0
    %2236 = vmatpush.bf16.msra.mxu0 0
    %2237 = vmatpush.bf16.msra.mxu0 0
    %2238 = vmatpush.bf16.msra.mxu0 0
    %2239 = vmatpush.bf16.msra.mxu0 0
    %2240 = vmatpush.bf16.msra.mxu0 0
    %2241 = vmatpush.bf16.msra.mxu0 0
    %2242 = vmatpush.bf16.msra.mxu0 0
    %2243 = vmatpush.bf16.msra.mxu0 %v1160
    %2244 = vmatmul.bf16.gmra.mxu0 %v2234
    %v2245 = vpop.f32.mrf.mxu0
    %v2246 = vadd.f32 %v2227, %v2245
    %v2247 = vpop.f32.mrf.mxu0
    %2248 = vdwg.mxu0
    %v2249 = vadd.f32 %v2246, %v1179
    %v2250 = vpack.c.bf16 %v1242, %v1242
    %2252 = vrot.lane.b32.xlu0 %v2250, 112
    %v2253 = vpop.permute.xlu0 %2252
    %v2255 = vsel %vm195, %v2253, 0
    %2257 = vmatpush.bf16.msra.mxu0 0
    %2258 = vmatpush.bf16.msra.mxu0 0
    %2259 = vmatpush.bf16.msra.mxu0 0
    %2260 = vmatpush.bf16.msra.mxu0 0
    %2261 = vmatpush.bf16.msra.mxu0 0
    %2262 = vmatpush.bf16.msra.mxu0 0
    %2263 = vmatpush.bf16.msra.mxu0 0
    %2264 = vmatpush.bf16.msra.mxu0 %v1189
    %2265 = vmatmul.bf16.gmra.mxu0 %v2255
    %v2266 = vpop.f32.mrf.mxu0
    %v2267 = vadd.f32 %v1183, %v2266
    %v2268 = vpop.f32.mrf.mxu0
    %2269 = vdwg.mxu0
    %v2270 = vadd.f32 %v2249, %v2267
    %v2271 = vxor.u32 %v2270, 2147483648
    %v2272 = vmul.f32 %v2271, 1.442695
    %v2273 = vpow.pop %v2272
    %v2274 = vadd.f32 %v2273, 1.0
    %v2275 = vrcp.pop %v2274
    %v2276 = vmul.f32 %v2274, %v2275
    %v2277 = vsub.f32 1.0, %v2276
    %v2278 = vmul.f32 %v2275, %v2277
    %v2279 = vadd.f32 %v2275, %v2278
    %vm2280 = vweird.f32 %v2274
    %vm2281 = vweird.f32 %v2275
    %vm2282 = vmor %vm2280, %vm2281
    %v2283 = vsel %vm2282, %v2275, %v2279
    %v2284 = vand.u32 2147483647, %v2274
    %vm2285 = vcmp.eq.f32.partialorder %v2284, 8.507059e+37
    %v2286 = vand.u32 %v2274, 2147483648
    %v2287 = vor.u32 1.1754944e-38, %v2286
    %v2288 = vsel %vm2285, %v2287, %v2283
    %v2289 = vmul.f32 1.0, %v2288
    %2291 = vrot.lane.b32.xlu0 %v2267, 96
    %v2292 = vpop.permute.xlu0 %2291
    %v2294 = vmul.f32 %v2289, %v2292
    %2296 = vrot.lane.b32.xlu0 %v2294, 32
    %v2297 = vpop.permute.xlu0 %2296
    %v2299 = vadd.f32 %v2249, %v2297
    %v2300 = vtanh.pop %v2299
    %v2301 = vsub.f32 1.0, %v2289
    %2303 = vrot.lane.b32.xlu0 %v2300, 112
    %v2304 = vpop.permute.xlu0 %2303
    %v2306 = vmul.f32 %v2301, %v2304
    %v2307 = vmul.f32 %v2289, %v1242
    %v2308 = vadd.f32 %v2306, %v2307
    %v2309 = vld [vmem:[%s0 + $0x30] sm:$0xf]
    %v2310 = vld [vmem:[%s0 + $0x34] sm:$0xf]
    %v2311 = vld [vmem:[%s0 + $0x38] sm:$0xf]
    %v2312 = vld [vmem:[%s0 + $0x3c] sm:$0xf]
    %v2313 = vld [vmem:[%s0 + $0x40] sm:$0xf]
    %v2314 = vld [vmem:[%s0 + $0x44] sm:$0xf]
    %v2321 = vunpack.c.l.b16 %v2309
    %v2322 = vunpack.c.l.b16 %v2310
    %v2323 = vunpack.c.l.b16 %v2311
    %v2324 = vunpack.c.l.b16 %v2312
    %v2325 = vunpack.c.l.b16 %v2313
    %v2326 = vunpack.c.l.b16 %v2314
    %v2327 = vpack.c.b16 %v2322, %v2321
    %v2328 = vpack.c.b16 %v2324, %v2323
    %v2329 = vpack.c.b16 %v2326, %v2325
    %v2331 = vsel %vm152, %v2327, 0
    %v2334 = vsel %vm152, %v2328, 0
    %v2337 = vsel %vm152, %v2329, 0
    %2339 = vmatpush.bf16.msra.mxu0 0
    %2340 = vmatpush.bf16.msra.mxu0 0
    %2341 = vmatpush.bf16.msra.mxu0 0
    %2342 = vmatpush.bf16.msra.mxu0 0
    %2343 = vmatpush.bf16.msra.mxu0 0
    %2344 = vmatpush.bf16.msra.mxu0 0
    %2345 = vmatpush.bf16.msra.mxu0 %v149
    %2346 = vmatpush.bf16.msra.mxu0 %v148
    %2347 = vmatmul.bf16.gmra.mxu0 %v2331
    %v2348 = vpop.f32.mrf.mxu0
    %v2349 = vadd.f32 %v123, %v2348
    %v2350 = vpop.f32.mrf.mxu0
    %v2351 = vadd.f32 %v123, %v2350
    %2352 = vmatmul.bf16.gmra.mxu0 %v2334
    %v2353 = vpop.f32.mrf.mxu0
    %v2354 = vadd.f32 %v123, %v2353
    %v2355 = vpop.f32.mrf.mxu0
    %v2356 = vadd.f32 %v123, %v2355
    %2357 = vmatmul.bf16.gmra.mxu0 %v2337
    %v2358 = vpop.f32.mrf.mxu0
    %v2359 = vadd.f32 %v123, %v2358
    %v2360 = vpop.f32.mrf.mxu0
    %v2361 = vadd.f32 %v123, %v2360
    %2362 = vdwg.mxu0
    %v2363 = vpack.c.bf16 %v1960, %v1960
    %2365 = vrot.lane.b32.xlu0 %v2363, 112
    %v2366 = vpop.permute.xlu0 %2365
    %v2368 = vsel %vm195, %v2366, 0
    %2370 = vmatpush.bf16.msra.mxu0 0
    %2371 = vmatpush.bf16.msra.mxu0 0
    %2372 = vmatpush.bf16.msra.mxu0 0
    %2373 = vmatpush.bf16.msra.mxu0 0
    %2374 = vmatpush.bf16.msra.mxu0 0
    %2375 = vmatpush.bf16.msra.mxu0 0
    %2376 = vmatpush.bf16.msra.mxu0 0
    %2377 = vmatpush.bf16.msra.mxu0 %v193
    %2378 = vmatmul.bf16.gmra.mxu0 %v2368
    %v2379 = vpop.f32.mrf.mxu0
    %v2380 = vadd.f32 %v187, %v2379
    %v2381 = vpop.f32.mrf.mxu0
    %2382 = vdwg.mxu0
    %v2383 = vadd.f32 %v2349, %v2380
    %v2384 = vxor.u32 %v2383, 2147483648
    %v2385 = vmul.f32 %v2384, 1.442695
    %v2386 = vpow.pop %v2385
    %v2387 = vadd.f32 %v2386, 1.0
    %v2388 = vrcp.pop %v2387
    %v2389 = vmul.f32 %v2387, %v2388
    %v2390 = vsub.f32 1.0, %v2389
    %v2391 = vmul.f32 %v2388, %v2390
    %v2392 = vadd.f32 %v2388, %v2391
    %vm2393 = vweird.f32 %v2387
    %vm2394 = vweird.f32 %v2388
    %vm2395 = vmor %vm2393, %vm2394
    %v2396 = vsel %vm2395, %v2388, %v2392
    %v2397 = vand.u32 2147483647, %v2387
    %vm2398 = vcmp.eq.f32.partialorder %v2397, 8.507059e+37
    %v2399 = vand.u32 %v2387, 2147483648
    %v2400 = vor.u32 1.1754944e-38, %v2399
    %v2401 = vsel %vm2398, %v2400, %v2396
    %v2402 = vmul.f32 1.0, %v2401
    %2404 = vrot.lane.b32.xlu0 %v2380, 96
    %v2405 = vpop.permute.xlu0 %2404
    %v2407 = vmul.f32 %v2402, %v2405
    %2409 = vrot.lane.b32.xlu0 %v2407, 32
    %v2410 = vpop.permute.xlu0 %2409
    %v2412 = vadd.f32 %v2349, %v2410
    %v2413 = vtanh.pop %v2412
    %v2414 = vsub.f32 1.0, %v2402
    %2416 = vrot.lane.b32.xlu0 %v2413, 112
    %v2417 = vpop.permute.xlu0 %2416
    %v2419 = vmul.f32 %v2414, %v2417
    %v2420 = vmul.f32 %v2402, %v1960
    %v2421 = vadd.f32 %v2419, %v2420
    %v2422 = vpack.c.bf16 %v2022, %v2022
    %2424 = vrot.lane.b32.xlu0 %v2422, 64
    %v2425 = vpop.permute.xlu0 %2424
    %v2427 = vsel %vm195, %v2425, 0
    %2429 = vmatpush.bf16.msra.mxu0 0
    %2430 = vmatpush.bf16.msra.mxu0 0
    %2431 = vmatpush.bf16.msra.mxu0 0
    %2432 = vmatpush.bf16.msra.mxu0 0
    %2433 = vmatpush.bf16.msra.mxu0 0
    %2434 = vmatpush.bf16.msra.mxu0 0
    %2435 = vmatpush.bf16.msra.mxu0 0
    %2436 = vmatpush.bf16.msra.mxu0 %v258
    %2437 = vmatmul.bf16.gmra.mxu0 %v2427
    %v2438 = vpop.f32.mrf.mxu0
    %v2439 = vadd.f32 %v252, %v2438
    %v2440 = vpop.f32.mrf.mxu0
    %2441 = vdwg.mxu0
    %2443 = vrot.lane.b32.xlu0 %v2439, 48
    %v2444 = vpop.permute.xlu0 %2443
    %v2446 = vadd.f32 %v2361, %v2444
    %v2447 = vxor.u32 %v2446, 2147483648
    %v2448 = vmul.f32 %v2447, 1.442695
    %v2449 = vpow.pop %v2448
    %v2450 = vadd.f32 %v2449, 1.0
    %v2451 = vrcp.pop %v2450
    %v2452 = vmul.f32 %v2450, %v2451
    %v2453 = vsub.f32 1.0, %v2452
    %v2454 = vmul.f32 %v2451, %v2453
    %v2455 = vadd.f32 %v2451, %v2454
    %vm2456 = vweird.f32 %v2450
    %vm2457 = vweird.f32 %v2451
    %vm2458 = vmor %vm2456, %vm2457
    %v2459 = vsel %vm2458, %v2451, %v2455
    %v2460 = vand.u32 2147483647, %v2450
    %vm2461 = vcmp.eq.f32.partialorder %v2460, 8.507059e+37
    %v2462 = vand.u32 %v2450, 2147483648
    %v2463 = vor.u32 1.1754944e-38, %v2462
    %v2464 = vsel %vm2461, %v2463, %v2459
    %v2465 = vmul.f32 1.0, %v2464
    %2466 = vrot.lane.b32.xlu0 %v2439, 16
    %v2467 = vpop.permute.xlu0 %2466
    %v2469 = vmul.f32 %v2465, %v2467
    %2471 = vrot.lane.b32.xlu0 %v2469, 32
    %v2472 = vpop.permute.xlu0 %2471
    %v2474 = vadd.f32 %v2361, %v2472
    %v2475 = vtanh.pop %v2474
    %v2476 = vsub.f32 1.0, %v2465
    %2478 = vrot.lane.b32.xlu0 %v2475, 112
    %v2479 = vpop.permute.xlu0 %2478
    %v2481 = vmul.f32 %v2476, %v2479
    %v2482 = vmul.f32 %v2465, %v2022
    %v2483 = vadd.f32 %v2481, %v2482
    %v2484 = vpack.c.bf16 %v2421, %v2421
    %2486 = vrot.lane.b32.xlu0 %v2484, 112
    %v2487 = vpop.permute.xlu0 %2486
    %v2489 = vsel %vm195, %v2487, 0
    %2491 = vmatpush.bf16.msra.mxu0 0
    %2492 = vmatpush.bf16.msra.mxu0 0
    %2493 = vmatpush.bf16.msra.mxu0 0
    %2494 = vmatpush.bf16.msra.mxu0 0
    %2495 = vmatpush.bf16.msra.mxu0 0
    %2496 = vmatpush.bf16.msra.mxu0 0
    %2497 = vmatpush.bf16.msra.mxu0 0
    %2498 = vmatpush.bf16.msra.mxu0 %v193
    %2499 = vmatmul.bf16.gmra.mxu0 %v2489
    %v2500 = vpop.f32.mrf.mxu0
    %v2501 = vadd.f32 %v187, %v2500
    %v2502 = vpop.f32.mrf.mxu0
    %2503 = vdwg.mxu0
    %v2504 = vadd.f32 %v2351, %v2501
    %v2505 = vxor.u32 %v2504, 2147483648
    %v2506 = vmul.f32 %v2505, 1.442695
    %v2507 = vpow.pop %v2506
    %v2508 = vadd.f32 %v2507, 1.0
    %v2509 = vrcp.pop %v2508
    %v2510 = vmul.f32 %v2508, %v2509
    %v2511 = vsub.f32 1.0, %v2510
    %v2512 = vmul.f32 %v2509, %v2511
    %v2513 = vadd.f32 %v2509, %v2512
    %vm2514 = vweird.f32 %v2508
    %vm2515 = vweird.f32 %v2509
    %vm2516 = vmor %vm2514, %vm2515
    %v2517 = vsel %vm2516, %v2509, %v2513
    %v2518 = vand.u32 2147483647, %v2508
    %vm2519 = vcmp.eq.f32.partialorder %v2518, 8.507059e+37
    %v2520 = vand.u32 %v2508, 2147483648
    %v2521 = vor.u32 1.1754944e-38, %v2520
    %v2522 = vsel %vm2519, %v2521, %v2517
    %v2523 = vmul.f32 1.0, %v2522
    %2525 = vrot.lane.b32.xlu0 %v2501, 96
    %v2526 = vpop.permute.xlu0 %2525
    %v2528 = vmul.f32 %v2523, %v2526
    %2530 = vrot.lane.b32.xlu0 %v2528, 32
    %v2531 = vpop.permute.xlu0 %2530
    %v2533 = vadd.f32 %v2351, %v2531
    %v2534 = vtanh.pop %v2533
    %v2535 = vsub.f32 1.0, %v2523
    %2537 = vrot.lane.b32.xlu0 %v2534, 112
    %v2538 = vpop.permute.xlu0 %2537
    %v2540 = vmul.f32 %v2535, %v2538
    %v2541 = vmul.f32 %v2523, %v2421
    %v2542 = vadd.f32 %v2540, %v2541
    %v2543 = vpack.c.bf16 %v2483, %v2483
    %2545 = vrot.lane.b32.xlu0 %v2543, 64
    %v2546 = vpop.permute.xlu0 %2545
    %v2548 = vsel %vm195, %v2546, 0
    %2550 = vmatpush.bf16.msra.mxu0 0
    %2551 = vmatpush.bf16.msra.mxu0 0
    %2552 = vmatpush.bf16.msra.mxu0 0
    %2553 = vmatpush.bf16.msra.mxu0 0
    %2554 = vmatpush.bf16.msra.mxu0 0
    %2555 = vmatpush.bf16.msra.mxu0 0
    %2556 = vmatpush.bf16.msra.mxu0 0
    %2557 = vmatpush.bf16.msra.mxu0 %v258
    %2558 = vmatmul.bf16.gmra.mxu0 %v2548
    %v2559 = vpop.f32.mrf.mxu0
    %v2560 = vadd.f32 %v252, %v2559
    %v2561 = vpop.f32.mrf.mxu0
    %2562 = vdwg.mxu0
    %2564 = vrot.lane.b32.xlu0 %v2560, 48
    %v2565 = vpop.permute.xlu0 %2564
    %v2567 = vadd.f32 %v2359, %v2565
    %v2568 = vxor.u32 %v2567, 2147483648
    %v2569 = vmul.f32 %v2568, 1.442695
    %v2570 = vpow.pop %v2569
    %v2571 = vadd.f32 %v2570, 1.0
    %v2572 = vrcp.pop %v2571
    %v2573 = vmul.f32 %v2571, %v2572
    %v2574 = vsub.f32 1.0, %v2573
    %v2575 = vmul.f32 %v2572, %v2574
    %v2576 = vadd.f32 %v2572, %v2575
    %vm2577 = vweird.f32 %v2571
    %vm2578 = vweird.f32 %v2572
    %vm2579 = vmor %vm2577, %vm2578
    %v2580 = vsel %vm2579, %v2572, %v2576
    %v2581 = vand.u32 2147483647, %v2571
    %vm2582 = vcmp.eq.f32.partialorder %v2581, 8.507059e+37
    %v2583 = vand.u32 %v2571, 2147483648
    %v2584 = vor.u32 1.1754944e-38, %v2583
    %v2585 = vsel %vm2582, %v2584, %v2580
    %v2586 = vmul.f32 1.0, %v2585
    %2587 = vrot.lane.b32.xlu0 %v2560, 16
    %v2588 = vpop.permute.xlu0 %2587
    %v2590 = vmul.f32 %v2586, %v2588
    %2592 = vrot.lane.b32.xlu0 %v2590, 32
    %v2593 = vpop.permute.xlu0 %2592
    %v2595 = vadd.f32 %v2359, %v2593
    %v2596 = vtanh.pop %v2595
    %v2597 = vsub.f32 1.0, %v2586
    %2599 = vrot.lane.b32.xlu0 %v2596, 112
    %v2600 = vpop.permute.xlu0 %2599
    %v2602 = vmul.f32 %v2597, %v2600
    %v2603 = vmul.f32 %v2586, %v2483
    %v2604 = vadd.f32 %v2602, %v2603
    %v2605 = vpack.c.bf16 %v2542, %v2542
    %2607 = vrot.lane.b32.xlu0 %v2605, 112
    %v2608 = vpop.permute.xlu0 %2607
    %v2610 = vsel %vm195, %v2608, 0
    %2612 = vmatpush.bf16.msra.mxu0 0
    %2613 = vmatpush.bf16.msra.mxu0 0
    %2614 = vmatpush.bf16.msra.mxu0 0
    %2615 = vmatpush.bf16.msra.mxu0 0
    %2616 = vmatpush.bf16.msra.mxu0 0
    %2617 = vmatpush.bf16.msra.mxu0 0
    %2618 = vmatpush.bf16.msra.mxu0 0
    %2619 = vmatpush.bf16.msra.mxu0 %v193
    %2620 = vmatmul.bf16.gmra.mxu0 %v2610
    %v2621 = vpop.f32.mrf.mxu0
    %v2622 = vadd.f32 %v187, %v2621
    %v2623 = vpop.f32.mrf.mxu0
    %2624 = vdwg.mxu0
    %v2625 = vadd.f32 %v2354, %v2622
    %v2626 = vxor.u32 %v2625, 2147483648
    %v2627 = vmul.f32 %v2626, 1.442695
    %v2628 = vpow.pop %v2627
    %v2629 = vadd.f32 %v2628, 1.0
    %v2630 = vrcp.pop %v2629
    %v2631 = vmul.f32 %v2629, %v2630
    %v2632 = vsub.f32 1.0, %v2631
    %v2633 = vmul.f32 %v2630, %v2632
    %v2634 = vadd.f32 %v2630, %v2633
    %vm2635 = vweird.f32 %v2629
    %vm2636 = vweird.f32 %v2630
    %vm2637 = vmor %vm2635, %vm2636
    %v2638 = vsel %vm2637, %v2630, %v2634
    %v2639 = vand.u32 2147483647, %v2629
    %vm2640 = vcmp.eq.f32.partialorder %v2639, 8.507059e+37
    %v2641 = vand.u32 %v2629, 2147483648
    %v2642 = vor.u32 1.1754944e-38, %v2641
    %v2643 = vsel %vm2640, %v2642, %v2638
    %v2644 = vmul.f32 1.0, %v2643
    %2646 = vrot.lane.b32.xlu0 %v2622, 96
    %v2647 = vpop.permute.xlu0 %2646
    %v2649 = vmul.f32 %v2644, %v2647
    %2651 = vrot.lane.b32.xlu0 %v2649, 32
    %v2652 = vpop.permute.xlu0 %2651
    %v2654 = vadd.f32 %v2354, %v2652
    %v2655 = vtanh.pop %v2654
    %v2656 = vsub.f32 1.0, %v2644
    %2658 = vrot.lane.b32.xlu0 %v2655, 112
    %v2659 = vpop.permute.xlu0 %2658
    %v2661 = vmul.f32 %v2656, %v2659
    %v2662 = vmul.f32 %v2644, %v2542
    %v2663 = vadd.f32 %v2661, %v2662
    %v2664 = vpack.c.bf16 %v2604, %v2604
    %2666 = vrot.lane.b32.xlu0 %v2664, 64
    %v2667 = vpop.permute.xlu0 %2666
    %v2669 = vsel %vm195, %v2667, 0
    %2671 = vmatpush.bf16.msra.mxu0 0
    %2672 = vmatpush.bf16.msra.mxu0 0
    %2673 = vmatpush.bf16.msra.mxu0 0
    %2674 = vmatpush.bf16.msra.mxu0 0
    %2675 = vmatpush.bf16.msra.mxu0 0
    %2676 = vmatpush.bf16.msra.mxu0 0
    %2677 = vmatpush.bf16.msra.mxu0 0
    %2678 = vmatpush.bf16.msra.mxu0 %v258
    %2679 = vmatmul.bf16.gmra.mxu0 %v2669
    %v2680 = vpop.f32.mrf.mxu0
    %v2681 = vadd.f32 %v252, %v2680
    %v2682 = vpop.f32.mrf.mxu0
    %2683 = vdwg.mxu0
    %2685 = vrot.lane.b32.xlu0 %v2681, 48
    %v2686 = vpop.permute.xlu0 %2685
    %v2688 = vadd.f32 %v2356, %v2686
    %v2689 = vxor.u32 %v2688, 2147483648
    %v2690 = vmul.f32 %v2689, 1.442695
    %v2691 = vpow.pop %v2690
    %v2692 = vadd.f32 %v2691, 1.0
    %v2693 = vrcp.pop %v2692
    %v2694 = vmul.f32 %v2692, %v2693
    %v2695 = vsub.f32 1.0, %v2694
    %v2696 = vmul.f32 %v2693, %v2695
    %v2697 = vadd.f32 %v2693, %v2696
    %vm2698 = vweird.f32 %v2692
    %vm2699 = vweird.f32 %v2693
    %vm2700 = vmor %vm2698, %vm2699
    %v2701 = vsel %vm2700, %v2693, %v2697
    %v2702 = vand.u32 2147483647, %v2692
    %vm2703 = vcmp.eq.f32.partialorder %v2702, 8.507059e+37
    %v2704 = vand.u32 %v2692, 2147483648
    %v2705 = vor.u32 1.1754944e-38, %v2704
    %v2706 = vsel %vm2703, %v2705, %v2701
    %v2707 = vmul.f32 1.0, %v2706
    %2708 = vrot.lane.b32.xlu0 %v2681, 16
    %v2709 = vpop.permute.xlu0 %2708
    %v2711 = vmul.f32 %v2707, %v2709
    %2713 = vrot.lane.b32.xlu0 %v2711, 32
    %v2714 = vpop.permute.xlu0 %2713
    %v2716 = vadd.f32 %v2356, %v2714
    %v2717 = vtanh.pop %v2716
    %v2718 = vsub.f32 1.0, %v2707
    %2720 = vrot.lane.b32.xlu0 %v2717, 112
    %v2721 = vpop.permute.xlu0 %2720
    %v2723 = vmul.f32 %v2718, %v2721
    %v2724 = vmul.f32 %v2707, %v2604
    %v2725 = vadd.f32 %v2723, %v2724
    %v2726 = vpack.c.bf16 %v2663, %v2663
    %2728 = vrot.lane.b32.xlu0 %v2726, 112
    %v2729 = vpop.permute.xlu0 %2728
    %v2731 = vsel %vm195, %v2729, 0
    %2733 = vmatpush.bf16.msra.mxu0 0
    %2734 = vmatpush.bf16.msra.mxu0 0
    %2735 = vmatpush.bf16.msra.mxu0 0
    %2736 = vmatpush.bf16.msra.mxu0 0
    %2737 = vmatpush.bf16.msra.mxu0 0
    %2738 = vmatpush.bf16.msra.mxu0 0
    %2739 = vmatpush.bf16.msra.mxu0 0
    %2740 = vmatpush.bf16.msra.mxu0 %v193
    %2741 = vmatmul.bf16.gmra.mxu0 %v2731
    %v2742 = vpop.f32.mrf.mxu0
    %v2743 = vadd.f32 %v187, %v2742
    %v2744 = vpop.f32.mrf.mxu0
    %2745 = vdwg.mxu0
    %v2746 = vadd.f32 %v2356, %v2743
    %v2747 = vxor.u32 %v2746, 2147483648
    %v2748 = vmul.f32 %v2747, 1.442695
    %v2749 = vpow.pop %v2748
    %v2750 = vadd.f32 %v2749, 1.0
    %v2751 = vrcp.pop %v2750
    %v2752 = vmul.f32 %v2750, %v2751
    %v2753 = vsub.f32 1.0, %v2752
    %v2754 = vmul.f32 %v2751, %v2753
    %v2755 = vadd.f32 %v2751, %v2754
    %vm2756 = vweird.f32 %v2750
    %vm2757 = vweird.f32 %v2751
    %vm2758 = vmor %vm2756, %vm2757
    %v2759 = vsel %vm2758, %v2751, %v2755
    %v2760 = vand.u32 2147483647, %v2750
    %vm2761 = vcmp.eq.f32.partialorder %v2760, 8.507059e+37
    %v2762 = vand.u32 %v2750, 2147483648
    %v2763 = vor.u32 1.1754944e-38, %v2762
    %v2764 = vsel %vm2761, %v2763, %v2759
    %v2765 = vmul.f32 1.0, %v2764
    %2767 = vrot.lane.b32.xlu0 %v2743, 96
    %v2768 = vpop.permute.xlu0 %2767
    %v2770 = vmul.f32 %v2765, %v2768
    %2772 = vrot.lane.b32.xlu0 %v2770, 32
    %v2773 = vpop.permute.xlu0 %2772
    %v2775 = vadd.f32 %v2356, %v2773
    %v2776 = vtanh.pop %v2775
    %v2777 = vsub.f32 1.0, %v2765
    %2779 = vrot.lane.b32.xlu0 %v2776, 112
    %v2780 = vpop.permute.xlu0 %2779
    %v2782 = vmul.f32 %v2777, %v2780
    %v2783 = vmul.f32 %v2765, %v2663
    %v2784 = vadd.f32 %v2782, %v2783
    %v2785 = vpack.c.bf16 %v2725, %v2725
    %2787 = vrot.lane.b32.xlu0 %v2785, 64
    %v2788 = vpop.permute.xlu0 %2787
    %v2790 = vsel %vm195, %v2788, 0
    %2792 = vmatpush.bf16.msra.mxu0 0
    %2793 = vmatpush.bf16.msra.mxu0 0
    %2794 = vmatpush.bf16.msra.mxu0 0
    %2795 = vmatpush.bf16.msra.mxu0 0
    %2796 = vmatpush.bf16.msra.mxu0 0
    %2797 = vmatpush.bf16.msra.mxu0 0
    %2798 = vmatpush.bf16.msra.mxu0 0
    %2799 = vmatpush.bf16.msra.mxu0 %v258
    %2800 = vmatmul.bf16.gmra.mxu0 %v2790
    %v2801 = vpop.f32.mrf.mxu0
    %v2802 = vadd.f32 %v252, %v2801
    %v2803 = vpop.f32.mrf.mxu0
    %2804 = vdwg.mxu0
    %2806 = vrot.lane.b32.xlu0 %v2802, 48
    %v2807 = vpop.permute.xlu0 %2806
    %v2809 = vadd.f32 %v2354, %v2807
    %v2810 = vxor.u32 %v2809, 2147483648
    %v2811 = vmul.f32 %v2810, 1.442695
    %v2812 = vpow.pop %v2811
    %v2813 = vadd.f32 %v2812, 1.0
    %v2814 = vrcp.pop %v2813
    %v2815 = vmul.f32 %v2813, %v2814
    %v2816 = vsub.f32 1.0, %v2815
    %v2817 = vmul.f32 %v2814, %v2816
    %v2818 = vadd.f32 %v2814, %v2817
    %vm2819 = vweird.f32 %v2813
    %vm2820 = vweird.f32 %v2814
    %vm2821 = vmor %vm2819, %vm2820
    %v2822 = vsel %vm2821, %v2814, %v2818
    %v2823 = vand.u32 2147483647, %v2813
    %vm2824 = vcmp.eq.f32.partialorder %v2823, 8.507059e+37
    %v2825 = vand.u32 %v2813, 2147483648
    %v2826 = vor.u32 1.1754944e-38, %v2825
    %v2827 = vsel %vm2824, %v2826, %v2822
    %v2828 = vmul.f32 1.0, %v2827
    %2829 = vrot.lane.b32.xlu0 %v2802, 16
    %v2830 = vpop.permute.xlu0 %2829
    %v2832 = vmul.f32 %v2828, %v2830
    %2834 = vrot.lane.b32.xlu0 %v2832, 32
    %v2835 = vpop.permute.xlu0 %2834
    %v2837 = vadd.f32 %v2354, %v2835
    %v2838 = vtanh.pop %v2837
    %v2839 = vsub.f32 1.0, %v2828
    %2841 = vrot.lane.b32.xlu0 %v2838, 112
    %v2842 = vpop.permute.xlu0 %2841
    %v2844 = vmul.f32 %v2839, %v2842
    %v2845 = vmul.f32 %v2828, %v2725
    %v2846 = vadd.f32 %v2844, %v2845
    %v2847 = vpack.c.bf16 %v2784, %v2784
    %2849 = vrot.lane.b32.xlu0 %v2847, 112
    %v2850 = vpop.permute.xlu0 %2849
    %v2852 = vsel %vm195, %v2850, 0
    %2854 = vmatpush.bf16.msra.mxu0 0
    %2855 = vmatpush.bf16.msra.mxu0 0
    %2856 = vmatpush.bf16.msra.mxu0 0
    %2857 = vmatpush.bf16.msra.mxu0 0
    %2858 = vmatpush.bf16.msra.mxu0 0
    %2859 = vmatpush.bf16.msra.mxu0 0
    %2860 = vmatpush.bf16.msra.mxu0 0
    %2861 = vmatpush.bf16.msra.mxu0 %v193
    %2862 = vmatmul.bf16.gmra.mxu0 %v2852
    %v2863 = vpop.f32.mrf.mxu0
    %v2864 = vadd.f32 %v187, %v2863
    %v2865 = vpop.f32.mrf.mxu0
    %2866 = vdwg.mxu0
    %v2867 = vadd.f32 %v2359, %v2864
    %v2868 = vxor.u32 %v2867, 2147483648
    %v2869 = vmul.f32 %v2868, 1.442695
    %v2870 = vpow.pop %v2869
    %v2871 = vadd.f32 %v2870, 1.0
    %v2872 = vrcp.pop %v2871
    %v2873 = vmul.f32 %v2871, %v2872
    %v2874 = vsub.f32 1.0, %v2873
    %v2875 = vmul.f32 %v2872, %v2874
    %v2876 = vadd.f32 %v2872, %v2875
    %vm2877 = vweird.f32 %v2871
    %vm2878 = vweird.f32 %v2872
    %vm2879 = vmor %vm2877, %vm2878
    %v2880 = vsel %vm2879, %v2872, %v2876
    %v2881 = vand.u32 2147483647, %v2871
    %vm2882 = vcmp.eq.f32.partialorder %v2881, 8.507059e+37
    %v2883 = vand.u32 %v2871, 2147483648
    %v2884 = vor.u32 1.1754944e-38, %v2883
    %v2885 = vsel %vm2882, %v2884, %v2880
    %v2886 = vmul.f32 1.0, %v2885
    %2888 = vrot.lane.b32.xlu0 %v2864, 96
    %v2889 = vpop.permute.xlu0 %2888
    %v2891 = vmul.f32 %v2886, %v2889
    %2893 = vrot.lane.b32.xlu0 %v2891, 32
    %v2894 = vpop.permute.xlu0 %2893
    %v2896 = vadd.f32 %v2359, %v2894
    %v2897 = vtanh.pop %v2896
    %v2898 = vsub.f32 1.0, %v2886
    %2900 = vrot.lane.b32.xlu0 %v2897, 112
    %v2901 = vpop.permute.xlu0 %2900
    %v2903 = vmul.f32 %v2898, %v2901
    %v2904 = vmul.f32 %v2886, %v2784
    %v2905 = vadd.f32 %v2903, %v2904
    %v2906 = vpack.c.bf16 %v2846, %v2846
    %2908 = vrot.lane.b32.xlu0 %v2906, 64
    %v2909 = vpop.permute.xlu0 %2908
    %v2911 = vsel %vm195, %v2909, 0
    %2913 = vmatpush.bf16.msra.mxu0 0
    %2914 = vmatpush.bf16.msra.mxu0 0
    %2915 = vmatpush.bf16.msra.mxu0 0
    %2916 = vmatpush.bf16.msra.mxu0 0
    %2917 = vmatpush.bf16.msra.mxu0 0
    %2918 = vmatpush.bf16.msra.mxu0 0
    %2919 = vmatpush.bf16.msra.mxu0 0
    %2920 = vmatpush.bf16.msra.mxu0 %v258
    %2921 = vmatmul.bf16.gmra.mxu0 %v2911
    %v2922 = vpop.f32.mrf.mxu0
    %v2923 = vadd.f32 %v252, %v2922
    %v2924 = vpop.f32.mrf.mxu0
    %2925 = vdwg.mxu0
    %2927 = vrot.lane.b32.xlu0 %v2923, 48
    %v2928 = vpop.permute.xlu0 %2927
    %v2930 = vadd.f32 %v2351, %v2928
    %v2931 = vxor.u32 %v2930, 2147483648
    %v2932 = vmul.f32 %v2931, 1.442695
    %v2933 = vpow.pop %v2932
    %v2934 = vadd.f32 %v2933, 1.0
    %v2935 = vrcp.pop %v2934
    %v2936 = vmul.f32 %v2934, %v2935
    %v2937 = vsub.f32 1.0, %v2936
    %v2938 = vmul.f32 %v2935, %v2937
    %v2939 = vadd.f32 %v2935, %v2938
    %vm2940 = vweird.f32 %v2934
    %vm2941 = vweird.f32 %v2935
    %vm2942 = vmor %vm2940, %vm2941
    %v2943 = vsel %vm2942, %v2935, %v2939
    %v2944 = vand.u32 2147483647, %v2934
    %vm2945 = vcmp.eq.f32.partialorder %v2944, 8.507059e+37
    %v2946 = vand.u32 %v2934, 2147483648
    %v2947 = vor.u32 1.1754944e-38, %v2946
    %v2948 = vsel %vm2945, %v2947, %v2943
    %v2949 = vmul.f32 1.0, %v2948
    %2950 = vrot.lane.b32.xlu0 %v2923, 16
    %v2951 = vpop.permute.xlu0 %2950
    %v2953 = vmul.f32 %v2949, %v2951
    %2955 = vrot.lane.b32.xlu0 %v2953, 32
    %v2956 = vpop.permute.xlu0 %2955
    %v2958 = vadd.f32 %v2351, %v2956
    %v2959 = vtanh.pop %v2958
    %v2960 = vsub.f32 1.0, %v2949
    %2962 = vrot.lane.b32.xlu0 %v2959, 112
    %v2963 = vpop.permute.xlu0 %2962
    %v2965 = vmul.f32 %v2960, %v2963
    %v2966 = vmul.f32 %v2949, %v2846
    %v2967 = vadd.f32 %v2965, %v2966
    %v2968 = vpack.c.bf16 %v2905, %v2905
    %2970 = vrot.lane.b32.xlu0 %v2968, 112
    %v2971 = vpop.permute.xlu0 %2970
    %v2973 = vsel %vm195, %v2971, 0
    %2975 = vmatpush.bf16.msra.mxu0 0
    %2976 = vmatpush.bf16.msra.mxu0 0
    %2977 = vmatpush.bf16.msra.mxu0 0
    %2978 = vmatpush.bf16.msra.mxu0 0
    %2979 = vmatpush.bf16.msra.mxu0 0
    %2980 = vmatpush.bf16.msra.mxu0 0
    %2981 = vmatpush.bf16.msra.mxu0 0
    %2982 = vmatpush.bf16.msra.mxu0 %v193
    %2983 = vmatmul.bf16.gmra.mxu0 %v2973
    %v2984 = vpop.f32.mrf.mxu0
    %v2985 = vadd.f32 %v187, %v2984
    %v2986 = vpop.f32.mrf.mxu0
    %2987 = vdwg.mxu0
    %v2988 = vadd.f32 %v2361, %v2985
    %v2989 = vxor.u32 %v2988, 2147483648
    %v2990 = vmul.f32 %v2989, 1.442695
    %v2991 = vpow.pop %v2990
    %v2992 = vadd.f32 %v2991, 1.0
    %v2993 = vrcp.pop %v2992
    %v2994 = vmul.f32 %v2992, %v2993
    %v2995 = vsub.f32 1.0, %v2994
    %v2996 = vmul.f32 %v2993, %v2995
    %v2997 = vadd.f32 %v2993, %v2996
    %vm2998 = vweird.f32 %v2992
    %vm2999 = vweird.f32 %v2993
    %vm3000 = vmor %vm2998, %vm2999
    %v3001 = vsel %vm3000, %v2993, %v2997
    %v3002 = vand.u32 2147483647, %v2992
    %vm3003 = vcmp.eq.f32.partialorder %v3002, 8.507059e+37
    %v3004 = vand.u32 %v2992, 2147483648
    %v3005 = vor.u32 1.1754944e-38, %v3004
    %v3006 = vsel %vm3003, %v3005, %v3001
    %v3007 = vmul.f32 1.0, %v3006
    %3009 = vrot.lane.b32.xlu0 %v2985, 96
    %v3010 = vpop.permute.xlu0 %3009
    %v3012 = vmul.f32 %v3007, %v3010
    %3014 = vrot.lane.b32.xlu0 %v3012, 32
    %v3015 = vpop.permute.xlu0 %3014
    %v3017 = vadd.f32 %v2361, %v3015
    %v3018 = vtanh.pop %v3017
    %v3019 = vsub.f32 1.0, %v3007
    %3021 = vrot.lane.b32.xlu0 %v3018, 112
    %v3022 = vpop.permute.xlu0 %3021
    %v3024 = vmul.f32 %v3019, %v3022
    %v3025 = vmul.f32 %v3007, %v2905
    %v3026 = vadd.f32 %v3024, %v3025
    %v3027 = vpack.c.bf16 %v2967, %v2967
    %3029 = vrot.lane.b32.xlu0 %v3027, 64
    %v3030 = vpop.permute.xlu0 %3029
    %v3032 = vsel %vm195, %v3030, 0
    %3034 = vmatpush.bf16.msra.mxu0 0
    %3035 = vmatpush.bf16.msra.mxu0 0
    %3036 = vmatpush.bf16.msra.mxu0 0
    %3037 = vmatpush.bf16.msra.mxu0 0
    %3038 = vmatpush.bf16.msra.mxu0 0
    %3039 = vmatpush.bf16.msra.mxu0 0
    %3040 = vmatpush.bf16.msra.mxu0 0
    %3041 = vmatpush.bf16.msra.mxu0 %v258
    %3042 = vmatmul.bf16.gmra.mxu0 %v3032
    %v3043 = vpop.f32.mrf.mxu0
    %v3044 = vadd.f32 %v252, %v3043
    %v3045 = vpop.f32.mrf.mxu0
    %3046 = vdwg.mxu0
    %3048 = vrot.lane.b32.xlu0 %v3044, 48
    %v3049 = vpop.permute.xlu0 %3048
    %v3051 = vadd.f32 %v2349, %v3049
    %v3052 = vxor.u32 %v3051, 2147483648
    %v3053 = vmul.f32 %v3052, 1.442695
    %v3054 = vpow.pop %v3053
    %v3055 = vadd.f32 %v3054, 1.0
    %v3056 = vrcp.pop %v3055
    %v3057 = vmul.f32 %v3055, %v3056
    %v3058 = vsub.f32 1.0, %v3057
    %v3059 = vmul.f32 %v3056, %v3058
    %v3060 = vadd.f32 %v3056, %v3059
    %vm3061 = vweird.f32 %v3055
    %vm3062 = vweird.f32 %v3056
    %vm3063 = vmor %vm3061, %vm3062
    %v3064 = vsel %vm3063, %v3056, %v3060
    %v3065 = vand.u32 2147483647, %v3055
    %vm3066 = vcmp.eq.f32.partialorder %v3065, 8.507059e+37
    %v3067 = vand.u32 %v3055, 2147483648
    %v3068 = vor.u32 1.1754944e-38, %v3067
    %v3069 = vsel %vm3066, %v3068, %v3064
    %v3070 = vmul.f32 1.0, %v3069
    %3071 = vrot.lane.b32.xlu0 %v3044, 16
    %v3072 = vpop.permute.xlu0 %3071
    %v3074 = vmul.f32 %v3070, %v3072
    %3076 = vrot.lane.b32.xlu0 %v3074, 32
    %v3077 = vpop.permute.xlu0 %3076
    %v3079 = vadd.f32 %v2349, %v3077
    %v3080 = vtanh.pop %v3079
    %v3081 = vsub.f32 1.0, %v3070
    %3083 = vrot.lane.b32.xlu0 %v3080, 112
    %v3084 = vpop.permute.xlu0 %3083
    %v3086 = vmul.f32 %v3081, %v3084
    %v3087 = vmul.f32 %v3070, %v2967
    %v3088 = vadd.f32 %v3086, %v3087
    %v3089 = vpack.c.bf16 %v2542, %v2421
    %v3090 = vpack.c.bf16 %v2784, %v2663
    %v3091 = vpack.c.bf16 %v3026, %v2905
    %v3092 = vpack.c.bf16 %v2967, %v3088
    %v3093 = vpack.c.bf16 %v2725, %v2846
    %v3094 = vpack.c.bf16 %v2483, %v2604
    %3098 = vrot.lane.b32.xlu0 %v3092, 64
    %v3099 = vpop.permute.xlu0 %3098
    %3100 = vrot.lane.b32.xlu0 %v3093, 64
    %v3101 = vpop.permute.xlu0 %3100
    %3102 = vrot.lane.b32.xlu0 %v3094, 64
    %v3103 = vpop.permute.xlu0 %3102
    %v3105 = vsel %vm195, %v3099, 0
    %v3108 = vsel %vm195, %v3101, 0
    %v3111 = vsel %vm195, %v3103, 0
    %3113 = vmatpush.bf16.msra.mxu0 0
    %3114 = vmatpush.bf16.msra.mxu0 0
    %3115 = vmatpush.bf16.msra.mxu0 0
    %3116 = vmatpush.bf16.msra.mxu0 0
    %3117 = vmatpush.bf16.msra.mxu0 0
    %3118 = vmatpush.bf16.msra.mxu0 0
    %3119 = vmatpush.bf16.msra.mxu0 0
    %3120 = vmatpush.bf16.msra.mxu0 %v939
    %3121 = vmatmul.bf16.gmra.mxu0 %v3105
    %v3122 = vpop.f32.mrf.mxu0
    %v3123 = vadd.f32 0.0, %v3122
    %v3124 = vpop.f32.mrf.mxu0
    %v3125 = vadd.f32 0.0, %v3124
    %3126 = vmatmul.bf16.gmra.mxu0 %v3108
    %v3127 = vpop.f32.mrf.mxu0
    %v3128 = vadd.f32 0.0, %v3127
    %v3129 = vpop.f32.mrf.mxu0
    %v3130 = vadd.f32 0.0, %v3129
    %3131 = vmatmul.bf16.gmra.mxu0 %v3111
    %v3132 = vpop.f32.mrf.mxu0
    %v3133 = vadd.f32 0.0, %v3132
    %v3134 = vpop.f32.mrf.mxu0
    %v3135 = vadd.f32 0.0, %v3134
    %3136 = vdwg.mxu0
    %3140 = vrot.lane.b32.xlu0 %v3089, 112
    %v3141 = vpop.permute.xlu0 %3140
    %3142 = vrot.lane.b32.xlu0 %v3090, 112
    %v3143 = vpop.permute.xlu0 %3142
    %3144 = vrot.lane.b32.xlu0 %v3091, 112
    %v3145 = vpop.permute.xlu0 %3144
    %v3147 = vsel %vm195, %v3141, 0
    %v3150 = vsel %vm195, %v3143, 0
    %v3153 = vsel %vm195, %v3145, 0
    %3155 = vmatpush.bf16.msra.mxu0 0
    %3156 = vmatpush.bf16.msra.mxu0 0
    %3157 = vmatpush.bf16.msra.mxu0 0
    %3158 = vmatpush.bf16.msra.mxu0 0
    %3159 = vmatpush.bf16.msra.mxu0 0
    %3160 = vmatpush.bf16.msra.mxu0 0
    %3161 = vmatpush.bf16.msra.mxu0 0
    %3162 = vmatpush.bf16.msra.mxu0 %v987
    %3163 = vmatmul.bf16.gmra.mxu0 %v3147
    %v3164 = vpop.f32.mrf.mxu0
    %v3165 = vadd.f32 %v3123, %v3164
    %v3166 = vpop.f32.mrf.mxu0
    %v3167 = vadd.f32 %v3125, %v3166
    %3168 = vmatmul.bf16.gmra.mxu0 %v3150
    %v3169 = vpop.f32.mrf.mxu0
    %v3170 = vadd.f32 %v3128, %v3169
    %v3171 = vpop.f32.mrf.mxu0
    %v3172 = vadd.f32 %v3130, %v3171
    %3173 = vmatmul.bf16.gmra.mxu0 %v3153
    %v3174 = vpop.f32.mrf.mxu0
    %v3175 = vadd.f32 %v3133, %v3174
    %v3176 = vpop.f32.mrf.mxu0
    %v3177 = vadd.f32 %v3135, %v3176
    %3178 = vdwg.mxu0
    %v3179 = vadd.f32 %v3165, %v1023
    %v3180 = vadd.f32 %v3167, %v1023
    %v3181 = vadd.f32 %v3170, %v1023
    %v3182 = vadd.f32 %v3172, %v1023
    %v3183 = vadd.f32 %v3175, %v1023
    %v3184 = vadd.f32 %v3177, %v1023
    %v3185 = vtanh.pop %v3179
    %v3186 = vtanh.pop %v3180
    %v3187 = vtanh.pop %v3181
    %v3188 = vtanh.pop %v3182
    %v3189 = vtanh.pop %v3183
    %v3190 = vtanh.pop %v3184
    %v3191 = vmul.f32 %v3185, %v1038
    %v3192 = vmul.f32 %v3186, %v1038
    %v3193 = vmul.f32 %v3187, %v1038
    %v3194 = vmul.f32 %v3188, %v1038
    %v3195 = vmul.f32 %v3189, %v1038
    %v3196 = vmul.f32 %v3190, %v1038
    %v3197 = vsel %vm152, %v3191, 0.0
    %3198 = vadd.xlane.f32.xlu0 %v3197
    %v3199 = vpop.xlane.xlu0 %3198
    %v3200 = vsel %vm152, %v3192, 0.0
    %3201 = vadd.xlane.f32.xlu0 %v3200
    %v3202 = vpop.xlane.xlu0 %3201
    %v3203 = vsel %vm152, %v3193, 0.0
    %3204 = vadd.xlane.f32.xlu0 %v3203
    %v3205 = vpop.xlane.xlu0 %3204
    %v3206 = vsel %vm152, %v3194, 0.0
    %3207 = vadd.xlane.f32.xlu0 %v3206
    %v3208 = vpop.xlane.xlu0 %3207
    %v3209 = vsel %vm152, %v3195, 0.0
    %3210 = vadd.xlane.f32.xlu0 %v3209
    %v3211 = vpop.xlane.xlu0 %3210
    %v3212 = vsel %vm152, %v3196, 0.0
    %3213 = vadd.xlane.f32.xlu0 %v3212
    %v3214 = vpop.xlane.xlu0 %3213
    %v3215 = vtanh.pop %v3199
    %v3216 = vtanh.pop %v3202
    %v3217 = vtanh.pop %v3205
    %v3218 = vtanh.pop %v3208
    %v3219 = vtanh.pop %v3211
    %v3220 = vtanh.pop %v3214
    %v3221 = vmul.f32 %v3215, 1.442695
    %v3222 = vpow.pop %v3221
    %v3223 = vmul.f32 %v3216, 1.442695
    %v3224 = vpow.pop %v3223
    %v3225 = vmul.f32 %v3217, 1.442695
    %v3226 = vpow.pop %v3225
    %v3227 = vmul.f32 %v3218, 1.442695
    %v3228 = vpow.pop %v3227
    %v3229 = vmul.f32 %v3219, 1.442695
    %v3230 = vpow.pop %v3229
    %v3231 = vmul.f32 %v3220, 1.442695
    %v3232 = vpow.pop %v3231
    %v3233 = vadd.f32 %v3222, %v3224
    %v3234 = vadd.f32 %v3233, %v3226
    %v3235 = vadd.f32 %v3234, %v3228
    %v3236 = vadd.f32 %v3235, %v3230
    %v3237 = vadd.f32 %v3236, %v3232
    %v3238 = vmul.f32 %v3222, %v2421
    %v3239 = vmul.f32 %v3224, %v2542
    %v3240 = vmul.f32 %v3226, %v2663
    %v3241 = vmul.f32 %v3228, %v2784
    %v3242 = vmul.f32 %v3230, %v2905
    %v3243 = vmul.f32 %v3232, %v3026
    %v3244 = vsel %vm1093, %v3238, 0.0
    %v3245 = vsel %vm1093, %v3239, 0.0
    %v3246 = vadd.f32 %v3244, %v3245
    %v3247 = vsel %vm1093, %v3240, 0.0
    %v3248 = vadd.f32 %v3246, %v3247
    %v3249 = vsel %vm1093, %v3241, 0.0
    %v3250 = vadd.f32 %v3248, %v3249
    %v3251 = vsel %vm1093, %v3242, 0.0
    %v3252 = vadd.f32 %v3250, %v3251
    %v3253 = vsel %vm1093, %v3243, 0.0
    %v3254 = vadd.f32 %v3252, %v3253
    %v3255 = vmul.f32 %v3222, %v3088
    %v3256 = vmul.f32 %v3224, %v2967
    %v3257 = vmul.f32 %v3226, %v2846
    %v3258 = vmul.f32 %v3228, %v2725
    %v3259 = vmul.f32 %v3230, %v2604
    %v3260 = vmul.f32 %v3232, %v2483
    %v3261 = vsel %vm1111, %v3255, 0.0
    %v3262 = vsel %vm1111, %v3256, 0.0
    %v3263 = vadd.f32 %v3261, %v3262
    %v3264 = vsel %vm1111, %v3257, 0.0
    %v3265 = vadd.f32 %v3263, %v3264
    %v3266 = vsel %vm1111, %v3258, 0.0
    %v3267 = vadd.f32 %v3265, %v3266
    %v3268 = vsel %vm1111, %v3259, 0.0
    %v3269 = vadd.f32 %v3267, %v3268
    %v3270 = vsel %vm1111, %v3260, 0.0
    %v3271 = vadd.f32 %v3269, %v3270
    %v3272 = vrcp.pop %v3237
    %v3273 = vmul.f32 %v3254, %v3272
    %v3274 = vmul.f32 %v3271, %v3272
    %v3275 = vpack.c.bf16 %v3273, %v3273
    %v3276 = vpack.c.bf16 %v3274, %v3274
    %3278 = vrot.lane.b32.xlu0 %v3276, 64
    %v3279 = vpop.permute.xlu0 %3278
    %v3281 = vsel %vm195, %v3279, 0
    %3283 = vmatpush.bf16.msra.mxu0 0
    %3284 = vmatpush.bf16.msra.mxu0 0
    %3285 = vmatpush.bf16.msra.mxu0 0
    %3286 = vmatpush.bf16.msra.mxu0 0
    %3287 = vmatpush.bf16.msra.mxu0 0
    %3288 = vmatpush.bf16.msra.mxu0 0
    %3289 = vmatpush.bf16.msra.mxu0 0
    %3290 = vmatpush.bf16.msra.mxu0 %v1135
    %3291 = vmatmul.bf16.gmra.mxu0 %v3281
    %v3292 = vpop.f32.mrf.mxu0
    %v3293 = vadd.f32 0.0, %v3292
    %v3294 = vpop.f32.mrf.mxu0
    %3295 = vdwg.mxu0
    %3297 = vrot.lane.b32.xlu0 %v3275, 112
    %v3298 = vpop.permute.xlu0 %3297
    %v3300 = vsel %vm195, %v3298, 0
    %3302 = vmatpush.bf16.msra.mxu0 0
    %3303 = vmatpush.bf16.msra.mxu0 0
    %3304 = vmatpush.bf16.msra.mxu0 0
    %3305 = vmatpush.bf16.msra.mxu0 0
    %3306 = vmatpush.bf16.msra.mxu0 0
    %3307 = vmatpush.bf16.msra.mxu0 0
    %3308 = vmatpush.bf16.msra.mxu0 0
    %3309 = vmatpush.bf16.msra.mxu0 %v1160
    %3310 = vmatmul.bf16.gmra.mxu0 %v3300
    %v3311 = vpop.f32.mrf.mxu0
    %v3312 = vadd.f32 %v3293, %v3311
    %v3313 = vpop.f32.mrf.mxu0
    %3314 = vdwg.mxu0
    %v3315 = vadd.f32 %v3312, %v1179
    %v3316 = vpack.c.bf16 %v2308, %v2308
    %3318 = vrot.lane.b32.xlu0 %v3316, 112
    %v3319 = vpop.permute.xlu0 %3318
    %v3321 = vsel %vm195, %v3319, 0
    %3323 = vmatpush.bf16.msra.mxu0 0
    %3324 = vmatpush.bf16.msra.mxu0 0
    %3325 = vmatpush.bf16.msra.mxu0 0
    %3326 = vmatpush.bf16.msra.mxu0 0
    %3327 = vmatpush.bf16.msra.mxu0 0
    %3328 = vmatpush.bf16.msra.mxu0 0
    %3329 = vmatpush.bf16.msra.mxu0 0
    %3330 = vmatpush.bf16.msra.mxu0 %v1189
    %3331 = vmatmul.bf16.gmra.mxu0 %v3321
    %v3332 = vpop.f32.mrf.mxu0
    %v3333 = vadd.f32 %v1183, %v3332
    %v3334 = vpop.f32.mrf.mxu0
    %3335 = vdwg.mxu0
    %v3336 = vadd.f32 %v3315, %v3333
    %v3337 = vxor.u32 %v3336, 2147483648
    %v3338 = vmul.f32 %v3337, 1.442695
    %v3339 = vpow.pop %v3338
    %v3340 = vadd.f32 %v3339, 1.0
    %v3341 = vrcp.pop %v3340
    %v3342 = vmul.f32 %v3340, %v3341
    %v3343 = vsub.f32 1.0, %v3342
    %v3344 = vmul.f32 %v3341, %v3343
    %v3345 = vadd.f32 %v3341, %v3344
    %vm3346 = vweird.f32 %v3340
    %vm3347 = vweird.f32 %v3341
    %vm3348 = vmor %vm3346, %vm3347
    %v3349 = vsel %vm3348, %v3341, %v3345
    %v3350 = vand.u32 2147483647, %v3340
    %vm3351 = vcmp.eq.f32.partialorder %v3350, 8.507059e+37
    %v3352 = vand.u32 %v3340, 2147483648
    %v3353 = vor.u32 1.1754944e-38, %v3352
    %v3354 = vsel %vm3351, %v3353, %v3349
    %v3355 = vmul.f32 1.0, %v3354
    %3357 = vrot.lane.b32.xlu0 %v3333, 96
    %v3358 = vpop.permute.xlu0 %3357
    %v3360 = vmul.f32 %v3355, %v3358
    %3362 = vrot.lane.b32.xlu0 %v3360, 32
    %v3363 = vpop.permute.xlu0 %3362
    %v3365 = vadd.f32 %v3315, %v3363
    %v3366 = vtanh.pop %v3365
    %v3367 = vsub.f32 1.0, %v3355
    %3369 = vrot.lane.b32.xlu0 %v3366, 112
    %v3370 = vpop.permute.xlu0 %3369
    %v3372 = vmul.f32 %v3367, %v3370
    %v3373 = vmul.f32 %v3355, %v2308
    %v3374 = vadd.f32 %v3372, %v3373
    %v3375 = vld [vmem:[%s0 + $0x48] sm:$0xf]
    %v3376 = vld [vmem:[%s0 + $0x4c] sm:$0xf]
    %v3377 = vld [vmem:[%s0 + $0x50] sm:$0xf]
    %v3378 = vld [vmem:[%s0 + $0x54] sm:$0xf]
    %v3379 = vld [vmem:[%s0 + $0x58] sm:$0xf]
    %v3380 = vld [vmem:[%s0 + $0x5c] sm:$0xf]
    %v3387 = vunpack.c.l.b16 %v3375
    %v3388 = vunpack.c.l.b16 %v3376
    %v3389 = vunpack.c.l.b16 %v3377
    %v3390 = vunpack.c.l.b16 %v3378
    %v3391 = vunpack.c.l.b16 %v3379
    %v3392 = vunpack.c.l.b16 %v3380
    %v3393 = vpack.c.b16 %v3388, %v3387
    %v3394 = vpack.c.b16 %v3390, %v3389
    %v3395 = vpack.c.b16 %v3392, %v3391
    %v3397 = vsel %vm152, %v3393, 0
    %v3400 = vsel %vm152, %v3394, 0
    %v3403 = vsel %vm152, %v3395, 0
    %3405 = vmatpush.bf16.msra.mxu0 0
    %3406 = vmatpush.bf16.msra.mxu0 0
    %3407 = vmatpush.bf16.msra.mxu0 0
    %3408 = vmatpush.bf16.msra.mxu0 0
    %3409 = vmatpush.bf16.msra.mxu0 0
    %3410 = vmatpush.bf16.msra.mxu0 0
    %3411 = vmatpush.bf16.msra.mxu0 %v149
    %3412 = vmatpush.bf16.msra.mxu0 %v148
    %3413 = vmatmul.bf16.gmra.mxu0 %v3397
    %v3414 = vpop.f32.mrf.mxu0
    %v3415 = vadd.f32 %v123, %v3414
    %v3416 = vpop.f32.mrf.mxu0
    %v3417 = vadd.f32 %v123, %v3416
    %3418 = vmatmul.bf16.gmra.mxu0 %v3400
    %v3419 = vpop.f32.mrf.mxu0
    %v3420 = vadd.f32 %v123, %v3419
    %v3421 = vpop.f32.mrf.mxu0
    %v3422 = vadd.f32 %v123, %v3421
    %3423 = vmatmul.bf16.gmra.mxu0 %v3403
    %v3424 = vpop.f32.mrf.mxu0
    %v3425 = vadd.f32 %v123, %v3424
    %v3426 = vpop.f32.mrf.mxu0
    %v3427 = vadd.f32 %v123, %v3426
    %3428 = vdwg.mxu0
    %v3429 = vpack.c.bf16 %v3026, %v3026
    %3431 = vrot.lane.b32.xlu0 %v3429, 112
    %v3432 = vpop.permute.xlu0 %3431
    %v3434 = vsel %vm195, %v3432, 0
    %3436 = vmatpush.bf16.msra.mxu0 0
    %3437 = vmatpush.bf16.msra.mxu0 0
    %3438 = vmatpush.bf16.msra.mxu0 0
    %3439 = vmatpush.bf16.msra.mxu0 0
    %3440 = vmatpush.bf16.msra.mxu0 0
    %3441 = vmatpush.bf16.msra.mxu0 0
    %3442 = vmatpush.bf16.msra.mxu0 0
    %3443 = vmatpush.bf16.msra.mxu0 %v193
    %3444 = vmatmul.bf16.gmra.mxu0 %v3434
    %v3445 = vpop.f32.mrf.mxu0
    %v3446 = vadd.f32 %v187, %v3445
    %v3447 = vpop.f32.mrf.mxu0
    %3448 = vdwg.mxu0
    %v3449 = vadd.f32 %v3415, %v3446
    %v3450 = vxor.u32 %v3449, 2147483648
    %v3451 = vmul.f32 %v3450, 1.442695
    %v3452 = vpow.pop %v3451
    %v3453 = vadd.f32 %v3452, 1.0
    %v3454 = vrcp.pop %v3453
    %v3455 = vmul.f32 %v3453, %v3454
    %v3456 = vsub.f32 1.0, %v3455
    %v3457 = vmul.f32 %v3454, %v3456
    %v3458 = vadd.f32 %v3454, %v3457
    %vm3459 = vweird.f32 %v3453
    %vm3460 = vweird.f32 %v3454
    %vm3461 = vmor %vm3459, %vm3460
    %v3462 = vsel %vm3461, %v3454, %v3458
    %v3463 = vand.u32 2147483647, %v3453
    %vm3464 = vcmp.eq.f32.partialorder %v3463, 8.507059e+37
    %v3465 = vand.u32 %v3453, 2147483648
    %v3466 = vor.u32 1.1754944e-38, %v3465
    %v3467 = vsel %vm3464, %v3466, %v3462
    %v3468 = vmul.f32 1.0, %v3467
    %3470 = vrot.lane.b32.xlu0 %v3446, 96
    %v3471 = vpop.permute.xlu0 %3470
    %v3473 = vmul.f32 %v3468, %v3471
    %3475 = vrot.lane.b32.xlu0 %v3473, 32
    %v3476 = vpop.permute.xlu0 %3475
    %v3478 = vadd.f32 %v3415, %v3476
    %v3479 = vtanh.pop %v3478
    %v3480 = vsub.f32 1.0, %v3468
    %3482 = vrot.lane.b32.xlu0 %v3479, 112
    %v3483 = vpop.permute.xlu0 %3482
    %v3485 = vmul.f32 %v3480, %v3483
    %v3486 = vmul.f32 %v3468, %v3026
    %v3487 = vadd.f32 %v3485, %v3486
    %v3488 = vpack.c.bf16 %v3088, %v3088
    %3490 = vrot.lane.b32.xlu0 %v3488, 64
    %v3491 = vpop.permute.xlu0 %3490
    %v3493 = vsel %vm195, %v3491, 0
    %3495 = vmatpush.bf16.msra.mxu0 0
    %3496 = vmatpush.bf16.msra.mxu0 0
    %3497 = vmatpush.bf16.msra.mxu0 0
    %3498 = vmatpush.bf16.msra.mxu0 0
    %3499 = vmatpush.bf16.msra.mxu0 0
    %3500 = vmatpush.bf16.msra.mxu0 0
    %3501 = vmatpush.bf16.msra.mxu0 0
    %3502 = vmatpush.bf16.msra.mxu0 %v258
    %3503 = vmatmul.bf16.gmra.mxu0 %v3493
    %v3504 = vpop.f32.mrf.mxu0
    %v3505 = vadd.f32 %v252, %v3504
    %v3506 = vpop.f32.mrf.mxu0
    %3507 = vdwg.mxu0
    %3509 = vrot.lane.b32.xlu0 %v3505, 48
    %v3510 = vpop.permute.xlu0 %3509
    %v3512 = vadd.f32 %v3427, %v3510
    %v3513 = vxor.u32 %v3512, 2147483648
    %v3514 = vmul.f32 %v3513, 1.442695
    %v3515 = vpow.pop %v3514
    %v3516 = vadd.f32 %v3515, 1.0
    %v3517 = vrcp.pop %v3516
    %v3518 = vmul.f32 %v3516, %v3517
    %v3519 = vsub.f32 1.0, %v3518
    %v3520 = vmul.f32 %v3517, %v3519
    %v3521 = vadd.f32 %v3517, %v3520
    %vm3522 = vweird.f32 %v3516
    %vm3523 = vweird.f32 %v3517
    %vm3524 = vmor %vm3522, %vm3523
    %v3525 = vsel %vm3524, %v3517, %v3521
    %v3526 = vand.u32 2147483647, %v3516
    %vm3527 = vcmp.eq.f32.partialorder %v3526, 8.507059e+37
    %v3528 = vand.u32 %v3516, 2147483648
    %v3529 = vor.u32 1.1754944e-38, %v3528
    %v3530 = vsel %vm3527, %v3529, %v3525
    %v3531 = vmul.f32 1.0, %v3530
    %3532 = vrot.lane.b32.xlu0 %v3505, 16
    %v3533 = vpop.permute.xlu0 %3532
    %v3535 = vmul.f32 %v3531, %v3533
    %3537 = vrot.lane.b32.xlu0 %v3535, 32
    %v3538 = vpop.permute.xlu0 %3537
    %v3540 = vadd.f32 %v3427, %v3538
    %v3541 = vtanh.pop %v3540
    %v3542 = vsub.f32 1.0, %v3531
    %3544 = vrot.lane.b32.xlu0 %v3541, 112
    %v3545 = vpop.permute.xlu0 %3544
    %v3547 = vmul.f32 %v3542, %v3545
    %v3548 = vmul.f32 %v3531, %v3088
    %v3549 = vadd.f32 %v3547, %v3548
    %v3550 = vpack.c.bf16 %v3487, %v3487
    %3552 = vrot.lane.b32.xlu0 %v3550, 112
    %v3553 = vpop.permute.xlu0 %3552
    %v3555 = vsel %vm195, %v3553, 0
    %3557 = vmatpush.bf16.msra.mxu0 0
    %3558 = vmatpush.bf16.msra.mxu0 0
    %3559 = vmatpush.bf16.msra.mxu0 0
    %3560 = vmatpush.bf16.msra.mxu0 0
    %3561 = vmatpush.bf16.msra.mxu0 0
    %3562 = vmatpush.bf16.msra.mxu0 0
    %3563 = vmatpush.bf16.msra.mxu0 0
    %3564 = vmatpush.bf16.msra.mxu0 %v193
    %3565 = vmatmul.bf16.gmra.mxu0 %v3555
    %v3566 = vpop.f32.mrf.mxu0
    %v3567 = vadd.f32 %v187, %v3566
    %v3568 = vpop.f32.mrf.mxu0
    %3569 = vdwg.mxu0
    %v3570 = vadd.f32 %v3417, %v3567
    %v3571 = vxor.u32 %v3570, 2147483648
    %v3572 = vmul.f32 %v3571, 1.442695
    %v3573 = vpow.pop %v3572
    %v3574 = vadd.f32 %v3573, 1.0
    %v3575 = vrcp.pop %v3574
    %v3576 = vmul.f32 %v3574, %v3575
    %v3577 = vsub.f32 1.0, %v3576
    %v3578 = vmul.f32 %v3575, %v3577
    %v3579 = vadd.f32 %v3575, %v3578
    %vm3580 = vweird.f32 %v3574
    %vm3581 = vweird.f32 %v3575
    %vm3582 = vmor %vm3580, %vm3581
    %v3583 = vsel %vm3582, %v3575, %v3579
    %v3584 = vand.u32 2147483647, %v3574
    %vm3585 = vcmp.eq.f32.partialorder %v3584, 8.507059e+37
    %v3586 = vand.u32 %v3574, 2147483648
    %v3587 = vor.u32 1.1754944e-38, %v3586
    %v3588 = vsel %vm3585, %v3587, %v3583
    %v3589 = vmul.f32 1.0, %v3588
    %3591 = vrot.lane.b32.xlu0 %v3567, 96
    %v3592 = vpop.permute.xlu0 %3591
    %v3594 = vmul.f32 %v3589, %v3592
    %3596 = vrot.lane.b32.xlu0 %v3594, 32
    %v3597 = vpop.permute.xlu0 %3596
    %v3599 = vadd.f32 %v3417, %v3597
    %v3600 = vtanh.pop %v3599
    %v3601 = vsub.f32 1.0, %v3589
    %3603 = vrot.lane.b32.xlu0 %v3600, 112
    %v3604 = vpop.permute.xlu0 %3603
    %v3606 = vmul.f32 %v3601, %v3604
    %v3607 = vmul.f32 %v3589, %v3487
    %v3608 = vadd.f32 %v3606, %v3607
    %v3609 = vpack.c.bf16 %v3549, %v3549
    %3611 = vrot.lane.b32.xlu0 %v3609, 64
    %v3612 = vpop.permute.xlu0 %3611
    %v3614 = vsel %vm195, %v3612, 0
    %3616 = vmatpush.bf16.msra.mxu0 0
    %3617 = vmatpush.bf16.msra.mxu0 0
    %3618 = vmatpush.bf16.msra.mxu0 0
    %3619 = vmatpush.bf16.msra.mxu0 0
    %3620 = vmatpush.bf16.msra.mxu0 0
    %3621 = vmatpush.bf16.msra.mxu0 0
    %3622 = vmatpush.bf16.msra.mxu0 0
    %3623 = vmatpush.bf16.msra.mxu0 %v258
    %3624 = vmatmul.bf16.gmra.mxu0 %v3614
    %v3625 = vpop.f32.mrf.mxu0
    %v3626 = vadd.f32 %v252, %v3625
    %v3627 = vpop.f32.mrf.mxu0
    %3628 = vdwg.mxu0
    %3630 = vrot.lane.b32.xlu0 %v3626, 48
    %v3631 = vpop.permute.xlu0 %3630
    %v3633 = vadd.f32 %v3425, %v3631
    %v3634 = vxor.u32 %v3633, 2147483648
    %v3635 = vmul.f32 %v3634, 1.442695
    %v3636 = vpow.pop %v3635
    %v3637 = vadd.f32 %v3636, 1.0
    %v3638 = vrcp.pop %v3637
    %v3639 = vmul.f32 %v3637, %v3638
    %v3640 = vsub.f32 1.0, %v3639
    %v3641 = vmul.f32 %v3638, %v3640
    %v3642 = vadd.f32 %v3638, %v3641
    %vm3643 = vweird.f32 %v3637
    %vm3644 = vweird.f32 %v3638
    %vm3645 = vmor %vm3643, %vm3644
    %v3646 = vsel %vm3645, %v3638, %v3642
    %v3647 = vand.u32 2147483647, %v3637
    %vm3648 = vcmp.eq.f32.partialorder %v3647, 8.507059e+37
    %v3649 = vand.u32 %v3637, 2147483648
    %v3650 = vor.u32 1.1754944e-38, %v3649
    %v3651 = vsel %vm3648, %v3650, %v3646
    %v3652 = vmul.f32 1.0, %v3651
    %3653 = vrot.lane.b32.xlu0 %v3626, 16
    %v3654 = vpop.permute.xlu0 %3653
    %v3656 = vmul.f32 %v3652, %v3654
    %3658 = vrot.lane.b32.xlu0 %v3656, 32
    %v3659 = vpop.permute.xlu0 %3658
    %v3661 = vadd.f32 %v3425, %v3659
    %v3662 = vtanh.pop %v3661
    %v3663 = vsub.f32 1.0, %v3652
    %3665 = vrot.lane.b32.xlu0 %v3662, 112
    %v3666 = vpop.permute.xlu0 %3665
    %v3668 = vmul.f32 %v3663, %v3666
    %v3669 = vmul.f32 %v3652, %v3549
    %v3670 = vadd.f32 %v3668, %v3669
    %v3671 = vpack.c.bf16 %v3608, %v3608
    %3673 = vrot.lane.b32.xlu0 %v3671, 112
    %v3674 = vpop.permute.xlu0 %3673
    %v3676 = vsel %vm195, %v3674, 0
    %3678 = vmatpush.bf16.msra.mxu0 0
    %3679 = vmatpush.bf16.msra.mxu0 0
    %3680 = vmatpush.bf16.msra.mxu0 0
    %3681 = vmatpush.bf16.msra.mxu0 0
    %3682 = vmatpush.bf16.msra.mxu0 0
    %3683 = vmatpush.bf16.msra.mxu0 0
    %3684 = vmatpush.bf16.msra.mxu0 0
    %3685 = vmatpush.bf16.msra.mxu0 %v193
    %3686 = vmatmul.bf16.gmra.mxu0 %v3676
    %v3687 = vpop.f32.mrf.mxu0
    %v3688 = vadd.f32 %v187, %v3687
    %v3689 = vpop.f32.mrf.mxu0
    %3690 = vdwg.mxu0
    %v3691 = vadd.f32 %v3420, %v3688
    %v3692 = vxor.u32 %v3691, 2147483648
    %v3693 = vmul.f32 %v3692, 1.442695
    %v3694 = vpow.pop %v3693
    %v3695 = vadd.f32 %v3694, 1.0
    %v3696 = vrcp.pop %v3695
    %v3697 = vmul.f32 %v3695, %v3696
    %v3698 = vsub.f32 1.0, %v3697
    %v3699 = vmul.f32 %v3696, %v3698
    %v3700 = vadd.f32 %v3696, %v3699
    %vm3701 = vweird.f32 %v3695
    %vm3702 = vweird.f32 %v3696
    %vm3703 = vmor %vm3701, %vm3702
    %v3704 = vsel %vm3703, %v3696, %v3700
    %v3705 = vand.u32 2147483647, %v3695
    %vm3706 = vcmp.eq.f32.partialorder %v3705, 8.507059e+37
    %v3707 = vand.u32 %v3695, 2147483648
    %v3708 = vor.u32 1.1754944e-38, %v3707
    %v3709 = vsel %vm3706, %v3708, %v3704
    %v3710 = vmul.f32 1.0, %v3709
    %3712 = vrot.lane.b32.xlu0 %v3688, 96
    %v3713 = vpop.permute.xlu0 %3712
    %v3715 = vmul.f32 %v3710, %v3713
    %3717 = vrot.lane.b32.xlu0 %v3715, 32
    %v3718 = vpop.permute.xlu0 %3717
    %v3720 = vadd.f32 %v3420, %v3718
    %v3721 = vtanh.pop %v3720
    %v3722 = vsub.f32 1.0, %v3710
    %3724 = vrot.lane.b32.xlu0 %v3721, 112
    %v3725 = vpop.permute.xlu0 %3724
    %v3727 = vmul.f32 %v3722, %v3725
    %v3728 = vmul.f32 %v3710, %v3608
    %v3729 = vadd.f32 %v3727, %v3728
    %v3730 = vpack.c.bf16 %v3670, %v3670
    %3732 = vrot.lane.b32.xlu0 %v3730, 64
    %v3733 = vpop.permute.xlu0 %3732
    %v3735 = vsel %vm195, %v3733, 0
    %3737 = vmatpush.bf16.msra.mxu0 0
    %3738 = vmatpush.bf16.msra.mxu0 0
    %3739 = vmatpush.bf16.msra.mxu0 0
    %3740 = vmatpush.bf16.msra.mxu0 0
    %3741 = vmatpush.bf16.msra.mxu0 0
    %3742 = vmatpush.bf16.msra.mxu0 0
    %3743 = vmatpush.bf16.msra.mxu0 0
    %3744 = vmatpush.bf16.msra.mxu0 %v258
    %3745 = vmatmul.bf16.gmra.mxu0 %v3735
    %v3746 = vpop.f32.mrf.mxu0
    %v3747 = vadd.f32 %v252, %v3746
    %v3748 = vpop.f32.mrf.mxu0
    %3749 = vdwg.mxu0
    %3751 = vrot.lane.b32.xlu0 %v3747, 48
    %v3752 = vpop.permute.xlu0 %3751
    %v3754 = vadd.f32 %v3422, %v3752
    %v3755 = vxor.u32 %v3754, 2147483648
    %v3756 = vmul.f32 %v3755, 1.442695
    %v3757 = vpow.pop %v3756
    %v3758 = vadd.f32 %v3757, 1.0
    %v3759 = vrcp.pop %v3758
    %v3760 = vmul.f32 %v3758, %v3759
    %v3761 = vsub.f32 1.0, %v3760
    %v3762 = vmul.f32 %v3759, %v3761
    %v3763 = vadd.f32 %v3759, %v3762
    %vm3764 = vweird.f32 %v3758
    %vm3765 = vweird.f32 %v3759
    %vm3766 = vmor %vm3764, %vm3765
    %v3767 = vsel %vm3766, %v3759, %v3763
    %v3768 = vand.u32 2147483647, %v3758
    %vm3769 = vcmp.eq.f32.partialorder %v3768, 8.507059e+37
    %v3770 = vand.u32 %v3758, 2147483648
    %v3771 = vor.u32 1.1754944e-38, %v3770
    %v3772 = vsel %vm3769, %v3771, %v3767
    %v3773 = vmul.f32 1.0, %v3772
    %3774 = vrot.lane.b32.xlu0 %v3747, 16
    %v3775 = vpop.permute.xlu0 %3774
    %v3777 = vmul.f32 %v3773, %v3775
    %3779 = vrot.lane.b32.xlu0 %v3777, 32
    %v3780 = vpop.permute.xlu0 %3779
    %v3782 = vadd.f32 %v3422, %v3780
    %v3783 = vtanh.pop %v3782
    %v3784 = vsub.f32 1.0, %v3773
    %3786 = vrot.lane.b32.xlu0 %v3783, 112
    %v3787 = vpop.permute.xlu0 %3786
    %v3789 = vmul.f32 %v3784, %v3787
    %v3790 = vmul.f32 %v3773, %v3670
    %v3791 = vadd.f32 %v3789, %v3790
    %v3792 = vpack.c.bf16 %v3729, %v3729
    %3794 = vrot.lane.b32.xlu0 %v3792, 112
    %v3795 = vpop.permute.xlu0 %3794
    %v3797 = vsel %vm195, %v3795, 0
    %3799 = vmatpush.bf16.msra.mxu0 0
    %3800 = vmatpush.bf16.msra.mxu0 0
    %3801 = vmatpush.bf16.msra.mxu0 0
    %3802 = vmatpush.bf16.msra.mxu0 0
    %3803 = vmatpush.bf16.msra.mxu0 0
    %3804 = vmatpush.bf16.msra.mxu0 0
    %3805 = vmatpush.bf16.msra.mxu0 0
    %3806 = vmatpush.bf16.msra.mxu0 %v193
    %3807 = vmatmul.bf16.gmra.mxu0 %v3797
    %v3808 = vpop.f32.mrf.mxu0
    %v3809 = vadd.f32 %v187, %v3808
    %v3810 = vpop.f32.mrf.mxu0
    %3811 = vdwg.mxu0
    %v3812 = vadd.f32 %v3422, %v3809
    %v3813 = vxor.u32 %v3812, 2147483648
    %v3814 = vmul.f32 %v3813, 1.442695
    %v3815 = vpow.pop %v3814
    %v3816 = vadd.f32 %v3815, 1.0
    %v3817 = vrcp.pop %v3816
    %v3818 = vmul.f32 %v3816, %v3817
    %v3819 = vsub.f32 1.0, %v3818
    %v3820 = vmul.f32 %v3817, %v3819
    %v3821 = vadd.f32 %v3817, %v3820
    %vm3822 = vweird.f32 %v3816
    %vm3823 = vweird.f32 %v3817
    %vm3824 = vmor %vm3822, %vm3823
    %v3825 = vsel %vm3824, %v3817, %v3821
    %v3826 = vand.u32 2147483647, %v3816
    %vm3827 = vcmp.eq.f32.partialorder %v3826, 8.507059e+37
    %v3828 = vand.u32 %v3816, 2147483648
    %v3829 = vor.u32 1.1754944e-38, %v3828
    %v3830 = vsel %vm3827, %v3829, %v3825
    %v3831 = vmul.f32 1.0, %v3830
    %3833 = vrot.lane.b32.xlu0 %v3809, 96
    %v3834 = vpop.permute.xlu0 %3833
    %v3836 = vmul.f32 %v3831, %v3834
    %3838 = vrot.lane.b32.xlu0 %v3836, 32
    %v3839 = vpop.permute.xlu0 %3838
    %v3841 = vadd.f32 %v3422, %v3839
    %v3842 = vtanh.pop %v3841
    %v3843 = vsub.f32 1.0, %v3831
    %3845 = vrot.lane.b32.xlu0 %v3842, 112
    %v3846 = vpop.permute.xlu0 %3845
    %v3848 = vmul.f32 %v3843, %v3846
    %v3849 = vmul.f32 %v3831, %v3729
    %v3850 = vadd.f32 %v3848, %v3849
    %v3851 = vpack.c.bf16 %v3791, %v3791
    %3853 = vrot.lane.b32.xlu0 %v3851, 64
    %v3854 = vpop.permute.xlu0 %3853
    %v3856 = vsel %vm195, %v3854, 0
    %3858 = vmatpush.bf16.msra.mxu0 0
    %3859 = vmatpush.bf16.msra.mxu0 0
    %3860 = vmatpush.bf16.msra.mxu0 0
    %3861 = vmatpush.bf16.msra.mxu0 0
    %3862 = vmatpush.bf16.msra.mxu0 0
    %3863 = vmatpush.bf16.msra.mxu0 0
    %3864 = vmatpush.bf16.msra.mxu0 0
    %3865 = vmatpush.bf16.msra.mxu0 %v258
    %3866 = vmatmul.bf16.gmra.mxu0 %v3856
    %v3867 = vpop.f32.mrf.mxu0
    %v3868 = vadd.f32 %v252, %v3867
    %v3869 = vpop.f32.mrf.mxu0
    %3870 = vdwg.mxu0
    %3872 = vrot.lane.b32.xlu0 %v3868, 48
    %v3873 = vpop.permute.xlu0 %3872
    %v3875 = vadd.f32 %v3420, %v3873
    %v3876 = vxor.u32 %v3875, 2147483648
    %v3877 = vmul.f32 %v3876, 1.442695
    %v3878 = vpow.pop %v3877
    %v3879 = vadd.f32 %v3878, 1.0
    %v3880 = vrcp.pop %v3879
    %v3881 = vmul.f32 %v3879, %v3880
    %v3882 = vsub.f32 1.0, %v3881
    %v3883 = vmul.f32 %v3880, %v3882
    %v3884 = vadd.f32 %v3880, %v3883
    %vm3885 = vweird.f32 %v3879
    %vm3886 = vweird.f32 %v3880
    %vm3887 = vmor %vm3885, %vm3886
    %v3888 = vsel %vm3887, %v3880, %v3884
    %v3889 = vand.u32 2147483647, %v3879
    %vm3890 = vcmp.eq.f32.partialorder %v3889, 8.507059e+37
    %v3891 = vand.u32 %v3879, 2147483648
    %v3892 = vor.u32 1.1754944e-38, %v3891
    %v3893 = vsel %vm3890, %v3892, %v3888
    %v3894 = vmul.f32 1.0, %v3893
    %3895 = vrot.lane.b32.xlu0 %v3868, 16
    %v3896 = vpop.permute.xlu0 %3895
    %v3898 = vmul.f32 %v3894, %v3896
    %3900 = vrot.lane.b32.xlu0 %v3898, 32
    %v3901 = vpop.permute.xlu0 %3900
    %v3903 = vadd.f32 %v3420, %v3901
    %v3904 = vtanh.pop %v3903
    %v3905 = vsub.f32 1.0, %v3894
    %3907 = vrot.lane.b32.xlu0 %v3904, 112
    %v3908 = vpop.permute.xlu0 %3907
    %v3910 = vmul.f32 %v3905, %v3908
    %v3911 = vmul.f32 %v3894, %v3791
    %v3912 = vadd.f32 %v3910, %v3911
    %v3913 = vpack.c.bf16 %v3850, %v3850
    %3915 = vrot.lane.b32.xlu0 %v3913, 112
    %v3916 = vpop.permute.xlu0 %3915
    %v3918 = vsel %vm195, %v3916, 0
    %3920 = vmatpush.bf16.msra.mxu0 0
    %3921 = vmatpush.bf16.msra.mxu0 0
    %3922 = vmatpush.bf16.msra.mxu0 0
    %3923 = vmatpush.bf16.msra.mxu0 0
    %3924 = vmatpush.bf16.msra.mxu0 0
    %3925 = vmatpush.bf16.msra.mxu0 0
    %3926 = vmatpush.bf16.msra.mxu0 0
    %3927 = vmatpush.bf16.msra.mxu0 %v193
    %3928 = vmatmul.bf16.gmra.mxu0 %v3918
    %v3929 = vpop.f32.mrf.mxu0
    %v3930 = vadd.f32 %v187, %v3929
    %v3931 = vpop.f32.mrf.mxu0
    %3932 = vdwg.mxu0
    %v3933 = vadd.f32 %v3425, %v3930
    %v3934 = vxor.u32 %v3933, 2147483648
    %v3935 = vmul.f32 %v3934, 1.442695
    %v3936 = vpow.pop %v3935
    %v3937 = vadd.f32 %v3936, 1.0
    %v3938 = vrcp.pop %v3937
    %v3939 = vmul.f32 %v3937, %v3938
    %v3940 = vsub.f32 1.0, %v3939
    %v3941 = vmul.f32 %v3938, %v3940
    %v3942 = vadd.f32 %v3938, %v3941
    %vm3943 = vweird.f32 %v3937
    %vm3944 = vweird.f32 %v3938
    %vm3945 = vmor %vm3943, %vm3944
    %v3946 = vsel %vm3945, %v3938, %v3942
    %v3947 = vand.u32 2147483647, %v3937
    %vm3948 = vcmp.eq.f32.partialorder %v3947, 8.507059e+37
    %v3949 = vand.u32 %v3937, 2147483648
    %v3950 = vor.u32 1.1754944e-38, %v3949
    %v3951 = vsel %vm3948, %v3950, %v3946
    %v3952 = vmul.f32 1.0, %v3951
    %3954 = vrot.lane.b32.xlu0 %v3930, 96
    %v3955 = vpop.permute.xlu0 %3954
    %v3957 = vmul.f32 %v3952, %v3955
    %3959 = vrot.lane.b32.xlu0 %v3957, 32
    %v3960 = vpop.permute.xlu0 %3959
    %v3962 = vadd.f32 %v3425, %v3960
    %v3963 = vtanh.pop %v3962
    %v3964 = vsub.f32 1.0, %v3952
    %3966 = vrot.lane.b32.xlu0 %v3963, 112
    %v3967 = vpop.permute.xlu0 %3966
    %v3969 = vmul.f32 %v3964, %v3967
    %v3970 = vmul.f32 %v3952, %v3850
    %v3971 = vadd.f32 %v3969, %v3970
    %v3972 = vpack.c.bf16 %v3912, %v3912
    %3974 = vrot.lane.b32.xlu0 %v3972, 64
    %v3975 = vpop.permute.xlu0 %3974
    %v3977 = vsel %vm195, %v3975, 0
    %3979 = vmatpush.bf16.msra.mxu0 0
    %3980 = vmatpush.bf16.msra.mxu0 0
    %3981 = vmatpush.bf16.msra.mxu0 0
    %3982 = vmatpush.bf16.msra.mxu0 0
    %3983 = vmatpush.bf16.msra.mxu0 0
    %3984 = vmatpush.bf16.msra.mxu0 0
    %3985 = vmatpush.bf16.msra.mxu0 0
    %3986 = vmatpush.bf16.msra.mxu0 %v258
    %3987 = vmatmul.bf16.gmra.mxu0 %v3977
    %v3988 = vpop.f32.mrf.mxu0
    %v3989 = vadd.f32 %v252, %v3988
    %v3990 = vpop.f32.mrf.mxu0
    %3991 = vdwg.mxu0
    %3993 = vrot.lane.b32.xlu0 %v3989, 48
    %v3994 = vpop.permute.xlu0 %3993
    %v3996 = vadd.f32 %v3417, %v3994
    %v3997 = vxor.u32 %v3996, 2147483648
    %v3998 = vmul.f32 %v3997, 1.442695
    %v3999 = vpow.pop %v3998
    %v4000 = vadd.f32 %v3999, 1.0
    %v4001 = vrcp.pop %v4000
    %v4002 = vmul.f32 %v4000, %v4001
    %v4003 = vsub.f32 1.0, %v4002
    %v4004 = vmul.f32 %v4001, %v4003
    %v4005 = vadd.f32 %v4001, %v4004
    %vm4006 = vweird.f32 %v4000
    %vm4007 = vweird.f32 %v4001
    %vm4008 = vmor %vm4006, %vm4007
    %v4009 = vsel %vm4008, %v4001, %v4005
    %v4010 = vand.u32 2147483647, %v4000
    %vm4011 = vcmp.eq.f32.partialorder %v4010, 8.507059e+37
    %v4012 = vand.u32 %v4000, 2147483648
    %v4013 = vor.u32 1.1754944e-38, %v4012
    %v4014 = vsel %vm4011, %v4013, %v4009
    %v4015 = vmul.f32 1.0, %v4014
    %4016 = vrot.lane.b32.xlu0 %v3989, 16
    %v4017 = vpop.permute.xlu0 %4016
    %v4019 = vmul.f32 %v4015, %v4017
    %4021 = vrot.lane.b32.xlu0 %v4019, 32
    %v4022 = vpop.permute.xlu0 %4021
    %v4024 = vadd.f32 %v3417, %v4022
    %v4025 = vtanh.pop %v4024
    %v4026 = vsub.f32 1.0, %v4015
    %4028 = vrot.lane.b32.xlu0 %v4025, 112
    %v4029 = vpop.permute.xlu0 %4028
    %v4031 = vmul.f32 %v4026, %v4029
    %v4032 = vmul.f32 %v4015, %v3912
    %v4033 = vadd.f32 %v4031, %v4032
    %v4034 = vpack.c.bf16 %v3971, %v3971
    %4036 = vrot.lane.b32.xlu0 %v4034, 112
    %v4037 = vpop.permute.xlu0 %4036
    %v4039 = vsel %vm195, %v4037, 0
    %4041 = vmatpush.bf16.msra.mxu0 0
    %4042 = vmatpush.bf16.msra.mxu0 0
    %4043 = vmatpush.bf16.msra.mxu0 0
    %4044 = vmatpush.bf16.msra.mxu0 0
    %4045 = vmatpush.bf16.msra.mxu0 0
    %4046 = vmatpush.bf16.msra.mxu0 0
    %4047 = vmatpush.bf16.msra.mxu0 0
    %4048 = vmatpush.bf16.msra.mxu0 %v193
    %4049 = vmatmul.bf16.gmra.mxu0 %v4039
    %v4050 = vpop.f32.mrf.mxu0
    %v4051 = vadd.f32 %v187, %v4050
    %v4052 = vpop.f32.mrf.mxu0
    %4053 = vdwg.mxu0
    %v4054 = vadd.f32 %v3427, %v4051
    %v4055 = vxor.u32 %v4054, 2147483648
    %v4056 = vmul.f32 %v4055, 1.442695
    %v4057 = vpow.pop %v4056
    %v4058 = vadd.f32 %v4057, 1.0
    %v4059 = vrcp.pop %v4058
    %v4060 = vmul.f32 %v4058, %v4059
    %v4061 = vsub.f32 1.0, %v4060
    %v4062 = vmul.f32 %v4059, %v4061
    %v4063 = vadd.f32 %v4059, %v4062
    %vm4064 = vweird.f32 %v4058
    %vm4065 = vweird.f32 %v4059
    %vm4066 = vmor %vm4064, %vm4065
    %v4067 = vsel %vm4066, %v4059, %v4063
    %v4068 = vand.u32 2147483647, %v4058
    %vm4069 = vcmp.eq.f32.partialorder %v4068, 8.507059e+37
    %v4070 = vand.u32 %v4058, 2147483648
    %v4071 = vor.u32 1.1754944e-38, %v4070
    %v4072 = vsel %vm4069, %v4071, %v4067
    %v4073 = vmul.f32 1.0, %v4072
    %4075 = vrot.lane.b32.xlu0 %v4051, 96
    %v4076 = vpop.permute.xlu0 %4075
    %v4078 = vmul.f32 %v4073, %v4076
    %4080 = vrot.lane.b32.xlu0 %v4078, 32
    %v4081 = vpop.permute.xlu0 %4080
    %v4083 = vadd.f32 %v3427, %v4081
    %v4084 = vtanh.pop %v4083
    %v4085 = vsub.f32 1.0, %v4073
    %4087 = vrot.lane.b32.xlu0 %v4084, 112
    %v4088 = vpop.permute.xlu0 %4087
    %v4090 = vmul.f32 %v4085, %v4088
    %v4091 = vmul.f32 %v4073, %v3971
    %v4092 = vadd.f32 %v4090, %v4091
    %v4093 = vpack.c.bf16 %v4033, %v4033
    %4095 = vrot.lane.b32.xlu0 %v4093, 64
    %v4096 = vpop.permute.xlu0 %4095
    %v4098 = vsel %vm195, %v4096, 0
    %4100 = vmatpush.bf16.msra.mxu0 0
    %4101 = vmatpush.bf16.msra.mxu0 0
    %4102 = vmatpush.bf16.msra.mxu0 0
    %4103 = vmatpush.bf16.msra.mxu0 0
    %4104 = vmatpush.bf16.msra.mxu0 0
    %4105 = vmatpush.bf16.msra.mxu0 0
    %4106 = vmatpush.bf16.msra.mxu0 0
    %4107 = vmatpush.bf16.msra.mxu0 %v258
    %4108 = vmatmul.bf16.gmra.mxu0 %v4098
    %v4109 = vpop.f32.mrf.mxu0
    %v4110 = vadd.f32 %v252, %v4109
    %v4111 = vpop.f32.mrf.mxu0
    %4112 = vdwg.mxu0
    %4114 = vrot.lane.b32.xlu0 %v4110, 48
    %v4115 = vpop.permute.xlu0 %4114
    %v4117 = vadd.f32 %v3415, %v4115
    %v4118 = vxor.u32 %v4117, 2147483648
    %v4119 = vmul.f32 %v4118, 1.442695
    %v4120 = vpow.pop %v4119
    %v4121 = vadd.f32 %v4120, 1.0
    %v4122 = vrcp.pop %v4121
    %v4123 = vmul.f32 %v4121, %v4122
    %v4124 = vsub.f32 1.0, %v4123
    %v4125 = vmul.f32 %v4122, %v4124
    %v4126 = vadd.f32 %v4122, %v4125
    %vm4127 = vweird.f32 %v4121
    %vm4128 = vweird.f32 %v4122
    %vm4129 = vmor %vm4127, %vm4128
    %v4130 = vsel %vm4129, %v4122, %v4126
    %v4131 = vand.u32 2147483647, %v4121
    %vm4132 = vcmp.eq.f32.partialorder %v4131, 8.507059e+37
    %v4133 = vand.u32 %v4121, 2147483648
    %v4134 = vor.u32 1.1754944e-38, %v4133
    %v4135 = vsel %vm4132, %v4134, %v4130
    %v4136 = vmul.f32 1.0, %v4135
    %4137 = vrot.lane.b32.xlu0 %v4110, 16
    %v4138 = vpop.permute.xlu0 %4137
    %v4140 = vmul.f32 %v4136, %v4138
    %4142 = vrot.lane.b32.xlu0 %v4140, 32
    %v4143 = vpop.permute.xlu0 %4142
    %v4145 = vadd.f32 %v3415, %v4143
    %v4146 = vtanh.pop %v4145
    %v4147 = vsub.f32 1.0, %v4136
    %4149 = vrot.lane.b32.xlu0 %v4146, 112
    %v4150 = vpop.permute.xlu0 %4149
    %v4152 = vmul.f32 %v4147, %v4150
    %v4153 = vmul.f32 %v4136, %v4033
    %v4154 = vadd.f32 %v4152, %v4153
    %v4155 = vpack.c.bf16 %v3608, %v3487
    %v4156 = vpack.c.bf16 %v3850, %v3729
    %v4157 = vpack.c.bf16 %v4092, %v3971
    %v4158 = vpack.c.bf16 %v4033, %v4154
    %v4159 = vpack.c.bf16 %v3791, %v3912
    %v4160 = vpack.c.bf16 %v3549, %v3670
    %4164 = vrot.lane.b32.xlu0 %v4158, 64
    %v4165 = vpop.permute.xlu0 %4164
    %4166 = vrot.lane.b32.xlu0 %v4159, 64
    %v4167 = vpop.permute.xlu0 %4166
    %4168 = vrot.lane.b32.xlu0 %v4160, 64
    %v4169 = vpop.permute.xlu0 %4168
    %v4171 = vsel %vm195, %v4165, 0
    %v4174 = vsel %vm195, %v4167, 0
    %v4177 = vsel %vm195, %v4169, 0
    %4179 = vmatpush.bf16.msra.mxu0 0
    %4180 = vmatpush.bf16.msra.mxu0 0
    %4181 = vmatpush.bf16.msra.mxu0 0
    %4182 = vmatpush.bf16.msra.mxu0 0
    %4183 = vmatpush.bf16.msra.mxu0 0
    %4184 = vmatpush.bf16.msra.mxu0 0
    %4185 = vmatpush.bf16.msra.mxu0 0
    %4186 = vmatpush.bf16.msra.mxu0 %v939
    %4187 = vmatmul.bf16.gmra.mxu0 %v4171
    %v4188 = vpop.f32.mrf.mxu0
    %v4189 = vadd.f32 0.0, %v4188
    %v4190 = vpop.f32.mrf.mxu0
    %v4191 = vadd.f32 0.0, %v4190
    %4192 = vmatmul.bf16.gmra.mxu0 %v4174
    %v4193 = vpop.f32.mrf.mxu0
    %v4194 = vadd.f32 0.0, %v4193
    %v4195 = vpop.f32.mrf.mxu0
    %v4196 = vadd.f32 0.0, %v4195
    %4197 = vmatmul.bf16.gmra.mxu0 %v4177
    %v4198 = vpop.f32.mrf.mxu0
    %v4199 = vadd.f32 0.0, %v4198
    %v4200 = vpop.f32.mrf.mxu0
    %v4201 = vadd.f32 0.0, %v4200
    %4202 = vdwg.mxu0
    %4206 = vrot.lane.b32.xlu0 %v4155, 112
    %v4207 = vpop.permute.xlu0 %4206
    %4208 = vrot.lane.b32.xlu0 %v4156, 112
    %v4209 = vpop.permute.xlu0 %4208
    %4210 = vrot.lane.b32.xlu0 %v4157, 112
    %v4211 = vpop.permute.xlu0 %4210
    %v4213 = vsel %vm195, %v4207, 0
    %v4216 = vsel %vm195, %v4209, 0
    %v4219 = vsel %vm195, %v4211, 0
    %4221 = vmatpush.bf16.msra.mxu0 0
    %4222 = vmatpush.bf16.msra.mxu0 0
    %4223 = vmatpush.bf16.msra.mxu0 0
    %4224 = vmatpush.bf16.msra.mxu0 0
    %4225 = vmatpush.bf16.msra.mxu0 0
    %4226 = vmatpush.bf16.msra.mxu0 0
    %4227 = vmatpush.bf16.msra.mxu0 0
    %4228 = vmatpush.bf16.msra.mxu0 %v987
    %4229 = vmatmul.bf16.gmra.mxu0 %v4213
    %v4230 = vpop.f32.mrf.mxu0
    %v4231 = vadd.f32 %v4189, %v4230
    %v4232 = vpop.f32.mrf.mxu0
    %v4233 = vadd.f32 %v4191, %v4232
    %4234 = vmatmul.bf16.gmra.mxu0 %v4216
    %v4235 = vpop.f32.mrf.mxu0
    %v4236 = vadd.f32 %v4194, %v4235
    %v4237 = vpop.f32.mrf.mxu0
    %v4238 = vadd.f32 %v4196, %v4237
    %4239 = vmatmul.bf16.gmra.mxu0 %v4219
    %v4240 = vpop.f32.mrf.mxu0
    %v4241 = vadd.f32 %v4199, %v4240
    %v4242 = vpop.f32.mrf.mxu0
    %v4243 = vadd.f32 %v4201, %v4242
    %4244 = vdwg.mxu0
    %v4245 = vadd.f32 %v4231, %v1023
    %v4246 = vadd.f32 %v4233, %v1023
    %v4247 = vadd.f32 %v4236, %v1023
    %v4248 = vadd.f32 %v4238, %v1023
    %v4249 = vadd.f32 %v4241, %v1023
    %v4250 = vadd.f32 %v4243, %v1023
    %v4251 = vtanh.pop %v4245
    %v4252 = vtanh.pop %v4246
    %v4253 = vtanh.pop %v4247
    %v4254 = vtanh.pop %v4248
    %v4255 = vtanh.pop %v4249
    %v4256 = vtanh.pop %v4250
    %v4257 = vmul.f32 %v4251, %v1038
    %v4258 = vmul.f32 %v4252, %v1038
    %v4259 = vmul.f32 %v4253, %v1038
    %v4260 = vmul.f32 %v4254, %v1038
    %v4261 = vmul.f32 %v4255, %v1038
    %v4262 = vmul.f32 %v4256, %v1038
    %v4263 = vsel %vm152, %v4257, 0.0
    %4264 = vadd.xlane.f32.xlu0 %v4263
    %v4265 = vpop.xlane.xlu0 %4264
    %v4266 = vsel %vm152, %v4258, 0.0
    %4267 = vadd.xlane.f32.xlu0 %v4266
    %v4268 = vpop.xlane.xlu0 %4267
    %v4269 = vsel %vm152, %v4259, 0.0
    %4270 = vadd.xlane.f32.xlu0 %v4269
    %v4271 = vpop.xlane.xlu0 %4270
    %v4272 = vsel %vm152, %v4260, 0.0
    %4273 = vadd.xlane.f32.xlu0 %v4272
    %v4274 = vpop.xlane.xlu0 %4273
    %v4275 = vsel %vm152, %v4261, 0.0
    %4276 = vadd.xlane.f32.xlu0 %v4275
    %v4277 = vpop.xlane.xlu0 %4276
    %v4278 = vsel %vm152, %v4262, 0.0
    %4279 = vadd.xlane.f32.xlu0 %v4278
    %v4280 = vpop.xlane.xlu0 %4279
    %v4281 = vtanh.pop %v4265
    %v4282 = vtanh.pop %v4268
    %v4283 = vtanh.pop %v4271
    %v4284 = vtanh.pop %v4274
    %v4285 = vtanh.pop %v4277
    %v4286 = vtanh.pop %v4280
    %v4287 = vmul.f32 %v4281, 1.442695
    %v4288 = vpow.pop %v4287
    %v4289 = vmul.f32 %v4282, 1.442695
    %v4290 = vpow.pop %v4289
    %v4291 = vmul.f32 %v4283, 1.442695
    %v4292 = vpow.pop %v4291
    %v4293 = vmul.f32 %v4284, 1.442695
    %v4294 = vpow.pop %v4293
    %v4295 = vmul.f32 %v4285, 1.442695
    %v4296 = vpow.pop %v4295
    %v4297 = vmul.f32 %v4286, 1.442695
    %v4298 = vpow.pop %v4297
    %v4299 = vadd.f32 %v4288, %v4290
    %v4300 = vadd.f32 %v4299, %v4292
    %v4301 = vadd.f32 %v4300, %v4294
    %v4302 = vadd.f32 %v4301, %v4296
    %v4303 = vadd.f32 %v4302, %v4298
    %v4304 = vmul.f32 %v4288, %v3487
    %v4305 = vmul.f32 %v4290, %v3608
    %v4306 = vmul.f32 %v4292, %v3729
    %v4307 = vmul.f32 %v4294, %v3850
    %v4308 = vmul.f32 %v4296, %v3971
    %v4309 = vmul.f32 %v4298, %v4092
    %v4310 = vsel %vm1093, %v4304, 0.0
    %v4311 = vsel %vm1093, %v4305, 0.0
    %v4312 = vadd.f32 %v4310, %v4311
    %v4313 = vsel %vm1093, %v4306, 0.0
    %v4314 = vadd.f32 %v4312, %v4313
    %v4315 = vsel %vm1093, %v4307, 0.0
    %v4316 = vadd.f32 %v4314, %v4315
    %v4317 = vsel %vm1093, %v4308, 0.0
    %v4318 = vadd.f32 %v4316, %v4317
    %v4319 = vsel %vm1093, %v4309, 0.0
    %v4320 = vadd.f32 %v4318, %v4319
    %v4321 = vmul.f32 %v4288, %v4154
    %v4322 = vmul.f32 %v4290, %v4033
    %v4323 = vmul.f32 %v4292, %v3912
    %v4324 = vmul.f32 %v4294, %v3791
    %v4325 = vmul.f32 %v4296, %v3670
    %v4326 = vmul.f32 %v4298, %v3549
    %v4327 = vsel %vm1111, %v4321, 0.0
    %v4328 = vsel %vm1111, %v4322, 0.0
    %v4329 = vadd.f32 %v4327, %v4328
    %v4330 = vsel %vm1111, %v4323, 0.0
    %v4331 = vadd.f32 %v4329, %v4330
    %v4332 = vsel %vm1111, %v4324, 0.0
    %v4333 = vadd.f32 %v4331, %v4332
    %v4334 = vsel %vm1111, %v4325, 0.0
    %v4335 = vadd.f32 %v4333, %v4334
    %v4336 = vsel %vm1111, %v4326, 0.0
    %v4337 = vadd.f32 %v4335, %v4336
    %v4338 = vrcp.pop %v4303
    %v4339 = vmul.f32 %v4320, %v4338
    %v4340 = vmul.f32 %v4337, %v4338
    %v4341 = vpack.c.bf16 %v4339, %v4339
    %v4342 = vpack.c.bf16 %v4340, %v4340
    %4344 = vrot.lane.b32.xlu0 %v4342, 64
    %v4345 = vpop.permute.xlu0 %4344
    %v4347 = vsel %vm195, %v4345, 0
    %4349 = vmatpush.bf16.msra.mxu0 0
    %4350 = vmatpush.bf16.msra.mxu0 0
    %4351 = vmatpush.bf16.msra.mxu0 0
    %4352 = vmatpush.bf16.msra.mxu0 0
    %4353 = vmatpush.bf16.msra.mxu0 0
    %4354 = vmatpush.bf16.msra.mxu0 0
    %4355 = vmatpush.bf16.msra.mxu0 0
    %4356 = vmatpush.bf16.msra.mxu0 %v1135
    %4357 = vmatmul.bf16.gmra.mxu0 %v4347
    %v4358 = vpop.f32.mrf.mxu0
    %v4359 = vadd.f32 0.0, %v4358
    %v4360 = vpop.f32.mrf.mxu0
    %4361 = vdwg.mxu0
    %4363 = vrot.lane.b32.xlu0 %v4341, 112
    %v4364 = vpop.permute.xlu0 %4363
    %v4366 = vsel %vm195, %v4364, 0
    %4368 = vmatpush.bf16.msra.mxu0 0
    %4369 = vmatpush.bf16.msra.mxu0 0
    %4370 = vmatpush.bf16.msra.mxu0 0
    %4371 = vmatpush.bf16.msra.mxu0 0
    %4372 = vmatpush.bf16.msra.mxu0 0
    %4373 = vmatpush.bf16.msra.mxu0 0
    %4374 = vmatpush.bf16.msra.mxu0 0
    %4375 = vmatpush.bf16.msra.mxu0 %v1160
    %4376 = vmatmul.bf16.gmra.mxu0 %v4366
    %v4377 = vpop.f32.mrf.mxu0
    %v4378 = vadd.f32 %v4359, %v4377
    %v4379 = vpop.f32.mrf.mxu0
    %4380 = vdwg.mxu0
    %v4381 = vadd.f32 %v4378, %v1179
    %v4382 = vpack.c.bf16 %v3374, %v3374
    %4384 = vrot.lane.b32.xlu0 %v4382, 112
    %v4385 = vpop.permute.xlu0 %4384
    %v4387 = vsel %vm195, %v4385, 0
    %4389 = vmatpush.bf16.msra.mxu0 0
    %4390 = vmatpush.bf16.msra.mxu0 0
    %4391 = vmatpush.bf16.msra.mxu0 0
    %4392 = vmatpush.bf16.msra.mxu0 0
    %4393 = vmatpush.bf16.msra.mxu0 0
    %4394 = vmatpush.bf16.msra.mxu0 0
    %4395 = vmatpush.bf16.msra.mxu0 0
    %4396 = vmatpush.bf16.msra.mxu0 %v1189
    %4397 = vmatmul.bf16.gmra.mxu0 %v4387
    %v4398 = vpop.f32.mrf.mxu0
    %v4399 = vadd.f32 %v1183, %v4398
    %v4400 = vpop.f32.mrf.mxu0
    %4401 = vdwg.mxu0
    %v4402 = vadd.f32 %v4381, %v4399
    %v4403 = vxor.u32 %v4402, 2147483648
    %v4404 = vmul.f32 %v4403, 1.442695
    %v4405 = vpow.pop %v4404
    %v4406 = vadd.f32 %v4405, 1.0
    %v4407 = vrcp.pop %v4406
    %v4408 = vmul.f32 %v4406, %v4407
    %v4409 = vsub.f32 1.0, %v4408
    %v4410 = vmul.f32 %v4407, %v4409
    %v4411 = vadd.f32 %v4407, %v4410
    %vm4412 = vweird.f32 %v4406
    %vm4413 = vweird.f32 %v4407
    %vm4414 = vmor %vm4412, %vm4413
    %v4415 = vsel %vm4414, %v4407, %v4411
    %v4416 = vand.u32 2147483647, %v4406
    %vm4417 = vcmp.eq.f32.partialorder %v4416, 8.507059e+37
    %v4418 = vand.u32 %v4406, 2147483648
    %v4419 = vor.u32 1.1754944e-38, %v4418
    %v4420 = vsel %vm4417, %v4419, %v4415
    %v4421 = vmul.f32 1.0, %v4420
    %4423 = vrot.lane.b32.xlu0 %v4399, 96
    %v4424 = vpop.permute.xlu0 %4423
    %v4426 = vmul.f32 %v4421, %v4424
    %4428 = vrot.lane.b32.xlu0 %v4426, 32
    %v4429 = vpop.permute.xlu0 %4428
    %v4431 = vadd.f32 %v4381, %v4429
    %v4432 = vtanh.pop %v4431
    %v4433 = vsub.f32 1.0, %v4421
    %4435 = vrot.lane.b32.xlu0 %v4432, 112
    %v4436 = vpop.permute.xlu0 %4435
    %v4438 = vmul.f32 %v4433, %v4436
    %v4439 = vmul.f32 %v4421, %v3374
    %v4440 = vadd.f32 %v4438, %v4439
    %v4442 = vperm.slane %v100, 0
    %v4446 = vunpack.c.l.b16 %v98
    %v4447 = vunpack.c.l.b16 %v99
    %v4448 = vpack.c.b16 %v4447, %v4446
    %4450 = vmatpush.bf16.msra.mxu0 0
    %4451 = vmatpush.bf16.msra.mxu0 0
    %4452 = vmatpush.bf16.msra.mxu0 0
    %4453 = vmatpush.bf16.msra.mxu0 0
    %4454 = vmatpush.bf16.msra.mxu0 0
    %4455 = vmatpush.bf16.msra.mxu0 0
    %4456 = vmatpush.bf16.msra.mxu0 0
    %4457 = vmatpush.bf16.msra.mxu0 %v4448
    %4458 = vmatmul.bf16.gmra.mxu0 %v197
    %v4459 = vpop.f32.mrf.mxu0
    %v4460 = vadd.f32 %v4442, %v4459
    %v4461 = vpop.f32.mrf.mxu0
    %4462 = vdwg.mxu0
    %4464 = vrot.lane.b32.xlu0 %v4460, 48
    %v4465 = vpop.permute.xlu0 %4464
    %v4467 = vadd.f32 %v4381, %v4465
    %v4468 = vxor.u32 %v4467, 2147483648
    %v4469 = vmul.f32 %v4468, 1.442695
    %v4470 = vpow.pop %v4469
    %v4471 = vadd.f32 %v4470, 1.0
    %v4472 = vrcp.pop %v4471
    %v4473 = vmul.f32 %v4471, %v4472
    %v4474 = vsub.f32 1.0, %v4473
    %v4475 = vmul.f32 %v4472, %v4474
    %v4476 = vadd.f32 %v4472, %v4475
    %vm4477 = vweird.f32 %v4471
    %vm4478 = vweird.f32 %v4472
    %vm4479 = vmor %vm4477, %vm4478
    %v4480 = vsel %vm4479, %v4472, %v4476
    %v4481 = vand.u32 2147483647, %v4471
    %vm4482 = vcmp.eq.f32.partialorder %v4481, 8.507059e+37
    %v4483 = vand.u32 %v4471, 2147483648
    %v4484 = vor.u32 1.1754944e-38, %v4483
    %v4485 = vsel %vm4482, %v4484, %v4480
    %v4486 = vmul.f32 1.0, %v4485
    %4487 = vrot.lane.b32.xlu0 %v4460, 16
    %v4488 = vpop.permute.xlu0 %4487
    %v4490 = vmul.f32 %v4486, %v4488
    %4492 = vrot.lane.b32.xlu0 %v4490, 32
    %v4493 = vpop.permute.xlu0 %4492
    %v4495 = vadd.f32 %v4381, %v4493
    %v4496 = vtanh.pop %v4495
    %v4497 = vsub.f32 1.0, %v4486
    %4499 = vrot.lane.b32.xlu0 %v4496, 112
    %v4500 = vpop.permute.xlu0 %4499
    %v4502 = vmul.f32 %v4497, %v4500
    %v4503 = vmul.f32 %v4486, 0.0
    %v4504 = vadd.f32 %v4502, %v4503
    %v4505 = vpack.c.bf16 %v4504, %v4504
    %4507 = vrot.lane.b32.xlu0 %v4505, 64
    %v4508 = vpop.permute.xlu0 %4507
    %v4510 = vsel %vm195, %v4508, 0
    %4512 = vmatpush.bf16.msra.mxu0 0
    %4513 = vmatpush.bf16.msra.mxu0 0
    %4514 = vmatpush.bf16.msra.mxu0 0
    %4515 = vmatpush.bf16.msra.mxu0 0
    %4516 = vmatpush.bf16.msra.mxu0 0
    %4517 = vmatpush.bf16.msra.mxu0 0
    %4518 = vmatpush.bf16.msra.mxu0 0
    %4519 = vmatpush.bf16.msra.mxu0 %v4448
    %4520 = vmatmul.bf16.gmra.mxu0 %v4510
    %v4521 = vpop.f32.mrf.mxu0
    %v4522 = vadd.f32 %v4442, %v4521
    %v4523 = vpop.f32.mrf.mxu0
    %4524 = vdwg.mxu0
    %4526 = vrot.lane.b32.xlu0 %v4522, 48
    %v4527 = vpop.permute.xlu0 %4526
    %v4529 = vadd.f32 %v3315, %v4527
    %v4530 = vxor.u32 %v4529, 2147483648
    %v4531 = vmul.f32 %v4530, 1.442695
    %v4532 = vpow.pop %v4531
    %v4533 = vadd.f32 %v4532, 1.0
    %v4534 = vrcp.pop %v4533
    %v4535 = vmul.f32 %v4533, %v4534
    %v4536 = vsub.f32 1.0, %v4535
    %v4537 = vmul.f32 %v4534, %v4536
    %v4538 = vadd.f32 %v4534, %v4537
    %vm4539 = vweird.f32 %v4533
    %vm4540 = vweird.f32 %v4534
    %vm4541 = vmor %vm4539, %vm4540
    %v4542 = vsel %vm4541, %v4534, %v4538
    %v4543 = vand.u32 2147483647, %v4533
    %vm4544 = vcmp.eq.f32.partialorder %v4543, 8.507059e+37
    %v4545 = vand.u32 %v4533, 2147483648
    %v4546 = vor.u32 1.1754944e-38, %v4545
    %v4547 = vsel %vm4544, %v4546, %v4542
    %v4548 = vmul.f32 1.0, %v4547
    %4549 = vrot.lane.b32.xlu0 %v4522, 16
    %v4550 = vpop.permute.xlu0 %4549
    %v4552 = vmul.f32 %v4548, %v4550
    %4554 = vrot.lane.b32.xlu0 %v4552, 32
    %v4555 = vpop.permute.xlu0 %4554
    %v4557 = vadd.f32 %v3315, %v4555
    %v4558 = vtanh.pop %v4557
    %v4559 = vsub.f32 1.0, %v4548
    %4561 = vrot.lane.b32.xlu0 %v4558, 112
    %v4562 = vpop.permute.xlu0 %4561
    %v4564 = vmul.f32 %v4559, %v4562
    %v4565 = vmul.f32 %v4548, %v4504
    %v4566 = vadd.f32 %v4564, %v4565
    %v4567 = vpack.c.bf16 %v4566, %v4566
    %4569 = vrot.lane.b32.xlu0 %v4567, 64
    %v4570 = vpop.permute.xlu0 %4569
    %v4572 = vsel %vm195, %v4570, 0
    %4574 = vmatpush.bf16.msra.mxu0 0
    %4575 = vmatpush.bf16.msra.mxu0 0
    %4576 = vmatpush.bf16.msra.mxu0 0
    %4577 = vmatpush.bf16.msra.mxu0 0
    %4578 = vmatpush.bf16.msra.mxu0 0
    %4579 = vmatpush.bf16.msra.mxu0 0
    %4580 = vmatpush.bf16.msra.mxu0 0
    %4581 = vmatpush.bf16.msra.mxu0 %v4448
    %4582 = vmatmul.bf16.gmra.mxu0 %v4572
    %v4583 = vpop.f32.mrf.mxu0
    %v4584 = vadd.f32 %v4442, %v4583
    %v4585 = vpop.f32.mrf.mxu0
    %4586 = vdwg.mxu0
    %4588 = vrot.lane.b32.xlu0 %v4584, 48
    %v4589 = vpop.permute.xlu0 %4588
    %v4591 = vadd.f32 %v2249, %v4589
    %v4592 = vxor.u32 %v4591, 2147483648
    %v4593 = vmul.f32 %v4592, 1.442695
    %v4594 = vpow.pop %v4593
    %v4595 = vadd.f32 %v4594, 1.0
    %v4596 = vrcp.pop %v4595
    %v4597 = vmul.f32 %v4595, %v4596
    %v4598 = vsub.f32 1.0, %v4597
    %v4599 = vmul.f32 %v4596, %v4598
    %v4600 = vadd.f32 %v4596, %v4599
    %vm4601 = vweird.f32 %v4595
    %vm4602 = vweird.f32 %v4596
    %vm4603 = vmor %vm4601, %vm4602
    %v4604 = vsel %vm4603, %v4596, %v4600
    %v4605 = vand.u32 2147483647, %v4595
    %vm4606 = vcmp.eq.f32.partialorder %v4605, 8.507059e+37
    %v4607 = vand.u32 %v4595, 2147483648
    %v4608 = vor.u32 1.1754944e-38, %v4607
    %v4609 = vsel %vm4606, %v4608, %v4604
    %v4610 = vmul.f32 1.0, %v4609
    %4611 = vrot.lane.b32.xlu0 %v4584, 16
    %v4612 = vpop.permute.xlu0 %4611
    %v4614 = vmul.f32 %v4610, %v4612
    %4616 = vrot.lane.b32.xlu0 %v4614, 32
    %v4617 = vpop.permute.xlu0 %4616
    %v4619 = vadd.f32 %v2249, %v4617
    %v4620 = vtanh.pop %v4619
    %v4621 = vsub.f32 1.0, %v4610
    %4623 = vrot.lane.b32.xlu0 %v4620, 112
    %v4624 = vpop.permute.xlu0 %4623
    %v4626 = vmul.f32 %v4621, %v4624
    %v4627 = vmul.f32 %v4610, %v4566
    %v4628 = vadd.f32 %v4626, %v4627
    %v4629 = vpack.c.bf16 %v4628, %v4628
    %4631 = vrot.lane.b32.xlu0 %v4629, 64
    %v4632 = vpop.permute.xlu0 %4631
    %v4634 = vsel %vm195, %v4632, 0
    %4636 = vmatpush.bf16.msra.mxu0 0
    %4637 = vmatpush.bf16.msra.mxu0 0
    %4638 = vmatpush.bf16.msra.mxu0 0
    %4639 = vmatpush.bf16.msra.mxu0 0
    %4640 = vmatpush.bf16.msra.mxu0 0
    %4641 = vmatpush.bf16.msra.mxu0 0
    %4642 = vmatpush.bf16.msra.mxu0 0
    %4643 = vmatpush.bf16.msra.mxu0 %v4448
    %4644 = vmatmul.bf16.gmra.mxu0 %v4634
    %v4645 = vpop.f32.mrf.mxu0
    %v4646 = vadd.f32 %v4442, %v4645
    %v4647 = vpop.f32.mrf.mxu0
    %4648 = vdwg.mxu0
    %4650 = vrot.lane.b32.xlu0 %v4646, 48
    %v4651 = vpop.permute.xlu0 %4650
    %v4653 = vadd.f32 %v1181, %v4651
    %v4654 = vxor.u32 %v4653, 2147483648
    %v4655 = vmul.f32 %v4654, 1.442695
    %v4656 = vpow.pop %v4655
    %v4657 = vadd.f32 %v4656, 1.0
    %v4658 = vrcp.pop %v4657
    %v4659 = vmul.f32 %v4657, %v4658
    %v4660 = vsub.f32 1.0, %v4659
    %v4661 = vmul.f32 %v4658, %v4660
    %v4662 = vadd.f32 %v4658, %v4661
    %vm4663 = vweird.f32 %v4657
    %vm4664 = vweird.f32 %v4658
    %vm4665 = vmor %vm4663, %vm4664
    %v4666 = vsel %vm4665, %v4658, %v4662
    %v4667 = vand.u32 2147483647, %v4657
    %vm4668 = vcmp.eq.f32.partialorder %v4667, 8.507059e+37
    %v4669 = vand.u32 %v4657, 2147483648
    %v4670 = vor.u32 1.1754944e-38, %v4669
    %v4671 = vsel %vm4668, %v4670, %v4666
    %v4672 = vmul.f32 1.0, %v4671
    %4673 = vrot.lane.b32.xlu0 %v4646, 16
    %v4674 = vpop.permute.xlu0 %4673
    %v4676 = vmul.f32 %v4672, %v4674
    %4678 = vrot.lane.b32.xlu0 %v4676, 32
    %v4679 = vpop.permute.xlu0 %4678
    %v4681 = vadd.f32 %v1181, %v4679
    %v4682 = vtanh.pop %v4681
    %v4683 = vsub.f32 1.0, %v4672
    %4685 = vrot.lane.b32.xlu0 %v4682, 112
    %v4686 = vpop.permute.xlu0 %4685
    %v4688 = vmul.f32 %v4683, %v4686
    %v4689 = vmul.f32 %v4672, %v4628
    %v4690 = vadd.f32 %v4688, %v4689
    %v4691 = vpack.c.bf16 %v2308, %v1242
    %v4692 = vpack.c.bf16 %v4440, %v3374
    %v4693 = vpack.c.bf16 %v4628, %v4690
    %v4694 = vpack.c.bf16 %v4504, %v4566
    %4697 = vrot.lane.b32.xlu0 %v4693, 64
    %v4698 = vpop.permute.xlu0 %4697
    %4699 = vrot.lane.b32.xlu0 %v4694, 64
    %v4700 = vpop.permute.xlu0 %4699
    %v4703 = vunpack.c.l.b16 %v103
    %v4704 = vunpack.c.l.b16 %v104
    %v4705 = vpack.c.b16 %v4704, %v4703
    %v4708 = vsel %vm195, %v4698, 0
    %v4711 = vsel %vm195, %v4700, 0
    %4713 = vmatpush.bf16.msra.mxu0 0
    %4714 = vmatpush.bf16.msra.mxu0 0
    %4715 = vmatpush.bf16.msra.mxu0 0
    %4716 = vmatpush.bf16.msra.mxu0 0
    %4717 = vmatpush.bf16.msra.mxu0 0
    %4718 = vmatpush.bf16.msra.mxu0 0
    %4719 = vmatpush.bf16.msra.mxu0 0
    %4720 = vmatpush.bf16.msra.mxu0 %v4705
    %4721 = vmatmul.bf16.gmra.mxu0 %v4708
    %v4722 = vpop.f32.mrf.mxu0
    %v4723 = vadd.f32 0.0, %v4722
    %v4724 = vpop.f32.mrf.mxu0
    %v4725 = vadd.f32 0.0, %v4724
    %4726 = vmatmul.bf16.gmra.mxu0 %v4711
    %v4727 = vpop.f32.mrf.mxu0
    %v4728 = vadd.f32 0.0, %v4727
    %v4729 = vpop.f32.mrf.mxu0
    %v4730 = vadd.f32 0.0, %v4729
    %4731 = vdwg.mxu0
    %4734 = vrot.lane.b32.xlu0 %v4691, 112
    %v4735 = vpop.permute.xlu0 %4734
    %4736 = vrot.lane.b32.xlu0 %v4692, 112
    %v4737 = vpop.permute.xlu0 %4736
    %v4740 = vunpack.c.l.b16 %v101
    %v4741 = vunpack.c.l.b16 %v102
    %v4742 = vpack.c.b16 %v4741, %v4740
    %v4745 = vsel %vm195, %v4735, 0
    %v4748 = vsel %vm195, %v4737, 0
    %4750 = vmatpush.bf16.msra.mxu0 0
    %4751 = vmatpush.bf16.msra.mxu0 0
    %4752 = vmatpush.bf16.msra.mxu0 0
    %4753 = vmatpush.bf16.msra.mxu0 0
    %4754 = vmatpush.bf16.msra.mxu0 0
    %4755 = vmatpush.bf16.msra.mxu0 0
    %4756 = vmatpush.bf16.msra.mxu0 0
    %4757 = vmatpush.bf16.msra.mxu0 %v4742
    %4758 = vmatmul.bf16.gmra.mxu0 %v4745
    %v4759 = vpop.f32.mrf.mxu0
    %v4760 = vadd.f32 %v4723, %v4759
    %v4761 = vpop.f32.mrf.mxu0
    %v4762 = vadd.f32 %v4725, %v4761
    %4763 = vmatmul.bf16.gmra.mxu0 %v4748
    %v4764 = vpop.f32.mrf.mxu0
    %v4765 = vadd.f32 %v4728, %v4764
    %v4766 = vpop.f32.mrf.mxu0
    %v4767 = vadd.f32 %v4730, %v4766
    %4768 = vdwg.mxu0
    %v4770 = vperm.slane %v105, 0
    %v4772 = vadd.f32 %v4760, %v4770
    %v4773 = vadd.f32 %v4762, %v4770
    %v4774 = vadd.f32 %v4765, %v4770
    %v4775 = vadd.f32 %v4767, %v4770
    %v4776 = vtanh.pop %v4772
    %v4777 = vtanh.pop %v4773
    %v4778 = vtanh.pop %v4774
    %v4779 = vtanh.pop %v4775
    %v4781 = vperm.slane %v106, 0
    %v4783 = vmul.f32 %v4776, %v4781
    %v4784 = vmul.f32 %v4777, %v4781
    %v4785 = vmul.f32 %v4778, %v4781
    %v4786 = vmul.f32 %v4779, %v4781
    %v4787 = vsel %vm152, %v4783, 0.0
    %4788 = vadd.xlane.f32.xlu0 %v4787
    %v4789 = vpop.xlane.xlu0 %4788
    %v4790 = vsel %vm152, %v4784, 0.0
    %4791 = vadd.xlane.f32.xlu0 %v4790
    %v4792 = vpop.xlane.xlu0 %4791
    %v4793 = vsel %vm152, %v4785, 0.0
    %4794 = vadd.xlane.f32.xlu0 %v4793
    %v4795 = vpop.xlane.xlu0 %4794
    %v4796 = vsel %vm152, %v4786, 0.0
    %4797 = vadd.xlane.f32.xlu0 %v4796
    %v4798 = vpop.xlane.xlu0 %4797
    %v4799 = vtanh.pop %v4789
    %v4800 = vtanh.pop %v4792
    %v4801 = vtanh.pop %v4795
    %v4802 = vtanh.pop %v4798
    %v4803 = vmul.f32 %v4799, 1.442695
    %v4804 = vpow.pop %v4803
    %v4805 = vmul.f32 %v4800, 1.442695
    %v4806 = vpow.pop %v4805
    %v4807 = vmul.f32 %v4801, 1.442695
    %v4808 = vpow.pop %v4807
    %v4809 = vmul.f32 %v4802, 1.442695
    %v4810 = vpow.pop %v4809
    %v4811 = vadd.f32 %v4804, %v4806
    %v4812 = vadd.f32 %v4811, %v4808
    %v4813 = vadd.f32 %v4812, %v4810
    %v4814 = vmul.f32 %v4804, %v1242
    %v4815 = vmul.f32 %v4806, %v2308
    %v4816 = vmul.f32 %v4808, %v3374
    %v4817 = vmul.f32 %v4810, %v4440
    %v4818 = vsel %vm1093, %v4814, 0.0
    %v4819 = vsel %vm1093, %v4815, 0.0
    %v4820 = vadd.f32 %v4818, %v4819
    %v4821 = vsel %vm1093, %v4816, 0.0
    %v4822 = vadd.f32 %v4820, %v4821
    %v4823 = vsel %vm1093, %v4817, 0.0
    %v4824 = vadd.f32 %v4822, %v4823
    %v4825 = vmul.f32 %v4804, %v4690
    %v4826 = vmul.f32 %v4806, %v4628
    %v4827 = vmul.f32 %v4808, %v4566
    %v4828 = vmul.f32 %v4810, %v4504
    %v4829 = vsel %vm1111, %v4825, 0.0
    %v4830 = vsel %vm1111, %v4826, 0.0
    %v4831 = vadd.f32 %v4829, %v4830
    %v4832 = vsel %vm1111, %v4827, 0.0
    %v4833 = vadd.f32 %v4831, %v4832
    %v4834 = vsel %vm1111, %v4828, 0.0
    %v4835 = vadd.f32 %v4833, %v4834
    %v4836 = vrcp.pop %v4813
    %v4837 = vmul.f32 %v4824, %v4836
    %v4838 = vmul.f32 %v4835, %v4836
    %v4839 = vpack.c.bf16 %v4837, %v4837
    %v4840 = vpack.c.bf16 %v4838, %v4838
    %4842 = vrot.lane.b32.xlu0 %v4840, 64
    %v4843 = vpop.permute.xlu0 %4842
    %v4846 = vunpack.c.l.b16 %v109
    %v4847 = vunpack.c.l.b16 %v110
    %v4848 = vpack.c.b16 %v4847, %v4846
    %v4851 = vsel %vm195, %v4843, 0
    %4853 = vmatpush.bf16.msra.mxu0 0
    %4854 = vmatpush.bf16.msra.mxu0 0
    %4855 = vmatpush.bf16.msra.mxu0 0
    %4856 = vmatpush.bf16.msra.mxu0 0
    %4857 = vmatpush.bf16.msra.mxu0 0
    %4858 = vmatpush.bf16.msra.mxu0 0
    %4859 = vmatpush.bf16.msra.mxu0 0
    %4860 = vmatpush.bf16.msra.mxu0 %v4848
    %4861 = vmatmul.bf16.gmra.mxu0 %v4851
    %v4862 = vpop.f32.mrf.mxu0
    %v4863 = vadd.f32 0.0, %v4862
    %v4864 = vpop.f32.mrf.mxu0
    %4865 = vdwg.mxu0
    %4867 = vrot.lane.b32.xlu0 %v4839, 112
    %v4868 = vpop.permute.xlu0 %4867
    %v4871 = vunpack.c.l.b16 %v107
    %v4872 = vunpack.c.l.b16 %v108
    %v4873 = vpack.c.b16 %v4872, %v4871
    %v4876 = vsel %vm195, %v4868, 0
    %4878 = vmatpush.bf16.msra.mxu0 0
    %4879 = vmatpush.bf16.msra.mxu0 0
    %4880 = vmatpush.bf16.msra.mxu0 0
    %4881 = vmatpush.bf16.msra.mxu0 0
    %4882 = vmatpush.bf16.msra.mxu0 0
    %4883 = vmatpush.bf16.msra.mxu0 0
    %4884 = vmatpush.bf16.msra.mxu0 0
    %4885 = vmatpush.bf16.msra.mxu0 %v4873
    %4886 = vmatmul.bf16.gmra.mxu0 %v4876
    %v4887 = vpop.f32.mrf.mxu0
    %v4888 = vadd.f32 %v4863, %v4887
    %v4889 = vpop.f32.mrf.mxu0
    %4890 = vdwg.mxu0
    %v4891 = vld [vmem:[%s1] sm:$0xff]
    %v4892 = vpack.c.bf16 %v4891, %v4891
    %v4897 = vunpack.c.l.b16 %v111
    %v4898 = vunpack.c.l.b16 %v112
    %v4899 = vunpack.c.l.b16 %v113
    %v4900 = vunpack.c.l.b16 %v114
    %v4901 = vpack.c.b16 %v4898, %v4897
    %v4902 = vpack.c.b16 %v4900, %v4899
    %vm4904 = vcmask 252928
    %v4906 = vsel %vm4904, %v4892, 0
    %vm4908 = vcmask 1046528
    %vm4909 = vcmask 1047552
    %v4910 = vsel %vm4908, 4294967295, 65535
    %v4911 = vsel %vm4909, %v4910, 0
    %v4913 = vand.u32 %v4902, %v4911
    %4915 = vmatpush.bf16.msra.mxu0 0
    %4916 = vmatpush.bf16.msra.mxu0 0
    %4917 = vmatpush.bf16.msra.mxu0 0
    %4918 = vmatpush.bf16.msra.mxu0 0
    %4919 = vmatpush.bf16.msra.mxu0 0
    %4920 = vmatpush.bf16.msra.mxu0 0
    %4921 = vmatpush.bf16.msra.mxu0 %v4913
    %4922 = vmatpush.bf16.msra.mxu0 %v4901
    %4923 = vmatmul.bf16.gmra.mxu0 %v4906
    %v4924 = vpop.f32.mrf.mxu0
    %v4925 = vadd.f32 0.0, %v4924
    %v4926 = vpop.f32.mrf.mxu0
    %4927 = vdwg.mxu0
    %v4928 = vadd.f32 %v4888, %v4925
    %v4930 = vperm.slane %v115, 0
    %v4932 = vadd.f32 %v4928, %v4930
    %vm4933 = vcmask 39936
    %4934 = vst.msk [vmem:[#allocation2] sm:$0xff] %vm4933, %v4932
    // Predicated region
    $region90: #{tpu_custom_call.1} parent=1 // pred_check
      _
    $region91: #{tpu_custom_call.1} parent=1 // pred_check_branch
      %4936 = sbr.rel (0) target = $region93
    $region92: #{tpu_custom_call.1} parent=1 // pred_region
      %4938 = vsyncadd [#allocation3], 0
      %s4940 = sshll.u32 [#allocation2], 4
      %s4941 = int_to_ptr.vmem [resolvable:$true] %s4940
      %s4942 = sshll.u32 %s22, 4
      %s4943 = int_to_ptr.hbm [resolvable:$true] %s4942
      %4945 = dma.vmem_to_hbm [thread:$0]  %s4941, 128, %s4943, [#allocation3]
    $region93: #{tpu_custom_call.1} parent=1 // pred_fallthru
      _
    // Predicated region
    $region94: #{tpu_custom_call.1} parent=1 // pred_check
      _
    $region95: #{tpu_custom_call.1} parent=1 // pred_check_branch
      %4947 = sbr.rel (0) target = $region97
    $region96: #{tpu_custom_call.1} parent=1 // pred_region
      %4949 = dma.done [#allocation3], 128
    $region97: #{tpu_custom_call.1} parent=1 // pred_fallthru
      _
    %4950 = vsyncpa [#allocation3], 1

</llo_original>
